<compile_context>
chip_gen: v7x
topology: tpu7x:2x2x1
jax: 0.10.0
libtpu: 0.0.40
codegen_flags: <defaults>
</compile_context>

<pallas_src>
import jax
import jax.numpy as jnp
from jax import lax
from jax.experimental import pallas as pl
from jax.experimental.pallas import tpu as pltpu

# TODO(synk): len(targets) is undefined in the original script; fixed to 5 here.
NUM_TARGETS = 5
LEAKY_SLOPE = 0.01       # nn.LeakyReLU default negative_slope
BN_EPS = 1e-5            # nn.BatchNorm3d default eps

# Static geometry.  Input (N, 1, 9, 21, 24) is chosen so pool2's output
# flattens to 7*32 = 224, matching nn.Linear(7*32, len(targets)).
D_IN, H_IN, W_IN = 9, 21, 24
WPAD = W_IN + 2                          # 26: conv1 W after padding
KD1, KH1, KW1 = 4, 6, 6                  # conv1 kernel
DO1, HO1, WO1 = 8, 18, 21                # conv1 output spatial dims
DP1, HP1, WP1 = 4, 9, 7                  # pool1 (2,2,3) output spatial dims
C1 = 16
KD2, KH2 = 4, 10                         # conv2 kernel (kw = 1)
DO2, HO2, WO2 = 3, 2, 7                  # conv2 output spatial dims
C2 = 32
K1 = KD1 * KH1 * WPAD                    # 624   conv1 contraction: (kd, kh, wi)
COLS1 = 3 * WP1 * C1                     # 336   conv1 output cols:  (r, wp, co)
K2 = KD2 * KH2 * WP1 * C1                # 4480  conv2 contraction: (kd, kh, wp, ci)
COLS2 = WO2 * C2                         # 224   conv2 output cols:  (wo2, co2)


# ------------------------------ fused Pallas kernel --------------------------

def _make_fused_kernel(n_batch):
    rb = n_batch * DP1 * HP1             # rows per (a,b) block after conv1 (72 for N=2)
    cb = WP1 * C1                        # cols per r block (112)

    def kernel(lhs1_ref, w1_ref, sh1_ref, w2_ref, sh2_ref, wl_ref, bl_ref, o_ref):
        # ---- conv1 (+ folded BN1) + LeakyReLU: one lane-dense MXU matmul ----
        z1 = jnp.dot(lhs1_ref[...], w1_ref[...],
                     preferred_element_type=jnp.float32) + sh1_ref[...]
        z1 = jnp.where(z1 >= 0.0, z1, LEAKY_SLOPE * z1)        # (4*rb, 336)

        # ---- pool1: max over (do%2, ho%2) = 4 contiguous row blocks,
        #      then over (wo%3) = 3 contiguous column blocks -----------------
        y = jnp.maximum(jnp.maximum(z1[0 * rb:1 * rb, :], z1[1 * rb:2 * rb, :]),
                        jnp.maximum(z1[2 * rb:3 * rb, :], z1[3 * rb:4 * rb, :]))
        p1 = jnp.maximum(jnp.maximum(y[:, 0:cb], y[:, cb:2 * cb]),
                         y[:, 2 * cb:3 * cb])                  # (rb, 112)
        # p1 rows = (n, dp, hp), cols = (wp, ci)

        # ---- build conv2 operand in VMEM: rows (n, do2, ho2),
        #      cols (kd, kh, wp, ci); d/h padding handled with zero rows ------
        zero1 = jnp.zeros((1, cb), jnp.float32)
        zero2 = jnp.zeros((2, cb), jnp.float32)
        pieces = []
        for kd in range(KD2):
            for kh in range(KH2):
                blocks = []
                for n in range(n_batch):
                    for do2 in range(DO2):
                        dsrc = do2 + kd - 1                    # unpadded dp index
                        if dsrc < 0 or dsrc >= DP1:
                            blocks.append(zero2)
                            continue
                        base = (n * DP1 + dsrc) * HP1
                        if kh == 0:                             # hp = -1 is padding
                            blocks.append(jnp.concatenate(
                                [zero1, p1[base:base + 1, :]], axis=0))
                        elif kh == KH2 - 1:                     # hp = HP1 is padding
                            blocks.append(jnp.concatenate(
                                [p1[base + HP1 - 1:base + HP1, :], zero1], axis=0))
                        else:
                            blocks.append(p1[base + kh - 1:base + kh + 1, :])
                pieces.append(jnp.concatenate(blocks, axis=0))  # (2*N*DO2, 112)
        lhs2 = jnp.concatenate(pieces, axis=1)                  # (6N, 4480)

        # ---- conv2 (+ folded BN2) + LeakyReLU -------------------------------
        z2 = jnp.dot(lhs2.astype(w2_ref.dtype), w2_ref[...],
                     preferred_element_type=jnp.float32) + sh2_ref[...]
        z2 = jnp.where(z2 >= 0.0, z2, LEAKY_SLOPE * z2)         # (6N, 224)

        # ---- pool2 (3,2,1): max over the 6 (do2, ho2) rows of each sample ---
        p2 = jnp.concatenate(
            [jnp.max(z2[n * 6:(n + 1) * 6, :], axis=0, keepdims=True)
             for n in range(n_batch)], axis=0)                  # (N, 224)

        # ---- flatten (handled by column ordering of wl) + Linear head -------
        o_ref[...] = (jnp.dot(p2, wl_ref[...],
                              preferred_element_type=jnp.float32) + bl_ref[...])

    return kernel


# ------------------------------ parameter folding ----------------------------

def fold_params(params):
    """One-time transform of PyTorch-layout parameters into the lane-dense
    matmul operands consumed by the fused kernel (BN scales folded in)."""
    s1 = params["bn1_gamma"] / jnp.sqrt(params["bn1_var"] + BN_EPS)       # (16,)
    sh1 = (params["b1"] - params["bn1_mean"]) * s1 + params["bn1_beta"]   # (16,)
    s2 = params["bn2_gamma"] / jnp.sqrt(params["bn2_var"] + BN_EPS)       # (32,)
    sh2 = (params["b2"] - params["bn2_mean"]) * s2 + params["bn2_beta"]   # (32,)

    # conv1: fold BN scale, then Toeplitz-expand along W so conv1 is a single
    # (288,624)@(624,336) matmul whose output columns are ordered (r, wp, co).
    w1f = params["w1"] * s1[:, None, None, None, None]                    # (16,1,4,6,6)
    w1p = w1f[:, 0].transpose(1, 2, 3, 0)                                 # (kd,kh,kw,co)
    wi = jnp.arange(WPAD)
    wo = jnp.arange(WO1)
    kw = jnp.arange(KW1)
    sel = (wi[:, None, None] == wo[None, :, None] + kw[None, None, :])
    sel = sel.astype(jnp.float32)                                         # (26,21,6)
    w1big = jnp.einsum("iwk,dhkc->dhiwc", sel, w1p)                       # (4,6,26,21,16)
    w1big = w1big.reshape(KD1, KH1, WPAD, WP1, 3, C1)                     # wo -> (wp, r)
    w1big = w1big.transpose(0, 1, 2, 4, 3, 5).reshape(K1, COLS1)          # (624, 336)

    # conv2: fold BN scale, expand the kw==1 conv into a block-diagonal
    # (wp == wo2) weight so conv2 is also a single matmul.
    w2f = params["w2"] * s2[:, None, None, None, None]                    # (32,16,4,10,1)
    w2r = w2f[:, :, :, :, 0].transpose(2, 3, 1, 0)                        # (kd,kh,ci,co)
    w2big = jnp.einsum("dhic,wo->dhwioc", w2r, jnp.eye(WO2, dtype=jnp.float32))
    w2big = w2big.reshape(K2, COLS2)                                      # (4480, 224)

    # Linear: re-order input rows from PyTorch's (co2, wo2) flatten order to
    # the kernel's (wo2, co2) column order.
    wl = params["wl"].reshape(NUM_TARGETS, C2, WO2)
    wl = wl.transpose(2, 1, 0).reshape(WO2 * C2, NUM_TARGETS)             # (224, 5)

    return {
        "w1big": w1big.astype(jnp.bfloat16),
        "shift1": jnp.tile(sh1, WO1)[None, :].astype(jnp.float32),        # (1, 336)
        "w2big": w2big.astype(jnp.bfloat16),
        "shift2": jnp.tile(sh2, WO2)[None, :].astype(jnp.float32),        # (1, 224)
        "wl": wl.astype(jnp.float32),
        "bl": params["bl"][None, :].astype(jnp.float32),
    }


# ------------------------------ forward pass ---------------------------------

def smallnet_forward(folded, x):
    """x: (N, 1, 9, 21, 24) float32 NCDHW.  folded: dict from fold_params()."""
    N = x.shape[0]
    assert x.shape[1:] == (1, D_IN, H_IN, W_IN), x.shape

    # Host side (tiny, ~0.36 MB): pad + (kd,kh)-only im2col with a
    # pooling-friendly row order (a, b, n, dp, hp) where do=2dp+a, ho=2hp+b.
    xpad = jnp.pad(x[:, 0], ((0, 0), (1, 1), (1, 1), (1, 1)))      # (N, 11, 23, 26)
    slabs = [xpad[:, kd:kd + DO1, kh:kh + HO1, :]
             for kd in range(KD1) for kh in range(KH1)]            # 24 x (N,8,18,26)
    p = jnp.stack(slabs, axis=0).reshape(KD1, KH1, N, DO1, HO1, WPAD)
    p = p.reshape(KD1, KH1, N, DP1, 2, HP1, 2, WPAD)               # do->(dp,a), ho->(hp,b)
    p = p.transpose(4, 6, 2, 3, 5, 0, 1, 7)                        # (a,b,n,dp,hp,kd,kh,wi)
    lhs1 = p.reshape(4 * N * DP1 * HP1, K1).astype(jnp.bfloat16)   # (288, 624)

    kernel = _make_fused_kernel(N)
    out = pl.pallas_call(
        kernel,
        out_shape=jax.ShapeDtypeStruct((N, NUM_TARGETS), jnp.float32),
        grid=(1,),
        in_specs=[
            pl.BlockSpec(lhs1.shape, lambda i: (0, 0)),
            pl.BlockSpec((K1, COLS1), lambda i: (0, 0)),
            pl.BlockSpec((1, COLS1), lambda i: (0, 0)),
            pl.BlockSpec((K2, COLS2), lambda i: (0, 0)),
            pl.BlockSpec((1, COLS2), lambda i: (0, 0)),
            pl.BlockSpec((WO2 * C2, NUM_TARGETS), lambda i: (0, 0)),
            pl.BlockSpec((1, NUM_TARGETS), lambda i: (0, 0)),
        ],
        out_specs=pl.BlockSpec((N, NUM_TARGETS), lambda i: (0, 0)),
        compiler_params=pltpu.CompilerParams(
            dimension_semantics=("arbitrary",),
            # total resident set ~4 MB; 32 MiB keeps us inside v7x's 64 MiB
            # physical VMEM as well as v5e/v6e's 128 MiB.
            vmem_limit_bytes=32 * 1024 * 1024),
    )(lhs1, folded["w1big"], folded["shift1"], folded["w2big"], folded["shift2"],
      folded["wl"], folded["bl"])
    return out


# ------------------------------ reference & params ---------------------------

def smallnet_reference(params, x):
    """Pure-XLA reference with the PyTorch (inference-mode) semantics."""
    dn = lax.conv_dimension_numbers(x.shape, params["w1"].shape,
                                    ("NCDHW", "OIDHW", "NCDHW"))

    def conv_bn_lrelu(h, w, b, gamma, beta, mean, var, pad):
        h = lax.conv_general_dilated(h, w, (1, 1, 1), pad, dimension_numbers=dn)
        h = h + b[None, :, None, None, None]
        s = gamma / jnp.sqrt(var + BN_EPS)
        h = ((h - mean[None, :, None, None, None]) * s[None, :, None, None, None]
             + beta[None, :, None, None, None])
        return jnp.where(h >= 0, h, LEAKY_SLOPE * h)

    def maxpool(h, win):
        return lax.reduce_window(h, -jnp.inf, lax.max,
                                 (1, 1) + win, (1, 1) + win, "VALID")

    h = conv_bn_lrelu(x, params["w1"], params["b1"], params["bn1_gamma"],
                      params["bn1_beta"], params["bn1_mean"], params["bn1_var"],
                      ((1, 1), (1, 1), (1, 1)))
    h = maxpool(h, (2, 2, 3))
    h = conv_bn_lrelu(h, params["w2"], params["b2"], params["bn2_gamma"],
                      params["bn2_beta"], params["bn2_mean"], params["bn2_var"],
                      ((1, 1), (1, 1), (0, 0)))
    h = maxpool(h, (3, 2, 1))
    h = h.reshape(h.shape[0], -1)
    return h @ params["wl"].T + params["bl"][None, :]


def init_params(key):
    ks = jax.random.split(key, 14)
    p = {}
    # conv1: Conv3d(1, 16, (4, 6, 6), padding=(1, 1, 1))
    p["w1"] = jax.random.normal(ks[0], (16, 1, 4, 6, 6), jnp.float32) * 0.05
    p["b1"] = jax.random.normal(ks[1], (16,), jnp.float32) * 0.05
    p["bn1_gamma"] = 1.0 + 0.1 * jax.random.normal(ks[2], (16,), jnp.float32)
    p["bn1_beta"] = 0.1 * jax.random.normal(ks[3], (16,), jnp.float32)
    p["bn1_mean"] = 0.1 * jax.random.normal(ks[4], (16,), jnp.float32)
    p["bn1_var"] = jax.random.uniform(ks[5], (16,), jnp.float32, 0.5, 1.5)
    # conv2: Conv3d(16, 32, (4, 10, 1), padding=(1, 1, 0))
    p["w2"] = jax.random.normal(ks[6], (32, 16, 4, 10, 1), jnp.float32) * 0.02
    p["b2"] = jax.random.normal(ks[7], (32,), jnp.float32) * 0.02
    p["bn2_gamma"] = 1.0 + 0.1 * jax.random.normal(ks[8], (32,), jnp.float32)
    p["bn2_beta"] = 0.1 * jax.random.normal(ks[9], (32,), jnp.float32)
    p["bn2_mean"] = 0.1 * jax.random.normal(ks[10], (32,), jnp.float32)
    p["bn2_var"] = jax.random.uniform(ks[11], (32,), jnp.float32, 0.5, 1.5)
    # outL: Linear(7*32, NUM_TARGETS)
    p["wl"] = jax.random.normal(ks[12], (NUM_TARGETS, 7 * 32), jnp.float32) * 0.05
    p["bl"] = jax.random.normal(ks[13], (NUM_TARGETS,), jnp.float32) * 0.05
    return p


if __name__ == "__main__":
    key = jax.random.PRNGKey(0)
    pkey, xkey = jax.random.split(key)
    params = init_params(pkey)
    # Input (N, 1, 9, 21, 24): chosen so pool2 output flattens to 7*32 = 224,
    # matching nn.Linear(7*32, len(targets)) in the reference module.
    x = jax.random.normal(xkey, (2, 1, D_IN, H_IN, W_IN), jnp.float32)

    folded = fold_params(params)                      # one-time weight preparation
    fwd = jax.jit(smallnet_forward)
    out = jax.block_until_ready(fwd(folded, x))

    assert out.shape == (2, NUM_TARGETS), out.shape
    assert bool(jnp.all(jnp.isfinite(out)))

    # numerical check against a pure-XLA reference (bf16 matmul operands in the
    # fused kernel -> modest tolerance)
    ref = jax.block_until_ready(jax.jit(smallnet_reference)(params, x))
    assert bool(jnp.allclose(out, ref, rtol=5e-2, atol=5e-2)), (out, ref)

    print("KERNEL_OK")
</pallas_src>

<mosaic_0001>
module attributes {stable_mosaic.version = 11 : i64} {
  func.func @kernel(%arg0: i32, %arg1: memref<288x624xbf16, #tpu.memory_space<vmem>>, %arg2: memref<624x336xbf16, #tpu.memory_space<vmem>>, %arg3: memref<1x336xf32, #tpu.memory_space<vmem>>, %arg4: memref<4480x224xbf16, #tpu.memory_space<vmem>>, %arg5: memref<1x224xf32, #tpu.memory_space<vmem>>, %arg6: memref<224x5xf32, #tpu.memory_space<vmem>>, %arg7: memref<1x5xf32, #tpu.memory_space<vmem>>, %arg8: memref<2x5xf32, #tpu.memory_space<vmem>>) attributes {dimension_semantics = [#tpu.dimension_semantics<arbitrary>], iteration_bounds = array<i64: 1>, scalar_prefetch = 0 : i64, scratch_operands = 0 : i64, tpu.core_type = #tpu.core_type<tc>, window_params = [{pipeline_mode = #tpu.pipeline_mode<synchronous>, transform_indices = @transform_0, window_bounds = array<i64: 288, 624>}, {pipeline_mode = #tpu.pipeline_mode<synchronous>, transform_indices = @transform_1, window_bounds = array<i64: 624, 336>}, {pipeline_mode = #tpu.pipeline_mode<synchronous>, transform_indices = @transform_2, window_bounds = array<i64: 1, 336>}, {pipeline_mode = #tpu.pipeline_mode<synchronous>, transform_indices = @transform_3, window_bounds = array<i64: 4480, 224>}, {pipeline_mode = #tpu.pipeline_mode<synchronous>, transform_indices = @transform_4, window_bounds = array<i64: 1, 224>}, {pipeline_mode = #tpu.pipeline_mode<synchronous>, transform_indices = @transform_5, window_bounds = array<i64: 224, 5>}, {pipeline_mode = #tpu.pipeline_mode<synchronous>, transform_indices = @transform_6, window_bounds = array<i64: 1, 5>}, {pipeline_mode = #tpu.pipeline_mode<synchronous>, transform_indices = @transform_7, window_bounds = array<i64: 2, 5>}]} {
    %c0 = arith.constant 0 : index
    %c0_0 = arith.constant 0 : index
    %0 = vector.load %arg1[%c0, %c0_0] : memref<288x624xbf16, #tpu.memory_space<vmem>>, vector<288x624xbf16>
    %c0_1 = arith.constant 0 : index
    %c0_2 = arith.constant 0 : index
    %1 = vector.load %arg2[%c0_1, %c0_2] : memref<624x336xbf16, #tpu.memory_space<vmem>>, vector<624x336xbf16>
    %cst = arith.constant dense<0.000000e+00> : vector<288x336xf32>
    %2 = tpu.matmul %0, %1, %cst {dimension_numbers = #tpu.dot_dimension_numbers<[1], [0], [0], [1], [0, 0, 1, 1], [], []>} : vector<288x624xbf16>, vector<624x336xbf16>, vector<288x336xf32> -> vector<288x336xf32>
    %c0_3 = arith.constant 0 : index
    %c0_4 = arith.constant 0 : index
    %3 = vector.load %arg3[%c0_3, %c0_4] : memref<1x336xf32, #tpu.memory_space<vmem>>, vector<1x336xf32>
    %4 = vector.broadcast %3 : vector<1x336xf32> to vector<288x336xf32>
    %5 = arith.addf %2, %4 : vector<288x336xf32>
    %cst_5 = arith.constant 0.000000e+00 : f32
    %6 = vector.broadcast %cst_5 : f32 to vector<288x336xf32>
    %7 = arith.cmpf oge, %5, %6 : vector<288x336xf32>
    %cst_6 = arith.constant 0.00999999977 : f32
    %8 = vector.broadcast %cst_6 : f32 to vector<288x336xf32>
    %9 = arith.mulf %8, %5 : vector<288x336xf32>
    %10 = arith.select %7, %5, %9 : vector<288x336xi1>, vector<288x336xf32>
    %11 = vector.extract_strided_slice %10 {offsets = [0, 0], sizes = [72, 336], strides = [1, 1]} : vector<288x336xf32> to vector<72x336xf32>
    %12 = vector.extract_strided_slice %10 {offsets = [72, 0], sizes = [72, 336], strides = [1, 1]} : vector<288x336xf32> to vector<72x336xf32>
    %13 = arith.maximumf %11, %12 : vector<72x336xf32>
    %14 = vector.extract_strided_slice %10 {offsets = [144, 0], sizes = [72, 336], strides = [1, 1]} : vector<288x336xf32> to vector<72x336xf32>
    %15 = vector.extract_strided_slice %10 {offsets = [216, 0], sizes = [72, 336], strides = [1, 1]} : vector<288x336xf32> to vector<72x336xf32>
    %16 = arith.maximumf %14, %15 : vector<72x336xf32>
    %17 = arith.maximumf %13, %16 : vector<72x336xf32>
    %18 = vector.extract_strided_slice %17 {offsets = [0, 0], sizes = [72, 112], strides = [1, 1]} : vector<72x336xf32> to vector<72x112xf32>
    %19 = vector.extract_strided_slice %17 {offsets = [0, 112], sizes = [72, 112], strides = [1, 1]} : vector<72x336xf32> to vector<72x112xf32>
    %20 = arith.maximumf %18, %19 : vector<72x112xf32>
    %21 = vector.extract_strided_slice %17 {offsets = [0, 224], sizes = [72, 112], strides = [1, 1]} : vector<72x336xf32> to vector<72x112xf32>
    %22 = arith.maximumf %20, %21 : vector<72x112xf32>
    %cst_7 = arith.constant 0.000000e+00 : f32
    %23 = vector.broadcast %cst_7 : f32 to vector<1x112xf32>
    %cst_8 = arith.constant 0.000000e+00 : f32
    %24 = vector.broadcast %cst_8 : f32 to vector<2x112xf32>
    %25 = vector.extract_strided_slice %22 {offsets = [0, 0], sizes = [1, 112], strides = [1, 1]} : vector<72x112xf32> to vector<1x112xf32>
    %26 = tpu.concatenate %23, %25 in 0 : vector<1x112xf32>, vector<1x112xf32> -> vector<2x112xf32>
    %27 = vector.extract_strided_slice %22 {offsets = [9, 0], sizes = [1, 112], strides = [1, 1]} : vector<72x112xf32> to vector<1x112xf32>
    %28 = tpu.concatenate %23, %27 in 0 : vector<1x112xf32>, vector<1x112xf32> -> vector<2x112xf32>
    %29 = vector.extract_strided_slice %22 {offsets = [36, 0], sizes = [1, 112], strides = [1, 1]} : vector<72x112xf32> to vector<1x112xf32>
    %30 = tpu.concatenate %23, %29 in 0 : vector<1x112xf32>, vector<1x112xf32> -> vector<2x112xf32>
    %31 = vector.extract_strided_slice %22 {offsets = [45, 0], sizes = [1, 112], strides = [1, 1]} : vector<72x112xf32> to vector<1x112xf32>
    %32 = tpu.concatenate %23, %31 in 0 : vector<1x112xf32>, vector<1x112xf32> -> vector<2x112xf32>
    %33 = tpu.concatenate %24, %26, %28, %24, %30, %32 in 0 : vector<2x112xf32>, vector<2x112xf32>, vector<2x112xf32>, vector<2x112xf32>, vector<2x112xf32>, vector<2x112xf32> -> vector<12x112xf32>
    %34 = vector.extract_strided_slice %22 {offsets = [0, 0], sizes = [2, 112], strides = [1, 1]} : vector<72x112xf32> to vector<2x112xf32>
    %35 = vector.extract_strided_slice %22 {offsets = [9, 0], sizes = [2, 112], strides = [1, 1]} : vector<72x112xf32> to vector<2x112xf32>
    %36 = vector.extract_strided_slice %22 {offsets = [36, 0], sizes = [2, 112], strides = [1, 1]} : vector<72x112xf32> to vector<2x112xf32>
    %37 = vector.extract_strided_slice %22 {offsets = [45, 0], sizes = [2, 112], strides = [1, 1]} : vector<72x112xf32> to vector<2x112xf32>
    %38 = tpu.concatenate %24, %34, %35, %24, %36, %37 in 0 : vector<2x112xf32>, vector<2x112xf32>, vector<2x112xf32>, vector<2x112xf32>, vector<2x112xf32>, vector<2x112xf32> -> vector<12x112xf32>
    %39 = vector.extract_strided_slice %22 {offsets = [1, 0], sizes = [2, 112], strides = [1, 1]} : vector<72x112xf32> to vector<2x112xf32>
    %40 = vector.extract_strided_slice %22 {offsets = [10, 0], sizes = [2, 112], strides = [1, 1]} : vector<72x112xf32> to vector<2x112xf32>
    %41 = vector.extract_strided_slice %22 {offsets = [37, 0], sizes = [2, 112], strides = [1, 1]} : vector<72x112xf32> to vector<2x112xf32>
    %42 = vector.extract_strided_slice %22 {offsets = [46, 0], sizes = [2, 112], strides = [1, 1]} : vector<72x112xf32> to vector<2x112xf32>
    %43 = tpu.concatenate %24, %39, %40, %24, %41, %42 in 0 : vector<2x112xf32>, vector<2x112xf32>, vector<2x112xf32>, vector<2x112xf32>, vector<2x112xf32>, vector<2x112xf32> -> vector<12x112xf32>
    %44 = vector.extract_strided_slice %22 {offsets = [2, 0], sizes = [2, 112], strides = [1, 1]} : vector<72x112xf32> to vector<2x112xf32>
    %45 = vector.extract_strided_slice %22 {offsets = [11, 0], sizes = [2, 112], strides = [1, 1]} : vector<72x112xf32> to vector<2x112xf32>
    %46 = vector.extract_strided_slice %22 {offsets = [38, 0], sizes = [2, 112], strides = [1, 1]} : vector<72x112xf32> to vector<2x112xf32>
    %47 = vector.extract_strided_slice %22 {offsets = [47, 0], sizes = [2, 112], strides = [1, 1]} : vector<72x112xf32> to vector<2x112xf32>
    %48 = tpu.concatenate %24, %44, %45, %24, %46, %47 in 0 : vector<2x112xf32>, vector<2x112xf32>, vector<2x112xf32>, vector<2x112xf32>, vector<2x112xf32>, vector<2x112xf32> -> vector<12x112xf32>
    %49 = vector.extract_strided_slice %22 {offsets = [3, 0], sizes = [2, 112], strides = [1, 1]} : vector<72x112xf32> to vector<2x112xf32>
    %50 = vector.extract_strided_slice %22 {offsets = [12, 0], sizes = [2, 112], strides = [1, 1]} : vector<72x112xf32> to vector<2x112xf32>
    %51 = vector.extract_strided_slice %22 {offsets = [39, 0], sizes = [2, 112], strides = [1, 1]} : vector<72x112xf32> to vector<2x112xf32>
    %52 = vector.extract_strided_slice %22 {offsets = [48, 0], sizes = [2, 112], strides = [1, 1]} : vector<72x112xf32> to vector<2x112xf32>
    %53 = tpu.concatenate %24, %49, %50, %24, %51, %52 in 0 : vector<2x112xf32>, vector<2x112xf32>, vector<2x112xf32>, vector<2x112xf32>, vector<2x112xf32>, vector<2x112xf32> -> vector<12x112xf32>
    %54 = vector.extract_strided_slice %22 {offsets = [4, 0], sizes = [2, 112], strides = [1, 1]} : vector<72x112xf32> to vector<2x112xf32>
    %55 = vector.extract_strided_slice %22 {offsets = [13, 0], sizes = [2, 112], strides = [1, 1]} : vector<72x112xf32> to vector<2x112xf32>
    %56 = vector.extract_strided_slice %22 {offsets = [40, 0], sizes = [2, 112], strides = [1, 1]} : vector<72x112xf32> to vector<2x112xf32>
    %57 = vector.extract_strided_slice %22 {offsets = [49, 0], sizes = [2, 112], strides = [1, 1]} : vector<72x112xf32> to vector<2x112xf32>
    %58 = tpu.concatenate %24, %54, %55, %24, %56, %57 in 0 : vector<2x112xf32>, vector<2x112xf32>, vector<2x112xf32>, vector<2x112xf32>, vector<2x112xf32>, vector<2x112xf32> -> vector<12x112xf32>
    %59 = vector.extract_strided_slice %22 {offsets = [5, 0], sizes = [2, 112], strides = [1, 1]} : vector<72x112xf32> to vector<2x112xf32>
    %60 = vector.extract_strided_slice %22 {offsets = [14, 0], sizes = [2, 112], strides = [1, 1]} : vector<72x112xf32> to vector<2x112xf32>
    %61 = vector.extract_strided_slice %22 {offsets = [41, 0], sizes = [2, 112], strides = [1, 1]} : vector<72x112xf32> to vector<2x112xf32>
    %62 = vector.extract_strided_slice %22 {offsets = [50, 0], sizes = [2, 112], strides = [1, 1]} : vector<72x112xf32> to vector<2x112xf32>
    %63 = tpu.concatenate %24, %59, %60, %24, %61, %62 in 0 : vector<2x112xf32>, vector<2x112xf32>, vector<2x112xf32>, vector<2x112xf32>, vector<2x112xf32>, vector<2x112xf32> -> vector<12x112xf32>
    %64 = vector.extract_strided_slice %22 {offsets = [6, 0], sizes = [2, 112], strides = [1, 1]} : vector<72x112xf32> to vector<2x112xf32>
    %65 = vector.extract_strided_slice %22 {offsets = [15, 0], sizes = [2, 112], strides = [1, 1]} : vector<72x112xf32> to vector<2x112xf32>
    %66 = vector.extract_strided_slice %22 {offsets = [42, 0], sizes = [2, 112], strides = [1, 1]} : vector<72x112xf32> to vector<2x112xf32>
    %67 = vector.extract_strided_slice %22 {offsets = [51, 0], sizes = [2, 112], strides = [1, 1]} : vector<72x112xf32> to vector<2x112xf32>
    %68 = tpu.concatenate %24, %64, %65, %24, %66, %67 in 0 : vector<2x112xf32>, vector<2x112xf32>, vector<2x112xf32>, vector<2x112xf32>, vector<2x112xf32>, vector<2x112xf32> -> vector<12x112xf32>
    %69 = vector.extract_strided_slice %22 {offsets = [7, 0], sizes = [2, 112], strides = [1, 1]} : vector<72x112xf32> to vector<2x112xf32>
    %70 = vector.extract_strided_slice %22 {offsets = [16, 0], sizes = [2, 112], strides = [1, 1]} : vector<72x112xf32> to vector<2x112xf32>
    %71 = vector.extract_strided_slice %22 {offsets = [43, 0], sizes = [2, 112], strides = [1, 1]} : vector<72x112xf32> to vector<2x112xf32>
    %72 = vector.extract_strided_slice %22 {offsets = [52, 0], sizes = [2, 112], strides = [1, 1]} : vector<72x112xf32> to vector<2x112xf32>
    %73 = tpu.concatenate %24, %69, %70, %24, %71, %72 in 0 : vector<2x112xf32>, vector<2x112xf32>, vector<2x112xf32>, vector<2x112xf32>, vector<2x112xf32>, vector<2x112xf32> -> vector<12x112xf32>
    %74 = vector.extract_strided_slice %22 {offsets = [8, 0], sizes = [1, 112], strides = [1, 1]} : vector<72x112xf32> to vector<1x112xf32>
    %75 = tpu.concatenate %74, %23 in 0 : vector<1x112xf32>, vector<1x112xf32> -> vector<2x112xf32>
    %76 = vector.extract_strided_slice %22 {offsets = [17, 0], sizes = [1, 112], strides = [1, 1]} : vector<72x112xf32> to vector<1x112xf32>
    %77 = tpu.concatenate %76, %23 in 0 : vector<1x112xf32>, vector<1x112xf32> -> vector<2x112xf32>
    %78 = vector.extract_strided_slice %22 {offsets = [44, 0], sizes = [1, 112], strides = [1, 1]} : vector<72x112xf32> to vector<1x112xf32>
    %79 = tpu.concatenate %78, %23 in 0 : vector<1x112xf32>, vector<1x112xf32> -> vector<2x112xf32>
    %80 = vector.extract_strided_slice %22 {offsets = [53, 0], sizes = [1, 112], strides = [1, 1]} : vector<72x112xf32> to vector<1x112xf32>
    %81 = tpu.concatenate %80, %23 in 0 : vector<1x112xf32>, vector<1x112xf32> -> vector<2x112xf32>
    %82 = tpu.concatenate %24, %75, %77, %24, %79, %81 in 0 : vector<2x112xf32>, vector<2x112xf32>, vector<2x112xf32>, vector<2x112xf32>, vector<2x112xf32>, vector<2x112xf32> -> vector<12x112xf32>
    %83 = vector.extract_strided_slice %22 {offsets = [0, 0], sizes = [1, 112], strides = [1, 1]} : vector<72x112xf32> to vector<1x112xf32>
    %84 = tpu.concatenate %23, %83 in 0 : vector<1x112xf32>, vector<1x112xf32> -> vector<2x112xf32>
    %85 = vector.extract_strided_slice %22 {offsets = [9, 0], sizes = [1, 112], strides = [1, 1]} : vector<72x112xf32> to vector<1x112xf32>
    %86 = tpu.concatenate %23, %85 in 0 : vector<1x112xf32>, vector<1x112xf32> -> vector<2x112xf32>
    %87 = vector.extract_strided_slice %22 {offsets = [18, 0], sizes = [1, 112], strides = [1, 1]} : vector<72x112xf32> to vector<1x112xf32>
    %88 = tpu.concatenate %23, %87 in 0 : vector<1x112xf32>, vector<1x112xf32> -> vector<2x112xf32>
    %89 = vector.extract_strided_slice %22 {offsets = [36, 0], sizes = [1, 112], strides = [1, 1]} : vector<72x112xf32> to vector<1x112xf32>
    %90 = tpu.concatenate %23, %89 in 0 : vector<1x112xf32>, vector<1x112xf32> -> vector<2x112xf32>
    %91 = vector.extract_strided_slice %22 {offsets = [45, 0], sizes = [1, 112], strides = [1, 1]} : vector<72x112xf32> to vector<1x112xf32>
    %92 = tpu.concatenate %23, %91 in 0 : vector<1x112xf32>, vector<1x112xf32> -> vector<2x112xf32>
    %93 = vector.extract_strided_slice %22 {offsets = [54, 0], sizes = [1, 112], strides = [1, 1]} : vector<72x112xf32> to vector<1x112xf32>
    %94 = tpu.concatenate %23, %93 in 0 : vector<1x112xf32>, vector<1x112xf32> -> vector<2x112xf32>
    %95 = tpu.concatenate %84, %86, %88, %90, %92, %94 in 0 : vector<2x112xf32>, vector<2x112xf32>, vector<2x112xf32>, vector<2x112xf32>, vector<2x112xf32>, vector<2x112xf32> -> vector<12x112xf32>
    %96 = vector.extract_strided_slice %22 {offsets = [0, 0], sizes = [2, 112], strides = [1, 1]} : vector<72x112xf32> to vector<2x112xf32>
    %97 = vector.extract_strided_slice %22 {offsets = [9, 0], sizes = [2, 112], strides = [1, 1]} : vector<72x112xf32> to vector<2x112xf32>
    %98 = vector.extract_strided_slice %22 {offsets = [18, 0], sizes = [2, 112], strides = [1, 1]} : vector<72x112xf32> to vector<2x112xf32>
    %99 = vector.extract_strided_slice %22 {offsets = [36, 0], sizes = [2, 112], strides = [1, 1]} : vector<72x112xf32> to vector<2x112xf32>
    %100 = vector.extract_strided_slice %22 {offsets = [45, 0], sizes = [2, 112], strides = [1, 1]} : vector<72x112xf32> to vector<2x112xf32>
    %101 = vector.extract_strided_slice %22 {offsets = [54, 0], sizes = [2, 112], strides = [1, 1]} : vector<72x112xf32> to vector<2x112xf32>
    %102 = tpu.concatenate %96, %97, %98, %99, %100, %101 in 0 : vector<2x112xf32>, vector<2x112xf32>, vector<2x112xf32>, vector<2x112xf32>, vector<2x112xf32>, vector<2x112xf32> -> vector<12x112xf32>
    %103 = vector.extract_strided_slice %22 {offsets = [1, 0], sizes = [2, 112], strides = [1, 1]} : vector<72x112xf32> to vector<2x112xf32>
    %104 = vector.extract_strided_slice %22 {offsets = [10, 0], sizes = [2, 112], strides = [1, 1]} : vector<72x112xf32> to vector<2x112xf32>
    %105 = vector.extract_strided_slice %22 {offsets = [19, 0], sizes = [2, 112], strides = [1, 1]} : vector<72x112xf32> to vector<2x112xf32>
    %106 = vector.extract_strided_slice %22 {offsets = [37, 0], sizes = [2, 112], strides = [1, 1]} : vector<72x112xf32> to vector<2x112xf32>
    %107 = vector.extract_strided_slice %22 {offsets = [46, 0], sizes = [2, 112], strides = [1, 1]} : vector<72x112xf32> to vector<2x112xf32>
    %108 = vector.extract_strided_slice %22 {offsets = [55, 0], sizes = [2, 112], strides = [1, 1]} : vector<72x112xf32> to vector<2x112xf32>
    %109 = tpu.concatenate %103, %104, %105, %106, %107, %108 in 0 : vector<2x112xf32>, vector<2x112xf32>, vector<2x112xf32>, vector<2x112xf32>, vector<2x112xf32>, vector<2x112xf32> -> vector<12x112xf32>
    %110 = vector.extract_strided_slice %22 {offsets = [2, 0], sizes = [2, 112], strides = [1, 1]} : vector<72x112xf32> to vector<2x112xf32>
    %111 = vector.extract_strided_slice %22 {offsets = [11, 0], sizes = [2, 112], strides = [1, 1]} : vector<72x112xf32> to vector<2x112xf32>
    %112 = vector.extract_strided_slice %22 {offsets = [20, 0], sizes = [2, 112], strides = [1, 1]} : vector<72x112xf32> to vector<2x112xf32>
    %113 = vector.extract_strided_slice %22 {offsets = [38, 0], sizes = [2, 112], strides = [1, 1]} : vector<72x112xf32> to vector<2x112xf32>
    %114 = vector.extract_strided_slice %22 {offsets = [47, 0], sizes = [2, 112], strides = [1, 1]} : vector<72x112xf32> to vector<2x112xf32>
    %115 = vector.extract_strided_slice %22 {offsets = [56, 0], sizes = [2, 112], strides = [1, 1]} : vector<72x112xf32> to vector<2x112xf32>
    %116 = tpu.concatenate %110, %111, %112, %113, %114, %115 in 0 : vector<2x112xf32>, vector<2x112xf32>, vector<2x112xf32>, vector<2x112xf32>, vector<2x112xf32>, vector<2x112xf32> -> vector<12x112xf32>
    %117 = vector.extract_strided_slice %22 {offsets = [3, 0], sizes = [2, 112], strides = [1, 1]} : vector<72x112xf32> to vector<2x112xf32>
    %118 = vector.extract_strided_slice %22 {offsets = [12, 0], sizes = [2, 112], strides = [1, 1]} : vector<72x112xf32> to vector<2x112xf32>
    %119 = vector.extract_strided_slice %22 {offsets = [21, 0], sizes = [2, 112], strides = [1, 1]} : vector<72x112xf32> to vector<2x112xf32>
    %120 = vector.extract_strided_slice %22 {offsets = [39, 0], sizes = [2, 112], strides = [1, 1]} : vector<72x112xf32> to vector<2x112xf32>
    %121 = vector.extract_strided_slice %22 {offsets = [48, 0], sizes = [2, 112], strides = [1, 1]} : vector<72x112xf32> to vector<2x112xf32>
    %122 = vector.extract_strided_slice %22 {offsets = [57, 0], sizes = [2, 112], strides = [1, 1]} : vector<72x112xf32> to vector<2x112xf32>
    %123 = tpu.concatenate %117, %118, %119, %120, %121, %122 in 0 : vector<2x112xf32>, vector<2x112xf32>, vector<2x112xf32>, vector<2x112xf32>, vector<2x112xf32>, vector<2x112xf32> -> vector<12x112xf32>
    %124 = vector.extract_strided_slice %22 {offsets = [4, 0], sizes = [2, 112], strides = [1, 1]} : vector<72x112xf32> to vector<2x112xf32>
    %125 = vector.extract_strided_slice %22 {offsets = [13, 0], sizes = [2, 112], strides = [1, 1]} : vector<72x112xf32> to vector<2x112xf32>
    %126 = vector.extract_strided_slice %22 {offsets = [22, 0], sizes = [2, 112], strides = [1, 1]} : vector<72x112xf32> to vector<2x112xf32>
    %127 = vector.extract_strided_slice %22 {offsets = [40, 0], sizes = [2, 112], strides = [1, 1]} : vector<72x112xf32> to vector<2x112xf32>
    %128 = vector.extract_strided_slice %22 {offsets = [49, 0], sizes = [2, 112], strides = [1, 1]} : vector<72x112xf32> to vector<2x112xf32>
    %129 = vector.extract_strided_slice %22 {offsets = [58, 0], sizes = [2, 112], strides = [1, 1]} : vector<72x112xf32> to vector<2x112xf32>
    %130 = tpu.concatenate %124, %125, %126, %127, %128, %129 in 0 : vector<2x112xf32>, vector<2x112xf32>, vector<2x112xf32>, vector<2x112xf32>, vector<2x112xf32>, vector<2x112xf32> -> vector<12x112xf32>
    %131 = vector.extract_strided_slice %22 {offsets = [5, 0], sizes = [2, 112], strides = [1, 1]} : vector<72x112xf32> to vector<2x112xf32>
    %132 = vector.extract_strided_slice %22 {offsets = [14, 0], sizes = [2, 112], strides = [1, 1]} : vector<72x112xf32> to vector<2x112xf32>
    %133 = vector.extract_strided_slice %22 {offsets = [23, 0], sizes = [2, 112], strides = [1, 1]} : vector<72x112xf32> to vector<2x112xf32>
    %134 = vector.extract_strided_slice %22 {offsets = [41, 0], sizes = [2, 112], strides = [1, 1]} : vector<72x112xf32> to vector<2x112xf32>
    %135 = vector.extract_strided_slice %22 {offsets = [50, 0], sizes = [2, 112], strides = [1, 1]} : vector<72x112xf32> to vector<2x112xf32>
    %136 = vector.extract_strided_slice %22 {offsets = [59, 0], sizes = [2, 112], strides = [1, 1]} : vector<72x112xf32> to vector<2x112xf32>
    %137 = tpu.concatenate %131, %132, %133, %134, %135, %136 in 0 : vector<2x112xf32>, vector<2x112xf32>, vector<2x112xf32>, vector<2x112xf32>, vector<2x112xf32>, vector<2x112xf32> -> vector<12x112xf32>
    %138 = vector.extract_strided_slice %22 {offsets = [6, 0], sizes = [2, 112], strides = [1, 1]} : vector<72x112xf32> to vector<2x112xf32>
    %139 = vector.extract_strided_slice %22 {offsets = [15, 0], sizes = [2, 112], strides = [1, 1]} : vector<72x112xf32> to vector<2x112xf32>
    %140 = vector.extract_strided_slice %22 {offsets = [24, 0], sizes = [2, 112], strides = [1, 1]} : vector<72x112xf32> to vector<2x112xf32>
    %141 = vector.extract_strided_slice %22 {offsets = [42, 0], sizes = [2, 112], strides = [1, 1]} : vector<72x112xf32> to vector<2x112xf32>
    %142 = vector.extract_strided_slice %22 {offsets = [51, 0], sizes = [2, 112], strides = [1, 1]} : vector<72x112xf32> to vector<2x112xf32>
    %143 = vector.extract_strided_slice %22 {offsets = [60, 0], sizes = [2, 112], strides = [1, 1]} : vector<72x112xf32> to vector<2x112xf32>
    %144 = tpu.concatenate %138, %139, %140, %141, %142, %143 in 0 : vector<2x112xf32>, vector<2x112xf32>, vector<2x112xf32>, vector<2x112xf32>, vector<2x112xf32>, vector<2x112xf32> -> vector<12x112xf32>
    %145 = vector.extract_strided_slice %22 {offsets = [7, 0], sizes = [2, 112], strides = [1, 1]} : vector<72x112xf32> to vector<2x112xf32>
    %146 = vector.extract_strided_slice %22 {offsets = [16, 0], sizes = [2, 112], strides = [1, 1]} : vector<72x112xf32> to vector<2x112xf32>
    %147 = vector.extract_strided_slice %22 {offsets = [25, 0], sizes = [2, 112], strides = [1, 1]} : vector<72x112xf32> to vector<2x112xf32>
    %148 = vector.extract_strided_slice %22 {offsets = [43, 0], sizes = [2, 112], strides = [1, 1]} : vector<72x112xf32> to vector<2x112xf32>
    %149 = vector.extract_strided_slice %22 {offsets = [52, 0], sizes = [2, 112], strides = [1, 1]} : vector<72x112xf32> to vector<2x112xf32>
    %150 = vector.extract_strided_slice %22 {offsets = [61, 0], sizes = [2, 112], strides = [1, 1]} : vector<72x112xf32> to vector<2x112xf32>
    %151 = tpu.concatenate %145, %146, %147, %148, %149, %150 in 0 : vector<2x112xf32>, vector<2x112xf32>, vector<2x112xf32>, vector<2x112xf32>, vector<2x112xf32>, vector<2x112xf32> -> vector<12x112xf32>
    %152 = vector.extract_strided_slice %22 {offsets = [8, 0], sizes = [1, 112], strides = [1, 1]} : vector<72x112xf32> to vector<1x112xf32>
    %153 = tpu.concatenate %152, %23 in 0 : vector<1x112xf32>, vector<1x112xf32> -> vector<2x112xf32>
    %154 = vector.extract_strided_slice %22 {offsets = [17, 0], sizes = [1, 112], strides = [1, 1]} : vector<72x112xf32> to vector<1x112xf32>
    %155 = tpu.concatenate %154, %23 in 0 : vector<1x112xf32>, vector<1x112xf32> -> vector<2x112xf32>
    %156 = vector.extract_strided_slice %22 {offsets = [26, 0], sizes = [1, 112], strides = [1, 1]} : vector<72x112xf32> to vector<1x112xf32>
    %157 = tpu.concatenate %156, %23 in 0 : vector<1x112xf32>, vector<1x112xf32> -> vector<2x112xf32>
    %158 = vector.extract_strided_slice %22 {offsets = [44, 0], sizes = [1, 112], strides = [1, 1]} : vector<72x112xf32> to vector<1x112xf32>
    %159 = tpu.concatenate %158, %23 in 0 : vector<1x112xf32>, vector<1x112xf32> -> vector<2x112xf32>
    %160 = vector.extract_strided_slice %22 {offsets = [53, 0], sizes = [1, 112], strides = [1, 1]} : vector<72x112xf32> to vector<1x112xf32>
    %161 = tpu.concatenate %160, %23 in 0 : vector<1x112xf32>, vector<1x112xf32> -> vector<2x112xf32>
    %162 = vector.extract_strided_slice %22 {offsets = [62, 0], sizes = [1, 112], strides = [1, 1]} : vector<72x112xf32> to vector<1x112xf32>
    %163 = tpu.concatenate %162, %23 in 0 : vector<1x112xf32>, vector<1x112xf32> -> vector<2x112xf32>
    %164 = tpu.concatenate %153, %155, %157, %159, %161, %163 in 0 : vector<2x112xf32>, vector<2x112xf32>, vector<2x112xf32>, vector<2x112xf32>, vector<2x112xf32>, vector<2x112xf32> -> vector<12x112xf32>
    %165 = vector.extract_strided_slice %22 {offsets = [9, 0], sizes = [1, 112], strides = [1, 1]} : vector<72x112xf32> to vector<1x112xf32>
    %166 = tpu.concatenate %23, %165 in 0 : vector<1x112xf32>, vector<1x112xf32> -> vector<2x112xf32>
    %167 = vector.extract_strided_slice %22 {offsets = [18, 0], sizes = [1, 112], strides = [1, 1]} : vector<72x112xf32> to vector<1x112xf32>
    %168 = tpu.concatenate %23, %167 in 0 : vector<1x112xf32>, vector<1x112xf32> -> vector<2x112xf32>
    %169 = vector.extract_strided_slice %22 {offsets = [27, 0], sizes = [1, 112], strides = [1, 1]} : vector<72x112xf32> to vector<1x112xf32>
    %170 = tpu.concatenate %23, %169 in 0 : vector<1x112xf32>, vector<1x112xf32> -> vector<2x112xf32>
    %171 = vector.extract_strided_slice %22 {offsets = [45, 0], sizes = [1, 112], strides = [1, 1]} : vector<72x112xf32> to vector<1x112xf32>
    %172 = tpu.concatenate %23, %171 in 0 : vector<1x112xf32>, vector<1x112xf32> -> vector<2x112xf32>
    %173 = vector.extract_strided_slice %22 {offsets = [54, 0], sizes = [1, 112], strides = [1, 1]} : vector<72x112xf32> to vector<1x112xf32>
    %174 = tpu.concatenate %23, %173 in 0 : vector<1x112xf32>, vector<1x112xf32> -> vector<2x112xf32>
    %175 = vector.extract_strided_slice %22 {offsets = [63, 0], sizes = [1, 112], strides = [1, 1]} : vector<72x112xf32> to vector<1x112xf32>
    %176 = tpu.concatenate %23, %175 in 0 : vector<1x112xf32>, vector<1x112xf32> -> vector<2x112xf32>
    %177 = tpu.concatenate %166, %168, %170, %172, %174, %176 in 0 : vector<2x112xf32>, vector<2x112xf32>, vector<2x112xf32>, vector<2x112xf32>, vector<2x112xf32>, vector<2x112xf32> -> vector<12x112xf32>
    %178 = vector.extract_strided_slice %22 {offsets = [9, 0], sizes = [2, 112], strides = [1, 1]} : vector<72x112xf32> to vector<2x112xf32>
    %179 = vector.extract_strided_slice %22 {offsets = [18, 0], sizes = [2, 112], strides = [1, 1]} : vector<72x112xf32> to vector<2x112xf32>
    %180 = vector.extract_strided_slice %22 {offsets = [27, 0], sizes = [2, 112], strides = [1, 1]} : vector<72x112xf32> to vector<2x112xf32>
    %181 = vector.extract_strided_slice %22 {offsets = [45, 0], sizes = [2, 112], strides = [1, 1]} : vector<72x112xf32> to vector<2x112xf32>
    %182 = vector.extract_strided_slice %22 {offsets = [54, 0], sizes = [2, 112], strides = [1, 1]} : vector<72x112xf32> to vector<2x112xf32>
    %183 = vector.extract_strided_slice %22 {offsets = [63, 0], sizes = [2, 112], strides = [1, 1]} : vector<72x112xf32> to vector<2x112xf32>
    %184 = tpu.concatenate %178, %179, %180, %181, %182, %183 in 0 : vector<2x112xf32>, vector<2x112xf32>, vector<2x112xf32>, vector<2x112xf32>, vector<2x112xf32>, vector<2x112xf32> -> vector<12x112xf32>
    %185 = vector.extract_strided_slice %22 {offsets = [10, 0], sizes = [2, 112], strides = [1, 1]} : vector<72x112xf32> to vector<2x112xf32>
    %186 = vector.extract_strided_slice %22 {offsets = [19, 0], sizes = [2, 112], strides = [1, 1]} : vector<72x112xf32> to vector<2x112xf32>
    %187 = vector.extract_strided_slice %22 {offsets = [28, 0], sizes = [2, 112], strides = [1, 1]} : vector<72x112xf32> to vector<2x112xf32>
    %188 = vector.extract_strided_slice %22 {offsets = [46, 0], sizes = [2, 112], strides = [1, 1]} : vector<72x112xf32> to vector<2x112xf32>
    %189 = vector.extract_strided_slice %22 {offsets = [55, 0], sizes = [2, 112], strides = [1, 1]} : vector<72x112xf32> to vector<2x112xf32>
    %190 = vector.extract_strided_slice %22 {offsets = [64, 0], sizes = [2, 112], strides = [1, 1]} : vector<72x112xf32> to vector<2x112xf32>
    %191 = tpu.concatenate %185, %186, %187, %188, %189, %190 in 0 : vector<2x112xf32>, vector<2x112xf32>, vector<2x112xf32>, vector<2x112xf32>, vector<2x112xf32>, vector<2x112xf32> -> vector<12x112xf32>
    %192 = vector.extract_strided_slice %22 {offsets = [11, 0], sizes = [2, 112], strides = [1, 1]} : vector<72x112xf32> to vector<2x112xf32>
    %193 = vector.extract_strided_slice %22 {offsets = [20, 0], sizes = [2, 112], strides = [1, 1]} : vector<72x112xf32> to vector<2x112xf32>
    %194 = vector.extract_strided_slice %22 {offsets = [29, 0], sizes = [2, 112], strides = [1, 1]} : vector<72x112xf32> to vector<2x112xf32>
    %195 = vector.extract_strided_slice %22 {offsets = [47, 0], sizes = [2, 112], strides = [1, 1]} : vector<72x112xf32> to vector<2x112xf32>
    %196 = vector.extract_strided_slice %22 {offsets = [56, 0], sizes = [2, 112], strides = [1, 1]} : vector<72x112xf32> to vector<2x112xf32>
    %197 = vector.extract_strided_slice %22 {offsets = [65, 0], sizes = [2, 112], strides = [1, 1]} : vector<72x112xf32> to vector<2x112xf32>
    %198 = tpu.concatenate %192, %193, %194, %195, %196, %197 in 0 : vector<2x112xf32>, vector<2x112xf32>, vector<2x112xf32>, vector<2x112xf32>, vector<2x112xf32>, vector<2x112xf32> -> vector<12x112xf32>
    %199 = vector.extract_strided_slice %22 {offsets = [12, 0], sizes = [2, 112], strides = [1, 1]} : vector<72x112xf32> to vector<2x112xf32>
    %200 = vector.extract_strided_slice %22 {offsets = [21, 0], sizes = [2, 112], strides = [1, 1]} : vector<72x112xf32> to vector<2x112xf32>
    %201 = vector.extract_strided_slice %22 {offsets = [30, 0], sizes = [2, 112], strides = [1, 1]} : vector<72x112xf32> to vector<2x112xf32>
    %202 = vector.extract_strided_slice %22 {offsets = [48, 0], sizes = [2, 112], strides = [1, 1]} : vector<72x112xf32> to vector<2x112xf32>
    %203 = vector.extract_strided_slice %22 {offsets = [57, 0], sizes = [2, 112], strides = [1, 1]} : vector<72x112xf32> to vector<2x112xf32>
    %204 = vector.extract_strided_slice %22 {offsets = [66, 0], sizes = [2, 112], strides = [1, 1]} : vector<72x112xf32> to vector<2x112xf32>
    %205 = tpu.concatenate %199, %200, %201, %202, %203, %204 in 0 : vector<2x112xf32>, vector<2x112xf32>, vector<2x112xf32>, vector<2x112xf32>, vector<2x112xf32>, vector<2x112xf32> -> vector<12x112xf32>
    %206 = vector.extract_strided_slice %22 {offsets = [13, 0], sizes = [2, 112], strides = [1, 1]} : vector<72x112xf32> to vector<2x112xf32>
    %207 = vector.extract_strided_slice %22 {offsets = [22, 0], sizes = [2, 112], strides = [1, 1]} : vector<72x112xf32> to vector<2x112xf32>
    %208 = vector.extract_strided_slice %22 {offsets = [31, 0], sizes = [2, 112], strides = [1, 1]} : vector<72x112xf32> to vector<2x112xf32>
    %209 = vector.extract_strided_slice %22 {offsets = [49, 0], sizes = [2, 112], strides = [1, 1]} : vector<72x112xf32> to vector<2x112xf32>
    %210 = vector.extract_strided_slice %22 {offsets = [58, 0], sizes = [2, 112], strides = [1, 1]} : vector<72x112xf32> to vector<2x112xf32>
    %211 = vector.extract_strided_slice %22 {offsets = [67, 0], sizes = [2, 112], strides = [1, 1]} : vector<72x112xf32> to vector<2x112xf32>
    %212 = tpu.concatenate %206, %207, %208, %209, %210, %211 in 0 : vector<2x112xf32>, vector<2x112xf32>, vector<2x112xf32>, vector<2x112xf32>, vector<2x112xf32>, vector<2x112xf32> -> vector<12x112xf32>
    %213 = vector.extract_strided_slice %22 {offsets = [14, 0], sizes = [2, 112], strides = [1, 1]} : vector<72x112xf32> to vector<2x112xf32>
    %214 = vector.extract_strided_slice %22 {offsets = [23, 0], sizes = [2, 112], strides = [1, 1]} : vector<72x112xf32> to vector<2x112xf32>
    %215 = vector.extract_strided_slice %22 {offsets = [32, 0], sizes = [2, 112], strides = [1, 1]} : vector<72x112xf32> to vector<2x112xf32>
    %216 = vector.extract_strided_slice %22 {offsets = [50, 0], sizes = [2, 112], strides = [1, 1]} : vector<72x112xf32> to vector<2x112xf32>
    %217 = vector.extract_strided_slice %22 {offsets = [59, 0], sizes = [2, 112], strides = [1, 1]} : vector<72x112xf32> to vector<2x112xf32>
    %218 = vector.extract_strided_slice %22 {offsets = [68, 0], sizes = [2, 112], strides = [1, 1]} : vector<72x112xf32> to vector<2x112xf32>
    %219 = tpu.concatenate %213, %214, %215, %216, %217, %218 in 0 : vector<2x112xf32>, vector<2x112xf32>, vector<2x112xf32>, vector<2x112xf32>, vector<2x112xf32>, vector<2x112xf32> -> vector<12x112xf32>
    %220 = vector.extract_strided_slice %22 {offsets = [15, 0], sizes = [2, 112], strides = [1, 1]} : vector<72x112xf32> to vector<2x112xf32>
    %221 = vector.extract_strided_slice %22 {offsets = [24, 0], sizes = [2, 112], strides = [1, 1]} : vector<72x112xf32> to vector<2x112xf32>
    %222 = vector.extract_strided_slice %22 {offsets = [33, 0], sizes = [2, 112], strides = [1, 1]} : vector<72x112xf32> to vector<2x112xf32>
    %223 = vector.extract_strided_slice %22 {offsets = [51, 0], sizes = [2, 112], strides = [1, 1]} : vector<72x112xf32> to vector<2x112xf32>
    %224 = vector.extract_strided_slice %22 {offsets = [60, 0], sizes = [2, 112], strides = [1, 1]} : vector<72x112xf32> to vector<2x112xf32>
    %225 = vector.extract_strided_slice %22 {offsets = [69, 0], sizes = [2, 112], strides = [1, 1]} : vector<72x112xf32> to vector<2x112xf32>
    %226 = tpu.concatenate %220, %221, %222, %223, %224, %225 in 0 : vector<2x112xf32>, vector<2x112xf32>, vector<2x112xf32>, vector<2x112xf32>, vector<2x112xf32>, vector<2x112xf32> -> vector<12x112xf32>
    %227 = vector.extract_strided_slice %22 {offsets = [16, 0], sizes = [2, 112], strides = [1, 1]} : vector<72x112xf32> to vector<2x112xf32>
    %228 = vector.extract_strided_slice %22 {offsets = [25, 0], sizes = [2, 112], strides = [1, 1]} : vector<72x112xf32> to vector<2x112xf32>
    %229 = vector.extract_strided_slice %22 {offsets = [34, 0], sizes = [2, 112], strides = [1, 1]} : vector<72x112xf32> to vector<2x112xf32>
    %230 = vector.extract_strided_slice %22 {offsets = [52, 0], sizes = [2, 112], strides = [1, 1]} : vector<72x112xf32> to vector<2x112xf32>
    %231 = vector.extract_strided_slice %22 {offsets = [61, 0], sizes = [2, 112], strides = [1, 1]} : vector<72x112xf32> to vector<2x112xf32>
    %232 = vector.extract_strided_slice %22 {offsets = [70, 0], sizes = [2, 112], strides = [1, 1]} : vector<72x112xf32> to vector<2x112xf32>
    %233 = tpu.concatenate %227, %228, %229, %230, %231, %232 in 0 : vector<2x112xf32>, vector<2x112xf32>, vector<2x112xf32>, vector<2x112xf32>, vector<2x112xf32>, vector<2x112xf32> -> vector<12x112xf32>
    %234 = vector.extract_strided_slice %22 {offsets = [17, 0], sizes = [1, 112], strides = [1, 1]} : vector<72x112xf32> to vector<1x112xf32>
    %235 = tpu.concatenate %234, %23 in 0 : vector<1x112xf32>, vector<1x112xf32> -> vector<2x112xf32>
    %236 = vector.extract_strided_slice %22 {offsets = [26, 0], sizes = [1, 112], strides = [1, 1]} : vector<72x112xf32> to vector<1x112xf32>
    %237 = tpu.concatenate %236, %23 in 0 : vector<1x112xf32>, vector<1x112xf32> -> vector<2x112xf32>
    %238 = vector.extract_strided_slice %22 {offsets = [35, 0], sizes = [1, 112], strides = [1, 1]} : vector<72x112xf32> to vector<1x112xf32>
    %239 = tpu.concatenate %238, %23 in 0 : vector<1x112xf32>, vector<1x112xf32> -> vector<2x112xf32>
    %240 = vector.extract_strided_slice %22 {offsets = [53, 0], sizes = [1, 112], strides = [1, 1]} : vector<72x112xf32> to vector<1x112xf32>
    %241 = tpu.concatenate %240, %23 in 0 : vector<1x112xf32>, vector<1x112xf32> -> vector<2x112xf32>
    %242 = vector.extract_strided_slice %22 {offsets = [62, 0], sizes = [1, 112], strides = [1, 1]} : vector<72x112xf32> to vector<1x112xf32>
    %243 = tpu.concatenate %242, %23 in 0 : vector<1x112xf32>, vector<1x112xf32> -> vector<2x112xf32>
    %244 = vector.extract_strided_slice %22 {offsets = [71, 0], sizes = [1, 112], strides = [1, 1]} : vector<72x112xf32> to vector<1x112xf32>
    %245 = tpu.concatenate %244, %23 in 0 : vector<1x112xf32>, vector<1x112xf32> -> vector<2x112xf32>
    %246 = tpu.concatenate %235, %237, %239, %241, %243, %245 in 0 : vector<2x112xf32>, vector<2x112xf32>, vector<2x112xf32>, vector<2x112xf32>, vector<2x112xf32>, vector<2x112xf32> -> vector<12x112xf32>
    %247 = vector.extract_strided_slice %22 {offsets = [18, 0], sizes = [1, 112], strides = [1, 1]} : vector<72x112xf32> to vector<1x112xf32>
    %248 = tpu.concatenate %23, %247 in 0 : vector<1x112xf32>, vector<1x112xf32> -> vector<2x112xf32>
    %249 = vector.extract_strided_slice %22 {offsets = [27, 0], sizes = [1, 112], strides = [1, 1]} : vector<72x112xf32> to vector<1x112xf32>
    %250 = tpu.concatenate %23, %249 in 0 : vector<1x112xf32>, vector<1x112xf32> -> vector<2x112xf32>
    %251 = vector.extract_strided_slice %22 {offsets = [54, 0], sizes = [1, 112], strides = [1, 1]} : vector<72x112xf32> to vector<1x112xf32>
    %252 = tpu.concatenate %23, %251 in 0 : vector<1x112xf32>, vector<1x112xf32> -> vector<2x112xf32>
    %253 = vector.extract_strided_slice %22 {offsets = [63, 0], sizes = [1, 112], strides = [1, 1]} : vector<72x112xf32> to vector<1x112xf32>
    %254 = tpu.concatenate %23, %253 in 0 : vector<1x112xf32>, vector<1x112xf32> -> vector<2x112xf32>
    %255 = tpu.concatenate %248, %250, %24, %252, %254, %24 in 0 : vector<2x112xf32>, vector<2x112xf32>, vector<2x112xf32>, vector<2x112xf32>, vector<2x112xf32>, vector<2x112xf32> -> vector<12x112xf32>
    %256 = vector.extract_strided_slice %22 {offsets = [18, 0], sizes = [2, 112], strides = [1, 1]} : vector<72x112xf32> to vector<2x112xf32>
    %257 = vector.extract_strided_slice %22 {offsets = [27, 0], sizes = [2, 112], strides = [1, 1]} : vector<72x112xf32> to vector<2x112xf32>
    %258 = vector.extract_strided_slice %22 {offsets = [54, 0], sizes = [2, 112], strides = [1, 1]} : vector<72x112xf32> to vector<2x112xf32>
    %259 = vector.extract_strided_slice %22 {offsets = [63, 0], sizes = [2, 112], strides = [1, 1]} : vector<72x112xf32> to vector<2x112xf32>
    %260 = tpu.concatenate %256, %257, %24, %258, %259, %24 in 0 : vector<2x112xf32>, vector<2x112xf32>, vector<2x112xf32>, vector<2x112xf32>, vector<2x112xf32>, vector<2x112xf32> -> vector<12x112xf32>
    %261 = vector.extract_strided_slice %22 {offsets = [19, 0], sizes = [2, 112], strides = [1, 1]} : vector<72x112xf32> to vector<2x112xf32>
    %262 = vector.extract_strided_slice %22 {offsets = [28, 0], sizes = [2, 112], strides = [1, 1]} : vector<72x112xf32> to vector<2x112xf32>
    %263 = vector.extract_strided_slice %22 {offsets = [55, 0], sizes = [2, 112], strides = [1, 1]} : vector<72x112xf32> to vector<2x112xf32>
    %264 = vector.extract_strided_slice %22 {offsets = [64, 0], sizes = [2, 112], strides = [1, 1]} : vector<72x112xf32> to vector<2x112xf32>
    %265 = tpu.concatenate %261, %262, %24, %263, %264, %24 in 0 : vector<2x112xf32>, vector<2x112xf32>, vector<2x112xf32>, vector<2x112xf32>, vector<2x112xf32>, vector<2x112xf32> -> vector<12x112xf32>
    %266 = vector.extract_strided_slice %22 {offsets = [20, 0], sizes = [2, 112], strides = [1, 1]} : vector<72x112xf32> to vector<2x112xf32>
    %267 = vector.extract_strided_slice %22 {offsets = [29, 0], sizes = [2, 112], strides = [1, 1]} : vector<72x112xf32> to vector<2x112xf32>
    %268 = vector.extract_strided_slice %22 {offsets = [56, 0], sizes = [2, 112], strides = [1, 1]} : vector<72x112xf32> to vector<2x112xf32>
    %269 = vector.extract_strided_slice %22 {offsets = [65, 0], sizes = [2, 112], strides = [1, 1]} : vector<72x112xf32> to vector<2x112xf32>
    %270 = tpu.concatenate %266, %267, %24, %268, %269, %24 in 0 : vector<2x112xf32>, vector<2x112xf32>, vector<2x112xf32>, vector<2x112xf32>, vector<2x112xf32>, vector<2x112xf32> -> vector<12x112xf32>
    %271 = vector.extract_strided_slice %22 {offsets = [21, 0], sizes = [2, 112], strides = [1, 1]} : vector<72x112xf32> to vector<2x112xf32>
    %272 = vector.extract_strided_slice %22 {offsets = [30, 0], sizes = [2, 112], strides = [1, 1]} : vector<72x112xf32> to vector<2x112xf32>
    %273 = vector.extract_strided_slice %22 {offsets = [57, 0], sizes = [2, 112], strides = [1, 1]} : vector<72x112xf32> to vector<2x112xf32>
    %274 = vector.extract_strided_slice %22 {offsets = [66, 0], sizes = [2, 112], strides = [1, 1]} : vector<72x112xf32> to vector<2x112xf32>
    %275 = tpu.concatenate %271, %272, %24, %273, %274, %24 in 0 : vector<2x112xf32>, vector<2x112xf32>, vector<2x112xf32>, vector<2x112xf32>, vector<2x112xf32>, vector<2x112xf32> -> vector<12x112xf32>
    %276 = vector.extract_strided_slice %22 {offsets = [22, 0], sizes = [2, 112], strides = [1, 1]} : vector<72x112xf32> to vector<2x112xf32>
    %277 = vector.extract_strided_slice %22 {offsets = [31, 0], sizes = [2, 112], strides = [1, 1]} : vector<72x112xf32> to vector<2x112xf32>
    %278 = vector.extract_strided_slice %22 {offsets = [58, 0], sizes = [2, 112], strides = [1, 1]} : vector<72x112xf32> to vector<2x112xf32>
    %279 = vector.extract_strided_slice %22 {offsets = [67, 0], sizes = [2, 112], strides = [1, 1]} : vector<72x112xf32> to vector<2x112xf32>
    %280 = tpu.concatenate %276, %277, %24, %278, %279, %24 in 0 : vector<2x112xf32>, vector<2x112xf32>, vector<2x112xf32>, vector<2x112xf32>, vector<2x112xf32>, vector<2x112xf32> -> vector<12x112xf32>
    %281 = vector.extract_strided_slice %22 {offsets = [23, 0], sizes = [2, 112], strides = [1, 1]} : vector<72x112xf32> to vector<2x112xf32>
    %282 = vector.extract_strided_slice %22 {offsets = [32, 0], sizes = [2, 112], strides = [1, 1]} : vector<72x112xf32> to vector<2x112xf32>
    %283 = vector.extract_strided_slice %22 {offsets = [59, 0], sizes = [2, 112], strides = [1, 1]} : vector<72x112xf32> to vector<2x112xf32>
    %284 = vector.extract_strided_slice %22 {offsets = [68, 0], sizes = [2, 112], strides = [1, 1]} : vector<72x112xf32> to vector<2x112xf32>
    %285 = tpu.concatenate %281, %282, %24, %283, %284, %24 in 0 : vector<2x112xf32>, vector<2x112xf32>, vector<2x112xf32>, vector<2x112xf32>, vector<2x112xf32>, vector<2x112xf32> -> vector<12x112xf32>
    %286 = vector.extract_strided_slice %22 {offsets = [24, 0], sizes = [2, 112], strides = [1, 1]} : vector<72x112xf32> to vector<2x112xf32>
    %287 = vector.extract_strided_slice %22 {offsets = [33, 0], sizes = [2, 112], strides = [1, 1]} : vector<72x112xf32> to vector<2x112xf32>
    %288 = vector.extract_strided_slice %22 {offsets = [60, 0], sizes = [2, 112], strides = [1, 1]} : vector<72x112xf32> to vector<2x112xf32>
    %289 = vector.extract_strided_slice %22 {offsets = [69, 0], sizes = [2, 112], strides = [1, 1]} : vector<72x112xf32> to vector<2x112xf32>
    %290 = tpu.concatenate %286, %287, %24, %288, %289, %24 in 0 : vector<2x112xf32>, vector<2x112xf32>, vector<2x112xf32>, vector<2x112xf32>, vector<2x112xf32>, vector<2x112xf32> -> vector<12x112xf32>
    %291 = vector.extract_strided_slice %22 {offsets = [25, 0], sizes = [2, 112], strides = [1, 1]} : vector<72x112xf32> to vector<2x112xf32>
    %292 = vector.extract_strided_slice %22 {offsets = [34, 0], sizes = [2, 112], strides = [1, 1]} : vector<72x112xf32> to vector<2x112xf32>
    %293 = vector.extract_strided_slice %22 {offsets = [61, 0], sizes = [2, 112], strides = [1, 1]} : vector<72x112xf32> to vector<2x112xf32>
    %294 = vector.extract_strided_slice %22 {offsets = [70, 0], sizes = [2, 112], strides = [1, 1]} : vector<72x112xf32> to vector<2x112xf32>
    %295 = tpu.concatenate %291, %292, %24, %293, %294, %24 in 0 : vector<2x112xf32>, vector<2x112xf32>, vector<2x112xf32>, vector<2x112xf32>, vector<2x112xf32>, vector<2x112xf32> -> vector<12x112xf32>
    %296 = vector.extract_strided_slice %22 {offsets = [26, 0], sizes = [1, 112], strides = [1, 1]} : vector<72x112xf32> to vector<1x112xf32>
    %297 = tpu.concatenate %296, %23 in 0 : vector<1x112xf32>, vector<1x112xf32> -> vector<2x112xf32>
    %298 = vector.extract_strided_slice %22 {offsets = [35, 0], sizes = [1, 112], strides = [1, 1]} : vector<72x112xf32> to vector<1x112xf32>
    %299 = tpu.concatenate %298, %23 in 0 : vector<1x112xf32>, vector<1x112xf32> -> vector<2x112xf32>
    %300 = vector.extract_strided_slice %22 {offsets = [62, 0], sizes = [1, 112], strides = [1, 1]} : vector<72x112xf32> to vector<1x112xf32>
    %301 = tpu.concatenate %300, %23 in 0 : vector<1x112xf32>, vector<1x112xf32> -> vector<2x112xf32>
    %302 = vector.extract_strided_slice %22 {offsets = [71, 0], sizes = [1, 112], strides = [1, 1]} : vector<72x112xf32> to vector<1x112xf32>
    %303 = tpu.concatenate %302, %23 in 0 : vector<1x112xf32>, vector<1x112xf32> -> vector<2x112xf32>
    %304 = tpu.concatenate %297, %299, %24, %301, %303, %24 in 0 : vector<2x112xf32>, vector<2x112xf32>, vector<2x112xf32>, vector<2x112xf32>, vector<2x112xf32>, vector<2x112xf32> -> vector<12x112xf32>
    %305 = tpu.concatenate %33, %38, %43, %48, %53, %58, %63, %68, %73, %82, %95, %102, %109, %116, %123, %130 in 1 : vector<12x112xf32>, vector<12x112xf32>, vector<12x112xf32>, vector<12x112xf32>, vector<12x112xf32>, vector<12x112xf32>, vector<12x112xf32>, vector<12x112xf32>, vector<12x112xf32>, vector<12x112xf32>, vector<12x112xf32>, vector<12x112xf32>, vector<12x112xf32>, vector<12x112xf32>, vector<12x112xf32>, vector<12x112xf32> -> vector<12x1792xf32>
    %306 = tpu.concatenate %137, %144, %151, %164, %177, %184, %191, %198, %205, %212, %219, %226, %233, %246, %255, %260 in 1 : vector<12x112xf32>, vector<12x112xf32>, vector<12x112xf32>, vector<12x112xf32>, vector<12x112xf32>, vector<12x112xf32>, vector<12x112xf32>, vector<12x112xf32>, vector<12x112xf32>, vector<12x112xf32>, vector<12x112xf32>, vector<12x112xf32>, vector<12x112xf32>, vector<12x112xf32>, vector<12x112xf32>, vector<12x112xf32> -> vector<12x1792xf32>
    %307 = tpu.concatenate %265, %270, %275, %280, %285, %290, %295, %304 in 1 : vector<12x112xf32>, vector<12x112xf32>, vector<12x112xf32>, vector<12x112xf32>, vector<12x112xf32>, vector<12x112xf32>, vector<12x112xf32>, vector<12x112xf32> -> vector<12x896xf32>
    %308 = tpu.concatenate %305, %306, %307 in 1 : vector<12x1792xf32>, vector<12x1792xf32>, vector<12x896xf32> -> vector<12x4480xf32>
    %309 = arith.truncf %308 : vector<12x4480xf32> to vector<12x4480xbf16>
    %c0_9 = arith.constant 0 : index
    %c0_10 = arith.constant 0 : index
    %310 = vector.load %arg4[%c0_9, %c0_10] : memref<4480x224xbf16, #tpu.memory_space<vmem>>, vector<4480x224xbf16>
    %cst_11 = arith.constant dense<0.000000e+00> : vector<12x224xf32>
    %311 = tpu.matmul %309, %310, %cst_11 {dimension_numbers = #tpu.dot_dimension_numbers<[1], [0], [0], [1], [0, 0, 1, 1], [], []>} : vector<12x4480xbf16>, vector<4480x224xbf16>, vector<12x224xf32> -> vector<12x224xf32>
    %c0_12 = arith.constant 0 : index
    %c0_13 = arith.constant 0 : index
    %312 = vector.load %arg5[%c0_12, %c0_13] : memref<1x224xf32, #tpu.memory_space<vmem>>, vector<1x224xf32>
    %313 = vector.broadcast %312 : vector<1x224xf32> to vector<12x224xf32>
    %314 = arith.addf %311, %313 : vector<12x224xf32>
    %cst_14 = arith.constant 0.000000e+00 : f32
    %315 = vector.broadcast %cst_14 : f32 to vector<12x224xf32>
    %316 = arith.cmpf oge, %314, %315 : vector<12x224xf32>
    %cst_15 = arith.constant 0.00999999977 : f32
    %317 = vector.broadcast %cst_15 : f32 to vector<12x224xf32>
    %318 = arith.mulf %317, %314 : vector<12x224xf32>
    %319 = arith.select %316, %314, %318 : vector<12x224xi1>, vector<12x224xf32>
    %320 = vector.extract_strided_slice %319 {offsets = [0, 0], sizes = [6, 224], strides = [1, 1]} : vector<12x224xf32> to vector<6x224xf32>
    %cst_16 = arith.constant dense<0xFF800000> : vector<224xf32>
    %321 = vector.multi_reduction <maximumf>, %320, %cst_16 [0] : vector<6x224xf32> to vector<224xf32>
    %322 = vector.shape_cast %321 : vector<224xf32> to vector<1x224xf32>
    %323 = vector.extract_strided_slice %319 {offsets = [6, 0], sizes = [6, 224], strides = [1, 1]} : vector<12x224xf32> to vector<6x224xf32>
    %cst_17 = arith.constant dense<0xFF800000> : vector<224xf32>
    %324 = vector.multi_reduction <maximumf>, %323, %cst_17 [0] : vector<6x224xf32> to vector<224xf32>
    %325 = vector.shape_cast %324 : vector<224xf32> to vector<1x224xf32>
    %326 = tpu.concatenate %322, %325 in 0 : vector<1x224xf32>, vector<1x224xf32> -> vector<2x224xf32>
    %c0_18 = arith.constant 0 : index
    %c0_19 = arith.constant 0 : index
    %327 = vector.load %arg6[%c0_18, %c0_19] : memref<224x5xf32, #tpu.memory_space<vmem>>, vector<224x5xf32>
    %cst_20 = arith.constant dense<0.000000e+00> : vector<2x5xf32>
    %328 = tpu.matmul %326, %327, %cst_20 {dimension_numbers = #tpu.dot_dimension_numbers<[1], [0], [0], [1], [0, 0, 1, 1], [], []>} : vector<2x224xf32>, vector<224x5xf32>, vector<2x5xf32> -> vector<2x5xf32>
    %c0_21 = arith.constant 0 : index
    %c0_22 = arith.constant 0 : index
    %329 = vector.load %arg7[%c0_21, %c0_22] : memref<1x5xf32, #tpu.memory_space<vmem>>, vector<1x5xf32>
    %330 = vector.broadcast %329 : vector<1x5xf32> to vector<2x5xf32>
    %331 = arith.addf %328, %330 : vector<2x5xf32>
    %c0_23 = arith.constant 0 : index
    %c0_24 = arith.constant 0 : index
    %332 = vector.load %arg8[%c0_23, %c0_24] : memref<2x5xf32, #tpu.memory_space<vmem>>, vector<2x5xf32>
    tpu.vector_store %arg8[%c0_23, %c0_24], %331 {strides = array<i32>} : memref<2x5xf32, #tpu.memory_space<vmem>>, vector<2x5xf32>,
    return
  }
  func.func @transform_0(%arg0: i32) -> (i32, i32) {
    %c0_i32 = arith.constant 0 : i32
    %c0_i32_0 = arith.constant 0 : i32
    %c0_i32_1 = arith.constant 0 : i32
    return %c0_i32, %c0_i32_0 : i32, i32
  }
  func.func @transform_1(%arg0: i32) -> (i32, i32) {
    %c0_i32 = arith.constant 0 : i32
    %c0_i32_0 = arith.constant 0 : i32
    %c0_i32_1 = arith.constant 0 : i32
    return %c0_i32, %c0_i32_0 : i32, i32
  }
  func.func @transform_2(%arg0: i32) -> (i32, i32) {
    %c0_i32 = arith.constant 0 : i32
    %c0_i32_0 = arith.constant 0 : i32
    %c0_i32_1 = arith.constant 0 : i32
    return %c0_i32, %c0_i32_0 : i32, i32
  }
  func.func @transform_3(%arg0: i32) -> (i32, i32) {
    %c0_i32 = arith.constant 0 : i32
    %c0_i32_0 = arith.constant 0 : i32
    %c0_i32_1 = arith.constant 0 : i32
    return %c0_i32, %c0_i32_0 : i32, i32
  }
  func.func @transform_4(%arg0: i32) -> (i32, i32) {
    %c0_i32 = arith.constant 0 : i32
    %c0_i32_0 = arith.constant 0 : i32
    %c0_i32_1 = arith.constant 0 : i32
    return %c0_i32, %c0_i32_0 : i32, i32
  }
  func.func @transform_5(%arg0: i32) -> (i32, i32) {
    %c0_i32 = arith.constant 0 : i32
    %c0_i32_0 = arith.constant 0 : i32
    %c0_i32_1 = arith.constant 0 : i32
    return %c0_i32, %c0_i32_0 : i32, i32
  }
  func.func @transform_6(%arg0: i32) -> (i32, i32) {
    %c0_i32 = arith.constant 0 : i32
    %c0_i32_0 = arith.constant 0 : i32
    %c0_i32_1 = arith.constant 0 : i32
    return %c0_i32, %c0_i32_0 : i32, i32
  }
  func.func @transform_7(%arg0: i32) -> (i32, i32) {
    %c0_i32 = arith.constant 0 : i32
    %c0_i32_0 = arith.constant 0 : i32
    %c0_i32_1 = arith.constant 0 : i32
    return %c0_i32, %c0_i32_0 : i32, i32
  }
}

</mosaic_0001>

<llo_original>
// kernel: smallnet_forward.1
$region0: #{smallnet_forward.1}
  #allocation0 [shape = 'u32[]', space=smem, size = 0x4, offset = 0x4, fixed_abs, tag = 'smem constant byte address 0x4 - core index']
  #allocation1 [shape = 'u32[144,128]{1,0:T(1,128)}', space=vmem, size = 0x12000, scoped, tag = 'internal scratch']
  %s0 = inlined_call_operand.vmem [shape: bf16[288,624], index: 0, kind: input, shape index: {}]
  %s1 = inlined_call_operand.vmem [shape: bf16[624,336], index: 1, kind: input, shape index: {}]
  %s2 = inlined_call_operand.vmem [shape: f32[1,336], index: 2, kind: input, shape index: {}]
  %s3 = inlined_call_operand.vmem [shape: bf16[4480,224], index: 3, kind: input, shape index: {}]
  %s4 = inlined_call_operand.vmem [shape: f32[1,224], index: 4, kind: input, shape index: {}]
  %s5 = inlined_call_operand.vmem [shape: f32[224,5], index: 5, kind: input, shape index: {}]
  %s6 = inlined_call_operand.vmem [shape: f32[1,5], index: 6, kind: input, shape index: {}]
  %s7 = inlined_call_operand.hbm [shape: f32[2,5], index: 7, kind: output, shape index: {}]
  %s8 = sld [smem:[#allocation0]]
  $region38: #{smallnet_forward.1} parent=0
    _
  %s10 = ssub.s32 1, %s8
  %s11 = scalar_select 0, %s10, %s8
  $region1: #{smallnet_forward.1} parent=0
    #allocation2 [shape = 'u8[1024]{0}', space=vmem, size = 0x400, scoped, tag = 'output window, operand 0, single buffered']
    #allocation3 [shape = 's32[1]{0}', space=sflag, size = 0x4, scoped, tag = 'scoped memory for smallnet_forward.1']
    %12 = vsyncpa [#allocation3], 0
    // Predicated region
    $region2: #{smallnet_forward.1} parent=1 // pred_check
      _
    $region3: #{smallnet_forward.1} parent=1 // pred_check_branch
      %14 = sbr.rel (0) target = $region5
    $region4: #{smallnet_forward.1} parent=1 // pred_region
      _
    $region5: #{smallnet_forward.1} parent=1 // pred_fallthru
      _
    // Predicated region
    $region6: #{smallnet_forward.1} parent=1 // pred_check
      _
    $region7: #{smallnet_forward.1} parent=1 // pred_check_branch
      %16 = sbr.rel (0) target = $region9
    $region8: #{smallnet_forward.1} parent=1 // pred_region
      _
    $region9: #{smallnet_forward.1} parent=1 // pred_fallthru
      _
    // Predicated region
    $region10: #{smallnet_forward.1} parent=1 // pred_check
      _
    $region11: #{smallnet_forward.1} parent=1 // pred_check_branch
      %18 = sbr.rel (0) target = $region13
    $region12: #{smallnet_forward.1} parent=1 // pred_region
      _
    $region13: #{smallnet_forward.1} parent=1 // pred_fallthru
      _
    // Predicated region
    $region14: #{smallnet_forward.1} parent=1 // pred_check
      _
    $region15: #{smallnet_forward.1} parent=1 // pred_check_branch
      %20 = sbr.rel (0) target = $region17
    $region16: #{smallnet_forward.1} parent=1 // pred_region
      _
    $region17: #{smallnet_forward.1} parent=1 // pred_fallthru
      _
    // Predicated region
    $region18: #{smallnet_forward.1} parent=1 // pred_check
      _
    $region19: #{smallnet_forward.1} parent=1 // pred_check_branch
      %22 = sbr.rel (0) target = $region21
    $region20: #{smallnet_forward.1} parent=1 // pred_region
      _
    $region21: #{smallnet_forward.1} parent=1 // pred_fallthru
      _
    // Predicated region
    $region22: #{smallnet_forward.1} parent=1 // pred_check
      _
    $region23: #{smallnet_forward.1} parent=1 // pred_check_branch
      %24 = sbr.rel (0) target = $region25
    $region24: #{smallnet_forward.1} parent=1 // pred_region
      _
    $region25: #{smallnet_forward.1} parent=1 // pred_fallthru
      _
    // Predicated region
    $region26: #{smallnet_forward.1} parent=1 // pred_check
      _
    $region27: #{smallnet_forward.1} parent=1 // pred_check_branch
      %26 = sbr.rel (0) target = $region29
    $region28: #{smallnet_forward.1} parent=1 // pred_region
      _
    $region29: #{smallnet_forward.1} parent=1 // pred_fallthru
      _
    %v28 = vld [vmem:[%s0] sm:$0xff]
    %v29 = vld [vmem:[%s0 + $0x8] sm:$0xff]
    %v30 = vld [vmem:[%s0 + $0x10] sm:$0xf]
    %v31 = vld [vmem:[%s0 + $0x14] sm:$0xff]
    %v32 = vld [vmem:[%s0 + $0x1c] sm:$0xff]
    %v33 = vld [vmem:[%s0 + $0x24] sm:$0xf]
    %v34 = vld [vmem:[%s0 + $0x28] sm:$0xff]
    %v35 = vld [vmem:[%s0 + $0x30] sm:$0xff]
    %v36 = vld [vmem:[%s0 + $0x38] sm:$0xf]
    %v37 = vld [vmem:[%s0 + $0x3c] sm:$0xff]
    %v38 = vld [vmem:[%s0 + $0x44] sm:$0xff]
    %v39 = vld [vmem:[%s0 + $0x4c] sm:$0xf]
    %v40 = vld [vmem:[%s0 + $0x50] sm:$0xff]
    %v41 = vld [vmem:[%s0 + $0x58] sm:$0xff]
    %v42 = vld [vmem:[%s0 + $0x60] sm:$0xf]
    %v43 = vld [vmem:[%s0 + $0x64] sm:$0xff]
    %v44 = vld [vmem:[%s0 + $0x6c] sm:$0xff]
    %v45 = vld [vmem:[%s0 + $0x74] sm:$0xf]
    %v46 = vld [vmem:[%s0 + $0x78] sm:$0xff]
    %v47 = vld [vmem:[%s0 + $0x80] sm:$0xff]
    %v48 = vld [vmem:[%s0 + $0x88] sm:$0xf]
    %v49 = vld [vmem:[%s0 + $0x8c] sm:$0xff]
    %v50 = vld [vmem:[%s0 + $0x94] sm:$0xff]
    %v51 = vld [vmem:[%s0 + $0x9c] sm:$0xf]
    %v52 = vld [vmem:[%s0 + $0xa0] sm:$0xff]
    %v53 = vld [vmem:[%s0 + $0xa8] sm:$0xff]
    %v54 = vld [vmem:[%s0 + $0xb0] sm:$0xf]
    %v55 = vld [vmem:[%s0 + $0xb4] sm:$0xff]
    %v56 = vld [vmem:[%s0 + $0xbc] sm:$0xff]
    %v57 = vld [vmem:[%s0 + $0xc4] sm:$0xf]
    %v58 = vld [vmem:[%s0 + $0xc8] sm:$0xff]
    %v59 = vld [vmem:[%s0 + $0xd0] sm:$0xff]
    %v60 = vld [vmem:[%s0 + $0xd8] sm:$0xf]
    %v61 = vld [vmem:[%s0 + $0xdc] sm:$0xff]
    %v62 = vld [vmem:[%s0 + $0xe4] sm:$0xff]
    %v63 = vld [vmem:[%s0 + $0xec] sm:$0xf]
    %v64 = vld [vmem:[%s0 + $0xf0] sm:$0xff]
    %v65 = vld [vmem:[%s0 + $0xf8] sm:$0xff]
    %v66 = vld [vmem:[%s0 + $0x100] sm:$0xf]
    %v67 = vld [vmem:[%s0 + $0x104] sm:$0xff]
    %v68 = vld [vmem:[%s0 + $0x10c] sm:$0xff]
    %v69 = vld [vmem:[%s0 + $0x114] sm:$0xf]
    %v70 = vld [vmem:[%s0 + $0x118] sm:$0xff]
    %v71 = vld [vmem:[%s0 + $0x120] sm:$0xff]
    %v72 = vld [vmem:[%s0 + $0x128] sm:$0xf]
    %v73 = vld [vmem:[%s0 + $0x12c] sm:$0xff]
    %v74 = vld [vmem:[%s0 + $0x134] sm:$0xff]
    %v75 = vld [vmem:[%s0 + $0x13c] sm:$0xf]
    %v76 = vld [vmem:[%s0 + $0x140] sm:$0xff]
    %v77 = vld [vmem:[%s0 + $0x148] sm:$0xff]
    %v78 = vld [vmem:[%s0 + $0x150] sm:$0xf]
    %v79 = vld [vmem:[%s0 + $0x154] sm:$0xff]
    %v80 = vld [vmem:[%s0 + $0x15c] sm:$0xff]
    %v81 = vld [vmem:[%s0 + $0x164] sm:$0xf]
    %v82 = vld [vmem:[%s0 + $0x168] sm:$0xff]
    %v83 = vld [vmem:[%s0 + $0x170] sm:$0xff]
    %v84 = vld [vmem:[%s0 + $0x178] sm:$0xf]
    %v85 = vld [vmem:[%s0 + $0x17c] sm:$0xff]
    %v86 = vld [vmem:[%s0 + $0x184] sm:$0xff]
    %v87 = vld [vmem:[%s0 + $0x18c] sm:$0xf]
    %v88 = vld [vmem:[%s0 + $0x190] sm:$0xff]
    %v89 = vld [vmem:[%s0 + $0x198] sm:$0xff]
    %v90 = vld [vmem:[%s0 + $0x1a0] sm:$0xf]
    %v91 = vld [vmem:[%s0 + $0x1a4] sm:$0xff]
    %v92 = vld [vmem:[%s0 + $0x1ac] sm:$0xff]
    %v93 = vld [vmem:[%s0 + $0x1b4] sm:$0xf]
    %v94 = vld [vmem:[%s0 + $0x1b8] sm:$0xff]
    %v95 = vld [vmem:[%s0 + $0x1c0] sm:$0xff]
    %v96 = vld [vmem:[%s0 + $0x1c8] sm:$0xf]
    %v97 = vld [vmem:[%s0 + $0x1cc] sm:$0xff]
    %v98 = vld [vmem:[%s0 + $0x1d4] sm:$0xff]
    %v99 = vld [vmem:[%s0 + $0x1dc] sm:$0xf]
    %v100 = vld [vmem:[%s0 + $0x1e0] sm:$0xff]
    %v101 = vld [vmem:[%s0 + $0x1e8] sm:$0xff]
    %v102 = vld [vmem:[%s0 + $0x1f0] sm:$0xf]
    %v103 = vld [vmem:[%s0 + $0x1f4] sm:$0xff]
    %v104 = vld [vmem:[%s0 + $0x1fc] sm:$0xff]
    %v105 = vld [vmem:[%s0 + $0x204] sm:$0xf]
    %v106 = vld [vmem:[%s0 + $0x208] sm:$0xff]
    %v107 = vld [vmem:[%s0 + $0x210] sm:$0xff]
    %v108 = vld [vmem:[%s0 + $0x218] sm:$0xf]
    %v109 = vld [vmem:[%s0 + $0x21c] sm:$0xff]
    %v110 = vld [vmem:[%s0 + $0x224] sm:$0xff]
    %v111 = vld [vmem:[%s0 + $0x22c] sm:$0xf]
    %v112 = vld [vmem:[%s0 + $0x230] sm:$0xff]
    %v113 = vld [vmem:[%s0 + $0x238] sm:$0xff]
    %v114 = vld [vmem:[%s0 + $0x240] sm:$0xf]
    %v115 = vld [vmem:[%s0 + $0x244] sm:$0xff]
    %v116 = vld [vmem:[%s0 + $0x24c] sm:$0xff]
    %v117 = vld [vmem:[%s0 + $0x254] sm:$0xf]
    %v118 = vld [vmem:[%s0 + $0x258] sm:$0xff]
    %v119 = vld [vmem:[%s0 + $0x260] sm:$0xff]
    %v120 = vld [vmem:[%s0 + $0x268] sm:$0xf]
    %v121 = vld [vmem:[%s0 + $0x26c] sm:$0xff]
    %v122 = vld [vmem:[%s0 + $0x274] sm:$0xff]
    %v123 = vld [vmem:[%s0 + $0x27c] sm:$0xf]
    %v124 = vld [vmem:[%s0 + $0x280] sm:$0xff]
    %v125 = vld [vmem:[%s0 + $0x288] sm:$0xff]
    %v126 = vld [vmem:[%s0 + $0x290] sm:$0xf]
    %v127 = vld [vmem:[%s0 + $0x294] sm:$0xff]
    %v128 = vld [vmem:[%s0 + $0x29c] sm:$0xff]
    %v129 = vld [vmem:[%s0 + $0x2a4] sm:$0xf]
    %v130 = vld [vmem:[%s0 + $0x2a8] sm:$0xff]
    %v131 = vld [vmem:[%s0 + $0x2b0] sm:$0xff]
    %v132 = vld [vmem:[%s0 + $0x2b8] sm:$0xf]
    %v133 = vld [vmem:[%s0 + $0x2bc] sm:$0xff]
    %v134 = vld [vmem:[%s0 + $0x2c4] sm:$0xff]
    %v135 = vld [vmem:[%s0 + $0x2cc] sm:$0xf]
    %v136 = vld [vmem:[%s1] sm:$0xff]
    %v137 = vld [vmem:[%s1 + $0x8] sm:$0xf]
    %v138 = vld [vmem:[%s1 + $0xc] sm:$0xff]
    %v139 = vld [vmem:[%s1 + $0x14] sm:$0xf]
    %v140 = vld [vmem:[%s1 + $0x18] sm:$0xff]
    %v141 = vld [vmem:[%s1 + $0x20] sm:$0xf]
    %v142 = vld [vmem:[%s1 + $0x24] sm:$0xff]
    %v143 = vld [vmem:[%s1 + $0x2c] sm:$0xf]
    %v144 = vld [vmem:[%s1 + $0x30] sm:$0xff]
    %v145 = vld [vmem:[%s1 + $0x38] sm:$0xf]
    %v146 = vld [vmem:[%s1 + $0x3c] sm:$0xff]
    %v147 = vld [vmem:[%s1 + $0x44] sm:$0xf]
    %v148 = vld [vmem:[%s1 + $0x48] sm:$0xff]
    %v149 = vld [vmem:[%s1 + $0x50] sm:$0xf]
    %v150 = vld [vmem:[%s1 + $0x54] sm:$0xff]
    %v151 = vld [vmem:[%s1 + $0x5c] sm:$0xf]
    %v152 = vld [vmem:[%s1 + $0x60] sm:$0xff]
    %v153 = vld [vmem:[%s1 + $0x68] sm:$0xf]
    %v154 = vld [vmem:[%s1 + $0x6c] sm:$0xff]
    %v155 = vld [vmem:[%s1 + $0x74] sm:$0xf]
    %v156 = vld [vmem:[%s1 + $0x78] sm:$0xff]
    %v157 = vld [vmem:[%s1 + $0x80] sm:$0xf]
    %v158 = vld [vmem:[%s1 + $0x84] sm:$0xff]
    %v159 = vld [vmem:[%s1 + $0x8c] sm:$0xf]
    %v160 = vld [vmem:[%s1 + $0x90] sm:$0xff]
    %v161 = vld [vmem:[%s1 + $0x98] sm:$0xf]
    %v162 = vld [vmem:[%s1 + $0x9c] sm:$0xff]
    %v163 = vld [vmem:[%s1 + $0xa4] sm:$0xf]
    %v164 = vld [vmem:[%s1 + $0xa8] sm:$0xff]
    %v165 = vld [vmem:[%s1 + $0xb0] sm:$0xf]
    %v166 = vld [vmem:[%s1 + $0xb4] sm:$0xff]
    %v167 = vld [vmem:[%s1 + $0xbc] sm:$0xf]
    %v168 = vld [vmem:[%s1 + $0xc0] sm:$0xff]
    %v169 = vld [vmem:[%s1 + $0xc8] sm:$0xf]
    %v170 = vld [vmem:[%s1 + $0xcc] sm:$0xff]
    %v171 = vld [vmem:[%s1 + $0xd4] sm:$0xf]
    %v172 = vld [vmem:[%s1 + $0xd8] sm:$0xff]
    %v173 = vld [vmem:[%s1 + $0xe0] sm:$0xf]
    %v174 = vld [vmem:[%s1 + $0xe4] sm:$0xff]
    %v175 = vld [vmem:[%s1 + $0xec] sm:$0xf]
    %v176 = vld [vmem:[%s1 + $0xf0] sm:$0xff]
    %v177 = vld [vmem:[%s1 + $0xf8] sm:$0xf]
    %v178 = vld [vmem:[%s1 + $0xfc] sm:$0xff]
    %v179 = vld [vmem:[%s1 + $0x104] sm:$0xf]
    %v180 = vld [vmem:[%s1 + $0x108] sm:$0xff]
    %v181 = vld [vmem:[%s1 + $0x110] sm:$0xf]
    %v182 = vld [vmem:[%s1 + $0x114] sm:$0xff]
    %v183 = vld [vmem:[%s1 + $0x11c] sm:$0xf]
    %v184 = vld [vmem:[%s1 + $0x120] sm:$0xff]
    %v185 = vld [vmem:[%s1 + $0x128] sm:$0xf]
    %v186 = vld [vmem:[%s1 + $0x12c] sm:$0xff]
    %v187 = vld [vmem:[%s1 + $0x134] sm:$0xf]
    %v188 = vld [vmem:[%s1 + $0x138] sm:$0xff]
    %v189 = vld [vmem:[%s1 + $0x140] sm:$0xf]
    %v190 = vld [vmem:[%s1 + $0x144] sm:$0xff]
    %v191 = vld [vmem:[%s1 + $0x14c] sm:$0xf]
    %v192 = vld [vmem:[%s1 + $0x150] sm:$0xff]
    %v193 = vld [vmem:[%s1 + $0x158] sm:$0xf]
    %v194 = vld [vmem:[%s1 + $0x15c] sm:$0xff]
    %v195 = vld [vmem:[%s1 + $0x164] sm:$0xf]
    %v196 = vld [vmem:[%s1 + $0x168] sm:$0xff]
    %v197 = vld [vmem:[%s1 + $0x170] sm:$0xf]
    %v198 = vld [vmem:[%s1 + $0x174] sm:$0xff]
    %v199 = vld [vmem:[%s1 + $0x17c] sm:$0xf]
    %v200 = vld [vmem:[%s1 + $0x180] sm:$0xff]
    %v201 = vld [vmem:[%s1 + $0x188] sm:$0xf]
    %v202 = vld [vmem:[%s1 + $0x18c] sm:$0xff]
    %v203 = vld [vmem:[%s1 + $0x194] sm:$0xf]
    %v204 = vld [vmem:[%s1 + $0x198] sm:$0xff]
    %v205 = vld [vmem:[%s1 + $0x1a0] sm:$0xf]
    %v206 = vld [vmem:[%s1 + $0x1a4] sm:$0xff]
    %v207 = vld [vmem:[%s1 + $0x1ac] sm:$0xf]
    %v208 = vld [vmem:[%s1 + $0x1b0] sm:$0xff]
    %v209 = vld [vmem:[%s1 + $0x1b8] sm:$0xf]
    %v210 = vld [vmem:[%s1 + $0x1bc] sm:$0xff]
    %v211 = vld [vmem:[%s1 + $0x1c4] sm:$0xf]
    %v212 = vld [vmem:[%s1 + $0x1c8] sm:$0xff]
    %v213 = vld [vmem:[%s1 + $0x1d0] sm:$0xf]
    %v214 = vld [vmem:[%s1 + $0x1d4] sm:$0xff]
    %v215 = vld [vmem:[%s1 + $0x1dc] sm:$0xf]
    %v216 = vld [vmem:[%s1 + $0x1e0] sm:$0xff]
    %v217 = vld [vmem:[%s1 + $0x1e8] sm:$0xf]
    %v218 = vld [vmem:[%s1 + $0x1ec] sm:$0xff]
    %v219 = vld [vmem:[%s1 + $0x1f4] sm:$0xf]
    %v220 = vld [vmem:[%s1 + $0x1f8] sm:$0xff]
    %v221 = vld [vmem:[%s1 + $0x200] sm:$0xf]
    %v222 = vld [vmem:[%s1 + $0x204] sm:$0xff]
    %v223 = vld [vmem:[%s1 + $0x20c] sm:$0xf]
    %v224 = vld [vmem:[%s1 + $0x210] sm:$0xff]
    %v225 = vld [vmem:[%s1 + $0x218] sm:$0xf]
    %v226 = vld [vmem:[%s1 + $0x21c] sm:$0xff]
    %v227 = vld [vmem:[%s1 + $0x224] sm:$0xf]
    %v228 = vld [vmem:[%s1 + $0x228] sm:$0xff]
    %v229 = vld [vmem:[%s1 + $0x230] sm:$0xf]
    %v230 = vld [vmem:[%s1 + $0x234] sm:$0xff]
    %v231 = vld [vmem:[%s1 + $0x23c] sm:$0xf]
    %v232 = vld [vmem:[%s1 + $0x240] sm:$0xff]
    %v233 = vld [vmem:[%s1 + $0x248] sm:$0xf]
    %v234 = vld [vmem:[%s1 + $0x24c] sm:$0xff]
    %v235 = vld [vmem:[%s1 + $0x254] sm:$0xf]
    %v236 = vld [vmem:[%s1 + $0x258] sm:$0xff]
    %v237 = vld [vmem:[%s1 + $0x260] sm:$0xf]
    %v238 = vld [vmem:[%s1 + $0x264] sm:$0xff]
    %v239 = vld [vmem:[%s1 + $0x26c] sm:$0xf]
    %v240 = vld [vmem:[%s1 + $0x270] sm:$0xff]
    %v241 = vld [vmem:[%s1 + $0x278] sm:$0xf]
    %v242 = vld [vmem:[%s1 + $0x27c] sm:$0xff]
    %v243 = vld [vmem:[%s1 + $0x284] sm:$0xf]
    %v244 = vld [vmem:[%s1 + $0x288] sm:$0xff]
    %v245 = vld [vmem:[%s1 + $0x290] sm:$0xf]
    %v246 = vld [vmem:[%s1 + $0x294] sm:$0xff]
    %v247 = vld [vmem:[%s1 + $0x29c] sm:$0xf]
    %v248 = vld [vmem:[%s1 + $0x2a0] sm:$0xff]
    %v249 = vld [vmem:[%s1 + $0x2a8] sm:$0xf]
    %v250 = vld [vmem:[%s1 + $0x2ac] sm:$0xff]
    %v251 = vld [vmem:[%s1 + $0x2b4] sm:$0xf]
    %v252 = vld [vmem:[%s1 + $0x2b8] sm:$0xff]
    %v253 = vld [vmem:[%s1 + $0x2c0] sm:$0xf]
    %v254 = vld [vmem:[%s1 + $0x2c4] sm:$0xff]
    %v255 = vld [vmem:[%s1 + $0x2cc] sm:$0xf]
    %v256 = vld [vmem:[%s1 + $0x2d0] sm:$0xff]
    %v257 = vld [vmem:[%s1 + $0x2d8] sm:$0xf]
    %v258 = vld [vmem:[%s1 + $0x2dc] sm:$0xff]
    %v259 = vld [vmem:[%s1 + $0x2e4] sm:$0xf]
    %v260 = vld [vmem:[%s1 + $0x2e8] sm:$0xff]
    %v261 = vld [vmem:[%s1 + $0x2f0] sm:$0xf]
    %v262 = vld [vmem:[%s1 + $0x2f4] sm:$0xff]
    %v263 = vld [vmem:[%s1 + $0x2fc] sm:$0xf]
    %v264 = vld [vmem:[%s1 + $0x300] sm:$0xff]
    %v265 = vld [vmem:[%s1 + $0x308] sm:$0xf]
    %v266 = vld [vmem:[%s1 + $0x30c] sm:$0xff]
    %v267 = vld [vmem:[%s1 + $0x314] sm:$0xf]
    %v268 = vld [vmem:[%s1 + $0x318] sm:$0xff]
    %v269 = vld [vmem:[%s1 + $0x320] sm:$0xf]
    %v270 = vld [vmem:[%s1 + $0x324] sm:$0xff]
    %v271 = vld [vmem:[%s1 + $0x32c] sm:$0xf]
    %v272 = vld [vmem:[%s1 + $0x330] sm:$0xff]
    %v273 = vld [vmem:[%s1 + $0x338] sm:$0xf]
    %v274 = vld [vmem:[%s1 + $0x33c] sm:$0xff]
    %v275 = vld [vmem:[%s1 + $0x344] sm:$0xf]
    %v276 = vld [vmem:[%s1 + $0x348] sm:$0xff]
    %v277 = vld [vmem:[%s1 + $0x350] sm:$0xf]
    %v278 = vld [vmem:[%s1 + $0x354] sm:$0xff]
    %v279 = vld [vmem:[%s1 + $0x35c] sm:$0xf]
    %v280 = vld [vmem:[%s1 + $0x360] sm:$0xff]
    %v281 = vld [vmem:[%s1 + $0x368] sm:$0xf]
    %v282 = vld [vmem:[%s1 + $0x36c] sm:$0xff]
    %v283 = vld [vmem:[%s1 + $0x374] sm:$0xf]
    %v284 = vld [vmem:[%s1 + $0x378] sm:$0xff]
    %v285 = vld [vmem:[%s1 + $0x380] sm:$0xf]
    %v286 = vld [vmem:[%s1 + $0x384] sm:$0xff]
    %v287 = vld [vmem:[%s1 + $0x38c] sm:$0xf]
    %v288 = vld [vmem:[%s1 + $0x390] sm:$0xff]
    %v289 = vld [vmem:[%s1 + $0x398] sm:$0xf]
    %v290 = vld [vmem:[%s1 + $0x39c] sm:$0xff]
    %v291 = vld [vmem:[%s1 + $0x3a4] sm:$0xf]
    %v292 = vld [vmem:[%s2] sm:$0x7]
    %v294 = vlaneseq
    %v295 = vshrl.u32 %v294, 7
    %v296 = vsub.s32 0, %v295
    %v297 = vrot.slane %v292, %v296
    %v298 = vlaneseq
    %v299 = vshrl.u32 %v298, 7
    %v300 = vsub.s32 1, %v299
    %v301 = vrot.slane %v292, %v300
    %v302 = vlaneseq
    %v303 = vshrl.u32 %v302, 7
    %v304 = vsub.s32 2, %v303
    %v305 = vrot.slane %v292, %v304
    %v417 = vunpack.c.l.b16 %v28
    %v418 = vunpack.c.h.b16 %v28
    %v419 = vunpack.c.l.b16 %v29
    %v420 = vunpack.c.h.b16 %v29
    %v421 = vunpack.c.l.b16 %v30
    %v422 = vunpack.c.l.b16 %v31
    %v423 = vunpack.c.h.b16 %v31
    %v424 = vunpack.c.l.b16 %v32
    %v425 = vunpack.c.h.b16 %v32
    %v426 = vunpack.c.l.b16 %v33
    %v427 = vunpack.c.l.b16 %v34
    %v428 = vunpack.c.h.b16 %v34
    %v429 = vunpack.c.l.b16 %v35
    %v430 = vunpack.c.h.b16 %v35
    %v431 = vunpack.c.l.b16 %v36
    %v432 = vunpack.c.l.b16 %v37
    %v433 = vunpack.c.h.b16 %v37
    %v434 = vunpack.c.l.b16 %v38
    %v435 = vunpack.c.h.b16 %v38
    %v436 = vunpack.c.l.b16 %v39
    %v437 = vunpack.c.l.b16 %v40
    %v438 = vunpack.c.h.b16 %v40
    %v439 = vunpack.c.l.b16 %v41
    %v440 = vunpack.c.h.b16 %v41
    %v441 = vunpack.c.l.b16 %v42
    %v442 = vunpack.c.l.b16 %v43
    %v443 = vunpack.c.h.b16 %v43
    %v444 = vunpack.c.l.b16 %v44
    %v445 = vunpack.c.h.b16 %v44
    %v446 = vunpack.c.l.b16 %v45
    %v447 = vunpack.c.l.b16 %v46
    %v448 = vunpack.c.h.b16 %v46
    %v449 = vunpack.c.l.b16 %v47
    %v450 = vunpack.c.h.b16 %v47
    %v451 = vunpack.c.l.b16 %v48
    %v452 = vunpack.c.l.b16 %v49
    %v453 = vunpack.c.h.b16 %v49
    %v454 = vunpack.c.l.b16 %v50
    %v455 = vunpack.c.h.b16 %v50
    %v456 = vunpack.c.l.b16 %v51
    %v457 = vunpack.c.l.b16 %v52
    %v458 = vunpack.c.h.b16 %v52
    %v459 = vunpack.c.l.b16 %v53
    %v460 = vunpack.c.h.b16 %v53
    %v461 = vunpack.c.l.b16 %v54
    %v462 = vunpack.c.l.b16 %v55
    %v463 = vunpack.c.h.b16 %v55
    %v464 = vunpack.c.l.b16 %v56
    %v465 = vunpack.c.h.b16 %v56
    %v466 = vunpack.c.l.b16 %v57
    %v467 = vunpack.c.l.b16 %v58
    %v468 = vunpack.c.h.b16 %v58
    %v469 = vunpack.c.l.b16 %v59
    %v470 = vunpack.c.h.b16 %v59
    %v471 = vunpack.c.l.b16 %v60
    %v472 = vunpack.c.l.b16 %v61
    %v473 = vunpack.c.h.b16 %v61
    %v474 = vunpack.c.l.b16 %v62
    %v475 = vunpack.c.h.b16 %v62
    %v476 = vunpack.c.l.b16 %v63
    %v477 = vunpack.c.l.b16 %v64
    %v478 = vunpack.c.h.b16 %v64
    %v479 = vunpack.c.l.b16 %v65
    %v480 = vunpack.c.h.b16 %v65
    %v481 = vunpack.c.l.b16 %v66
    %v482 = vunpack.c.l.b16 %v67
    %v483 = vunpack.c.h.b16 %v67
    %v484 = vunpack.c.l.b16 %v68
    %v485 = vunpack.c.h.b16 %v68
    %v486 = vunpack.c.l.b16 %v69
    %v487 = vunpack.c.l.b16 %v70
    %v488 = vunpack.c.h.b16 %v70
    %v489 = vunpack.c.l.b16 %v71
    %v490 = vunpack.c.h.b16 %v71
    %v491 = vunpack.c.l.b16 %v72
    %v492 = vunpack.c.l.b16 %v73
    %v493 = vunpack.c.h.b16 %v73
    %v494 = vunpack.c.l.b16 %v74
    %v495 = vunpack.c.h.b16 %v74
    %v496 = vunpack.c.l.b16 %v75
    %v497 = vunpack.c.l.b16 %v76
    %v498 = vunpack.c.h.b16 %v76
    %v499 = vunpack.c.l.b16 %v77
    %v500 = vunpack.c.h.b16 %v77
    %v501 = vunpack.c.l.b16 %v78
    %v502 = vunpack.c.l.b16 %v79
    %v503 = vunpack.c.h.b16 %v79
    %v504 = vunpack.c.l.b16 %v80
    %v505 = vunpack.c.h.b16 %v80
    %v506 = vunpack.c.l.b16 %v81
    %v507 = vunpack.c.l.b16 %v82
    %v508 = vunpack.c.h.b16 %v82
    %v509 = vunpack.c.l.b16 %v83
    %v510 = vunpack.c.h.b16 %v83
    %v511 = vunpack.c.l.b16 %v84
    %v512 = vunpack.c.l.b16 %v85
    %v513 = vunpack.c.h.b16 %v85
    %v514 = vunpack.c.l.b16 %v86
    %v515 = vunpack.c.h.b16 %v86
    %v516 = vunpack.c.l.b16 %v87
    %v517 = vunpack.c.l.b16 %v88
    %v518 = vunpack.c.h.b16 %v88
    %v519 = vunpack.c.l.b16 %v89
    %v520 = vunpack.c.h.b16 %v89
    %v521 = vunpack.c.l.b16 %v90
    %v522 = vunpack.c.l.b16 %v91
    %v523 = vunpack.c.h.b16 %v91
    %v524 = vunpack.c.l.b16 %v92
    %v525 = vunpack.c.h.b16 %v92
    %v526 = vunpack.c.l.b16 %v93
    %v527 = vunpack.c.l.b16 %v94
    %v528 = vunpack.c.h.b16 %v94
    %v529 = vunpack.c.l.b16 %v95
    %v530 = vunpack.c.h.b16 %v95
    %v531 = vunpack.c.l.b16 %v96
    %v532 = vunpack.c.l.b16 %v97
    %v533 = vunpack.c.h.b16 %v97
    %v534 = vunpack.c.l.b16 %v98
    %v535 = vunpack.c.h.b16 %v98
    %v536 = vunpack.c.l.b16 %v99
    %v537 = vunpack.c.l.b16 %v100
    %v538 = vunpack.c.h.b16 %v100
    %v539 = vunpack.c.l.b16 %v101
    %v540 = vunpack.c.h.b16 %v101
    %v541 = vunpack.c.l.b16 %v102
    %v542 = vunpack.c.l.b16 %v103
    %v543 = vunpack.c.h.b16 %v103
    %v544 = vunpack.c.l.b16 %v104
    %v545 = vunpack.c.h.b16 %v104
    %v546 = vunpack.c.l.b16 %v105
    %v547 = vunpack.c.l.b16 %v106
    %v548 = vunpack.c.h.b16 %v106
    %v549 = vunpack.c.l.b16 %v107
    %v550 = vunpack.c.h.b16 %v107
    %v551 = vunpack.c.l.b16 %v108
    %v552 = vunpack.c.l.b16 %v109
    %v553 = vunpack.c.h.b16 %v109
    %v554 = vunpack.c.l.b16 %v110
    %v555 = vunpack.c.h.b16 %v110
    %v556 = vunpack.c.l.b16 %v111
    %v557 = vunpack.c.l.b16 %v112
    %v558 = vunpack.c.h.b16 %v112
    %v559 = vunpack.c.l.b16 %v113
    %v560 = vunpack.c.h.b16 %v113
    %v561 = vunpack.c.l.b16 %v114
    %v562 = vunpack.c.l.b16 %v115
    %v563 = vunpack.c.h.b16 %v115
    %v564 = vunpack.c.l.b16 %v116
    %v565 = vunpack.c.h.b16 %v116
    %v566 = vunpack.c.l.b16 %v117
    %v567 = vunpack.c.l.b16 %v118
    %v568 = vunpack.c.h.b16 %v118
    %v569 = vunpack.c.l.b16 %v119
    %v570 = vunpack.c.h.b16 %v119
    %v571 = vunpack.c.l.b16 %v120
    %v572 = vunpack.c.l.b16 %v121
    %v573 = vunpack.c.h.b16 %v121
    %v574 = vunpack.c.l.b16 %v122
    %v575 = vunpack.c.h.b16 %v122
    %v576 = vunpack.c.l.b16 %v123
    %v577 = vunpack.c.l.b16 %v124
    %v578 = vunpack.c.h.b16 %v124
    %v579 = vunpack.c.l.b16 %v125
    %v580 = vunpack.c.h.b16 %v125
    %v581 = vunpack.c.l.b16 %v126
    %v582 = vunpack.c.l.b16 %v127
    %v583 = vunpack.c.h.b16 %v127
    %v584 = vunpack.c.l.b16 %v128
    %v585 = vunpack.c.h.b16 %v128
    %v586 = vunpack.c.l.b16 %v129
    %v587 = vunpack.c.l.b16 %v130
    %v588 = vunpack.c.h.b16 %v130
    %v589 = vunpack.c.l.b16 %v131
    %v590 = vunpack.c.h.b16 %v131
    %v591 = vunpack.c.l.b16 %v132
    %v592 = vunpack.c.l.b16 %v133
    %v593 = vunpack.c.h.b16 %v133
    %v594 = vunpack.c.l.b16 %v134
    %v595 = vunpack.c.h.b16 %v134
    %v596 = vunpack.c.l.b16 %v135
    %v597 = vpack.c.b16 %v422, %v417
    %v598 = vpack.c.b16 %v423, %v418
    %v599 = vpack.c.b16 %v424, %v419
    %v600 = vpack.c.b16 %v425, %v420
    %v601 = vpack.c.b16 %v426, %v421
    %v602 = vpack.c.b16 %v432, %v427
    %v603 = vpack.c.b16 %v433, %v428
    %v604 = vpack.c.b16 %v434, %v429
    %v605 = vpack.c.b16 %v435, %v430
    %v606 = vpack.c.b16 %v436, %v431
    %v607 = vpack.c.b16 %v442, %v437
    %v608 = vpack.c.b16 %v443, %v438
    %v609 = vpack.c.b16 %v444, %v439
    %v610 = vpack.c.b16 %v445, %v440
    %v611 = vpack.c.b16 %v446, %v441
    %v612 = vpack.c.b16 %v452, %v447
    %v613 = vpack.c.b16 %v453, %v448
    %v614 = vpack.c.b16 %v454, %v449
    %v615 = vpack.c.b16 %v455, %v450
    %v616 = vpack.c.b16 %v456, %v451
    %v617 = vpack.c.b16 %v462, %v457
    %v618 = vpack.c.b16 %v463, %v458
    %v619 = vpack.c.b16 %v464, %v459
    %v620 = vpack.c.b16 %v465, %v460
    %v621 = vpack.c.b16 %v466, %v461
    %v622 = vpack.c.b16 %v472, %v467
    %v623 = vpack.c.b16 %v473, %v468
    %v624 = vpack.c.b16 %v474, %v469
    %v625 = vpack.c.b16 %v475, %v470
    %v626 = vpack.c.b16 %v476, %v471
    %v627 = vpack.c.b16 %v482, %v477
    %v628 = vpack.c.b16 %v483, %v478
    %v629 = vpack.c.b16 %v484, %v479
    %v630 = vpack.c.b16 %v485, %v480
    %v631 = vpack.c.b16 %v486, %v481
    %v632 = vpack.c.b16 %v492, %v487
    %v633 = vpack.c.b16 %v493, %v488
    %v634 = vpack.c.b16 %v494, %v489
    %v635 = vpack.c.b16 %v495, %v490
    %v636 = vpack.c.b16 %v496, %v491
    %v637 = vpack.c.b16 %v502, %v497
    %v638 = vpack.c.b16 %v503, %v498
    %v639 = vpack.c.b16 %v504, %v499
    %v640 = vpack.c.b16 %v505, %v500
    %v641 = vpack.c.b16 %v506, %v501
    %v642 = vpack.c.b16 %v512, %v507
    %v643 = vpack.c.b16 %v513, %v508
    %v644 = vpack.c.b16 %v514, %v509
    %v645 = vpack.c.b16 %v515, %v510
    %v646 = vpack.c.b16 %v516, %v511
    %v647 = vpack.c.b16 %v522, %v517
    %v648 = vpack.c.b16 %v523, %v518
    %v649 = vpack.c.b16 %v524, %v519
    %v650 = vpack.c.b16 %v525, %v520
    %v651 = vpack.c.b16 %v526, %v521
    %v652 = vpack.c.b16 %v532, %v527
    %v653 = vpack.c.b16 %v533, %v528
    %v654 = vpack.c.b16 %v534, %v529
    %v655 = vpack.c.b16 %v535, %v530
    %v656 = vpack.c.b16 %v536, %v531
    %v657 = vpack.c.b16 %v542, %v537
    %v658 = vpack.c.b16 %v543, %v538
    %v659 = vpack.c.b16 %v544, %v539
    %v660 = vpack.c.b16 %v545, %v540
    %v661 = vpack.c.b16 %v546, %v541
    %v662 = vpack.c.b16 %v552, %v547
    %v663 = vpack.c.b16 %v553, %v548
    %v664 = vpack.c.b16 %v554, %v549
    %v665 = vpack.c.b16 %v555, %v550
    %v666 = vpack.c.b16 %v556, %v551
    %v667 = vpack.c.b16 %v562, %v557
    %v668 = vpack.c.b16 %v563, %v558
    %v669 = vpack.c.b16 %v564, %v559
    %v670 = vpack.c.b16 %v565, %v560
    %v671 = vpack.c.b16 %v566, %v561
    %v672 = vpack.c.b16 %v572, %v567
    %v673 = vpack.c.b16 %v573, %v568
    %v674 = vpack.c.b16 %v574, %v569
    %v675 = vpack.c.b16 %v575, %v570
    %v676 = vpack.c.b16 %v576, %v571
    %v677 = vpack.c.b16 %v582, %v577
    %v678 = vpack.c.b16 %v583, %v578
    %v679 = vpack.c.b16 %v584, %v579
    %v680 = vpack.c.b16 %v585, %v580
    %v681 = vpack.c.b16 %v586, %v581
    %v682 = vpack.c.b16 %v592, %v587
    %v683 = vpack.c.b16 %v593, %v588
    %v684 = vpack.c.b16 %v594, %v589
    %v685 = vpack.c.b16 %v595, %v590
    %v686 = vpack.c.b16 %v596, %v591
    %v915 = vunpack.c.l.b16 %v136
    %v916 = vunpack.c.h.b16 %v136
    %v917 = vunpack.c.l.b16 %v137
    %v918 = vunpack.c.l.b16 %v138
    %v919 = vunpack.c.h.b16 %v138
    %v920 = vunpack.c.l.b16 %v139
    %v921 = vunpack.c.l.b16 %v140
    %v922 = vunpack.c.h.b16 %v140
    %v923 = vunpack.c.l.b16 %v141
    %v924 = vunpack.c.l.b16 %v142
    %v925 = vunpack.c.h.b16 %v142
    %v926 = vunpack.c.l.b16 %v143
    %v927 = vunpack.c.l.b16 %v144
    %v928 = vunpack.c.h.b16 %v144
    %v929 = vunpack.c.l.b16 %v145
    %v930 = vunpack.c.l.b16 %v146
    %v931 = vunpack.c.h.b16 %v146
    %v932 = vunpack.c.l.b16 %v147
    %v933 = vunpack.c.l.b16 %v148
    %v934 = vunpack.c.h.b16 %v148
    %v935 = vunpack.c.l.b16 %v149
    %v936 = vunpack.c.l.b16 %v150
    %v937 = vunpack.c.h.b16 %v150
    %v938 = vunpack.c.l.b16 %v151
    %v939 = vunpack.c.l.b16 %v152
    %v940 = vunpack.c.h.b16 %v152
    %v941 = vunpack.c.l.b16 %v153
    %v942 = vunpack.c.l.b16 %v154
    %v943 = vunpack.c.h.b16 %v154
    %v944 = vunpack.c.l.b16 %v155
    %v945 = vunpack.c.l.b16 %v156
    %v946 = vunpack.c.h.b16 %v156
    %v947 = vunpack.c.l.b16 %v157
    %v948 = vunpack.c.l.b16 %v158
    %v949 = vunpack.c.h.b16 %v158
    %v950 = vunpack.c.l.b16 %v159
    %v951 = vunpack.c.l.b16 %v160
    %v952 = vunpack.c.h.b16 %v160
    %v953 = vunpack.c.l.b16 %v161
    %v954 = vunpack.c.l.b16 %v162
    %v955 = vunpack.c.h.b16 %v162
    %v956 = vunpack.c.l.b16 %v163
    %v957 = vunpack.c.l.b16 %v164
    %v958 = vunpack.c.h.b16 %v164
    %v959 = vunpack.c.l.b16 %v165
    %v960 = vunpack.c.l.b16 %v166
    %v961 = vunpack.c.h.b16 %v166
    %v962 = vunpack.c.l.b16 %v167
    %v963 = vunpack.c.l.b16 %v168
    %v964 = vunpack.c.h.b16 %v168
    %v965 = vunpack.c.l.b16 %v169
    %v966 = vunpack.c.l.b16 %v170
    %v967 = vunpack.c.h.b16 %v170
    %v968 = vunpack.c.l.b16 %v171
    %v969 = vunpack.c.l.b16 %v172
    %v970 = vunpack.c.h.b16 %v172
    %v971 = vunpack.c.l.b16 %v173
    %v972 = vunpack.c.l.b16 %v174
    %v973 = vunpack.c.h.b16 %v174
    %v974 = vunpack.c.l.b16 %v175
    %v975 = vunpack.c.l.b16 %v176
    %v976 = vunpack.c.h.b16 %v176
    %v977 = vunpack.c.l.b16 %v177
    %v978 = vunpack.c.l.b16 %v178
    %v979 = vunpack.c.h.b16 %v178
    %v980 = vunpack.c.l.b16 %v179
    %v981 = vunpack.c.l.b16 %v180
    %v982 = vunpack.c.h.b16 %v180
    %v983 = vunpack.c.l.b16 %v181
    %v984 = vunpack.c.l.b16 %v182
    %v985 = vunpack.c.h.b16 %v182
    %v986 = vunpack.c.l.b16 %v183
    %v987 = vunpack.c.l.b16 %v184
    %v988 = vunpack.c.h.b16 %v184
    %v989 = vunpack.c.l.b16 %v185
    %v990 = vunpack.c.l.b16 %v186
    %v991 = vunpack.c.h.b16 %v186
    %v992 = vunpack.c.l.b16 %v187
    %v993 = vunpack.c.l.b16 %v188
    %v994 = vunpack.c.h.b16 %v188
    %v995 = vunpack.c.l.b16 %v189
    %v996 = vunpack.c.l.b16 %v190
    %v997 = vunpack.c.h.b16 %v190
    %v998 = vunpack.c.l.b16 %v191
    %v999 = vunpack.c.l.b16 %v192
    %v1000 = vunpack.c.h.b16 %v192
    %v1001 = vunpack.c.l.b16 %v193
    %v1002 = vunpack.c.l.b16 %v194
    %v1003 = vunpack.c.h.b16 %v194
    %v1004 = vunpack.c.l.b16 %v195
    %v1005 = vunpack.c.l.b16 %v196
    %v1006 = vunpack.c.h.b16 %v196
    %v1007 = vunpack.c.l.b16 %v197
    %v1008 = vunpack.c.l.b16 %v198
    %v1009 = vunpack.c.h.b16 %v198
    %v1010 = vunpack.c.l.b16 %v199
    %v1011 = vunpack.c.l.b16 %v200
    %v1012 = vunpack.c.h.b16 %v200
    %v1013 = vunpack.c.l.b16 %v201
    %v1014 = vunpack.c.l.b16 %v202
    %v1015 = vunpack.c.h.b16 %v202
    %v1016 = vunpack.c.l.b16 %v203
    %v1017 = vunpack.c.l.b16 %v204
    %v1018 = vunpack.c.h.b16 %v204
    %v1019 = vunpack.c.l.b16 %v205
    %v1020 = vunpack.c.l.b16 %v206
    %v1021 = vunpack.c.h.b16 %v206
    %v1022 = vunpack.c.l.b16 %v207
    %v1023 = vunpack.c.l.b16 %v208
    %v1024 = vunpack.c.h.b16 %v208
    %v1025 = vunpack.c.l.b16 %v209
    %v1026 = vunpack.c.l.b16 %v210
    %v1027 = vunpack.c.h.b16 %v210
    %v1028 = vunpack.c.l.b16 %v211
    %v1029 = vunpack.c.l.b16 %v212
    %v1030 = vunpack.c.h.b16 %v212
    %v1031 = vunpack.c.l.b16 %v213
    %v1032 = vunpack.c.l.b16 %v214
    %v1033 = vunpack.c.h.b16 %v214
    %v1034 = vunpack.c.l.b16 %v215
    %v1035 = vunpack.c.l.b16 %v216
    %v1036 = vunpack.c.h.b16 %v216
    %v1037 = vunpack.c.l.b16 %v217
    %v1038 = vunpack.c.l.b16 %v218
    %v1039 = vunpack.c.h.b16 %v218
    %v1040 = vunpack.c.l.b16 %v219
    %v1041 = vunpack.c.l.b16 %v220
    %v1042 = vunpack.c.h.b16 %v220
    %v1043 = vunpack.c.l.b16 %v221
    %v1044 = vunpack.c.l.b16 %v222
    %v1045 = vunpack.c.h.b16 %v222
    %v1046 = vunpack.c.l.b16 %v223
    %v1047 = vunpack.c.l.b16 %v224
    %v1048 = vunpack.c.h.b16 %v224
    %v1049 = vunpack.c.l.b16 %v225
    %v1050 = vunpack.c.l.b16 %v226
    %v1051 = vunpack.c.h.b16 %v226
    %v1052 = vunpack.c.l.b16 %v227
    %v1053 = vunpack.c.l.b16 %v228
    %v1054 = vunpack.c.h.b16 %v228
    %v1055 = vunpack.c.l.b16 %v229
    %v1056 = vunpack.c.l.b16 %v230
    %v1057 = vunpack.c.h.b16 %v230
    %v1058 = vunpack.c.l.b16 %v231
    %v1059 = vunpack.c.l.b16 %v232
    %v1060 = vunpack.c.h.b16 %v232
    %v1061 = vunpack.c.l.b16 %v233
    %v1062 = vunpack.c.l.b16 %v234
    %v1063 = vunpack.c.h.b16 %v234
    %v1064 = vunpack.c.l.b16 %v235
    %v1065 = vunpack.c.l.b16 %v236
    %v1066 = vunpack.c.h.b16 %v236
    %v1067 = vunpack.c.l.b16 %v237
    %v1068 = vunpack.c.l.b16 %v238
    %v1069 = vunpack.c.h.b16 %v238
    %v1070 = vunpack.c.l.b16 %v239
    %v1071 = vunpack.c.l.b16 %v240
    %v1072 = vunpack.c.h.b16 %v240
    %v1073 = vunpack.c.l.b16 %v241
    %v1074 = vunpack.c.l.b16 %v242
    %v1075 = vunpack.c.h.b16 %v242
    %v1076 = vunpack.c.l.b16 %v243
    %v1077 = vunpack.c.l.b16 %v244
    %v1078 = vunpack.c.h.b16 %v244
    %v1079 = vunpack.c.l.b16 %v245
    %v1080 = vunpack.c.l.b16 %v246
    %v1081 = vunpack.c.h.b16 %v246
    %v1082 = vunpack.c.l.b16 %v247
    %v1083 = vunpack.c.l.b16 %v248
    %v1084 = vunpack.c.h.b16 %v248
    %v1085 = vunpack.c.l.b16 %v249
    %v1086 = vunpack.c.l.b16 %v250
    %v1087 = vunpack.c.h.b16 %v250
    %v1088 = vunpack.c.l.b16 %v251
    %v1089 = vunpack.c.l.b16 %v252
    %v1090 = vunpack.c.h.b16 %v252
    %v1091 = vunpack.c.l.b16 %v253
    %v1092 = vunpack.c.l.b16 %v254
    %v1093 = vunpack.c.h.b16 %v254
    %v1094 = vunpack.c.l.b16 %v255
    %v1095 = vunpack.c.l.b16 %v256
    %v1096 = vunpack.c.h.b16 %v256
    %v1097 = vunpack.c.l.b16 %v257
    %v1098 = vunpack.c.l.b16 %v258
    %v1099 = vunpack.c.h.b16 %v258
    %v1100 = vunpack.c.l.b16 %v259
    %v1101 = vunpack.c.l.b16 %v260
    %v1102 = vunpack.c.h.b16 %v260
    %v1103 = vunpack.c.l.b16 %v261
    %v1104 = vunpack.c.l.b16 %v262
    %v1105 = vunpack.c.h.b16 %v262
    %v1106 = vunpack.c.l.b16 %v263
    %v1107 = vunpack.c.l.b16 %v264
    %v1108 = vunpack.c.h.b16 %v264
    %v1109 = vunpack.c.l.b16 %v265
    %v1110 = vunpack.c.l.b16 %v266
    %v1111 = vunpack.c.h.b16 %v266
    %v1112 = vunpack.c.l.b16 %v267
    %v1113 = vunpack.c.l.b16 %v268
    %v1114 = vunpack.c.h.b16 %v268
    %v1115 = vunpack.c.l.b16 %v269
    %v1116 = vunpack.c.l.b16 %v270
    %v1117 = vunpack.c.h.b16 %v270
    %v1118 = vunpack.c.l.b16 %v271
    %v1119 = vunpack.c.l.b16 %v272
    %v1120 = vunpack.c.h.b16 %v272
    %v1121 = vunpack.c.l.b16 %v273
    %v1122 = vunpack.c.l.b16 %v274
    %v1123 = vunpack.c.h.b16 %v274
    %v1124 = vunpack.c.l.b16 %v275
    %v1125 = vunpack.c.l.b16 %v276
    %v1126 = vunpack.c.h.b16 %v276
    %v1127 = vunpack.c.l.b16 %v277
    %v1128 = vunpack.c.l.b16 %v278
    %v1129 = vunpack.c.h.b16 %v278
    %v1130 = vunpack.c.l.b16 %v279
    %v1131 = vunpack.c.l.b16 %v280
    %v1132 = vunpack.c.h.b16 %v280
    %v1133 = vunpack.c.l.b16 %v281
    %v1134 = vunpack.c.l.b16 %v282
    %v1135 = vunpack.c.h.b16 %v282
    %v1136 = vunpack.c.l.b16 %v283
    %v1137 = vunpack.c.l.b16 %v284
    %v1138 = vunpack.c.h.b16 %v284
    %v1139 = vunpack.c.l.b16 %v285
    %v1140 = vunpack.c.l.b16 %v286
    %v1141 = vunpack.c.h.b16 %v286
    %v1142 = vunpack.c.l.b16 %v287
    %v1143 = vunpack.c.l.b16 %v288
    %v1144 = vunpack.c.h.b16 %v288
    %v1145 = vunpack.c.l.b16 %v289
    %v1146 = vunpack.c.l.b16 %v290
    %v1147 = vunpack.c.h.b16 %v290
    %v1148 = vunpack.c.l.b16 %v291
    %v1149 = vpack.c.b16 %v918, %v915
    %v1150 = vpack.c.b16 %v919, %v916
    %v1151 = vpack.c.b16 %v920, %v917
    %v1152 = vpack.c.b16 %v924, %v921
    %v1153 = vpack.c.b16 %v925, %v922
    %v1154 = vpack.c.b16 %v926, %v923
    %v1155 = vpack.c.b16 %v930, %v927
    %v1156 = vpack.c.b16 %v931, %v928
    %v1157 = vpack.c.b16 %v932, %v929
    %v1158 = vpack.c.b16 %v936, %v933
    %v1159 = vpack.c.b16 %v937, %v934
    %v1160 = vpack.c.b16 %v938, %v935
    %v1161 = vpack.c.b16 %v942, %v939
    %v1162 = vpack.c.b16 %v943, %v940
    %v1163 = vpack.c.b16 %v944, %v941
    %v1164 = vpack.c.b16 %v948, %v945
    %v1165 = vpack.c.b16 %v949, %v946
    %v1166 = vpack.c.b16 %v950, %v947
    %v1167 = vpack.c.b16 %v954, %v951
    %v1168 = vpack.c.b16 %v955, %v952
    %v1169 = vpack.c.b16 %v956, %v953
    %v1170 = vpack.c.b16 %v960, %v957
    %v1171 = vpack.c.b16 %v961, %v958
    %v1172 = vpack.c.b16 %v962, %v959
    %v1173 = vpack.c.b16 %v966, %v963
    %v1174 = vpack.c.b16 %v967, %v964
    %v1175 = vpack.c.b16 %v968, %v965
    %v1176 = vpack.c.b16 %v972, %v969
    %v1177 = vpack.c.b16 %v973, %v970
    %v1178 = vpack.c.b16 %v974, %v971
    %v1179 = vpack.c.b16 %v978, %v975
    %v1180 = vpack.c.b16 %v979, %v976
    %v1181 = vpack.c.b16 %v980, %v977
    %v1182 = vpack.c.b16 %v984, %v981
    %v1183 = vpack.c.b16 %v985, %v982
    %v1184 = vpack.c.b16 %v986, %v983
    %v1185 = vpack.c.b16 %v990, %v987
    %v1186 = vpack.c.b16 %v991, %v988
    %v1187 = vpack.c.b16 %v992, %v989
    %v1188 = vpack.c.b16 %v996, %v993
    %v1189 = vpack.c.b16 %v997, %v994
    %v1190 = vpack.c.b16 %v998, %v995
    %v1191 = vpack.c.b16 %v1002, %v999
    %v1192 = vpack.c.b16 %v1003, %v1000
    %v1193 = vpack.c.b16 %v1004, %v1001
    %v1194 = vpack.c.b16 %v1008, %v1005
    %v1195 = vpack.c.b16 %v1009, %v1006
    %v1196 = vpack.c.b16 %v1010, %v1007
    %v1197 = vpack.c.b16 %v1014, %v1011
    %v1198 = vpack.c.b16 %v1015, %v1012
    %v1199 = vpack.c.b16 %v1016, %v1013
    %v1200 = vpack.c.b16 %v1020, %v1017
    %v1201 = vpack.c.b16 %v1021, %v1018
    %v1202 = vpack.c.b16 %v1022, %v1019
    %v1203 = vpack.c.b16 %v1026, %v1023
    %v1204 = vpack.c.b16 %v1027, %v1024
    %v1205 = vpack.c.b16 %v1028, %v1025
    %v1206 = vpack.c.b16 %v1032, %v1029
    %v1207 = vpack.c.b16 %v1033, %v1030
    %v1208 = vpack.c.b16 %v1034, %v1031
    %v1209 = vpack.c.b16 %v1038, %v1035
    %v1210 = vpack.c.b16 %v1039, %v1036
    %v1211 = vpack.c.b16 %v1040, %v1037
    %v1212 = vpack.c.b16 %v1044, %v1041
    %v1213 = vpack.c.b16 %v1045, %v1042
    %v1214 = vpack.c.b16 %v1046, %v1043
    %v1215 = vpack.c.b16 %v1050, %v1047
    %v1216 = vpack.c.b16 %v1051, %v1048
    %v1217 = vpack.c.b16 %v1052, %v1049
    %v1218 = vpack.c.b16 %v1056, %v1053
    %v1219 = vpack.c.b16 %v1057, %v1054
    %v1220 = vpack.c.b16 %v1058, %v1055
    %v1221 = vpack.c.b16 %v1062, %v1059
    %v1222 = vpack.c.b16 %v1063, %v1060
    %v1223 = vpack.c.b16 %v1064, %v1061
    %v1224 = vpack.c.b16 %v1068, %v1065
    %v1225 = vpack.c.b16 %v1069, %v1066
    %v1226 = vpack.c.b16 %v1070, %v1067
    %v1227 = vpack.c.b16 %v1074, %v1071
    %v1228 = vpack.c.b16 %v1075, %v1072
    %v1229 = vpack.c.b16 %v1076, %v1073
    %v1230 = vpack.c.b16 %v1080, %v1077
    %v1231 = vpack.c.b16 %v1081, %v1078
    %v1232 = vpack.c.b16 %v1082, %v1079
    %v1233 = vpack.c.b16 %v1086, %v1083
    %v1234 = vpack.c.b16 %v1087, %v1084
    %v1235 = vpack.c.b16 %v1088, %v1085
    %v1236 = vpack.c.b16 %v1092, %v1089
    %v1237 = vpack.c.b16 %v1093, %v1090
    %v1238 = vpack.c.b16 %v1094, %v1091
    %v1239 = vpack.c.b16 %v1098, %v1095
    %v1240 = vpack.c.b16 %v1099, %v1096
    %v1241 = vpack.c.b16 %v1100, %v1097
    %v1242 = vpack.c.b16 %v1104, %v1101
    %v1243 = vpack.c.b16 %v1105, %v1102
    %v1244 = vpack.c.b16 %v1106, %v1103
    %v1245 = vpack.c.b16 %v1110, %v1107
    %v1246 = vpack.c.b16 %v1111, %v1108
    %v1247 = vpack.c.b16 %v1112, %v1109
    %v1248 = vpack.c.b16 %v1116, %v1113
    %v1249 = vpack.c.b16 %v1117, %v1114
    %v1250 = vpack.c.b16 %v1118, %v1115
    %v1251 = vpack.c.b16 %v1122, %v1119
    %v1252 = vpack.c.b16 %v1123, %v1120
    %v1253 = vpack.c.b16 %v1124, %v1121
    %v1254 = vpack.c.b16 %v1128, %v1125
    %v1255 = vpack.c.b16 %v1129, %v1126
    %v1256 = vpack.c.b16 %v1130, %v1127
    %v1257 = vpack.c.b16 %v1134, %v1131
    %v1258 = vpack.c.b16 %v1135, %v1132
    %v1259 = vpack.c.b16 %v1136, %v1133
    %v1260 = vpack.c.b16 %v1140, %v1137
    %v1261 = vpack.c.b16 %v1141, %v1138
    %v1262 = vpack.c.b16 %v1142, %v1139
    %v1263 = vpack.c.b16 %v1146, %v1143
    %v1264 = vpack.c.b16 %v1147, %v1144
    %v1265 = vpack.c.b16 %v1148, %v1145
    %vm1383 = vcmask 916480
    %v1385 = vsel %vm1383, %v601, 0
    %v1388 = vsel %vm1383, %v606, 0
    %v1391 = vsel %vm1383, %v611, 0
    %v1394 = vsel %vm1383, %v616, 0
    %v1397 = vsel %vm1383, %v621, 0
    %v1400 = vsel %vm1383, %v626, 0
    %v1403 = vsel %vm1383, %v631, 0
    %v1406 = vsel %vm1383, %v636, 0
    %v1409 = vsel %vm1383, %v641, 0
    %v1412 = vsel %vm1383, %v646, 0
    %v1415 = vsel %vm1383, %v651, 0
    %v1418 = vsel %vm1383, %v656, 0
    %v1421 = vsel %vm1383, %v661, 0
    %v1424 = vsel %vm1383, %v666, 0
    %v1427 = vsel %vm1383, %v671, 0
    %v1430 = vsel %vm1383, %v676, 0
    %v1433 = vsel %vm1383, %v681, 0
    %v1436 = vsel %vm1383, %v686, 0
    %1438 = vmatprep.subr.bf16.mxu0 %v1150
    %1439 = vmatpush1.bf16.msra.mxu0 %v1149
    %1440 = vmatprep.subr.bf16.mxu0 %v1153
    %1441 = vmatpush1.bf16.msra.mxu0 %v1152
    %1442 = vmatprep.subr.bf16.mxu0 %v1156
    %1443 = vmatpush1.bf16.msra.mxu0 %v1155
    %1444 = vmatprep.subr.bf16.mxu0 %v1159
    %1445 = vmatpush1.bf16.msra.mxu0 %v1158
    %1446 = vmatprep.subr.bf16.mxu0 %v1162
    %1447 = vmatpush1.bf16.msra.mxu0 %v1161
    %1448 = vmatprep.subr.bf16.mxu0 %v1165
    %1449 = vmatpush1.bf16.msra.mxu0 %v1164
    %1450 = vmatprep.subr.bf16.mxu0 %v1168
    %1451 = vmatpush1.bf16.msra.mxu0 %v1167
    %1452 = vmatprep.subr.bf16.mxu0 %v1171
    %1453 = vmatpush1.bf16.msra.mxu0 %v1170
    %1454 = vmatprep.subr.bf16.mxu0 %v1174
    %1455 = vmatpush1.bf16.msra.mxu0 %v1173
    %1456 = vmatprep.subr.bf16.mxu0 %v1177
    %1457 = vmatpush1.bf16.msra.mxu0 %v1176
    %1458 = vmatprep.subr.bf16.mxu0 %v1180
    %1459 = vmatpush1.bf16.msra.mxu0 %v1179
    %1460 = vmatprep.subr.bf16.mxu0 %v1183
    %1461 = vmatpush1.bf16.msra.mxu0 %v1182
    %1462 = vmatprep.subr.bf16.mxu0 %v1186
    %1463 = vmatpush1.bf16.msra.mxu0 %v1185
    %1464 = vmatprep.subr.bf16.mxu0 %v1189
    %1465 = vmatpush1.bf16.msra.mxu0 %v1188
    %1466 = vmatprep.subr.bf16.mxu0 %v1192
    %1467 = vmatpush1.bf16.msra.mxu0 %v1191
    %1468 = vmatprep.subr.bf16.mxu0 %v1195
    %1469 = vmatpush1.bf16.msra.mxu0 %v1194
    %1470 = vmatprep.mubr.bf16.mxu0 %v598
    %1471 = vmatmul.mubr.bf16.gmra.mrb[0].mxu0 %v597
    %v1472 = vpop.f32.mrb[0].mxu0
    %v1473 = vadd.f32 %v297, %v1472
    %v1474 = vpop.f32.mrb[0].mxu0
    %v1475 = vadd.f32 %v301, %v1474
    %v1476 = vpop.f32.mrb[0].mxu0
    %v1477 = vadd.f32 %v297, %v1476
    %v1478 = vpop.f32.mrb[0].mxu0
    %v1479 = vadd.f32 %v301, %v1478
    %1480 = vmatprep.mubr.bf16.mxu0 %v603
    %1481 = vmatmul.mubr.bf16.gmra.mrb[0].mxu0 %v602
    %v1482 = vpop.f32.mrb[0].mxu0
    %v1483 = vadd.f32 %v297, %v1482
    %v1484 = vpop.f32.mrb[0].mxu0
    %v1485 = vadd.f32 %v301, %v1484
    %v1486 = vpop.f32.mrb[0].mxu0
    %v1487 = vadd.f32 %v297, %v1486
    %v1488 = vpop.f32.mrb[0].mxu0
    %v1489 = vadd.f32 %v301, %v1488
    %1490 = vmatprep.mubr.bf16.mxu0 %v608
    %1491 = vmatmul.mubr.bf16.gmra.mrb[0].mxu0 %v607
    %v1492 = vpop.f32.mrb[0].mxu0
    %v1493 = vadd.f32 %v297, %v1492
    %v1494 = vpop.f32.mrb[0].mxu0
    %v1495 = vadd.f32 %v301, %v1494
    %v1496 = vpop.f32.mrb[0].mxu0
    %v1497 = vadd.f32 %v297, %v1496
    %v1498 = vpop.f32.mrb[0].mxu0
    %v1499 = vadd.f32 %v301, %v1498
    %1500 = vmatprep.mubr.bf16.mxu0 %v613
    %1501 = vmatmul.mubr.bf16.gmra.mrb[0].mxu0 %v612
    %v1502 = vpop.f32.mrb[0].mxu0
    %v1503 = vadd.f32 %v297, %v1502
    %v1504 = vpop.f32.mrb[0].mxu0
    %v1505 = vadd.f32 %v301, %v1504
    %v1506 = vpop.f32.mrb[0].mxu0
    %v1507 = vadd.f32 %v297, %v1506
    %v1508 = vpop.f32.mrb[0].mxu0
    %v1509 = vadd.f32 %v301, %v1508
    %1510 = vmatprep.mubr.bf16.mxu0 %v618
    %1511 = vmatmul.mubr.bf16.gmra.mrb[0].mxu0 %v617
    %v1512 = vpop.f32.mrb[0].mxu0
    %v1513 = vadd.f32 %v297, %v1512
    %v1514 = vpop.f32.mrb[0].mxu0
    %v1515 = vadd.f32 %v301, %v1514
    %v1516 = vpop.f32.mrb[0].mxu0
    %v1517 = vadd.f32 %v297, %v1516
    %v1518 = vpop.f32.mrb[0].mxu0
    %v1519 = vadd.f32 %v301, %v1518
    %1520 = vmatprep.mubr.bf16.mxu0 %v623
    %1521 = vmatmul.mubr.bf16.gmra.mrb[0].mxu0 %v622
    %v1522 = vpop.f32.mrb[0].mxu0
    %v1523 = vadd.f32 %v297, %v1522
    %v1524 = vpop.f32.mrb[0].mxu0
    %v1525 = vadd.f32 %v301, %v1524
    %v1526 = vpop.f32.mrb[0].mxu0
    %v1527 = vadd.f32 %v297, %v1526
    %v1528 = vpop.f32.mrb[0].mxu0
    %v1529 = vadd.f32 %v301, %v1528
    %1530 = vmatprep.mubr.bf16.mxu0 %v628
    %1531 = vmatmul.mubr.bf16.gmra.mrb[0].mxu0 %v627
    %v1532 = vpop.f32.mrb[0].mxu0
    %v1533 = vadd.f32 %v297, %v1532
    %v1534 = vpop.f32.mrb[0].mxu0
    %v1535 = vadd.f32 %v301, %v1534
    %v1536 = vpop.f32.mrb[0].mxu0
    %v1537 = vadd.f32 %v297, %v1536
    %v1538 = vpop.f32.mrb[0].mxu0
    %v1539 = vadd.f32 %v301, %v1538
    %1540 = vmatprep.mubr.bf16.mxu0 %v633
    %1541 = vmatmul.mubr.bf16.gmra.mrb[0].mxu0 %v632
    %v1542 = vpop.f32.mrb[0].mxu0
    %v1543 = vadd.f32 %v297, %v1542
    %v1544 = vpop.f32.mrb[0].mxu0
    %v1545 = vadd.f32 %v301, %v1544
    %v1546 = vpop.f32.mrb[0].mxu0
    %v1547 = vadd.f32 %v297, %v1546
    %v1548 = vpop.f32.mrb[0].mxu0
    %v1549 = vadd.f32 %v301, %v1548
    %1550 = vmatprep.mubr.bf16.mxu0 %v638
    %1551 = vmatmul.mubr.bf16.gmra.mrb[0].mxu0 %v637
    %v1552 = vpop.f32.mrb[0].mxu0
    %v1553 = vadd.f32 %v297, %v1552
    %v1554 = vpop.f32.mrb[0].mxu0
    %v1555 = vadd.f32 %v301, %v1554
    %v1556 = vpop.f32.mrb[0].mxu0
    %v1557 = vadd.f32 %v297, %v1556
    %v1558 = vpop.f32.mrb[0].mxu0
    %v1559 = vadd.f32 %v301, %v1558
    %1560 = vmatprep.mubr.bf16.mxu0 %v643
    %1561 = vmatmul.mubr.bf16.gmra.mrb[0].mxu0 %v642
    %v1562 = vpop.f32.mrb[0].mxu0
    %v1563 = vadd.f32 %v297, %v1562
    %v1564 = vpop.f32.mrb[0].mxu0
    %v1565 = vadd.f32 %v301, %v1564
    %v1566 = vpop.f32.mrb[0].mxu0
    %v1567 = vadd.f32 %v297, %v1566
    %v1568 = vpop.f32.mrb[0].mxu0
    %v1569 = vadd.f32 %v301, %v1568
    %1570 = vmatprep.mubr.bf16.mxu0 %v648
    %1571 = vmatmul.mubr.bf16.gmra.mrb[0].mxu0 %v647
    %v1572 = vpop.f32.mrb[0].mxu0
    %v1573 = vadd.f32 %v297, %v1572
    %v1574 = vpop.f32.mrb[0].mxu0
    %v1575 = vadd.f32 %v301, %v1574
    %v1576 = vpop.f32.mrb[0].mxu0
    %v1577 = vadd.f32 %v297, %v1576
    %v1578 = vpop.f32.mrb[0].mxu0
    %v1579 = vadd.f32 %v301, %v1578
    %1580 = vmatprep.mubr.bf16.mxu0 %v653
    %1581 = vmatmul.mubr.bf16.gmra.mrb[0].mxu0 %v652
    %v1582 = vpop.f32.mrb[0].mxu0
    %v1583 = vadd.f32 %v297, %v1582
    %v1584 = vpop.f32.mrb[0].mxu0
    %v1585 = vadd.f32 %v301, %v1584
    %v1586 = vpop.f32.mrb[0].mxu0
    %v1587 = vadd.f32 %v297, %v1586
    %v1588 = vpop.f32.mrb[0].mxu0
    %v1589 = vadd.f32 %v301, %v1588
    %1590 = vmatprep.mubr.bf16.mxu0 %v658
    %1591 = vmatmul.mubr.bf16.gmra.mrb[0].mxu0 %v657
    %v1592 = vpop.f32.mrb[0].mxu0
    %v1593 = vadd.f32 %v297, %v1592
    %v1594 = vpop.f32.mrb[0].mxu0
    %v1595 = vadd.f32 %v301, %v1594
    %v1596 = vpop.f32.mrb[0].mxu0
    %v1597 = vadd.f32 %v297, %v1596
    %v1598 = vpop.f32.mrb[0].mxu0
    %v1599 = vadd.f32 %v301, %v1598
    %1600 = vmatprep.mubr.bf16.mxu0 %v663
    %1601 = vmatmul.mubr.bf16.gmra.mrb[0].mxu0 %v662
    %v1602 = vpop.f32.mrb[0].mxu0
    %v1603 = vadd.f32 %v297, %v1602
    %v1604 = vpop.f32.mrb[0].mxu0
    %v1605 = vadd.f32 %v301, %v1604
    %v1606 = vpop.f32.mrb[0].mxu0
    %v1607 = vadd.f32 %v297, %v1606
    %v1608 = vpop.f32.mrb[0].mxu0
    %v1609 = vadd.f32 %v301, %v1608
    %1610 = vmatprep.mubr.bf16.mxu0 %v668
    %1611 = vmatmul.mubr.bf16.gmra.mrb[0].mxu0 %v667
    %v1612 = vpop.f32.mrb[0].mxu0
    %v1613 = vadd.f32 %v297, %v1612
    %v1614 = vpop.f32.mrb[0].mxu0
    %v1615 = vadd.f32 %v301, %v1614
    %v1616 = vpop.f32.mrb[0].mxu0
    %v1617 = vadd.f32 %v297, %v1616
    %v1618 = vpop.f32.mrb[0].mxu0
    %v1619 = vadd.f32 %v301, %v1618
    %1620 = vmatprep.mubr.bf16.mxu0 %v673
    %1621 = vmatmul.mubr.bf16.gmra.mrb[0].mxu0 %v672
    %v1622 = vpop.f32.mrb[0].mxu0
    %v1623 = vadd.f32 %v297, %v1622
    %v1624 = vpop.f32.mrb[0].mxu0
    %v1625 = vadd.f32 %v301, %v1624
    %v1626 = vpop.f32.mrb[0].mxu0
    %v1627 = vadd.f32 %v297, %v1626
    %v1628 = vpop.f32.mrb[0].mxu0
    %v1629 = vadd.f32 %v301, %v1628
    %1630 = vmatprep.mubr.bf16.mxu0 %v678
    %1631 = vmatmul.mubr.bf16.gmra.mrb[0].mxu0 %v677
    %v1632 = vpop.f32.mrb[0].mxu0
    %v1633 = vadd.f32 %v297, %v1632
    %v1634 = vpop.f32.mrb[0].mxu0
    %v1635 = vadd.f32 %v301, %v1634
    %v1636 = vpop.f32.mrb[0].mxu0
    %v1637 = vadd.f32 %v297, %v1636
    %v1638 = vpop.f32.mrb[0].mxu0
    %v1639 = vadd.f32 %v301, %v1638
    %1640 = vmatprep.mubr.bf16.mxu0 %v683
    %1641 = vmatmul.mubr.bf16.gmra.mrb[0].mxu0 %v682
    %v1642 = vpop.f32.mrb[0].mxu0
    %v1643 = vadd.f32 %v297, %v1642
    %v1644 = vpop.f32.mrb[0].mxu0
    %v1645 = vadd.f32 %v301, %v1644
    %v1646 = vpop.f32.mrb[0].mxu0
    %v1647 = vadd.f32 %v297, %v1646
    %v1648 = vpop.f32.mrb[0].mxu0
    %v1649 = vadd.f32 %v301, %v1648
    %1650 = vdwg.mxu0
    %1651 = vmatprep.subr.bf16.mxu0 %v1198
    %1652 = vmatpush1.bf16.msra.mxu0 %v1197
    %1653 = vmatprep.subr.bf16.mxu0 %v1201
    %1654 = vmatpush1.bf16.msra.mxu0 %v1200
    %1655 = vmatprep.subr.bf16.mxu0 %v1204
    %1656 = vmatpush1.bf16.msra.mxu0 %v1203
    %1657 = vmatprep.subr.bf16.mxu0 %v1207
    %1658 = vmatpush1.bf16.msra.mxu0 %v1206
    %1659 = vmatprep.subr.bf16.mxu0 %v1210
    %1660 = vmatpush1.bf16.msra.mxu0 %v1209
    %1661 = vmatprep.subr.bf16.mxu0 %v1213
    %1662 = vmatpush1.bf16.msra.mxu0 %v1212
    %1663 = vmatprep.subr.bf16.mxu0 %v1216
    %1664 = vmatpush1.bf16.msra.mxu0 %v1215
    %1665 = vmatprep.subr.bf16.mxu0 %v1219
    %1666 = vmatpush1.bf16.msra.mxu0 %v1218
    %1667 = vmatprep.subr.bf16.mxu0 %v1222
    %1668 = vmatpush1.bf16.msra.mxu0 %v1221
    %1669 = vmatprep.subr.bf16.mxu0 %v1225
    %1670 = vmatpush1.bf16.msra.mxu0 %v1224
    %1671 = vmatprep.subr.bf16.mxu0 %v1228
    %1672 = vmatpush1.bf16.msra.mxu0 %v1227
    %1673 = vmatprep.subr.bf16.mxu0 %v1231
    %1674 = vmatpush1.bf16.msra.mxu0 %v1230
    %1675 = vmatprep.subr.bf16.mxu0 %v1234
    %1676 = vmatpush1.bf16.msra.mxu0 %v1233
    %1677 = vmatprep.subr.bf16.mxu0 %v1237
    %1678 = vmatpush1.bf16.msra.mxu0 %v1236
    %1679 = vmatprep.subr.bf16.mxu0 %v1240
    %1680 = vmatpush1.bf16.msra.mxu0 %v1239
    %1681 = vmatprep.subr.bf16.mxu0 %v1243
    %1682 = vmatpush1.bf16.msra.mxu0 %v1242
    %1683 = vmatprep.mubr.bf16.mxu0 %v600
    %1684 = vmatmul.mubr.bf16.gmra.mrb[0].mxu0 %v599
    %v1685 = vpop.f32.mrb[0].mxu0
    %v1686 = vadd.f32 %v1473, %v1685
    %v1687 = vpop.f32.mrb[0].mxu0
    %v1688 = vadd.f32 %v1475, %v1687
    %v1689 = vpop.f32.mrb[0].mxu0
    %v1690 = vadd.f32 %v1477, %v1689
    %v1691 = vpop.f32.mrb[0].mxu0
    %v1692 = vadd.f32 %v1479, %v1691
    %1693 = vmatprep.mubr.bf16.mxu0 %v605
    %1694 = vmatmul.mubr.bf16.gmra.mrb[0].mxu0 %v604
    %v1695 = vpop.f32.mrb[0].mxu0
    %v1696 = vadd.f32 %v1483, %v1695
    %v1697 = vpop.f32.mrb[0].mxu0
    %v1698 = vadd.f32 %v1485, %v1697
    %v1699 = vpop.f32.mrb[0].mxu0
    %v1700 = vadd.f32 %v1487, %v1699
    %v1701 = vpop.f32.mrb[0].mxu0
    %v1702 = vadd.f32 %v1489, %v1701
    %1703 = vmatprep.mubr.bf16.mxu0 %v610
    %1704 = vmatmul.mubr.bf16.gmra.mrb[0].mxu0 %v609
    %v1705 = vpop.f32.mrb[0].mxu0
    %v1706 = vadd.f32 %v1493, %v1705
    %v1707 = vpop.f32.mrb[0].mxu0
    %v1708 = vadd.f32 %v1495, %v1707
    %v1709 = vpop.f32.mrb[0].mxu0
    %v1710 = vadd.f32 %v1497, %v1709
    %v1711 = vpop.f32.mrb[0].mxu0
    %v1712 = vadd.f32 %v1499, %v1711
    %1713 = vmatprep.mubr.bf16.mxu0 %v615
    %1714 = vmatmul.mubr.bf16.gmra.mrb[0].mxu0 %v614
    %v1715 = vpop.f32.mrb[0].mxu0
    %v1716 = vadd.f32 %v1503, %v1715
    %v1717 = vpop.f32.mrb[0].mxu0
    %v1718 = vadd.f32 %v1505, %v1717
    %v1719 = vpop.f32.mrb[0].mxu0
    %v1720 = vadd.f32 %v1507, %v1719
    %v1721 = vpop.f32.mrb[0].mxu0
    %v1722 = vadd.f32 %v1509, %v1721
    %1723 = vmatprep.mubr.bf16.mxu0 %v620
    %1724 = vmatmul.mubr.bf16.gmra.mrb[0].mxu0 %v619
    %v1725 = vpop.f32.mrb[0].mxu0
    %v1726 = vadd.f32 %v1513, %v1725
    %v1727 = vpop.f32.mrb[0].mxu0
    %v1728 = vadd.f32 %v1515, %v1727
    %v1729 = vpop.f32.mrb[0].mxu0
    %v1730 = vadd.f32 %v1517, %v1729
    %v1731 = vpop.f32.mrb[0].mxu0
    %v1732 = vadd.f32 %v1519, %v1731
    %1733 = vmatprep.mubr.bf16.mxu0 %v625
    %1734 = vmatmul.mubr.bf16.gmra.mrb[0].mxu0 %v624
    %v1735 = vpop.f32.mrb[0].mxu0
    %v1736 = vadd.f32 %v1523, %v1735
    %v1737 = vpop.f32.mrb[0].mxu0
    %v1738 = vadd.f32 %v1525, %v1737
    %v1739 = vpop.f32.mrb[0].mxu0
    %v1740 = vadd.f32 %v1527, %v1739
    %v1741 = vpop.f32.mrb[0].mxu0
    %v1742 = vadd.f32 %v1529, %v1741
    %1743 = vmatprep.mubr.bf16.mxu0 %v630
    %1744 = vmatmul.mubr.bf16.gmra.mrb[0].mxu0 %v629
    %v1745 = vpop.f32.mrb[0].mxu0
    %v1746 = vadd.f32 %v1533, %v1745
    %v1747 = vpop.f32.mrb[0].mxu0
    %v1748 = vadd.f32 %v1535, %v1747
    %v1749 = vpop.f32.mrb[0].mxu0
    %v1750 = vadd.f32 %v1537, %v1749
    %v1751 = vpop.f32.mrb[0].mxu0
    %v1752 = vadd.f32 %v1539, %v1751
    %1753 = vmatprep.mubr.bf16.mxu0 %v635
    %1754 = vmatmul.mubr.bf16.gmra.mrb[0].mxu0 %v634
    %v1755 = vpop.f32.mrb[0].mxu0
    %v1756 = vadd.f32 %v1543, %v1755
    %v1757 = vpop.f32.mrb[0].mxu0
    %v1758 = vadd.f32 %v1545, %v1757
    %v1759 = vpop.f32.mrb[0].mxu0
    %v1760 = vadd.f32 %v1547, %v1759
    %v1761 = vpop.f32.mrb[0].mxu0
    %v1762 = vadd.f32 %v1549, %v1761
    %1763 = vmatprep.mubr.bf16.mxu0 %v640
    %1764 = vmatmul.mubr.bf16.gmra.mrb[0].mxu0 %v639
    %v1765 = vpop.f32.mrb[0].mxu0
    %v1766 = vadd.f32 %v1553, %v1765
    %v1767 = vpop.f32.mrb[0].mxu0
    %v1768 = vadd.f32 %v1555, %v1767
    %v1769 = vpop.f32.mrb[0].mxu0
    %v1770 = vadd.f32 %v1557, %v1769
    %v1771 = vpop.f32.mrb[0].mxu0
    %v1772 = vadd.f32 %v1559, %v1771
    %1773 = vmatprep.mubr.bf16.mxu0 %v645
    %1774 = vmatmul.mubr.bf16.gmra.mrb[0].mxu0 %v644
    %v1775 = vpop.f32.mrb[0].mxu0
    %v1776 = vadd.f32 %v1563, %v1775
    %v1777 = vpop.f32.mrb[0].mxu0
    %v1778 = vadd.f32 %v1565, %v1777
    %v1779 = vpop.f32.mrb[0].mxu0
    %v1780 = vadd.f32 %v1567, %v1779
    %v1781 = vpop.f32.mrb[0].mxu0
    %v1782 = vadd.f32 %v1569, %v1781
    %1783 = vmatprep.mubr.bf16.mxu0 %v650
    %1784 = vmatmul.mubr.bf16.gmra.mrb[0].mxu0 %v649
    %v1785 = vpop.f32.mrb[0].mxu0
    %v1786 = vadd.f32 %v1573, %v1785
    %v1787 = vpop.f32.mrb[0].mxu0
    %v1788 = vadd.f32 %v1575, %v1787
    %v1789 = vpop.f32.mrb[0].mxu0
    %v1790 = vadd.f32 %v1577, %v1789
    %v1791 = vpop.f32.mrb[0].mxu0
    %v1792 = vadd.f32 %v1579, %v1791
    %1793 = vmatprep.mubr.bf16.mxu0 %v655
    %1794 = vmatmul.mubr.bf16.gmra.mrb[0].mxu0 %v654
    %v1795 = vpop.f32.mrb[0].mxu0
    %v1796 = vadd.f32 %v1583, %v1795
    %v1797 = vpop.f32.mrb[0].mxu0
    %v1798 = vadd.f32 %v1585, %v1797
    %v1799 = vpop.f32.mrb[0].mxu0
    %v1800 = vadd.f32 %v1587, %v1799
    %v1801 = vpop.f32.mrb[0].mxu0
    %v1802 = vadd.f32 %v1589, %v1801
    %1803 = vmatprep.mubr.bf16.mxu0 %v660
    %1804 = vmatmul.mubr.bf16.gmra.mrb[0].mxu0 %v659
    %v1805 = vpop.f32.mrb[0].mxu0
    %v1806 = vadd.f32 %v1593, %v1805
    %v1807 = vpop.f32.mrb[0].mxu0
    %v1808 = vadd.f32 %v1595, %v1807
    %v1809 = vpop.f32.mrb[0].mxu0
    %v1810 = vadd.f32 %v1597, %v1809
    %v1811 = vpop.f32.mrb[0].mxu0
    %v1812 = vadd.f32 %v1599, %v1811
    %1813 = vmatprep.mubr.bf16.mxu0 %v665
    %1814 = vmatmul.mubr.bf16.gmra.mrb[0].mxu0 %v664
    %v1815 = vpop.f32.mrb[0].mxu0
    %v1816 = vadd.f32 %v1603, %v1815
    %v1817 = vpop.f32.mrb[0].mxu0
    %v1818 = vadd.f32 %v1605, %v1817
    %v1819 = vpop.f32.mrb[0].mxu0
    %v1820 = vadd.f32 %v1607, %v1819
    %v1821 = vpop.f32.mrb[0].mxu0
    %v1822 = vadd.f32 %v1609, %v1821
    %1823 = vmatprep.mubr.bf16.mxu0 %v670
    %1824 = vmatmul.mubr.bf16.gmra.mrb[0].mxu0 %v669
    %v1825 = vpop.f32.mrb[0].mxu0
    %v1826 = vadd.f32 %v1613, %v1825
    %v1827 = vpop.f32.mrb[0].mxu0
    %v1828 = vadd.f32 %v1615, %v1827
    %v1829 = vpop.f32.mrb[0].mxu0
    %v1830 = vadd.f32 %v1617, %v1829
    %v1831 = vpop.f32.mrb[0].mxu0
    %v1832 = vadd.f32 %v1619, %v1831
    %1833 = vmatprep.mubr.bf16.mxu0 %v675
    %1834 = vmatmul.mubr.bf16.gmra.mrb[0].mxu0 %v674
    %v1835 = vpop.f32.mrb[0].mxu0
    %v1836 = vadd.f32 %v1623, %v1835
    %v1837 = vpop.f32.mrb[0].mxu0
    %v1838 = vadd.f32 %v1625, %v1837
    %v1839 = vpop.f32.mrb[0].mxu0
    %v1840 = vadd.f32 %v1627, %v1839
    %v1841 = vpop.f32.mrb[0].mxu0
    %v1842 = vadd.f32 %v1629, %v1841
    %1843 = vmatprep.mubr.bf16.mxu0 %v680
    %1844 = vmatmul.mubr.bf16.gmra.mrb[0].mxu0 %v679
    %v1845 = vpop.f32.mrb[0].mxu0
    %v1846 = vadd.f32 %v1633, %v1845
    %v1847 = vpop.f32.mrb[0].mxu0
    %v1848 = vadd.f32 %v1635, %v1847
    %v1849 = vpop.f32.mrb[0].mxu0
    %v1850 = vadd.f32 %v1637, %v1849
    %v1851 = vpop.f32.mrb[0].mxu0
    %v1852 = vadd.f32 %v1639, %v1851
    %1853 = vmatprep.mubr.bf16.mxu0 %v685
    %1854 = vmatmul.mubr.bf16.gmra.mrb[0].mxu0 %v684
    %v1855 = vpop.f32.mrb[0].mxu0
    %v1856 = vadd.f32 %v1643, %v1855
    %v1857 = vpop.f32.mrb[0].mxu0
    %v1858 = vadd.f32 %v1645, %v1857
    %v1859 = vpop.f32.mrb[0].mxu0
    %v1860 = vadd.f32 %v1647, %v1859
    %v1861 = vpop.f32.mrb[0].mxu0
    %v1862 = vadd.f32 %v1649, %v1861
    %1863 = vdwg.mxu0
    %1864 = vmatprep.subr.bf16.mxu0 %v1246
    %1865 = vmatpush1.bf16.msra.mxu0 %v1245
    %1866 = vmatprep.subr.bf16.mxu0 %v1249
    %1867 = vmatpush1.bf16.msra.mxu0 %v1248
    %1868 = vmatprep.subr.bf16.mxu0 %v1252
    %1869 = vmatpush1.bf16.msra.mxu0 %v1251
    %1870 = vmatprep.subr.bf16.mxu0 %v1255
    %1871 = vmatpush1.bf16.msra.mxu0 %v1254
    %1872 = vmatprep.subr.bf16.mxu0 %v1258
    %1873 = vmatpush1.bf16.msra.mxu0 %v1257
    %1874 = vmatprep.subr.bf16.mxu0 %v1261
    %1875 = vmatpush1.bf16.msra.mxu0 %v1260
    %1876 = vmatprep.subr.bf16.mxu0 %v1264
    %1877 = vmatpush1.bf16.msra.mxu0 %v1263
    %1878 = vmatprep.subr.bf16.mxu0 0
    %1879 = vmatpush1.bf16.msra.mxu0 0
    %1880 = vmatprep.subr.bf16.mxu0 0
    %1881 = vmatpush1.bf16.msra.mxu0 0
    %1882 = vmatprep.subr.bf16.mxu0 0
    %1883 = vmatpush1.bf16.msra.mxu0 0
    %1884 = vmatprep.subr.bf16.mxu0 0
    %1885 = vmatpush1.bf16.msra.mxu0 0
    %1886 = vmatprep.subr.bf16.mxu0 0
    %1887 = vmatpush1.bf16.msra.mxu0 0
    %1888 = vmatprep.subr.bf16.mxu0 0
    %1889 = vmatpush1.bf16.msra.mxu0 0
    %1890 = vmatprep.subr.bf16.mxu0 0
    %1891 = vmatpush1.bf16.msra.mxu0 0
    %1892 = vmatprep.subr.bf16.mxu0 0
    %1893 = vmatpush1.bf16.msra.mxu0 0
    %1894 = vmatprep.subr.bf16.mxu0 0
    %1895 = vmatpush1.bf16.msra.mxu0 0
    %1896 = vmatprep.mubr.bf16.mxu0 0
    %1897 = vmatmul.mubr.bf16.gmra.mrb[0].mxu0 %v1385
    %v1898 = vpop.f32.mrb[0].mxu0
    %v1899 = vadd.f32 %v1686, %v1898
    %v1900 = vpop.f32.mrb[0].mxu0
    %v1901 = vadd.f32 %v1688, %v1900
    %v1902 = vpop.f32.mrb[0].mxu0
    %v1903 = vadd.f32 %v1690, %v1902
    %v1904 = vpop.f32.mrb[0].mxu0
    %v1905 = vadd.f32 %v1692, %v1904
    %1906 = vmatprep.mubr.bf16.mxu0 0
    %1907 = vmatmul.mubr.bf16.gmra.mrb[0].mxu0 %v1388
    %v1908 = vpop.f32.mrb[0].mxu0
    %v1909 = vadd.f32 %v1696, %v1908
    %v1910 = vpop.f32.mrb[0].mxu0
    %v1911 = vadd.f32 %v1698, %v1910
    %v1912 = vpop.f32.mrb[0].mxu0
    %v1913 = vadd.f32 %v1700, %v1912
    %v1914 = vpop.f32.mrb[0].mxu0
    %v1915 = vadd.f32 %v1702, %v1914
    %1916 = vmatprep.mubr.bf16.mxu0 0
    %1917 = vmatmul.mubr.bf16.gmra.mrb[0].mxu0 %v1391
    %v1918 = vpop.f32.mrb[0].mxu0
    %v1919 = vadd.f32 %v1706, %v1918
    %v1920 = vpop.f32.mrb[0].mxu0
    %v1921 = vadd.f32 %v1708, %v1920
    %v1922 = vpop.f32.mrb[0].mxu0
    %v1923 = vadd.f32 %v1710, %v1922
    %v1924 = vpop.f32.mrb[0].mxu0
    %v1925 = vadd.f32 %v1712, %v1924
    %1926 = vmatprep.mubr.bf16.mxu0 0
    %1927 = vmatmul.mubr.bf16.gmra.mrb[0].mxu0 %v1394
    %v1928 = vpop.f32.mrb[0].mxu0
    %v1929 = vadd.f32 %v1716, %v1928
    %v1930 = vpop.f32.mrb[0].mxu0
    %v1931 = vadd.f32 %v1718, %v1930
    %v1932 = vpop.f32.mrb[0].mxu0
    %v1933 = vadd.f32 %v1720, %v1932
    %v1934 = vpop.f32.mrb[0].mxu0
    %v1935 = vadd.f32 %v1722, %v1934
    %1936 = vmatprep.mubr.bf16.mxu0 0
    %1937 = vmatmul.mubr.bf16.gmra.mrb[0].mxu0 %v1397
    %v1938 = vpop.f32.mrb[0].mxu0
    %v1939 = vadd.f32 %v1726, %v1938
    %v1940 = vpop.f32.mrb[0].mxu0
    %v1941 = vadd.f32 %v1728, %v1940
    %v1942 = vpop.f32.mrb[0].mxu0
    %v1943 = vadd.f32 %v1730, %v1942
    %v1944 = vpop.f32.mrb[0].mxu0
    %v1945 = vadd.f32 %v1732, %v1944
    %1946 = vmatprep.mubr.bf16.mxu0 0
    %1947 = vmatmul.mubr.bf16.gmra.mrb[0].mxu0 %v1400
    %v1948 = vpop.f32.mrb[0].mxu0
    %v1949 = vadd.f32 %v1736, %v1948
    %v1950 = vpop.f32.mrb[0].mxu0
    %v1951 = vadd.f32 %v1738, %v1950
    %v1952 = vpop.f32.mrb[0].mxu0
    %v1953 = vadd.f32 %v1740, %v1952
    %v1954 = vpop.f32.mrb[0].mxu0
    %v1955 = vadd.f32 %v1742, %v1954
    %1956 = vmatprep.mubr.bf16.mxu0 0
    %1957 = vmatmul.mubr.bf16.gmra.mrb[0].mxu0 %v1403
    %v1958 = vpop.f32.mrb[0].mxu0
    %v1959 = vadd.f32 %v1746, %v1958
    %v1960 = vpop.f32.mrb[0].mxu0
    %v1961 = vadd.f32 %v1748, %v1960
    %v1962 = vpop.f32.mrb[0].mxu0
    %v1963 = vadd.f32 %v1750, %v1962
    %v1964 = vpop.f32.mrb[0].mxu0
    %v1965 = vadd.f32 %v1752, %v1964
    %1966 = vmatprep.mubr.bf16.mxu0 0
    %1967 = vmatmul.mubr.bf16.gmra.mrb[0].mxu0 %v1406
    %v1968 = vpop.f32.mrb[0].mxu0
    %v1969 = vadd.f32 %v1756, %v1968
    %v1970 = vpop.f32.mrb[0].mxu0
    %v1971 = vadd.f32 %v1758, %v1970
    %v1972 = vpop.f32.mrb[0].mxu0
    %v1973 = vadd.f32 %v1760, %v1972
    %v1974 = vpop.f32.mrb[0].mxu0
    %v1975 = vadd.f32 %v1762, %v1974
    %1976 = vmatprep.mubr.bf16.mxu0 0
    %1977 = vmatmul.mubr.bf16.gmra.mrb[0].mxu0 %v1409
    %v1978 = vpop.f32.mrb[0].mxu0
    %v1979 = vadd.f32 %v1766, %v1978
    %v1980 = vpop.f32.mrb[0].mxu0
    %v1981 = vadd.f32 %v1768, %v1980
    %v1982 = vpop.f32.mrb[0].mxu0
    %v1983 = vadd.f32 %v1770, %v1982
    %v1984 = vpop.f32.mrb[0].mxu0
    %v1985 = vadd.f32 %v1772, %v1984
    %1986 = vmatprep.mubr.bf16.mxu0 0
    %1987 = vmatmul.mubr.bf16.gmra.mrb[0].mxu0 %v1412
    %v1988 = vpop.f32.mrb[0].mxu0
    %v1989 = vadd.f32 %v1776, %v1988
    %v1990 = vpop.f32.mrb[0].mxu0
    %v1991 = vadd.f32 %v1778, %v1990
    %v1992 = vpop.f32.mrb[0].mxu0
    %v1993 = vadd.f32 %v1780, %v1992
    %v1994 = vpop.f32.mrb[0].mxu0
    %v1995 = vadd.f32 %v1782, %v1994
    %1996 = vmatprep.mubr.bf16.mxu0 0
    %1997 = vmatmul.mubr.bf16.gmra.mrb[0].mxu0 %v1415
    %v1998 = vpop.f32.mrb[0].mxu0
    %v1999 = vadd.f32 %v1786, %v1998
    %v2000 = vpop.f32.mrb[0].mxu0
    %v2001 = vadd.f32 %v1788, %v2000
    %v2002 = vpop.f32.mrb[0].mxu0
    %v2003 = vadd.f32 %v1790, %v2002
    %v2004 = vpop.f32.mrb[0].mxu0
    %v2005 = vadd.f32 %v1792, %v2004
    %2006 = vmatprep.mubr.bf16.mxu0 0
    %2007 = vmatmul.mubr.bf16.gmra.mrb[0].mxu0 %v1418
    %v2008 = vpop.f32.mrb[0].mxu0
    %v2009 = vadd.f32 %v1796, %v2008
    %v2010 = vpop.f32.mrb[0].mxu0
    %v2011 = vadd.f32 %v1798, %v2010
    %v2012 = vpop.f32.mrb[0].mxu0
    %v2013 = vadd.f32 %v1800, %v2012
    %v2014 = vpop.f32.mrb[0].mxu0
    %v2015 = vadd.f32 %v1802, %v2014
    %2016 = vmatprep.mubr.bf16.mxu0 0
    %2017 = vmatmul.mubr.bf16.gmra.mrb[0].mxu0 %v1421
    %v2018 = vpop.f32.mrb[0].mxu0
    %v2019 = vadd.f32 %v1806, %v2018
    %v2020 = vpop.f32.mrb[0].mxu0
    %v2021 = vadd.f32 %v1808, %v2020
    %v2022 = vpop.f32.mrb[0].mxu0
    %v2023 = vadd.f32 %v1810, %v2022
    %v2024 = vpop.f32.mrb[0].mxu0
    %v2025 = vadd.f32 %v1812, %v2024
    %2026 = vmatprep.mubr.bf16.mxu0 0
    %2027 = vmatmul.mubr.bf16.gmra.mrb[0].mxu0 %v1424
    %v2028 = vpop.f32.mrb[0].mxu0
    %v2029 = vadd.f32 %v1816, %v2028
    %v2030 = vpop.f32.mrb[0].mxu0
    %v2031 = vadd.f32 %v1818, %v2030
    %v2032 = vpop.f32.mrb[0].mxu0
    %v2033 = vadd.f32 %v1820, %v2032
    %v2034 = vpop.f32.mrb[0].mxu0
    %v2035 = vadd.f32 %v1822, %v2034
    %2036 = vmatprep.mubr.bf16.mxu0 0
    %2037 = vmatmul.mubr.bf16.gmra.mrb[0].mxu0 %v1427
    %v2038 = vpop.f32.mrb[0].mxu0
    %v2039 = vadd.f32 %v1826, %v2038
    %v2040 = vpop.f32.mrb[0].mxu0
    %v2041 = vadd.f32 %v1828, %v2040
    %v2042 = vpop.f32.mrb[0].mxu0
    %v2043 = vadd.f32 %v1830, %v2042
    %v2044 = vpop.f32.mrb[0].mxu0
    %v2045 = vadd.f32 %v1832, %v2044
    %2046 = vmatprep.mubr.bf16.mxu0 0
    %2047 = vmatmul.mubr.bf16.gmra.mrb[0].mxu0 %v1430
    %v2048 = vpop.f32.mrb[0].mxu0
    %v2049 = vadd.f32 %v1836, %v2048
    %v2050 = vpop.f32.mrb[0].mxu0
    %v2051 = vadd.f32 %v1838, %v2050
    %v2052 = vpop.f32.mrb[0].mxu0
    %v2053 = vadd.f32 %v1840, %v2052
    %v2054 = vpop.f32.mrb[0].mxu0
    %v2055 = vadd.f32 %v1842, %v2054
    %2056 = vmatprep.mubr.bf16.mxu0 0
    %2057 = vmatmul.mubr.bf16.gmra.mrb[0].mxu0 %v1433
    %v2058 = vpop.f32.mrb[0].mxu0
    %v2059 = vadd.f32 %v1846, %v2058
    %v2060 = vpop.f32.mrb[0].mxu0
    %v2061 = vadd.f32 %v1848, %v2060
    %v2062 = vpop.f32.mrb[0].mxu0
    %v2063 = vadd.f32 %v1850, %v2062
    %v2064 = vpop.f32.mrb[0].mxu0
    %v2065 = vadd.f32 %v1852, %v2064
    %2066 = vmatprep.mubr.bf16.mxu0 0
    %2067 = vmatmul.mubr.bf16.gmra.mrb[0].mxu0 %v1436
    %v2068 = vpop.f32.mrb[0].mxu0
    %v2069 = vadd.f32 %v1856, %v2068
    %v2070 = vpop.f32.mrb[0].mxu0
    %v2071 = vadd.f32 %v1858, %v2070
    %v2072 = vpop.f32.mrb[0].mxu0
    %v2073 = vadd.f32 %v1860, %v2072
    %v2074 = vpop.f32.mrb[0].mxu0
    %v2075 = vadd.f32 %v1862, %v2074
    %2076 = vdwg.mxu0
    %2077 = vmatprep.subr.bf16.mxu0 0
    %2078 = vmatpush1.bf16.msra.mxu0 %v1151
    %2079 = vmatprep.subr.bf16.mxu0 0
    %2080 = vmatpush1.bf16.msra.mxu0 %v1154
    %2081 = vmatprep.subr.bf16.mxu0 0
    %2082 = vmatpush1.bf16.msra.mxu0 %v1157
    %2083 = vmatprep.subr.bf16.mxu0 0
    %2084 = vmatpush1.bf16.msra.mxu0 %v1160
    %2085 = vmatprep.subr.bf16.mxu0 0
    %2086 = vmatpush1.bf16.msra.mxu0 %v1163
    %2087 = vmatprep.subr.bf16.mxu0 0
    %2088 = vmatpush1.bf16.msra.mxu0 %v1166
    %2089 = vmatprep.subr.bf16.mxu0 0
    %2090 = vmatpush1.bf16.msra.mxu0 %v1169
    %2091 = vmatprep.subr.bf16.mxu0 0
    %2092 = vmatpush1.bf16.msra.mxu0 %v1172
    %2093 = vmatprep.subr.bf16.mxu0 0
    %2094 = vmatpush1.bf16.msra.mxu0 %v1175
    %2095 = vmatprep.subr.bf16.mxu0 0
    %2096 = vmatpush1.bf16.msra.mxu0 %v1178
    %2097 = vmatprep.subr.bf16.mxu0 0
    %2098 = vmatpush1.bf16.msra.mxu0 %v1181
    %2099 = vmatprep.subr.bf16.mxu0 0
    %2100 = vmatpush1.bf16.msra.mxu0 %v1184
    %2101 = vmatprep.subr.bf16.mxu0 0
    %2102 = vmatpush1.bf16.msra.mxu0 %v1187
    %2103 = vmatprep.subr.bf16.mxu0 0
    %2104 = vmatpush1.bf16.msra.mxu0 %v1190
    %2105 = vmatprep.subr.bf16.mxu0 0
    %2106 = vmatpush1.bf16.msra.mxu0 %v1193
    %2107 = vmatprep.subr.bf16.mxu0 0
    %2108 = vmatpush1.bf16.msra.mxu0 %v1196
    %2109 = vmatprep.mubr.bf16.mxu0 %v598
    %2110 = vmatmul.mubr.bf16.gmra.mrb[0].mxu0 %v597
    %v2111 = vpop.f32.mrb[0].mxu0
    %v2112 = vadd.f32 %v305, %v2111
    %v2113 = vpop.f32.mrb[0].mxu0
    %v2114 = vpop.f32.mrb[0].mxu0
    %v2115 = vadd.f32 %v305, %v2114
    %v2116 = vpop.f32.mrb[0].mxu0
    %2117 = vmatprep.mubr.bf16.mxu0 %v603
    %2118 = vmatmul.mubr.bf16.gmra.mrb[0].mxu0 %v602
    %v2119 = vpop.f32.mrb[0].mxu0
    %v2120 = vadd.f32 %v305, %v2119
    %v2121 = vpop.f32.mrb[0].mxu0
    %v2122 = vpop.f32.mrb[0].mxu0
    %v2123 = vadd.f32 %v305, %v2122
    %v2124 = vpop.f32.mrb[0].mxu0
    %2125 = vmatprep.mubr.bf16.mxu0 %v608
    %2126 = vmatmul.mubr.bf16.gmra.mrb[0].mxu0 %v607
    %v2127 = vpop.f32.mrb[0].mxu0
    %v2128 = vadd.f32 %v305, %v2127
    %v2129 = vpop.f32.mrb[0].mxu0
    %v2130 = vpop.f32.mrb[0].mxu0
    %v2131 = vadd.f32 %v305, %v2130
    %v2132 = vpop.f32.mrb[0].mxu0
    %2133 = vmatprep.mubr.bf16.mxu0 %v613
    %2134 = vmatmul.mubr.bf16.gmra.mrb[0].mxu0 %v612
    %v2135 = vpop.f32.mrb[0].mxu0
    %v2136 = vadd.f32 %v305, %v2135
    %v2137 = vpop.f32.mrb[0].mxu0
    %v2138 = vpop.f32.mrb[0].mxu0
    %v2139 = vadd.f32 %v305, %v2138
    %v2140 = vpop.f32.mrb[0].mxu0
    %2141 = vmatprep.mubr.bf16.mxu0 %v618
    %2142 = vmatmul.mubr.bf16.gmra.mrb[0].mxu0 %v617
    %v2143 = vpop.f32.mrb[0].mxu0
    %v2144 = vadd.f32 %v305, %v2143
    %v2145 = vpop.f32.mrb[0].mxu0
    %v2146 = vpop.f32.mrb[0].mxu0
    %v2147 = vadd.f32 %v305, %v2146
    %v2148 = vpop.f32.mrb[0].mxu0
    %2149 = vmatprep.mubr.bf16.mxu0 %v623
    %2150 = vmatmul.mubr.bf16.gmra.mrb[0].mxu0 %v622
    %v2151 = vpop.f32.mrb[0].mxu0
    %v2152 = vadd.f32 %v305, %v2151
    %v2153 = vpop.f32.mrb[0].mxu0
    %v2154 = vpop.f32.mrb[0].mxu0
    %v2155 = vadd.f32 %v305, %v2154
    %v2156 = vpop.f32.mrb[0].mxu0
    %2157 = vmatprep.mubr.bf16.mxu0 %v628
    %2158 = vmatmul.mubr.bf16.gmra.mrb[0].mxu0 %v627
    %v2159 = vpop.f32.mrb[0].mxu0
    %v2160 = vadd.f32 %v305, %v2159
    %v2161 = vpop.f32.mrb[0].mxu0
    %v2162 = vpop.f32.mrb[0].mxu0
    %v2163 = vadd.f32 %v305, %v2162
    %v2164 = vpop.f32.mrb[0].mxu0
    %2165 = vmatprep.mubr.bf16.mxu0 %v633
    %2166 = vmatmul.mubr.bf16.gmra.mrb[0].mxu0 %v632
    %v2167 = vpop.f32.mrb[0].mxu0
    %v2168 = vadd.f32 %v305, %v2167
    %v2169 = vpop.f32.mrb[0].mxu0
    %v2170 = vpop.f32.mrb[0].mxu0
    %v2171 = vadd.f32 %v305, %v2170
    %v2172 = vpop.f32.mrb[0].mxu0
    %2173 = vmatprep.mubr.bf16.mxu0 %v638
    %2174 = vmatmul.mubr.bf16.gmra.mrb[0].mxu0 %v637
    %v2175 = vpop.f32.mrb[0].mxu0
    %v2176 = vadd.f32 %v305, %v2175
    %v2177 = vpop.f32.mrb[0].mxu0
    %v2178 = vpop.f32.mrb[0].mxu0
    %v2179 = vadd.f32 %v305, %v2178
    %v2180 = vpop.f32.mrb[0].mxu0
    %2181 = vmatprep.mubr.bf16.mxu0 %v643
    %2182 = vmatmul.mubr.bf16.gmra.mrb[0].mxu0 %v642
    %v2183 = vpop.f32.mrb[0].mxu0
    %v2184 = vadd.f32 %v305, %v2183
    %v2185 = vpop.f32.mrb[0].mxu0
    %v2186 = vpop.f32.mrb[0].mxu0
    %v2187 = vadd.f32 %v305, %v2186
    %v2188 = vpop.f32.mrb[0].mxu0
    %2189 = vmatprep.mubr.bf16.mxu0 %v648
    %2190 = vmatmul.mubr.bf16.gmra.mrb[0].mxu0 %v647
    %v2191 = vpop.f32.mrb[0].mxu0
    %v2192 = vadd.f32 %v305, %v2191
    %v2193 = vpop.f32.mrb[0].mxu0
    %v2194 = vpop.f32.mrb[0].mxu0
    %v2195 = vadd.f32 %v305, %v2194
    %v2196 = vpop.f32.mrb[0].mxu0
    %2197 = vmatprep.mubr.bf16.mxu0 %v653
    %2198 = vmatmul.mubr.bf16.gmra.mrb[0].mxu0 %v652
    %v2199 = vpop.f32.mrb[0].mxu0
    %v2200 = vadd.f32 %v305, %v2199
    %v2201 = vpop.f32.mrb[0].mxu0
    %v2202 = vpop.f32.mrb[0].mxu0
    %v2203 = vadd.f32 %v305, %v2202
    %v2204 = vpop.f32.mrb[0].mxu0
    %2205 = vmatprep.mubr.bf16.mxu0 %v658
    %2206 = vmatmul.mubr.bf16.gmra.mrb[0].mxu0 %v657
    %v2207 = vpop.f32.mrb[0].mxu0
    %v2208 = vadd.f32 %v305, %v2207
    %v2209 = vpop.f32.mrb[0].mxu0
    %v2210 = vpop.f32.mrb[0].mxu0
    %v2211 = vadd.f32 %v305, %v2210
    %v2212 = vpop.f32.mrb[0].mxu0
    %2213 = vmatprep.mubr.bf16.mxu0 %v663
    %2214 = vmatmul.mubr.bf16.gmra.mrb[0].mxu0 %v662
    %v2215 = vpop.f32.mrb[0].mxu0
    %v2216 = vadd.f32 %v305, %v2215
    %v2217 = vpop.f32.mrb[0].mxu0
    %v2218 = vpop.f32.mrb[0].mxu0
    %v2219 = vadd.f32 %v305, %v2218
    %v2220 = vpop.f32.mrb[0].mxu0
    %2221 = vmatprep.mubr.bf16.mxu0 %v668
    %2222 = vmatmul.mubr.bf16.gmra.mrb[0].mxu0 %v667
    %v2223 = vpop.f32.mrb[0].mxu0
    %v2224 = vadd.f32 %v305, %v2223
    %v2225 = vpop.f32.mrb[0].mxu0
    %v2226 = vpop.f32.mrb[0].mxu0
    %v2227 = vadd.f32 %v305, %v2226
    %v2228 = vpop.f32.mrb[0].mxu0
    %2229 = vmatprep.mubr.bf16.mxu0 %v673
    %2230 = vmatmul.mubr.bf16.gmra.mrb[0].mxu0 %v672
    %v2231 = vpop.f32.mrb[0].mxu0
    %v2232 = vadd.f32 %v305, %v2231
    %v2233 = vpop.f32.mrb[0].mxu0
    %v2234 = vpop.f32.mrb[0].mxu0
    %v2235 = vadd.f32 %v305, %v2234
    %v2236 = vpop.f32.mrb[0].mxu0
    %2237 = vmatprep.mubr.bf16.mxu0 %v678
    %2238 = vmatmul.mubr.bf16.gmra.mrb[0].mxu0 %v677
    %v2239 = vpop.f32.mrb[0].mxu0
    %v2240 = vadd.f32 %v305, %v2239
    %v2241 = vpop.f32.mrb[0].mxu0
    %v2242 = vpop.f32.mrb[0].mxu0
    %v2243 = vadd.f32 %v305, %v2242
    %v2244 = vpop.f32.mrb[0].mxu0
    %2245 = vmatprep.mubr.bf16.mxu0 %v683
    %2246 = vmatmul.mubr.bf16.gmra.mrb[0].mxu0 %v682
    %v2247 = vpop.f32.mrb[0].mxu0
    %v2248 = vadd.f32 %v305, %v2247
    %v2249 = vpop.f32.mrb[0].mxu0
    %v2250 = vpop.f32.mrb[0].mxu0
    %v2251 = vadd.f32 %v305, %v2250
    %v2252 = vpop.f32.mrb[0].mxu0
    %2253 = vdwg.mxu0
    %2254 = vmatprep.subr.bf16.mxu0 0
    %2255 = vmatpush1.bf16.msra.mxu0 %v1199
    %2256 = vmatprep.subr.bf16.mxu0 0
    %2257 = vmatpush1.bf16.msra.mxu0 %v1202
    %2258 = vmatprep.subr.bf16.mxu0 0
    %2259 = vmatpush1.bf16.msra.mxu0 %v1205
    %2260 = vmatprep.subr.bf16.mxu0 0
    %2261 = vmatpush1.bf16.msra.mxu0 %v1208
    %2262 = vmatprep.subr.bf16.mxu0 0
    %2263 = vmatpush1.bf16.msra.mxu0 %v1211
    %2264 = vmatprep.subr.bf16.mxu0 0
    %2265 = vmatpush1.bf16.msra.mxu0 %v1214
    %2266 = vmatprep.subr.bf16.mxu0 0
    %2267 = vmatpush1.bf16.msra.mxu0 %v1217
    %2268 = vmatprep.subr.bf16.mxu0 0
    %2269 = vmatpush1.bf16.msra.mxu0 %v1220
    %2270 = vmatprep.subr.bf16.mxu0 0
    %2271 = vmatpush1.bf16.msra.mxu0 %v1223
    %2272 = vmatprep.subr.bf16.mxu0 0
    %2273 = vmatpush1.bf16.msra.mxu0 %v1226
    %2274 = vmatprep.subr.bf16.mxu0 0
    %2275 = vmatpush1.bf16.msra.mxu0 %v1229
    %2276 = vmatprep.subr.bf16.mxu0 0
    %2277 = vmatpush1.bf16.msra.mxu0 %v1232
    %2278 = vmatprep.subr.bf16.mxu0 0
    %2279 = vmatpush1.bf16.msra.mxu0 %v1235
    %2280 = vmatprep.subr.bf16.mxu0 0
    %2281 = vmatpush1.bf16.msra.mxu0 %v1238
    %2282 = vmatprep.subr.bf16.mxu0 0
    %2283 = vmatpush1.bf16.msra.mxu0 %v1241
    %2284 = vmatprep.subr.bf16.mxu0 0
    %2285 = vmatpush1.bf16.msra.mxu0 %v1244
    %2286 = vmatprep.mubr.bf16.mxu0 %v600
    %2287 = vmatmul.mubr.bf16.gmra.mrb[0].mxu0 %v599
    %v2288 = vpop.f32.mrb[0].mxu0
    %v2289 = vadd.f32 %v2112, %v2288
    %v2290 = vpop.f32.mrb[0].mxu0
    %v2291 = vpop.f32.mrb[0].mxu0
    %v2292 = vadd.f32 %v2115, %v2291
    %v2293 = vpop.f32.mrb[0].mxu0
    %2294 = vmatprep.mubr.bf16.mxu0 %v605
    %2295 = vmatmul.mubr.bf16.gmra.mrb[0].mxu0 %v604
    %v2296 = vpop.f32.mrb[0].mxu0
    %v2297 = vadd.f32 %v2120, %v2296
    %v2298 = vpop.f32.mrb[0].mxu0
    %v2299 = vpop.f32.mrb[0].mxu0
    %v2300 = vadd.f32 %v2123, %v2299
    %v2301 = vpop.f32.mrb[0].mxu0
    %2302 = vmatprep.mubr.bf16.mxu0 %v610
    %2303 = vmatmul.mubr.bf16.gmra.mrb[0].mxu0 %v609
    %v2304 = vpop.f32.mrb[0].mxu0
    %v2305 = vadd.f32 %v2128, %v2304
    %v2306 = vpop.f32.mrb[0].mxu0
    %v2307 = vpop.f32.mrb[0].mxu0
    %v2308 = vadd.f32 %v2131, %v2307
    %v2309 = vpop.f32.mrb[0].mxu0
    %2310 = vmatprep.mubr.bf16.mxu0 %v615
    %2311 = vmatmul.mubr.bf16.gmra.mrb[0].mxu0 %v614
    %v2312 = vpop.f32.mrb[0].mxu0
    %v2313 = vadd.f32 %v2136, %v2312
    %v2314 = vpop.f32.mrb[0].mxu0
    %v2315 = vpop.f32.mrb[0].mxu0
    %v2316 = vadd.f32 %v2139, %v2315
    %v2317 = vpop.f32.mrb[0].mxu0
    %2318 = vmatprep.mubr.bf16.mxu0 %v620
    %2319 = vmatmul.mubr.bf16.gmra.mrb[0].mxu0 %v619
    %v2320 = vpop.f32.mrb[0].mxu0
    %v2321 = vadd.f32 %v2144, %v2320
    %v2322 = vpop.f32.mrb[0].mxu0
    %v2323 = vpop.f32.mrb[0].mxu0
    %v2324 = vadd.f32 %v2147, %v2323
    %v2325 = vpop.f32.mrb[0].mxu0
    %2326 = vmatprep.mubr.bf16.mxu0 %v625
    %2327 = vmatmul.mubr.bf16.gmra.mrb[0].mxu0 %v624
    %v2328 = vpop.f32.mrb[0].mxu0
    %v2329 = vadd.f32 %v2152, %v2328
    %v2330 = vpop.f32.mrb[0].mxu0
    %v2331 = vpop.f32.mrb[0].mxu0
    %v2332 = vadd.f32 %v2155, %v2331
    %v2333 = vpop.f32.mrb[0].mxu0
    %2334 = vmatprep.mubr.bf16.mxu0 %v630
    %2335 = vmatmul.mubr.bf16.gmra.mrb[0].mxu0 %v629
    %v2336 = vpop.f32.mrb[0].mxu0
    %v2337 = vadd.f32 %v2160, %v2336
    %v2338 = vpop.f32.mrb[0].mxu0
    %v2339 = vpop.f32.mrb[0].mxu0
    %v2340 = vadd.f32 %v2163, %v2339
    %v2341 = vpop.f32.mrb[0].mxu0
    %2342 = vmatprep.mubr.bf16.mxu0 %v635
    %2343 = vmatmul.mubr.bf16.gmra.mrb[0].mxu0 %v634
    %v2344 = vpop.f32.mrb[0].mxu0
    %v2345 = vadd.f32 %v2168, %v2344
    %v2346 = vpop.f32.mrb[0].mxu0
    %v2347 = vpop.f32.mrb[0].mxu0
    %v2348 = vadd.f32 %v2171, %v2347
    %v2349 = vpop.f32.mrb[0].mxu0
    %2350 = vmatprep.mubr.bf16.mxu0 %v640
    %2351 = vmatmul.mubr.bf16.gmra.mrb[0].mxu0 %v639
    %v2352 = vpop.f32.mrb[0].mxu0
    %v2353 = vadd.f32 %v2176, %v2352
    %v2354 = vpop.f32.mrb[0].mxu0
    %v2355 = vpop.f32.mrb[0].mxu0
    %v2356 = vadd.f32 %v2179, %v2355
    %v2357 = vpop.f32.mrb[0].mxu0
    %2358 = vmatprep.mubr.bf16.mxu0 %v645
    %2359 = vmatmul.mubr.bf16.gmra.mrb[0].mxu0 %v644
    %v2360 = vpop.f32.mrb[0].mxu0
    %v2361 = vadd.f32 %v2184, %v2360
    %v2362 = vpop.f32.mrb[0].mxu0
    %v2363 = vpop.f32.mrb[0].mxu0
    %v2364 = vadd.f32 %v2187, %v2363
    %v2365 = vpop.f32.mrb[0].mxu0
    %2366 = vmatprep.mubr.bf16.mxu0 %v650
    %2367 = vmatmul.mubr.bf16.gmra.mrb[0].mxu0 %v649
    %v2368 = vpop.f32.mrb[0].mxu0
    %v2369 = vadd.f32 %v2192, %v2368
    %v2370 = vpop.f32.mrb[0].mxu0
    %v2371 = vpop.f32.mrb[0].mxu0
    %v2372 = vadd.f32 %v2195, %v2371
    %v2373 = vpop.f32.mrb[0].mxu0
    %2374 = vmatprep.mubr.bf16.mxu0 %v655
    %2375 = vmatmul.mubr.bf16.gmra.mrb[0].mxu0 %v654
    %v2376 = vpop.f32.mrb[0].mxu0
    %v2377 = vadd.f32 %v2200, %v2376
    %v2378 = vpop.f32.mrb[0].mxu0
    %v2379 = vpop.f32.mrb[0].mxu0
    %v2380 = vadd.f32 %v2203, %v2379
    %v2381 = vpop.f32.mrb[0].mxu0
    %2382 = vmatprep.mubr.bf16.mxu0 %v660
    %2383 = vmatmul.mubr.bf16.gmra.mrb[0].mxu0 %v659
    %v2384 = vpop.f32.mrb[0].mxu0
    %v2385 = vadd.f32 %v2208, %v2384
    %v2386 = vpop.f32.mrb[0].mxu0
    %v2387 = vpop.f32.mrb[0].mxu0
    %v2388 = vadd.f32 %v2211, %v2387
    %v2389 = vpop.f32.mrb[0].mxu0
    %2390 = vmatprep.mubr.bf16.mxu0 %v665
    %2391 = vmatmul.mubr.bf16.gmra.mrb[0].mxu0 %v664
    %v2392 = vpop.f32.mrb[0].mxu0
    %v2393 = vadd.f32 %v2216, %v2392
    %v2394 = vpop.f32.mrb[0].mxu0
    %v2395 = vpop.f32.mrb[0].mxu0
    %v2396 = vadd.f32 %v2219, %v2395
    %v2397 = vpop.f32.mrb[0].mxu0
    %2398 = vmatprep.mubr.bf16.mxu0 %v670
    %2399 = vmatmul.mubr.bf16.gmra.mrb[0].mxu0 %v669
    %v2400 = vpop.f32.mrb[0].mxu0
    %v2401 = vadd.f32 %v2224, %v2400
    %v2402 = vpop.f32.mrb[0].mxu0
    %v2403 = vpop.f32.mrb[0].mxu0
    %v2404 = vadd.f32 %v2227, %v2403
    %v2405 = vpop.f32.mrb[0].mxu0
    %2406 = vmatprep.mubr.bf16.mxu0 %v675
    %2407 = vmatmul.mubr.bf16.gmra.mrb[0].mxu0 %v674
    %v2408 = vpop.f32.mrb[0].mxu0
    %v2409 = vadd.f32 %v2232, %v2408
    %v2410 = vpop.f32.mrb[0].mxu0
    %v2411 = vpop.f32.mrb[0].mxu0
    %v2412 = vadd.f32 %v2235, %v2411
    %v2413 = vpop.f32.mrb[0].mxu0
    %2414 = vmatprep.mubr.bf16.mxu0 %v680
    %2415 = vmatmul.mubr.bf16.gmra.mrb[0].mxu0 %v679
    %v2416 = vpop.f32.mrb[0].mxu0
    %v2417 = vadd.f32 %v2240, %v2416
    %v2418 = vpop.f32.mrb[0].mxu0
    %v2419 = vpop.f32.mrb[0].mxu0
    %v2420 = vadd.f32 %v2243, %v2419
    %v2421 = vpop.f32.mrb[0].mxu0
    %2422 = vmatprep.mubr.bf16.mxu0 %v685
    %2423 = vmatmul.mubr.bf16.gmra.mrb[0].mxu0 %v684
    %v2424 = vpop.f32.mrb[0].mxu0
    %v2425 = vadd.f32 %v2248, %v2424
    %v2426 = vpop.f32.mrb[0].mxu0
    %v2427 = vpop.f32.mrb[0].mxu0
    %v2428 = vadd.f32 %v2251, %v2427
    %v2429 = vpop.f32.mrb[0].mxu0
    %2430 = vdwg.mxu0
    %2431 = vmatprep.subr.bf16.mxu0 0
    %2432 = vmatpush1.bf16.msra.mxu0 %v1247
    %2433 = vmatprep.subr.bf16.mxu0 0
    %2434 = vmatpush1.bf16.msra.mxu0 %v1250
    %2435 = vmatprep.subr.bf16.mxu0 0
    %2436 = vmatpush1.bf16.msra.mxu0 %v1253
    %2437 = vmatprep.subr.bf16.mxu0 0
    %2438 = vmatpush1.bf16.msra.mxu0 %v1256
    %2439 = vmatprep.subr.bf16.mxu0 0
    %2440 = vmatpush1.bf16.msra.mxu0 %v1259
    %2441 = vmatprep.subr.bf16.mxu0 0
    %2442 = vmatpush1.bf16.msra.mxu0 %v1262
    %2443 = vmatprep.subr.bf16.mxu0 0
    %2444 = vmatpush1.bf16.msra.mxu0 %v1265
    %2445 = vmatprep.subr.bf16.mxu0 0
    %2446 = vmatpush1.bf16.msra.mxu0 0
    %2447 = vmatprep.subr.bf16.mxu0 0
    %2448 = vmatpush1.bf16.msra.mxu0 0
    %2449 = vmatprep.subr.bf16.mxu0 0
    %2450 = vmatpush1.bf16.msra.mxu0 0
    %2451 = vmatprep.subr.bf16.mxu0 0
    %2452 = vmatpush1.bf16.msra.mxu0 0
    %2453 = vmatprep.subr.bf16.mxu0 0
    %2454 = vmatpush1.bf16.msra.mxu0 0
    %2455 = vmatprep.subr.bf16.mxu0 0
    %2456 = vmatpush1.bf16.msra.mxu0 0
    %2457 = vmatprep.subr.bf16.mxu0 0
    %2458 = vmatpush1.bf16.msra.mxu0 0
    %2459 = vmatprep.subr.bf16.mxu0 0
    %2460 = vmatpush1.bf16.msra.mxu0 0
    %2461 = vmatprep.subr.bf16.mxu0 0
    %2462 = vmatpush1.bf16.msra.mxu0 0
    %2463 = vmatprep.mubr.bf16.mxu0 0
    %2464 = vmatmul.mubr.bf16.gmra.mrb[0].mxu0 %v1385
    %v2465 = vpop.f32.mrb[0].mxu0
    %v2466 = vadd.f32 %v2289, %v2465
    %v2467 = vpop.f32.mrb[0].mxu0
    %v2468 = vpop.f32.mrb[0].mxu0
    %v2469 = vadd.f32 %v2292, %v2468
    %v2470 = vpop.f32.mrb[0].mxu0
    %2471 = vmatprep.mubr.bf16.mxu0 0
    %2472 = vmatmul.mubr.bf16.gmra.mrb[0].mxu0 %v1388
    %v2473 = vpop.f32.mrb[0].mxu0
    %v2474 = vadd.f32 %v2297, %v2473
    %v2475 = vpop.f32.mrb[0].mxu0
    %v2476 = vpop.f32.mrb[0].mxu0
    %v2477 = vadd.f32 %v2300, %v2476
    %v2478 = vpop.f32.mrb[0].mxu0
    %2479 = vmatprep.mubr.bf16.mxu0 0
    %2480 = vmatmul.mubr.bf16.gmra.mrb[0].mxu0 %v1391
    %v2481 = vpop.f32.mrb[0].mxu0
    %v2482 = vadd.f32 %v2305, %v2481
    %v2483 = vpop.f32.mrb[0].mxu0
    %v2484 = vpop.f32.mrb[0].mxu0
    %v2485 = vadd.f32 %v2308, %v2484
    %v2486 = vpop.f32.mrb[0].mxu0
    %2487 = vmatprep.mubr.bf16.mxu0 0
    %2488 = vmatmul.mubr.bf16.gmra.mrb[0].mxu0 %v1394
    %v2489 = vpop.f32.mrb[0].mxu0
    %v2490 = vadd.f32 %v2313, %v2489
    %v2491 = vpop.f32.mrb[0].mxu0
    %v2492 = vpop.f32.mrb[0].mxu0
    %v2493 = vadd.f32 %v2316, %v2492
    %v2494 = vpop.f32.mrb[0].mxu0
    %2495 = vmatprep.mubr.bf16.mxu0 0
    %2496 = vmatmul.mubr.bf16.gmra.mrb[0].mxu0 %v1397
    %v2497 = vpop.f32.mrb[0].mxu0
    %v2498 = vadd.f32 %v2321, %v2497
    %v2499 = vpop.f32.mrb[0].mxu0
    %v2500 = vpop.f32.mrb[0].mxu0
    %v2501 = vadd.f32 %v2324, %v2500
    %v2502 = vpop.f32.mrb[0].mxu0
    %2503 = vmatprep.mubr.bf16.mxu0 0
    %2504 = vmatmul.mubr.bf16.gmra.mrb[0].mxu0 %v1400
    %v2505 = vpop.f32.mrb[0].mxu0
    %v2506 = vadd.f32 %v2329, %v2505
    %v2507 = vpop.f32.mrb[0].mxu0
    %v2508 = vpop.f32.mrb[0].mxu0
    %v2509 = vadd.f32 %v2332, %v2508
    %v2510 = vpop.f32.mrb[0].mxu0
    %2511 = vmatprep.mubr.bf16.mxu0 0
    %2512 = vmatmul.mubr.bf16.gmra.mrb[0].mxu0 %v1403
    %v2513 = vpop.f32.mrb[0].mxu0
    %v2514 = vadd.f32 %v2337, %v2513
    %v2515 = vpop.f32.mrb[0].mxu0
    %v2516 = vpop.f32.mrb[0].mxu0
    %v2517 = vadd.f32 %v2340, %v2516
    %v2518 = vpop.f32.mrb[0].mxu0
    %2519 = vmatprep.mubr.bf16.mxu0 0
    %2520 = vmatmul.mubr.bf16.gmra.mrb[0].mxu0 %v1406
    %v2521 = vpop.f32.mrb[0].mxu0
    %v2522 = vadd.f32 %v2345, %v2521
    %v2523 = vpop.f32.mrb[0].mxu0
    %v2524 = vpop.f32.mrb[0].mxu0
    %v2525 = vadd.f32 %v2348, %v2524
    %v2526 = vpop.f32.mrb[0].mxu0
    %2527 = vmatprep.mubr.bf16.mxu0 0
    %2528 = vmatmul.mubr.bf16.gmra.mrb[0].mxu0 %v1409
    %v2529 = vpop.f32.mrb[0].mxu0
    %v2530 = vadd.f32 %v2353, %v2529
    %v2531 = vpop.f32.mrb[0].mxu0
    %v2532 = vpop.f32.mrb[0].mxu0
    %v2533 = vadd.f32 %v2356, %v2532
    %v2534 = vpop.f32.mrb[0].mxu0
    %2535 = vmatprep.mubr.bf16.mxu0 0
    %2536 = vmatmul.mubr.bf16.gmra.mrb[0].mxu0 %v1412
    %v2537 = vpop.f32.mrb[0].mxu0
    %v2538 = vadd.f32 %v2361, %v2537
    %v2539 = vpop.f32.mrb[0].mxu0
    %v2540 = vpop.f32.mrb[0].mxu0
    %v2541 = vadd.f32 %v2364, %v2540
    %v2542 = vpop.f32.mrb[0].mxu0
    %2543 = vmatprep.mubr.bf16.mxu0 0
    %2544 = vmatmul.mubr.bf16.gmra.mrb[0].mxu0 %v1415
    %v2545 = vpop.f32.mrb[0].mxu0
    %v2546 = vadd.f32 %v2369, %v2545
    %v2547 = vpop.f32.mrb[0].mxu0
    %v2548 = vpop.f32.mrb[0].mxu0
    %v2549 = vadd.f32 %v2372, %v2548
    %v2550 = vpop.f32.mrb[0].mxu0
    %2551 = vmatprep.mubr.bf16.mxu0 0
    %2552 = vmatmul.mubr.bf16.gmra.mrb[0].mxu0 %v1418
    %v2553 = vpop.f32.mrb[0].mxu0
    %v2554 = vadd.f32 %v2377, %v2553
    %v2555 = vpop.f32.mrb[0].mxu0
    %v2556 = vpop.f32.mrb[0].mxu0
    %v2557 = vadd.f32 %v2380, %v2556
    %v2558 = vpop.f32.mrb[0].mxu0
    %2559 = vmatprep.mubr.bf16.mxu0 0
    %2560 = vmatmul.mubr.bf16.gmra.mrb[0].mxu0 %v1421
    %v2561 = vpop.f32.mrb[0].mxu0
    %v2562 = vadd.f32 %v2385, %v2561
    %v2563 = vpop.f32.mrb[0].mxu0
    %v2564 = vpop.f32.mrb[0].mxu0
    %v2565 = vadd.f32 %v2388, %v2564
    %v2566 = vpop.f32.mrb[0].mxu0
    %2567 = vmatprep.mubr.bf16.mxu0 0
    %2568 = vmatmul.mubr.bf16.gmra.mrb[0].mxu0 %v1424
    %v2569 = vpop.f32.mrb[0].mxu0
    %v2570 = vadd.f32 %v2393, %v2569
    %v2571 = vpop.f32.mrb[0].mxu0
    %v2572 = vpop.f32.mrb[0].mxu0
    %v2573 = vadd.f32 %v2396, %v2572
    %v2574 = vpop.f32.mrb[0].mxu0
    %2575 = vmatprep.mubr.bf16.mxu0 0
    %2576 = vmatmul.mubr.bf16.gmra.mrb[0].mxu0 %v1427
    %v2577 = vpop.f32.mrb[0].mxu0
    %v2578 = vadd.f32 %v2401, %v2577
    %v2579 = vpop.f32.mrb[0].mxu0
    %v2580 = vpop.f32.mrb[0].mxu0
    %v2581 = vadd.f32 %v2404, %v2580
    %v2582 = vpop.f32.mrb[0].mxu0
    %2583 = vmatprep.mubr.bf16.mxu0 0
    %2584 = vmatmul.mubr.bf16.gmra.mrb[0].mxu0 %v1430
    %v2585 = vpop.f32.mrb[0].mxu0
    %v2586 = vadd.f32 %v2409, %v2585
    %v2587 = vpop.f32.mrb[0].mxu0
    %v2588 = vpop.f32.mrb[0].mxu0
    %v2589 = vadd.f32 %v2412, %v2588
    %v2590 = vpop.f32.mrb[0].mxu0
    %2591 = vmatprep.mubr.bf16.mxu0 0
    %2592 = vmatmul.mubr.bf16.gmra.mrb[0].mxu0 %v1433
    %v2593 = vpop.f32.mrb[0].mxu0
    %v2594 = vadd.f32 %v2417, %v2593
    %v2595 = vpop.f32.mrb[0].mxu0
    %v2596 = vpop.f32.mrb[0].mxu0
    %v2597 = vadd.f32 %v2420, %v2596
    %v2598 = vpop.f32.mrb[0].mxu0
    %2599 = vmatprep.mubr.bf16.mxu0 0
    %2600 = vmatmul.mubr.bf16.gmra.mrb[0].mxu0 %v1436
    %v2601 = vpop.f32.mrb[0].mxu0
    %v2602 = vadd.f32 %v2425, %v2601
    %v2603 = vpop.f32.mrb[0].mxu0
    %v2604 = vpop.f32.mrb[0].mxu0
    %v2605 = vadd.f32 %v2428, %v2604
    %v2606 = vpop.f32.mrb[0].mxu0
    %2607 = vdwg.mxu0
    %vm2608 = vcmp.ge.f32.partialorder %v1899, 0.0
    %vm2609 = vcmp.ge.f32.partialorder %v1901, 0.0
    %vm2610 = vcmp.ge.f32.partialorder %v2466, 0.0
    %vm2611 = vcmp.ge.f32.partialorder %v1903, 0.0
    %vm2612 = vcmp.ge.f32.partialorder %v1905, 0.0
    %vm2613 = vcmp.ge.f32.partialorder %v2469, 0.0
    %vm2614 = vcmp.ge.f32.partialorder %v1909, 0.0
    %vm2615 = vcmp.ge.f32.partialorder %v1911, 0.0
    %vm2616 = vcmp.ge.f32.partialorder %v2474, 0.0
    %vm2617 = vcmp.ge.f32.partialorder %v1913, 0.0
    %vm2618 = vcmp.ge.f32.partialorder %v1915, 0.0
    %vm2619 = vcmp.ge.f32.partialorder %v2477, 0.0
    %vm2620 = vcmp.ge.f32.partialorder %v1919, 0.0
    %vm2621 = vcmp.ge.f32.partialorder %v1921, 0.0
    %vm2622 = vcmp.ge.f32.partialorder %v2482, 0.0
    %vm2623 = vcmp.ge.f32.partialorder %v1923, 0.0
    %vm2624 = vcmp.ge.f32.partialorder %v1925, 0.0
    %vm2625 = vcmp.ge.f32.partialorder %v2485, 0.0
    %vm2626 = vcmp.ge.f32.partialorder %v1929, 0.0
    %vm2627 = vcmp.ge.f32.partialorder %v1931, 0.0
    %vm2628 = vcmp.ge.f32.partialorder %v2490, 0.0
    %vm2629 = vcmp.ge.f32.partialorder %v1933, 0.0
    %vm2630 = vcmp.ge.f32.partialorder %v1935, 0.0
    %vm2631 = vcmp.ge.f32.partialorder %v2493, 0.0
    %vm2632 = vcmp.ge.f32.partialorder %v1939, 0.0
    %vm2633 = vcmp.ge.f32.partialorder %v1941, 0.0
    %vm2634 = vcmp.ge.f32.partialorder %v2498, 0.0
    %vm2635 = vcmp.ge.f32.partialorder %v1943, 0.0
    %vm2636 = vcmp.ge.f32.partialorder %v1945, 0.0
    %vm2637 = vcmp.ge.f32.partialorder %v2501, 0.0
    %vm2638 = vcmp.ge.f32.partialorder %v1949, 0.0
    %vm2639 = vcmp.ge.f32.partialorder %v1951, 0.0
    %vm2640 = vcmp.ge.f32.partialorder %v2506, 0.0
    %vm2641 = vcmp.ge.f32.partialorder %v1953, 0.0
    %vm2642 = vcmp.ge.f32.partialorder %v1955, 0.0
    %vm2643 = vcmp.ge.f32.partialorder %v2509, 0.0
    %vm2644 = vcmp.ge.f32.partialorder %v1959, 0.0
    %vm2645 = vcmp.ge.f32.partialorder %v1961, 0.0
    %vm2646 = vcmp.ge.f32.partialorder %v2514, 0.0
    %vm2647 = vcmp.ge.f32.partialorder %v1963, 0.0
    %vm2648 = vcmp.ge.f32.partialorder %v1965, 0.0
    %vm2649 = vcmp.ge.f32.partialorder %v2517, 0.0
    %vm2650 = vcmp.ge.f32.partialorder %v1969, 0.0
    %vm2651 = vcmp.ge.f32.partialorder %v1971, 0.0
    %vm2652 = vcmp.ge.f32.partialorder %v2522, 0.0
    %vm2653 = vcmp.ge.f32.partialorder %v1973, 0.0
    %vm2654 = vcmp.ge.f32.partialorder %v1975, 0.0
    %vm2655 = vcmp.ge.f32.partialorder %v2525, 0.0
    %vm2656 = vcmp.ge.f32.partialorder %v1979, 0.0
    %vm2657 = vcmp.ge.f32.partialorder %v1981, 0.0
    %vm2658 = vcmp.ge.f32.partialorder %v2530, 0.0
    %vm2659 = vcmp.ge.f32.partialorder %v1983, 0.0
    %vm2660 = vcmp.ge.f32.partialorder %v1985, 0.0
    %vm2661 = vcmp.ge.f32.partialorder %v2533, 0.0
    %vm2662 = vcmp.ge.f32.partialorder %v1989, 0.0
    %vm2663 = vcmp.ge.f32.partialorder %v1991, 0.0
    %vm2664 = vcmp.ge.f32.partialorder %v2538, 0.0
    %vm2665 = vcmp.ge.f32.partialorder %v1993, 0.0
    %vm2666 = vcmp.ge.f32.partialorder %v1995, 0.0
    %vm2667 = vcmp.ge.f32.partialorder %v2541, 0.0
    %vm2668 = vcmp.ge.f32.partialorder %v1999, 0.0
    %vm2669 = vcmp.ge.f32.partialorder %v2001, 0.0
    %vm2670 = vcmp.ge.f32.partialorder %v2546, 0.0
    %vm2671 = vcmp.ge.f32.partialorder %v2003, 0.0
    %vm2672 = vcmp.ge.f32.partialorder %v2005, 0.0
    %vm2673 = vcmp.ge.f32.partialorder %v2549, 0.0
    %vm2674 = vcmp.ge.f32.partialorder %v2009, 0.0
    %vm2675 = vcmp.ge.f32.partialorder %v2011, 0.0
    %vm2676 = vcmp.ge.f32.partialorder %v2554, 0.0
    %vm2677 = vcmp.ge.f32.partialorder %v2013, 0.0
    %vm2678 = vcmp.ge.f32.partialorder %v2015, 0.0
    %vm2679 = vcmp.ge.f32.partialorder %v2557, 0.0
    %vm2680 = vcmp.ge.f32.partialorder %v2019, 0.0
    %vm2681 = vcmp.ge.f32.partialorder %v2021, 0.0
    %vm2682 = vcmp.ge.f32.partialorder %v2562, 0.0
    %vm2683 = vcmp.ge.f32.partialorder %v2023, 0.0
    %vm2684 = vcmp.ge.f32.partialorder %v2025, 0.0
    %vm2685 = vcmp.ge.f32.partialorder %v2565, 0.0
    %vm2686 = vcmp.ge.f32.partialorder %v2029, 0.0
    %vm2687 = vcmp.ge.f32.partialorder %v2031, 0.0
    %vm2688 = vcmp.ge.f32.partialorder %v2570, 0.0
    %vm2689 = vcmp.ge.f32.partialorder %v2033, 0.0
    %vm2690 = vcmp.ge.f32.partialorder %v2035, 0.0
    %vm2691 = vcmp.ge.f32.partialorder %v2573, 0.0
    %vm2692 = vcmp.ge.f32.partialorder %v2039, 0.0
    %vm2693 = vcmp.ge.f32.partialorder %v2041, 0.0
    %vm2694 = vcmp.ge.f32.partialorder %v2578, 0.0
    %vm2695 = vcmp.ge.f32.partialorder %v2043, 0.0
    %vm2696 = vcmp.ge.f32.partialorder %v2045, 0.0
    %vm2697 = vcmp.ge.f32.partialorder %v2581, 0.0
    %vm2698 = vcmp.ge.f32.partialorder %v2049, 0.0
    %vm2699 = vcmp.ge.f32.partialorder %v2051, 0.0
    %vm2700 = vcmp.ge.f32.partialorder %v2586, 0.0
    %vm2701 = vcmp.ge.f32.partialorder %v2053, 0.0
    %vm2702 = vcmp.ge.f32.partialorder %v2055, 0.0
    %vm2703 = vcmp.ge.f32.partialorder %v2589, 0.0
    %vm2704 = vcmp.ge.f32.partialorder %v2059, 0.0
    %vm2705 = vcmp.ge.f32.partialorder %v2061, 0.0
    %vm2706 = vcmp.ge.f32.partialorder %v2594, 0.0
    %vm2707 = vcmp.ge.f32.partialorder %v2063, 0.0
    %vm2708 = vcmp.ge.f32.partialorder %v2065, 0.0
    %vm2709 = vcmp.ge.f32.partialorder %v2597, 0.0
    %vm2710 = vcmp.ge.f32.partialorder %v2069, 0.0
    %vm2711 = vcmp.ge.f32.partialorder %v2071, 0.0
    %vm2712 = vcmp.ge.f32.partialorder %v2602, 0.0
    %vm2713 = vcmp.ge.f32.partialorder %v2073, 0.0
    %vm2714 = vcmp.ge.f32.partialorder %v2075, 0.0
    %vm2715 = vcmp.ge.f32.partialorder %v2605, 0.0
    %v2716 = vmul.f32 %v1899, 0.01
    %v2717 = vmul.f32 %v1901, 0.01
    %v2718 = vmul.f32 %v2466, 0.01
    %v2719 = vmul.f32 %v1903, 0.01
    %v2720 = vmul.f32 %v1905, 0.01
    %v2721 = vmul.f32 %v2469, 0.01
    %v2722 = vmul.f32 %v1909, 0.01
    %v2723 = vmul.f32 %v1911, 0.01
    %v2724 = vmul.f32 %v2474, 0.01
    %v2725 = vmul.f32 %v1913, 0.01
    %v2726 = vmul.f32 %v1915, 0.01
    %v2727 = vmul.f32 %v2477, 0.01
    %v2728 = vmul.f32 %v1919, 0.01
    %v2729 = vmul.f32 %v1921, 0.01
    %v2730 = vmul.f32 %v2482, 0.01
    %v2731 = vmul.f32 %v1923, 0.01
    %v2732 = vmul.f32 %v1925, 0.01
    %v2733 = vmul.f32 %v2485, 0.01
    %v2734 = vmul.f32 %v1929, 0.01
    %v2735 = vmul.f32 %v1931, 0.01
    %v2736 = vmul.f32 %v2490, 0.01
    %v2737 = vmul.f32 %v1933, 0.01
    %v2738 = vmul.f32 %v1935, 0.01
    %v2739 = vmul.f32 %v2493, 0.01
    %v2740 = vmul.f32 %v1939, 0.01
    %v2741 = vmul.f32 %v1941, 0.01
    %v2742 = vmul.f32 %v2498, 0.01
    %v2743 = vmul.f32 %v1943, 0.01
    %v2744 = vmul.f32 %v1945, 0.01
    %v2745 = vmul.f32 %v2501, 0.01
    %v2746 = vmul.f32 %v1949, 0.01
    %v2747 = vmul.f32 %v1951, 0.01
    %v2748 = vmul.f32 %v2506, 0.01
    %v2749 = vmul.f32 %v1953, 0.01
    %v2750 = vmul.f32 %v1955, 0.01
    %v2751 = vmul.f32 %v2509, 0.01
    %v2752 = vmul.f32 %v1959, 0.01
    %v2753 = vmul.f32 %v1961, 0.01
    %v2754 = vmul.f32 %v2514, 0.01
    %v2755 = vmul.f32 %v1963, 0.01
    %v2756 = vmul.f32 %v1965, 0.01
    %v2757 = vmul.f32 %v2517, 0.01
    %v2758 = vmul.f32 %v1969, 0.01
    %v2759 = vmul.f32 %v1971, 0.01
    %v2760 = vmul.f32 %v2522, 0.01
    %v2761 = vmul.f32 %v1973, 0.01
    %v2762 = vmul.f32 %v1975, 0.01
    %v2763 = vmul.f32 %v2525, 0.01
    %v2764 = vmul.f32 %v1979, 0.01
    %v2765 = vmul.f32 %v1981, 0.01
    %v2766 = vmul.f32 %v2530, 0.01
    %v2767 = vmul.f32 %v1983, 0.01
    %v2768 = vmul.f32 %v1985, 0.01
    %v2769 = vmul.f32 %v2533, 0.01
    %v2770 = vmul.f32 %v1989, 0.01
    %v2771 = vmul.f32 %v1991, 0.01
    %v2772 = vmul.f32 %v2538, 0.01
    %v2773 = vmul.f32 %v1993, 0.01
    %v2774 = vmul.f32 %v1995, 0.01
    %v2775 = vmul.f32 %v2541, 0.01
    %v2776 = vmul.f32 %v1999, 0.01
    %v2777 = vmul.f32 %v2001, 0.01
    %v2778 = vmul.f32 %v2546, 0.01
    %v2779 = vmul.f32 %v2003, 0.01
    %v2780 = vmul.f32 %v2005, 0.01
    %v2781 = vmul.f32 %v2549, 0.01
    %v2782 = vmul.f32 %v2009, 0.01
    %v2783 = vmul.f32 %v2011, 0.01
    %v2784 = vmul.f32 %v2554, 0.01
    %v2785 = vmul.f32 %v2013, 0.01
    %v2786 = vmul.f32 %v2015, 0.01
    %v2787 = vmul.f32 %v2557, 0.01
    %v2788 = vmul.f32 %v2019, 0.01
    %v2789 = vmul.f32 %v2021, 0.01
    %v2790 = vmul.f32 %v2562, 0.01
    %v2791 = vmul.f32 %v2023, 0.01
    %v2792 = vmul.f32 %v2025, 0.01
    %v2793 = vmul.f32 %v2565, 0.01
    %v2794 = vmul.f32 %v2029, 0.01
    %v2795 = vmul.f32 %v2031, 0.01
    %v2796 = vmul.f32 %v2570, 0.01
    %v2797 = vmul.f32 %v2033, 0.01
    %v2798 = vmul.f32 %v2035, 0.01
    %v2799 = vmul.f32 %v2573, 0.01
    %v2800 = vmul.f32 %v2039, 0.01
    %v2801 = vmul.f32 %v2041, 0.01
    %v2802 = vmul.f32 %v2578, 0.01
    %v2803 = vmul.f32 %v2043, 0.01
    %v2804 = vmul.f32 %v2045, 0.01
    %v2805 = vmul.f32 %v2581, 0.01
    %v2806 = vmul.f32 %v2049, 0.01
    %v2807 = vmul.f32 %v2051, 0.01
    %v2808 = vmul.f32 %v2586, 0.01
    %v2809 = vmul.f32 %v2053, 0.01
    %v2810 = vmul.f32 %v2055, 0.01
    %v2811 = vmul.f32 %v2589, 0.01
    %v2812 = vmul.f32 %v2059, 0.01
    %v2813 = vmul.f32 %v2061, 0.01
    %v2814 = vmul.f32 %v2594, 0.01
    %v2815 = vmul.f32 %v2063, 0.01
    %v2816 = vmul.f32 %v2065, 0.01
    %v2817 = vmul.f32 %v2597, 0.01
    %v2818 = vmul.f32 %v2069, 0.01
    %v2819 = vmul.f32 %v2071, 0.01
    %v2820 = vmul.f32 %v2602, 0.01
    %v2821 = vmul.f32 %v2073, 0.01
    %v2822 = vmul.f32 %v2075, 0.01
    %v2823 = vmul.f32 %v2605, 0.01
    %v2824 = vsel %vm2608, %v1899, %v2716
    %v2825 = vsel %vm2609, %v1901, %v2717
    %v2826 = vsel %vm2610, %v2466, %v2718
    %v2827 = vsel %vm2611, %v1903, %v2719
    %v2828 = vsel %vm2612, %v1905, %v2720
    %v2829 = vsel %vm2613, %v2469, %v2721
    %v2830 = vsel %vm2614, %v1909, %v2722
    %v2831 = vsel %vm2615, %v1911, %v2723
    %v2832 = vsel %vm2616, %v2474, %v2724
    %v2833 = vsel %vm2617, %v1913, %v2725
    %v2834 = vsel %vm2618, %v1915, %v2726
    %v2835 = vsel %vm2619, %v2477, %v2727
    %v2836 = vsel %vm2620, %v1919, %v2728
    %v2837 = vsel %vm2621, %v1921, %v2729
    %v2838 = vsel %vm2622, %v2482, %v2730
    %v2839 = vsel %vm2623, %v1923, %v2731
    %v2840 = vsel %vm2624, %v1925, %v2732
    %v2841 = vsel %vm2625, %v2485, %v2733
    %v2842 = vsel %vm2626, %v1929, %v2734
    %v2843 = vsel %vm2627, %v1931, %v2735
    %v2844 = vsel %vm2628, %v2490, %v2736
    %v2845 = vsel %vm2629, %v1933, %v2737
    %v2846 = vsel %vm2630, %v1935, %v2738
    %v2847 = vsel %vm2631, %v2493, %v2739
    %v2848 = vsel %vm2632, %v1939, %v2740
    %v2849 = vsel %vm2633, %v1941, %v2741
    %v2850 = vsel %vm2634, %v2498, %v2742
    %v2851 = vsel %vm2635, %v1943, %v2743
    %v2852 = vsel %vm2636, %v1945, %v2744
    %v2853 = vsel %vm2637, %v2501, %v2745
    %v2854 = vsel %vm2638, %v1949, %v2746
    %v2855 = vsel %vm2639, %v1951, %v2747
    %v2856 = vsel %vm2640, %v2506, %v2748
    %v2857 = vsel %vm2641, %v1953, %v2749
    %v2858 = vsel %vm2642, %v1955, %v2750
    %v2859 = vsel %vm2643, %v2509, %v2751
    %v2860 = vsel %vm2644, %v1959, %v2752
    %v2861 = vsel %vm2645, %v1961, %v2753
    %v2862 = vsel %vm2646, %v2514, %v2754
    %v2863 = vsel %vm2647, %v1963, %v2755
    %v2864 = vsel %vm2648, %v1965, %v2756
    %v2865 = vsel %vm2649, %v2517, %v2757
    %v2866 = vsel %vm2650, %v1969, %v2758
    %v2867 = vsel %vm2651, %v1971, %v2759
    %v2868 = vsel %vm2652, %v2522, %v2760
    %v2869 = vsel %vm2653, %v1973, %v2761
    %v2870 = vsel %vm2654, %v1975, %v2762
    %v2871 = vsel %vm2655, %v2525, %v2763
    %v2872 = vsel %vm2656, %v1979, %v2764
    %v2873 = vsel %vm2657, %v1981, %v2765
    %v2874 = vsel %vm2658, %v2530, %v2766
    %v2875 = vsel %vm2659, %v1983, %v2767
    %v2876 = vsel %vm2660, %v1985, %v2768
    %v2877 = vsel %vm2661, %v2533, %v2769
    %v2878 = vsel %vm2662, %v1989, %v2770
    %v2879 = vsel %vm2663, %v1991, %v2771
    %v2880 = vsel %vm2664, %v2538, %v2772
    %v2881 = vsel %vm2665, %v1993, %v2773
    %v2882 = vsel %vm2666, %v1995, %v2774
    %v2883 = vsel %vm2667, %v2541, %v2775
    %v2884 = vsel %vm2668, %v1999, %v2776
    %v2885 = vsel %vm2669, %v2001, %v2777
    %v2886 = vsel %vm2670, %v2546, %v2778
    %v2887 = vsel %vm2671, %v2003, %v2779
    %v2888 = vsel %vm2672, %v2005, %v2780
    %v2889 = vsel %vm2673, %v2549, %v2781
    %v2890 = vsel %vm2674, %v2009, %v2782
    %v2891 = vsel %vm2675, %v2011, %v2783
    %v2892 = vsel %vm2676, %v2554, %v2784
    %v2893 = vsel %vm2677, %v2013, %v2785
    %v2894 = vsel %vm2678, %v2015, %v2786
    %v2895 = vsel %vm2679, %v2557, %v2787
    %v2896 = vsel %vm2680, %v2019, %v2788
    %v2897 = vsel %vm2681, %v2021, %v2789
    %v2898 = vsel %vm2682, %v2562, %v2790
    %v2899 = vsel %vm2683, %v2023, %v2791
    %v2900 = vsel %vm2684, %v2025, %v2792
    %v2901 = vsel %vm2685, %v2565, %v2793
    %v2902 = vsel %vm2686, %v2029, %v2794
    %v2903 = vsel %vm2687, %v2031, %v2795
    %v2904 = vsel %vm2688, %v2570, %v2796
    %v2905 = vsel %vm2689, %v2033, %v2797
    %v2906 = vsel %vm2690, %v2035, %v2798
    %v2907 = vsel %vm2691, %v2573, %v2799
    %v2908 = vsel %vm2692, %v2039, %v2800
    %v2909 = vsel %vm2693, %v2041, %v2801
    %v2910 = vsel %vm2694, %v2578, %v2802
    %v2911 = vsel %vm2695, %v2043, %v2803
    %v2912 = vsel %vm2696, %v2045, %v2804
    %v2913 = vsel %vm2697, %v2581, %v2805
    %v2914 = vsel %vm2698, %v2049, %v2806
    %v2915 = vsel %vm2699, %v2051, %v2807
    %v2916 = vsel %vm2700, %v2586, %v2808
    %v2917 = vsel %vm2701, %v2053, %v2809
    %v2918 = vsel %vm2702, %v2055, %v2810
    %v2919 = vsel %vm2703, %v2589, %v2811
    %v2920 = vsel %vm2704, %v2059, %v2812
    %v2921 = vsel %vm2705, %v2061, %v2813
    %v2922 = vsel %vm2706, %v2594, %v2814
    %v2923 = vsel %vm2707, %v2063, %v2815
    %v2924 = vsel %vm2708, %v2065, %v2816
    %v2925 = vsel %vm2709, %v2597, %v2817
    %v2926 = vsel %vm2710, %v2069, %v2818
    %v2927 = vsel %vm2711, %v2071, %v2819
    %v2928 = vsel %vm2712, %v2602, %v2820
    %v2929 = vsel %vm2713, %v2073, %v2821
    %v2930 = vsel %vm2714, %v2075, %v2822
    %v2931 = vsel %vm2715, %v2605, %v2823
    %v2932 = vmax.f32 %v2824, %v2851
    %v2933 = vmax.f32 %v2825, %v2852
    %v2934 = vmax.f32 %v2826, %v2853
    %v2935 = vmax.f32 %v2827, %v2854
    %v2936 = vmax.f32 %v2828, %v2855
    %v2937 = vmax.f32 %v2829, %v2856
    %v2938 = vmax.f32 %v2830, %v2857
    %v2939 = vmax.f32 %v2831, %v2858
    %v2940 = vmax.f32 %v2832, %v2859
    %v2941 = vmax.f32 %v2833, %v2860
    %v2942 = vmax.f32 %v2834, %v2861
    %v2943 = vmax.f32 %v2835, %v2862
    %v2944 = vmax.f32 %v2836, %v2863
    %v2945 = vmax.f32 %v2837, %v2864
    %v2946 = vmax.f32 %v2838, %v2865
    %v2947 = vmax.f32 %v2839, %v2866
    %v2948 = vmax.f32 %v2840, %v2867
    %v2949 = vmax.f32 %v2841, %v2868
    %v2950 = vmax.f32 %v2842, %v2869
    %v2951 = vmax.f32 %v2843, %v2870
    %v2952 = vmax.f32 %v2844, %v2871
    %v2953 = vmax.f32 %v2845, %v2872
    %v2954 = vmax.f32 %v2846, %v2873
    %v2955 = vmax.f32 %v2847, %v2874
    %v2956 = vmax.f32 %v2848, %v2875
    %v2957 = vmax.f32 %v2849, %v2876
    %v2958 = vmax.f32 %v2850, %v2877
    %v2959 = vmax.f32 %v2878, %v2905
    %v2960 = vmax.f32 %v2879, %v2906
    %v2961 = vmax.f32 %v2880, %v2907
    %v2962 = vmax.f32 %v2881, %v2908
    %v2963 = vmax.f32 %v2882, %v2909
    %v2964 = vmax.f32 %v2883, %v2910
    %v2965 = vmax.f32 %v2884, %v2911
    %v2966 = vmax.f32 %v2885, %v2912
    %v2967 = vmax.f32 %v2886, %v2913
    %v2968 = vmax.f32 %v2887, %v2914
    %v2969 = vmax.f32 %v2888, %v2915
    %v2970 = vmax.f32 %v2889, %v2916
    %v2971 = vmax.f32 %v2890, %v2917
    %v2972 = vmax.f32 %v2891, %v2918
    %v2973 = vmax.f32 %v2892, %v2919
    %v2974 = vmax.f32 %v2893, %v2920
    %v2975 = vmax.f32 %v2894, %v2921
    %v2976 = vmax.f32 %v2895, %v2922
    %v2977 = vmax.f32 %v2896, %v2923
    %v2978 = vmax.f32 %v2897, %v2924
    %v2979 = vmax.f32 %v2898, %v2925
    %v2980 = vmax.f32 %v2899, %v2926
    %v2981 = vmax.f32 %v2900, %v2927
    %v2982 = vmax.f32 %v2901, %v2928
    %v2983 = vmax.f32 %v2902, %v2929
    %v2984 = vmax.f32 %v2903, %v2930
    %v2985 = vmax.f32 %v2904, %v2931
    %v2986 = vmax.f32 %v2932, %v2959
    %v2987 = vmax.f32 %v2933, %v2960
    %v2988 = vmax.f32 %v2934, %v2961
    %v2989 = vmax.f32 %v2935, %v2962
    %v2990 = vmax.f32 %v2936, %v2963
    %v2991 = vmax.f32 %v2937, %v2964
    %v2992 = vmax.f32 %v2938, %v2965
    %v2993 = vmax.f32 %v2939, %v2966
    %v2994 = vmax.f32 %v2940, %v2967
    %v2995 = vmax.f32 %v2941, %v2968
    %v2996 = vmax.f32 %v2942, %v2969
    %v2997 = vmax.f32 %v2943, %v2970
    %v2998 = vmax.f32 %v2944, %v2971
    %v2999 = vmax.f32 %v2945, %v2972
    %v3000 = vmax.f32 %v2946, %v2973
    %v3001 = vmax.f32 %v2947, %v2974
    %v3002 = vmax.f32 %v2948, %v2975
    %v3003 = vmax.f32 %v2949, %v2976
    %v3004 = vmax.f32 %v2950, %v2977
    %v3005 = vmax.f32 %v2951, %v2978
    %v3006 = vmax.f32 %v2952, %v2979
    %v3007 = vmax.f32 %v2953, %v2980
    %v3008 = vmax.f32 %v2954, %v2981
    %v3009 = vmax.f32 %v2955, %v2982
    %v3010 = vmax.f32 %v2956, %v2983
    %v3011 = vmax.f32 %v2957, %v2984
    %v3012 = vmax.f32 %v2958, %v2985
    %3031 = vrot.lane.b32.xlu0 %v2986, 16
    %v3032 = vpop.permute.xlu0 %3031
    %3033 = vrot.lane.b32.xlu0 %v2987, 16
    %v3034 = vpop.permute.xlu0 %3033
    %3035 = vrot.lane.b32.xlu0 %v2989, 16
    %v3036 = vpop.permute.xlu0 %3035
    %3037 = vrot.lane.b32.xlu0 %v2990, 16
    %v3038 = vpop.permute.xlu0 %3037
    %3039 = vrot.lane.b32.xlu0 %v2992, 16
    %v3040 = vpop.permute.xlu0 %3039
    %3041 = vrot.lane.b32.xlu0 %v2993, 16
    %v3042 = vpop.permute.xlu0 %3041
    %3043 = vrot.lane.b32.xlu0 %v2995, 16
    %v3044 = vpop.permute.xlu0 %3043
    %3045 = vrot.lane.b32.xlu0 %v2996, 16
    %v3046 = vpop.permute.xlu0 %3045
    %3047 = vrot.lane.b32.xlu0 %v2998, 16
    %v3048 = vpop.permute.xlu0 %3047
    %3049 = vrot.lane.b32.xlu0 %v2999, 16
    %v3050 = vpop.permute.xlu0 %3049
    %3051 = vrot.lane.b32.xlu0 %v3001, 16
    %v3052 = vpop.permute.xlu0 %3051
    %3053 = vrot.lane.b32.xlu0 %v3002, 16
    %v3054 = vpop.permute.xlu0 %3053
    %3055 = vrot.lane.b32.xlu0 %v3004, 16
    %v3056 = vpop.permute.xlu0 %3055
    %3057 = vrot.lane.b32.xlu0 %v3005, 16
    %v3058 = vpop.permute.xlu0 %3057
    %3059 = vrot.lane.b32.xlu0 %v3007, 16
    %v3060 = vpop.permute.xlu0 %3059
    %3061 = vrot.lane.b32.xlu0 %v3008, 16
    %v3062 = vpop.permute.xlu0 %3061
    %3063 = vrot.lane.b32.xlu0 %v3010, 16
    %v3064 = vpop.permute.xlu0 %3063
    %3065 = vrot.lane.b32.xlu0 %v3011, 16
    %v3066 = vpop.permute.xlu0 %3065
    %vm3067 = vcmask 130048
    %v3068 = vsel %vm3067, %v3032, %v3034
    %v3069 = vsel %vm3067, %v3036, %v3038
    %v3070 = vsel %vm3067, %v3040, %v3042
    %v3071 = vsel %vm3067, %v3044, %v3046
    %v3072 = vsel %vm3067, %v3048, %v3050
    %v3073 = vsel %vm3067, %v3052, %v3054
    %v3074 = vsel %vm3067, %v3056, %v3058
    %v3075 = vsel %vm3067, %v3060, %v3062
    %v3076 = vsel %vm3067, %v3064, %v3066
    %v3086 = vmax.f32 %v2986, %v3068
    %v3087 = vmax.f32 %v2989, %v3069
    %v3088 = vmax.f32 %v2992, %v3070
    %v3089 = vmax.f32 %v2995, %v3071
    %v3090 = vmax.f32 %v2998, %v3072
    %v3091 = vmax.f32 %v3001, %v3073
    %v3092 = vmax.f32 %v3004, %v3074
    %v3093 = vmax.f32 %v3007, %v3075
    %v3094 = vmax.f32 %v3010, %v3076
    %3104 = vrot.lane.b32.xlu0 %v2987, 32
    %v3105 = vpop.permute.xlu0 %3104
    %3106 = vrot.lane.b32.xlu0 %v2988, 32
    %v3107 = vpop.permute.xlu0 %3106
    %3108 = vrot.lane.b32.xlu0 %v2990, 32
    %v3109 = vpop.permute.xlu0 %3108
    %3110 = vrot.lane.b32.xlu0 %v2991, 32
    %v3111 = vpop.permute.xlu0 %3110
    %3112 = vrot.lane.b32.xlu0 %v2993, 32
    %v3113 = vpop.permute.xlu0 %3112
    %3114 = vrot.lane.b32.xlu0 %v2994, 32
    %v3115 = vpop.permute.xlu0 %3114
    %3116 = vrot.lane.b32.xlu0 %v2996, 32
    %v3117 = vpop.permute.xlu0 %3116
    %3118 = vrot.lane.b32.xlu0 %v2997, 32
    %v3119 = vpop.permute.xlu0 %3118
    %3120 = vrot.lane.b32.xlu0 %v2999, 32
    %v3121 = vpop.permute.xlu0 %3120
    %3122 = vrot.lane.b32.xlu0 %v3000, 32
    %v3123 = vpop.permute.xlu0 %3122
    %3124 = vrot.lane.b32.xlu0 %v3002, 32
    %v3125 = vpop.permute.xlu0 %3124
    %3126 = vrot.lane.b32.xlu0 %v3003, 32
    %v3127 = vpop.permute.xlu0 %3126
    %3128 = vrot.lane.b32.xlu0 %v3005, 32
    %v3129 = vpop.permute.xlu0 %3128
    %3130 = vrot.lane.b32.xlu0 %v3006, 32
    %v3131 = vpop.permute.xlu0 %3130
    %3132 = vrot.lane.b32.xlu0 %v3008, 32
    %v3133 = vpop.permute.xlu0 %3132
    %3134 = vrot.lane.b32.xlu0 %v3009, 32
    %v3135 = vpop.permute.xlu0 %3134
    %3136 = vrot.lane.b32.xlu0 %v3011, 32
    %v3137 = vpop.permute.xlu0 %3136
    %3138 = vrot.lane.b32.xlu0 %v3012, 32
    %v3139 = vpop.permute.xlu0 %3138
    %vm3140 = vcmask 261120
    %v3141 = vsel %vm3140, %v3105, %v3107
    %v3142 = vsel %vm3140, %v3109, %v3111
    %v3143 = vsel %vm3140, %v3113, %v3115
    %v3144 = vsel %vm3140, %v3117, %v3119
    %v3145 = vsel %vm3140, %v3121, %v3123
    %v3146 = vsel %vm3140, %v3125, %v3127
    %v3147 = vsel %vm3140, %v3129, %v3131
    %v3148 = vsel %vm3140, %v3133, %v3135
    %v3149 = vsel %vm3140, %v3137, %v3139
    %v3159 = vmax.f32 %v3086, %v3141
    %v3160 = vmax.f32 %v3087, %v3142
    %v3161 = vmax.f32 %v3088, %v3143
    %v3162 = vmax.f32 %v3089, %v3144
    %v3163 = vmax.f32 %v3090, %v3145
    %v3164 = vmax.f32 %v3091, %v3146
    %v3165 = vmax.f32 %v3092, %v3147
    %v3166 = vmax.f32 %v3093, %v3148
    %v3167 = vmax.f32 %v3094, %v3149
    %v3169 = vrot.slane %v3159, 7
    %vm3171 = vcmask 1040384
    %v3172 = vsel %vm3171, 0.0, %v3169
    %v3173 = vsel %vm3171, 0.0, %v3160
    %v3175 = vrot.slane %v3163, 3
    %v3177 = vsel %vm3171, 0.0, %v3175
    %v3179 = vrot.slane %v3164, 4
    %v3181 = vsel %vm3171, 0.0, %v3179
    %v3183 = vrot.slane %v3172, 6
    %v3186 = vrot.slane %v3173, 4
    %v3189 = vrot.slane %v3181, 6
    %vm3191 = vcmask 1041408
    %v3192 = vsel %vm3191, 0.0, %v3183
    %vm3193 = vcmask 1043456
    %v3194 = vsel %vm3193, %v3192, %v3186
    %vm3195 = vcmask 1045504
    %v3196 = vsel %vm3195, %v3194, 0.0
    %v3197 = vsel %vm3191, %v3177, %v3189
    %v3198 = vrot.slane %v3159, 6
    %v3201 = vrot.slane %v3160, 5
    %v3203 = vrot.slane %v3163, 4
    %v3205 = vrot.slane %v3164, 3
    %v3207 = vsel %vm3191, 0.0, %v3198
    %v3208 = vsel %vm3193, %v3207, %v3201
    %v3209 = vsel %vm3195, %v3208, 0.0
    %v3210 = vsel %vm3191, %v3203, %v3205
    %v3211 = vrot.slane %v3160, 6
    %v3213 = vrot.slane %v3163, 5
    %v3215 = vsel %vm3191, 0.0, %v3169
    %v3216 = vsel %vm3193, %v3215, %v3211
    %v3217 = vsel %vm3195, %v3216, 0.0
    %v3218 = vsel %vm3191, %v3213, %v3179
    %v3219 = vrot.slane %v3160, 7
    %v3221 = vrot.slane %v3163, 6
    %vm3224 = vcmask 1042432
    %v3225 = vrot.slane %v3164, 5
    %v3226 = vrot.slane %v3165, 5
    %v3227 = vsel %vm3224, %v3225, %v3226
    %v3229 = vsel %vm3191, 0.0, %v3159
    %v3230 = vsel %vm3193, %v3229, %v3219
    %v3231 = vsel %vm3195, %v3230, 0.0
    %v3232 = vsel %vm3191, %v3221, %v3227
    %v3233 = vrot.slane %v3159, 1
    %v3235 = vrot.slane %v3163, 7
    %v3236 = vrot.slane %v3164, 7
    %v3237 = vsel %vm3171, %v3235, %v3236
    %v3239 = vrot.slane %v3165, 6
    %v3241 = vsel %vm3191, 0.0, %v3233
    %v3242 = vsel %vm3193, %v3241, %v3160
    %v3243 = vsel %vm3195, %v3242, 0.0
    %v3244 = vsel %vm3191, %v3237, %v3239
    %v3245 = vrot.slane %v3159, 2
    %v3247 = vrot.slane %v3160, 1
    %v3249 = vrot.slane %v3165, 7
    %v3251 = vsel %vm3191, 0.0, %v3245
    %v3252 = vsel %vm3193, %v3251, %v3247
    %v3253 = vsel %vm3195, %v3252, 0.0
    %v3254 = vsel %vm3191, %v3164, %v3249
    %v3255 = vrot.slane %v3159, 3
    %v3257 = vrot.slane %v3160, 2
    %v3259 = vrot.slane %v3164, 1
    %v3261 = vsel %vm3191, 0.0, %v3255
    %v3262 = vsel %vm3193, %v3261, %v3257
    %v3263 = vsel %vm3195, %v3262, 0.0
    %v3264 = vsel %vm3191, %v3259, %v3165
    %v3265 = vrot.slane %v3159, 4
    %vm3268 = vcmask 1044480
    %v3269 = vrot.slane %v3160, 3
    %v3270 = vrot.slane %v3161, 3
    %v3271 = vsel %vm3268, %v3269, %v3270
    %v3273 = vrot.slane %v3164, 2
    %v3275 = vrot.slane %v3165, 1
    %v3277 = vsel %vm3191, 0.0, %v3265
    %v3278 = vsel %vm3193, %v3277, %v3271
    %v3279 = vsel %vm3195, %v3278, 0.0
    %v3280 = vsel %vm3191, %v3273, %v3275
    %v3281 = vrot.slane %v3159, 5
    %v3282 = vsel %vm3224, %v3281, %v3201
    %v3284 = vrot.slane %v3161, 4
    %v3286 = vrot.slane %v3165, 2
    %v3288 = vsel %vm3191, 0.0, %v3282
    %v3289 = vsel %vm3193, %v3288, %v3284
    %v3290 = vsel %vm3195, %v3289, 0.0
    %v3291 = vsel %vm3191, %v3205, %v3286
    %v3292 = vsel %vm3171, %v3160, 0.0
    %v3293 = vrot.slane %v3161, 1
    %v3295 = vsel %vm3171, %v3293, 0.0
    %v3296 = vsel %vm3171, %v3179, 0.0
    %v3298 = vsel %vm3171, %v3226, 0.0
    %v3300 = vrot.slane %v3292, 6
    %v3303 = vrot.slane %v3295, 4
    %v3306 = vrot.slane %v3298, 6
    %v3308 = vsel %vm3191, 0.0, %v3300
    %v3309 = vsel %vm3193, %v3308, %v3303
    %v3310 = vsel %vm3195, %v3309, 0.0
    %v3311 = vsel %vm3191, %v3296, %v3306
    %v3312 = vsel %vm3171, 0.0, %v3293
    %v3313 = vsel %vm3171, 0.0, %v3226
    %v3314 = vrot.slane %v3173, 6
    %v3317 = vrot.slane %v3312, 4
    %v3320 = vrot.slane %v3177, 2
    %v3323 = vrot.slane %v3313, 6
    %v3325 = vsel %vm3191, %v3172, %v3314
    %v3326 = vsel %vm3193, %v3325, %v3317
    %v3327 = vsel %vm3195, %v3326, %v3320
    %v3328 = vsel %vm3191, %v3181, %v3323
    %v3329 = vrot.slane %v3161, 6
    %v3332 = vrot.slane %v3165, 4
    %v3334 = vsel %vm3191, %v3159, %v3219
    %v3335 = vsel %vm3193, %v3334, %v3329
    %v3336 = vsel %vm3195, %v3335, %v3221
    %v3337 = vsel %vm3191, %v3225, %v3332
    %v3338 = vrot.slane %v3161, 7
    %v3341 = vrot.slane %v3164, 6
    %v3344 = vrot.slane %v3166, 5
    %v3345 = vsel %vm3224, %v3226, %v3344
    %v3347 = vsel %vm3191, %v3233, %v3160
    %v3348 = vsel %vm3193, %v3347, %v3338
    %v3349 = vsel %vm3195, %v3348, %v3235
    %v3350 = vsel %vm3191, %v3341, %v3345
    %v3351 = vsel %vm3171, %v3236, %v3249
    %v3353 = vrot.slane %v3166, 6
    %v3355 = vsel %vm3191, %v3245, %v3247
    %v3356 = vsel %vm3193, %v3355, %v3161
    %v3357 = vsel %vm3195, %v3356, %v3163
    %v3358 = vsel %vm3191, %v3351, %v3353
    %vm3359 = vcmask 1046528
    %v3360 = vrot.slane %v3163, 1
    %v3361 = vsel %vm3359, %v3360, %v3259
    %v3363 = vrot.slane %v3166, 7
    %v3365 = vsel %vm3191, %v3255, %v3257
    %v3366 = vsel %vm3193, %v3365, %v3293
    %v3367 = vsel %vm3195, %v3366, %v3361
    %v3368 = vsel %vm3191, %v3165, %v3363
    %v3370 = vrot.slane %v3161, 2
    %v3372 = vsel %vm3191, %v3265, %v3269
    %v3373 = vsel %vm3193, %v3372, %v3370
    %v3374 = vsel %vm3195, %v3373, %v3273
    %v3375 = vsel %vm3191, %v3275, %v3166
    %v3377 = vrot.slane %v3160, 4
    %v3380 = vrot.slane %v3162, 3
    %v3381 = vsel %vm3268, %v3270, %v3380
    %v3383 = vrot.slane %v3166, 1
    %v3385 = vsel %vm3191, %v3281, %v3377
    %v3386 = vsel %vm3193, %v3385, %v3381
    %v3387 = vsel %vm3195, %v3386, %v3205
    %v3388 = vsel %vm3191, %v3286, %v3383
    %v3389 = vrot.slane %v3161, 5
    %v3390 = vsel %vm3224, %v3201, %v3389
    %v3392 = vrot.slane %v3162, 4
    %v3394 = vrot.slane %v3165, 3
    %v3396 = vrot.slane %v3166, 2
    %v3398 = vsel %vm3191, %v3198, %v3390
    %v3399 = vsel %vm3193, %v3398, %v3392
    %v3400 = vsel %vm3195, %v3399, %v3179
    %v3401 = vsel %vm3191, %v3394, %v3396
    %v3402 = vsel %vm3171, %v3169, %v3219
    %v3404 = vrot.slane %v3162, 5
    %v3406 = vrot.slane %v3166, 3
    %v3408 = vsel %vm3191, %v3402, %v3329
    %v3409 = vsel %vm3193, %v3408, %v3404
    %v3410 = vsel %vm3195, %v3409, %v3225
    %v3411 = vsel %vm3191, %v3332, %v3406
    %v3412 = vrot.slane %v3162, 2
    %v3414 = vsel %vm3171, %v3412, 0.0
    %v3415 = vsel %vm3171, %v3353, 0.0
    %v3416 = vrot.slane %v3295, 6
    %v3419 = vrot.slane %v3414, 4
    %v3422 = vrot.slane %v3296, 2
    %v3425 = vrot.slane %v3415, 6
    %v3427 = vsel %vm3191, %v3292, %v3416
    %v3428 = vsel %vm3193, %v3427, %v3419
    %v3429 = vsel %vm3195, %v3428, %v3422
    %v3430 = vsel %vm3191, %v3298, %v3425
    %v3431 = vsel %vm3171, 0.0, %v3412
    %v3432 = vsel %vm3171, 0.0, %v3353
    %v3433 = vrot.slane %v3312, 6
    %v3436 = vrot.slane %v3431, 4
    %v3438 = vrot.slane %v3181, 2
    %v3441 = vrot.slane %v3432, 6
    %v3443 = vsel %vm3191, %v3173, %v3433
    %v3444 = vsel %vm3193, %v3443, %v3436
    %v3445 = vsel %vm3195, %v3444, %v3438
    %v3446 = vsel %vm3191, %v3313, %v3441
    %v3447 = vrot.slane %v3162, 7
    %v3451 = vrot.slane %v3167, 5
    %v3452 = vsel %vm3224, %v3344, %v3451
    %v3454 = vsel %vm3191, %v3247, %v3161
    %v3455 = vsel %vm3193, %v3454, %v3447
    %v3456 = vsel %vm3195, %v3455, %v3236
    %v3457 = vsel %vm3191, %v3239, %v3452
    %v3458 = vsel %vm3171, %v3249, %v3363
    %v3460 = vrot.slane %v3167, 6
    %v3462 = vsel %vm3191, %v3257, %v3293
    %v3463 = vsel %vm3193, %v3462, %v3162
    %v3464 = vsel %vm3195, %v3463, %v3164
    %v3465 = vsel %vm3191, %v3458, %v3460
    %v3466 = vrot.slane %v3162, 1
    %v3468 = vsel %vm3359, %v3259, %v3275
    %v3470 = vrot.slane %v3167, 7
    %v3472 = vsel %vm3191, %v3269, %v3370
    %v3473 = vsel %vm3193, %v3472, %v3466
    %v3474 = vsel %vm3195, %v3473, %v3468
    %v3475 = vsel %vm3191, %v3166, %v3470
    %v3477 = vsel %vm3191, %v3377, %v3270
    %v3478 = vsel %vm3193, %v3477, %v3412
    %v3479 = vsel %vm3195, %v3478, %v3286
    %v3480 = vsel %vm3191, %v3383, %v3167
    %v3481 = vsel %vm3268, %v3380, %v3175
    %v3483 = vrot.slane %v3167, 1
    %v3485 = vsel %vm3191, %v3201, %v3284
    %v3486 = vsel %vm3193, %v3485, %v3481
    %v3487 = vsel %vm3195, %v3486, %v3394
    %v3488 = vsel %vm3191, %v3396, %v3483
    %v3489 = vsel %vm3224, %v3389, %v3404
    %v3491 = vrot.slane %v3167, 2
    %v3493 = vsel %vm3191, %v3211, %v3489
    %v3494 = vsel %vm3193, %v3493, %v3203
    %v3495 = vsel %vm3195, %v3494, %v3332
    %v3496 = vsel %vm3191, %v3406, %v3491
    %v3497 = vsel %vm3171, %v3219, %v3338
    %v3499 = vrot.slane %v3162, 6
    %v3501 = vrot.slane %v3166, 4
    %v3503 = vrot.slane %v3167, 3
    %v3505 = vsel %vm3191, %v3497, %v3499
    %v3506 = vsel %vm3193, %v3505, %v3213
    %v3507 = vsel %vm3195, %v3506, %v3226
    %v3508 = vsel %vm3191, %v3501, %v3503
    %v3510 = vrot.slane %v3167, 4
    %v3512 = vsel %vm3191, %v3161, %v3447
    %v3513 = vsel %vm3193, %v3512, %v3221
    %v3514 = vsel %vm3195, %v3513, %v3239
    %v3515 = vsel %vm3191, %v3344, %v3510
    %v3516 = vsel %vm3171, %v3175, 0.0
    %v3517 = vsel %vm3171, %v3470, 0.0
    %v3518 = vrot.slane %v3414, 6
    %v3521 = vrot.slane %v3516, 4
    %v3523 = vrot.slane %v3298, 2
    %v3526 = vrot.slane %v3517, 6
    %v3528 = vsel %vm3191, %v3295, %v3518
    %v3529 = vsel %vm3193, %v3528, %v3521
    %v3530 = vsel %vm3195, %v3529, %v3523
    %v3531 = vsel %vm3191, %v3415, %v3526
    %v3532 = vrot.slane %v3431, 6
    %v3534 = vrot.slane %v3313, 2
    %v3536 = vsel %vm3191, %v3312, %v3532
    %v3537 = vsel %vm3193, %v3536, 0.0
    %v3538 = vsel %vm3195, %v3537, %v3534
    %v3539 = vsel %vm3191, %v3432, 0.0
    %v3540 = vsel %vm3171, %v3363, %v3470
    %v3542 = vsel %vm3191, %v3370, %v3466
    %v3543 = vsel %vm3193, %v3542, 0.0
    %v3544 = vsel %vm3195, %v3543, %v3165
    %v3545 = vsel %vm3191, %v3540, 0.0
    %v3546 = vsel %vm3359, %v3275, %v3383
    %v3548 = vsel %vm3191, %v3270, %v3412
    %v3549 = vsel %vm3193, %v3548, 0.0
    %v3550 = vsel %vm3195, %v3549, %v3546
    %v3551 = vsel %vm3191, %v3167, 0.0
    %v3553 = vsel %vm3191, %v3284, %v3380
    %v3554 = vsel %vm3193, %v3553, 0.0
    %v3555 = vsel %vm3195, %v3554, %v3396
    %v3556 = vsel %vm3191, %v3483, 0.0
    %v3558 = vsel %vm3191, %v3389, %v3392
    %v3559 = vsel %vm3193, %v3558, 0.0
    %v3560 = vsel %vm3195, %v3559, %v3406
    %v3561 = vsel %vm3191, %v3491, 0.0
    %v3562 = vsel %vm3224, %v3404, %v3213
    %v3564 = vsel %vm3191, %v3329, %v3562
    %v3565 = vsel %vm3193, %v3564, 0.0
    %v3566 = vsel %vm3195, %v3565, %v3501
    %v3567 = vsel %vm3191, %v3503, 0.0
    %v3568 = vsel %vm3171, %v3338, %v3447
    %v3570 = vsel %vm3191, %v3568, %v3221
    %v3571 = vsel %vm3193, %v3570, 0.0
    %v3572 = vsel %vm3195, %v3571, %v3344
    %v3573 = vsel %vm3191, %v3510, 0.0
    %v3575 = vsel %vm3191, %v3162, %v3235
    %v3576 = vsel %vm3193, %v3575, 0.0
    %v3577 = vsel %vm3195, %v3576, %v3353
    %v3578 = vsel %vm3191, %v3451, 0.0
    %v3579 = vsel %vm3191, %v3466, %v3163
    %v3580 = vsel %vm3193, %v3579, 0.0
    %v3581 = vsel %vm3195, %v3580, %v3363
    %v3582 = vsel %vm3191, %v3460, 0.0
    %v3583 = vrot.slane %v3516, 6
    %v3585 = vrot.slane %v3415, 2
    %v3587 = vsel %vm3191, %v3414, %v3583
    %v3588 = vsel %vm3193, %v3587, 0.0
    %v3589 = vsel %vm3195, %v3588, %v3585
    %v3590 = vsel %vm3191, %v3517, 0.0
    %3593 = vrot.lane.b32.xlu0 %v3209, 112
    %v3594 = vpop.permute.xlu0 %3593
    %3595 = vrot.lane.b32.xlu0 %v3210, 112
    %v3596 = vpop.permute.xlu0 %3595
    %3601 = vrot.lane.b32.xlu0 %v3217, 96
    %v3602 = vpop.permute.xlu0 %3601
    %3603 = vrot.lane.b32.xlu0 %v3218, 96
    %v3604 = vpop.permute.xlu0 %3603
    %3609 = vrot.lane.b32.xlu0 %v3231, 80
    %v3610 = vpop.permute.xlu0 %3609
    %3611 = vrot.lane.b32.xlu0 %v3232, 80
    %v3612 = vpop.permute.xlu0 %3611
    %3617 = vrot.lane.b32.xlu0 %v3243, 64
    %v3618 = vpop.permute.xlu0 %3617
    %3619 = vrot.lane.b32.xlu0 %v3244, 64
    %v3620 = vpop.permute.xlu0 %3619
    %3625 = vrot.lane.b32.xlu0 %v3253, 48
    %v3626 = vpop.permute.xlu0 %3625
    %3627 = vrot.lane.b32.xlu0 %v3254, 48
    %v3628 = vpop.permute.xlu0 %3627
    %3633 = vrot.lane.b32.xlu0 %v3263, 32
    %v3634 = vpop.permute.xlu0 %3633
    %3635 = vrot.lane.b32.xlu0 %v3264, 32
    %v3636 = vpop.permute.xlu0 %3635
    %3641 = vrot.lane.b32.xlu0 %v3279, 16
    %v3642 = vpop.permute.xlu0 %3641
    %3643 = vrot.lane.b32.xlu0 %v3280, 16
    %v3644 = vpop.permute.xlu0 %3643
    %3649 = vrot.lane.b32.xlu0 %v3310, 112
    %v3650 = vpop.permute.xlu0 %3649
    %3651 = vrot.lane.b32.xlu0 %v3311, 112
    %v3652 = vpop.permute.xlu0 %3651
    %3657 = vrot.lane.b32.xlu0 %v3327, 96
    %v3658 = vpop.permute.xlu0 %3657
    %3659 = vrot.lane.b32.xlu0 %v3328, 96
    %v3660 = vpop.permute.xlu0 %3659
    %3665 = vrot.lane.b32.xlu0 %v3336, 80
    %v3666 = vpop.permute.xlu0 %3665
    %3667 = vrot.lane.b32.xlu0 %v3337, 80
    %v3668 = vpop.permute.xlu0 %3667
    %3673 = vrot.lane.b32.xlu0 %v3349, 64
    %v3674 = vpop.permute.xlu0 %3673
    %3675 = vrot.lane.b32.xlu0 %v3350, 64
    %v3676 = vpop.permute.xlu0 %3675
    %3681 = vrot.lane.b32.xlu0 %v3357, 48
    %v3682 = vpop.permute.xlu0 %3681
    %3683 = vrot.lane.b32.xlu0 %v3358, 48
    %v3684 = vpop.permute.xlu0 %3683
    %3689 = vrot.lane.b32.xlu0 %v3367, 32
    %v3690 = vpop.permute.xlu0 %3689
    %3691 = vrot.lane.b32.xlu0 %v3368, 32
    %v3692 = vpop.permute.xlu0 %3691
    %3697 = vrot.lane.b32.xlu0 %v3374, 16
    %v3698 = vpop.permute.xlu0 %3697
    %3699 = vrot.lane.b32.xlu0 %v3375, 16
    %v3700 = vpop.permute.xlu0 %3699
    %v3703 = vsel %vm1383, %v3196, %v3594
    %v3704 = vsel %vm1383, %v3197, %v3596
    %vm3705 = vcmask 785408
    %v3706 = vsel %vm3705, %v3594, %v3602
    %v3707 = vsel %vm3705, %v3596, %v3604
    %vm3708 = vcmask 654336
    %v3709 = vsel %vm3708, %v3602, %v3610
    %v3710 = vsel %vm3708, %v3604, %v3612
    %vm3711 = vcmask 523264
    %v3712 = vsel %vm3711, %v3610, %v3618
    %v3713 = vsel %vm3711, %v3612, %v3620
    %vm3714 = vcmask 392192
    %v3715 = vsel %vm3714, %v3618, %v3626
    %v3716 = vsel %vm3714, %v3620, %v3628
    %v3717 = vsel %vm3140, %v3626, %v3634
    %v3718 = vsel %vm3140, %v3628, %v3636
    %v3719 = vsel %vm3067, %v3634, %v3642
    %v3720 = vsel %vm3067, %v3636, %v3644
    %v3721 = vsel %vm1383, %v3290, %v3650
    %v3722 = vsel %vm1383, %v3291, %v3652
    %v3723 = vsel %vm3705, %v3650, %v3658
    %v3724 = vsel %vm3705, %v3652, %v3660
    %v3725 = vsel %vm3708, %v3658, %v3666
    %v3726 = vsel %vm3708, %v3660, %v3668
    %v3727 = vsel %vm3711, %v3666, %v3674
    %v3728 = vsel %vm3711, %v3668, %v3676
    %v3729 = vsel %vm3714, %v3674, %v3682
    %v3730 = vsel %vm3714, %v3676, %v3684
    %v3731 = vsel %vm3140, %v3682, %v3690
    %v3732 = vsel %vm3140, %v3684, %v3692
    %v3733 = vsel %vm3067, %v3690, %v3698
    %v3734 = vsel %vm3067, %v3692, %v3700
    %3737 = vrot.lane.b32.xlu0 %v3400, 112
    %v3738 = vpop.permute.xlu0 %3737
    %3739 = vrot.lane.b32.xlu0 %v3401, 112
    %v3740 = vpop.permute.xlu0 %3739
    %3745 = vrot.lane.b32.xlu0 %v3410, 96
    %v3746 = vpop.permute.xlu0 %3745
    %3747 = vrot.lane.b32.xlu0 %v3411, 96
    %v3748 = vpop.permute.xlu0 %3747
    %3753 = vrot.lane.b32.xlu0 %v3429, 80
    %v3754 = vpop.permute.xlu0 %3753
    %3755 = vrot.lane.b32.xlu0 %v3430, 80
    %v3756 = vpop.permute.xlu0 %3755
    %3761 = vrot.lane.b32.xlu0 %v3445, 64
    %v3762 = vpop.permute.xlu0 %3761
    %3763 = vrot.lane.b32.xlu0 %v3446, 64
    %v3764 = vpop.permute.xlu0 %3763
    %3769 = vrot.lane.b32.xlu0 %v3456, 48
    %v3770 = vpop.permute.xlu0 %3769
    %3771 = vrot.lane.b32.xlu0 %v3457, 48
    %v3772 = vpop.permute.xlu0 %3771
    %3777 = vrot.lane.b32.xlu0 %v3464, 32
    %v3778 = vpop.permute.xlu0 %3777
    %3779 = vrot.lane.b32.xlu0 %v3465, 32
    %v3780 = vpop.permute.xlu0 %3779
    %3785 = vrot.lane.b32.xlu0 %v3474, 16
    %v3786 = vpop.permute.xlu0 %3785
    %3787 = vrot.lane.b32.xlu0 %v3475, 16
    %v3788 = vpop.permute.xlu0 %3787
    %3793 = vrot.lane.b32.xlu0 %v3487, 112
    %v3794 = vpop.permute.xlu0 %3793
    %3795 = vrot.lane.b32.xlu0 %v3488, 112
    %v3796 = vpop.permute.xlu0 %3795
    %3801 = vrot.lane.b32.xlu0 %v3495, 96
    %v3802 = vpop.permute.xlu0 %3801
    %3803 = vrot.lane.b32.xlu0 %v3496, 96
    %v3804 = vpop.permute.xlu0 %3803
    %3809 = vrot.lane.b32.xlu0 %v3507, 80
    %v3810 = vpop.permute.xlu0 %3809
    %3811 = vrot.lane.b32.xlu0 %v3508, 80
    %v3812 = vpop.permute.xlu0 %3811
    %3817 = vrot.lane.b32.xlu0 %v3514, 64
    %v3818 = vpop.permute.xlu0 %3817
    %3819 = vrot.lane.b32.xlu0 %v3515, 64
    %v3820 = vpop.permute.xlu0 %3819
    %3825 = vrot.lane.b32.xlu0 %v3530, 48
    %v3826 = vpop.permute.xlu0 %3825
    %3827 = vrot.lane.b32.xlu0 %v3531, 48
    %v3828 = vpop.permute.xlu0 %3827
    %3833 = vrot.lane.b32.xlu0 %v3538, 32
    %v3834 = vpop.permute.xlu0 %3833
    %3835 = vrot.lane.b32.xlu0 %v3539, 32
    %v3836 = vpop.permute.xlu0 %3835
    %3841 = vrot.lane.b32.xlu0 %v3544, 16
    %v3842 = vpop.permute.xlu0 %3841
    %3843 = vrot.lane.b32.xlu0 %v3545, 16
    %v3844 = vpop.permute.xlu0 %3843
    %v3847 = vsel %vm1383, %v3387, %v3738
    %v3848 = vsel %vm1383, %v3388, %v3740
    %v3849 = vsel %vm3705, %v3738, %v3746
    %v3850 = vsel %vm3705, %v3740, %v3748
    %v3851 = vsel %vm3708, %v3746, %v3754
    %v3852 = vsel %vm3708, %v3748, %v3756
    %v3853 = vsel %vm3711, %v3754, %v3762
    %v3854 = vsel %vm3711, %v3756, %v3764
    %v3855 = vsel %vm3714, %v3762, %v3770
    %v3856 = vsel %vm3714, %v3764, %v3772
    %v3857 = vsel %vm3140, %v3770, %v3778
    %v3858 = vsel %vm3140, %v3772, %v3780
    %v3859 = vsel %vm3067, %v3778, %v3786
    %v3860 = vsel %vm3067, %v3780, %v3788
    %v3861 = vsel %vm1383, %v3479, %v3794
    %v3862 = vsel %vm1383, %v3480, %v3796
    %v3863 = vsel %vm3705, %v3794, %v3802
    %v3864 = vsel %vm3705, %v3796, %v3804
    %v3865 = vsel %vm3708, %v3802, %v3810
    %v3866 = vsel %vm3708, %v3804, %v3812
    %v3867 = vsel %vm3711, %v3810, %v3818
    %v3868 = vsel %vm3711, %v3812, %v3820
    %v3869 = vsel %vm3714, %v3818, %v3826
    %v3870 = vsel %vm3714, %v3820, %v3828
    %v3871 = vsel %vm3140, %v3826, %v3834
    %v3872 = vsel %vm3140, %v3828, %v3836
    %v3873 = vsel %vm3067, %v3834, %v3842
    %v3874 = vsel %vm3067, %v3836, %v3844
    %3877 = vrot.lane.b32.xlu0 %v3555, 112
    %v3878 = vpop.permute.xlu0 %3877
    %3879 = vrot.lane.b32.xlu0 %v3556, 112
    %v3880 = vpop.permute.xlu0 %3879
    %3885 = vrot.lane.b32.xlu0 %v3560, 96
    %v3886 = vpop.permute.xlu0 %3885
    %3887 = vrot.lane.b32.xlu0 %v3561, 96
    %v3888 = vpop.permute.xlu0 %3887
    %3893 = vrot.lane.b32.xlu0 %v3566, 80
    %v3894 = vpop.permute.xlu0 %3893
    %3895 = vrot.lane.b32.xlu0 %v3567, 80
    %v3896 = vpop.permute.xlu0 %3895
    %3901 = vrot.lane.b32.xlu0 %v3572, 64
    %v3902 = vpop.permute.xlu0 %3901
    %3903 = vrot.lane.b32.xlu0 %v3573, 64
    %v3904 = vpop.permute.xlu0 %3903
    %3909 = vrot.lane.b32.xlu0 %v3577, 48
    %v3910 = vpop.permute.xlu0 %3909
    %3911 = vrot.lane.b32.xlu0 %v3578, 48
    %v3912 = vpop.permute.xlu0 %3911
    %3917 = vrot.lane.b32.xlu0 %v3581, 32
    %v3918 = vpop.permute.xlu0 %3917
    %3919 = vrot.lane.b32.xlu0 %v3582, 32
    %v3920 = vpop.permute.xlu0 %3919
    %3925 = vrot.lane.b32.xlu0 %v3589, 16
    %v3926 = vpop.permute.xlu0 %3925
    %3927 = vrot.lane.b32.xlu0 %v3590, 16
    %v3928 = vpop.permute.xlu0 %3927
    %v3931 = vsel %vm1383, %v3550, %v3878
    %v3932 = vsel %vm1383, %v3551, %v3880
    %v3933 = vsel %vm3705, %v3878, %v3886
    %v3934 = vsel %vm3705, %v3880, %v3888
    %v3935 = vsel %vm3708, %v3886, %v3894
    %v3936 = vsel %vm3708, %v3888, %v3896
    %v3937 = vsel %vm3711, %v3894, %v3902
    %v3938 = vsel %vm3711, %v3896, %v3904
    %v3939 = vsel %vm3714, %v3902, %v3910
    %v3940 = vsel %vm3714, %v3904, %v3912
    %v3941 = vsel %vm3140, %v3910, %v3918
    %v3942 = vsel %vm3140, %v3912, %v3920
    %v3943 = vsel %vm3067, %v3918, %v3926
    %v3944 = vsel %vm3067, %v3920, %v3928
    %v3945 = vpack.c.bf16 %v3704, %v3703
    %v3946 = vpack.c.bf16 %v3707, %v3706
    %v3947 = vpack.c.bf16 %v3710, %v3709
    %v3948 = vpack.c.bf16 %v3713, %v3712
    %v3949 = vpack.c.bf16 %v3716, %v3715
    %v3950 = vpack.c.bf16 %v3718, %v3717
    %v3951 = vpack.c.bf16 %v3720, %v3719
    %v3952 = vpack.c.bf16 %v3722, %v3721
    %v3953 = vpack.c.bf16 %v3724, %v3723
    %v3954 = vpack.c.bf16 %v3726, %v3725
    %v3955 = vpack.c.bf16 %v3728, %v3727
    %v3956 = vpack.c.bf16 %v3730, %v3729
    %v3957 = vpack.c.bf16 %v3732, %v3731
    %v3958 = vpack.c.bf16 %v3734, %v3733
    %v3959 = vpack.c.bf16 %v3848, %v3847
    %v3960 = vpack.c.bf16 %v3850, %v3849
    %v3961 = vpack.c.bf16 %v3852, %v3851
    %v3962 = vpack.c.bf16 %v3854, %v3853
    %v3963 = vpack.c.bf16 %v3856, %v3855
    %v3964 = vpack.c.bf16 %v3858, %v3857
    %v3965 = vpack.c.bf16 %v3860, %v3859
    %v3966 = vpack.c.bf16 %v3862, %v3861
    %v3967 = vpack.c.bf16 %v3864, %v3863
    %v3968 = vpack.c.bf16 %v3866, %v3865
    %v3969 = vpack.c.bf16 %v3868, %v3867
    %v3970 = vpack.c.bf16 %v3870, %v3869
    %v3971 = vpack.c.bf16 %v3872, %v3871
    %v3972 = vpack.c.bf16 %v3874, %v3873
    %v3973 = vpack.c.bf16 %v3932, %v3931
    %v3974 = vpack.c.bf16 %v3934, %v3933
    %v3975 = vpack.c.bf16 %v3936, %v3935
    %v3976 = vpack.c.bf16 %v3938, %v3937
    %v3977 = vpack.c.bf16 %v3940, %v3939
    %v3978 = vpack.c.bf16 %v3942, %v3941
    %v3979 = vpack.c.bf16 %v3944, %v3943
    %v3980 = vld [vmem:[%s3] sm:$0xff]
    %v3981 = vld [vmem:[%s3 + $0x8] sm:$0xff]
    %v3982 = vld [vmem:[%s3 + $0x10] sm:$0xff]
    %v3983 = vld [vmem:[%s3 + $0x18] sm:$0xff]
    %v3984 = vld [vmem:[%s3 + $0x20] sm:$0xff]
    %v3985 = vld [vmem:[%s3 + $0x28] sm:$0xff]
    %v3986 = vld [vmem:[%s3 + $0x30] sm:$0xff]
    %v3987 = vld [vmem:[%s3 + $0x38] sm:$0xff]
    %v3988 = vld [vmem:[%s3 + $0x40] sm:$0xff]
    %v3989 = vld [vmem:[%s3 + $0x48] sm:$0xff]
    %v3990 = vld [vmem:[%s3 + $0x50] sm:$0xff]
    %v3991 = vld [vmem:[%s3 + $0x58] sm:$0xff]
    %v3992 = vld [vmem:[%s3 + $0x60] sm:$0xff]
    %v3993 = vld [vmem:[%s3 + $0x68] sm:$0xff]
    %v3994 = vld [vmem:[%s3 + $0x70] sm:$0xff]
    %v3995 = vld [vmem:[%s3 + $0x78] sm:$0xff]
    %v3996 = vld [vmem:[%s3 + $0x80] sm:$0xff]
    %v3997 = vld [vmem:[%s3 + $0x88] sm:$0xff]
    %v3998 = vld [vmem:[%s3 + $0x90] sm:$0xff]
    %v3999 = vld [vmem:[%s3 + $0x98] sm:$0xff]
    %v4000 = vld [vmem:[%s3 + $0xa0] sm:$0xff]
    %v4001 = vld [vmem:[%s3 + $0xa8] sm:$0xff]
    %v4002 = vld [vmem:[%s3 + $0xb0] sm:$0xff]
    %v4003 = vld [vmem:[%s3 + $0xb8] sm:$0xff]
    %v4004 = vld [vmem:[%s3 + $0xc0] sm:$0xff]
    %v4005 = vld [vmem:[%s3 + $0xc8] sm:$0xff]
    %v4006 = vld [vmem:[%s3 + $0xd0] sm:$0xff]
    %v4007 = vld [vmem:[%s3 + $0xd8] sm:$0xff]
    %v4008 = vld [vmem:[%s3 + $0xe0] sm:$0xff]
    %v4009 = vld [vmem:[%s3 + $0xe8] sm:$0xff]
    %v4010 = vld [vmem:[%s3 + $0xf0] sm:$0xff]
    %v4011 = vld [vmem:[%s3 + $0xf8] sm:$0xff]
    %v4012 = vld [vmem:[%s3 + $0x100] sm:$0xff]
    %v4013 = vld [vmem:[%s3 + $0x108] sm:$0xff]
    %v4014 = vld [vmem:[%s3 + $0x110] sm:$0xff]
    %v4015 = vld [vmem:[%s3 + $0x118] sm:$0xff]
    %v4016 = vld [vmem:[%s3 + $0x120] sm:$0xff]
    %v4017 = vld [vmem:[%s3 + $0x128] sm:$0xff]
    %v4018 = vld [vmem:[%s3 + $0x130] sm:$0xff]
    %v4019 = vld [vmem:[%s3 + $0x138] sm:$0xff]
    %v4020 = vld [vmem:[%s3 + $0x140] sm:$0xff]
    %v4021 = vld [vmem:[%s3 + $0x148] sm:$0xff]
    %v4022 = vld [vmem:[%s3 + $0x150] sm:$0xff]
    %v4023 = vld [vmem:[%s3 + $0x158] sm:$0xff]
    %v4024 = vld [vmem:[%s3 + $0x160] sm:$0xff]
    %v4025 = vld [vmem:[%s3 + $0x168] sm:$0xff]
    %v4026 = vld [vmem:[%s3 + $0x170] sm:$0xff]
    %v4027 = vld [vmem:[%s3 + $0x178] sm:$0xff]
    %v4028 = vld [vmem:[%s3 + $0x180] sm:$0xff]
    %v4029 = vld [vmem:[%s3 + $0x188] sm:$0xff]
    %v4030 = vld [vmem:[%s3 + $0x190] sm:$0xff]
    %v4031 = vld [vmem:[%s3 + $0x198] sm:$0xff]
    %v4032 = vld [vmem:[%s3 + $0x1a0] sm:$0xff]
    %v4033 = vld [vmem:[%s3 + $0x1a8] sm:$0xff]
    %v4034 = vld [vmem:[%s3 + $0x1b0] sm:$0xff]
    %v4035 = vld [vmem:[%s3 + $0x1b8] sm:$0xff]
    %v4036 = vld [vmem:[%s3 + $0x1c0] sm:$0xff]
    %v4037 = vld [vmem:[%s3 + $0x1c8] sm:$0xff]
    %v4038 = vld [vmem:[%s3 + $0x1d0] sm:$0xff]
    %v4039 = vld [vmem:[%s3 + $0x1d8] sm:$0xff]
    %v4040 = vld [vmem:[%s3 + $0x1e0] sm:$0xff]
    %v4041 = vld [vmem:[%s3 + $0x1e8] sm:$0xff]
    %v4042 = vld [vmem:[%s3 + $0x1f0] sm:$0xff]
    %v4043 = vld [vmem:[%s3 + $0x1f8] sm:$0xff]
    %v4044 = vld [vmem:[%s3 + $0x200] sm:$0xff]
    %v4045 = vld [vmem:[%s3 + $0x208] sm:$0xff]
    %v4046 = vld [vmem:[%s3 + $0x210] sm:$0xff]
    %v4047 = vld [vmem:[%s3 + $0x218] sm:$0xff]
    %v4048 = vld [vmem:[%s3 + $0x220] sm:$0xff]
    %v4049 = vld [vmem:[%s3 + $0x228] sm:$0xff]
    %v4050 = vld [vmem:[%s3 + $0x230] sm:$0xff]
    %v4051 = vld [vmem:[%s3 + $0x238] sm:$0xff]
    %v4052 = vld [vmem:[%s3 + $0x240] sm:$0xff]
    %v4053 = vld [vmem:[%s3 + $0x248] sm:$0xff]
    %v4054 = vld [vmem:[%s3 + $0x250] sm:$0xff]
    %v4055 = vld [vmem:[%s3 + $0x258] sm:$0xff]
    %v4056 = vld [vmem:[%s3 + $0x260] sm:$0xff]
    %v4057 = vld [vmem:[%s3 + $0x268] sm:$0xff]
    %v4058 = vld [vmem:[%s3 + $0x270] sm:$0xff]
    %v4059 = vld [vmem:[%s3 + $0x278] sm:$0xff]
    %v4060 = vld [vmem:[%s3 + $0x280] sm:$0xff]
    %v4061 = vld [vmem:[%s3 + $0x288] sm:$0xff]
    %v4062 = vld [vmem:[%s3 + $0x290] sm:$0xff]
    %v4063 = vld [vmem:[%s3 + $0x298] sm:$0xff]
    %v4064 = vld [vmem:[%s3 + $0x2a0] sm:$0xff]
    %v4065 = vld [vmem:[%s3 + $0x2a8] sm:$0xff]
    %v4066 = vld [vmem:[%s3 + $0x2b0] sm:$0xff]
    %v4067 = vld [vmem:[%s3 + $0x2b8] sm:$0xff]
    %v4068 = vld [vmem:[%s3 + $0x2c0] sm:$0xff]
    %v4069 = vld [vmem:[%s3 + $0x2c8] sm:$0xff]
    %v4070 = vld [vmem:[%s3 + $0x2d0] sm:$0xff]
    %v4071 = vld [vmem:[%s3 + $0x2d8] sm:$0xff]
    %v4072 = vld [vmem:[%s3 + $0x2e0] sm:$0xff]
    %v4073 = vld [vmem:[%s3 + $0x2e8] sm:$0xff]
    %v4074 = vld [vmem:[%s3 + $0x2f0] sm:$0xff]
    %v4075 = vld [vmem:[%s3 + $0x2f8] sm:$0xff]
    %v4076 = vld [vmem:[%s3 + $0x300] sm:$0xff]
    %v4077 = vld [vmem:[%s3 + $0x308] sm:$0xff]
    %v4078 = vld [vmem:[%s3 + $0x310] sm:$0xff]
    %v4079 = vld [vmem:[%s3 + $0x318] sm:$0xff]
    %v4080 = vld [vmem:[%s3 + $0x320] sm:$0xff]
    %v4081 = vld [vmem:[%s3 + $0x328] sm:$0xff]
    %v4082 = vld [vmem:[%s3 + $0x330] sm:$0xff]
    %v4083 = vld [vmem:[%s3 + $0x338] sm:$0xff]
    %v4084 = vld [vmem:[%s3 + $0x340] sm:$0xff]
    %v4085 = vld [vmem:[%s3 + $0x348] sm:$0xff]
    %v4086 = vld [vmem:[%s3 + $0x350] sm:$0xff]
    %v4087 = vld [vmem:[%s3 + $0x358] sm:$0xff]
    %v4088 = vld [vmem:[%s3 + $0x360] sm:$0xff]
    %v4089 = vld [vmem:[%s3 + $0x368] sm:$0xff]
    %v4090 = vld [vmem:[%s3 + $0x370] sm:$0xff]
    %v4091 = vld [vmem:[%s3 + $0x378] sm:$0xff]
    %v4092 = vld [vmem:[%s3 + $0x380] sm:$0xff]
    %v4093 = vld [vmem:[%s3 + $0x388] sm:$0xff]
    %v4094 = vld [vmem:[%s3 + $0x390] sm:$0xff]
    %v4095 = vld [vmem:[%s3 + $0x398] sm:$0xff]
    %v4096 = vld [vmem:[%s3 + $0x3a0] sm:$0xff]
    %v4097 = vld [vmem:[%s3 + $0x3a8] sm:$0xff]
    %v4098 = vld [vmem:[%s3 + $0x3b0] sm:$0xff]
    %v4099 = vld [vmem:[%s3 + $0x3b8] sm:$0xff]
    %v4100 = vld [vmem:[%s3 + $0x3c0] sm:$0xff]
    %v4101 = vld [vmem:[%s3 + $0x3c8] sm:$0xff]
    %v4102 = vld [vmem:[%s3 + $0x3d0] sm:$0xff]
    %v4103 = vld [vmem:[%s3 + $0x3d8] sm:$0xff]
    %v4104 = vld [vmem:[%s3 + $0x3e0] sm:$0xff]
    %v4105 = vld [vmem:[%s3 + $0x3e8] sm:$0xff]
    %v4106 = vld [vmem:[%s3 + $0x3f0] sm:$0xff]
    %v4107 = vld [vmem:[%s3 + $0x3f8] sm:$0xff]
    %v4108 = vld [vmem:[%s3 + $0x400] sm:$0xff]
    %v4109 = vld [vmem:[%s3 + $0x408] sm:$0xff]
    %v4110 = vld [vmem:[%s3 + $0x410] sm:$0xff]
    %v4111 = vld [vmem:[%s3 + $0x418] sm:$0xff]
    %v4112 = vld [vmem:[%s3 + $0x420] sm:$0xff]
    %v4113 = vld [vmem:[%s3 + $0x428] sm:$0xff]
    %v4114 = vld [vmem:[%s3 + $0x430] sm:$0xff]
    %v4115 = vld [vmem:[%s3 + $0x438] sm:$0xff]
    %v4116 = vld [vmem:[%s3 + $0x440] sm:$0xff]
    %v4117 = vld [vmem:[%s3 + $0x448] sm:$0xff]
    %v4118 = vld [vmem:[%s3 + $0x450] sm:$0xff]
    %v4119 = vld [vmem:[%s3 + $0x458] sm:$0xff]
    %v4120 = vld [vmem:[%s3 + $0x460] sm:$0xff]
    %v4121 = vld [vmem:[%s3 + $0x468] sm:$0xff]
    %v4122 = vld [vmem:[%s3 + $0x470] sm:$0xff]
    %v4123 = vld [vmem:[%s3 + $0x478] sm:$0xff]
    %v4124 = vld [vmem:[%s3 + $0x480] sm:$0xff]
    %v4125 = vld [vmem:[%s3 + $0x488] sm:$0xff]
    %v4126 = vld [vmem:[%s3 + $0x490] sm:$0xff]
    %v4127 = vld [vmem:[%s3 + $0x498] sm:$0xff]
    %v4128 = vld [vmem:[%s3 + $0x4a0] sm:$0xff]
    %v4129 = vld [vmem:[%s3 + $0x4a8] sm:$0xff]
    %v4130 = vld [vmem:[%s3 + $0x4b0] sm:$0xff]
    %v4131 = vld [vmem:[%s3 + $0x4b8] sm:$0xff]
    %v4132 = vld [vmem:[%s3 + $0x4c0] sm:$0xff]
    %v4133 = vld [vmem:[%s3 + $0x4c8] sm:$0xff]
    %v4134 = vld [vmem:[%s3 + $0x4d0] sm:$0xff]
    %v4135 = vld [vmem:[%s3 + $0x4d8] sm:$0xff]
    %v4136 = vld [vmem:[%s3 + $0x4e0] sm:$0xff]
    %v4137 = vld [vmem:[%s3 + $0x4e8] sm:$0xff]
    %v4138 = vld [vmem:[%s3 + $0x4f0] sm:$0xff]
    %v4139 = vld [vmem:[%s3 + $0x4f8] sm:$0xff]
    %v4140 = vld [vmem:[%s3 + $0x500] sm:$0xff]
    %v4141 = vld [vmem:[%s3 + $0x508] sm:$0xff]
    %v4142 = vld [vmem:[%s3 + $0x510] sm:$0xff]
    %v4143 = vld [vmem:[%s3 + $0x518] sm:$0xff]
    %v4144 = vld [vmem:[%s3 + $0x520] sm:$0xff]
    %v4145 = vld [vmem:[%s3 + $0x528] sm:$0xff]
    %v4146 = vld [vmem:[%s3 + $0x530] sm:$0xff]
    %v4147 = vld [vmem:[%s3 + $0x538] sm:$0xff]
    %v4148 = vld [vmem:[%s3 + $0x540] sm:$0xff]
    %v4149 = vld [vmem:[%s3 + $0x548] sm:$0xff]
    %v4150 = vld [vmem:[%s3 + $0x550] sm:$0xff]
    %v4151 = vld [vmem:[%s3 + $0x558] sm:$0xff]
    %v4152 = vld [vmem:[%s3 + $0x560] sm:$0xff]
    %v4153 = vld [vmem:[%s3 + $0x568] sm:$0xff]
    %v4154 = vld [vmem:[%s3 + $0x570] sm:$0xff]
    %v4155 = vld [vmem:[%s3 + $0x578] sm:$0xff]
    %v4156 = vld [vmem:[%s3 + $0x580] sm:$0xff]
    %v4157 = vld [vmem:[%s3 + $0x588] sm:$0xff]
    %v4158 = vld [vmem:[%s3 + $0x590] sm:$0xff]
    %v4159 = vld [vmem:[%s3 + $0x598] sm:$0xff]
    %v4160 = vld [vmem:[%s3 + $0x5a0] sm:$0xff]
    %v4161 = vld [vmem:[%s3 + $0x5a8] sm:$0xff]
    %v4162 = vld [vmem:[%s3 + $0x5b0] sm:$0xff]
    %v4163 = vld [vmem:[%s3 + $0x5b8] sm:$0xff]
    %v4164 = vld [vmem:[%s3 + $0x5c0] sm:$0xff]
    %v4165 = vld [vmem:[%s3 + $0x5c8] sm:$0xff]
    %v4166 = vld [vmem:[%s3 + $0x5d0] sm:$0xff]
    %v4167 = vld [vmem:[%s3 + $0x5d8] sm:$0xff]
    %v4168 = vld [vmem:[%s3 + $0x5e0] sm:$0xff]
    %v4169 = vld [vmem:[%s3 + $0x5e8] sm:$0xff]
    %v4170 = vld [vmem:[%s3 + $0x5f0] sm:$0xff]
    %v4171 = vld [vmem:[%s3 + $0x5f8] sm:$0xff]
    %v4172 = vld [vmem:[%s3 + $0x600] sm:$0xff]
    %v4173 = vld [vmem:[%s3 + $0x608] sm:$0xff]
    %v4174 = vld [vmem:[%s3 + $0x610] sm:$0xff]
    %v4175 = vld [vmem:[%s3 + $0x618] sm:$0xff]
    %v4176 = vld [vmem:[%s3 + $0x620] sm:$0xff]
    %v4177 = vld [vmem:[%s3 + $0x628] sm:$0xff]
    %v4178 = vld [vmem:[%s3 + $0x630] sm:$0xff]
    %v4179 = vld [vmem:[%s3 + $0x638] sm:$0xff]
    %v4180 = vld [vmem:[%s3 + $0x640] sm:$0xff]
    %v4181 = vld [vmem:[%s3 + $0x648] sm:$0xff]
    %v4182 = vld [vmem:[%s3 + $0x650] sm:$0xff]
    %v4183 = vld [vmem:[%s3 + $0x658] sm:$0xff]
    %v4184 = vld [vmem:[%s3 + $0x660] sm:$0xff]
    %v4185 = vld [vmem:[%s3 + $0x668] sm:$0xff]
    %v4186 = vld [vmem:[%s3 + $0x670] sm:$0xff]
    %v4187 = vld [vmem:[%s3 + $0x678] sm:$0xff]
    %v4188 = vld [vmem:[%s3 + $0x680] sm:$0xff]
    %v4189 = vld [vmem:[%s3 + $0x688] sm:$0xff]
    %v4190 = vld [vmem:[%s3 + $0x690] sm:$0xff]
    %v4191 = vld [vmem:[%s3 + $0x698] sm:$0xff]
    %v4192 = vld [vmem:[%s3 + $0x6a0] sm:$0xff]
    %v4193 = vld [vmem:[%s3 + $0x6a8] sm:$0xff]
    %v4194 = vld [vmem:[%s3 + $0x6b0] sm:$0xff]
    %v4195 = vld [vmem:[%s3 + $0x6b8] sm:$0xff]
    %v4196 = vld [vmem:[%s3 + $0x6c0] sm:$0xff]
    %v4197 = vld [vmem:[%s3 + $0x6c8] sm:$0xff]
    %v4198 = vld [vmem:[%s3 + $0x6d0] sm:$0xff]
    %v4199 = vld [vmem:[%s3 + $0x6d8] sm:$0xff]
    %v4200 = vld [vmem:[%s3 + $0x6e0] sm:$0xff]
    %v4201 = vld [vmem:[%s3 + $0x6e8] sm:$0xff]
    %v4202 = vld [vmem:[%s3 + $0x6f0] sm:$0xff]
    %v4203 = vld [vmem:[%s3 + $0x6f8] sm:$0xff]
    %v4204 = vld [vmem:[%s3 + $0x700] sm:$0xff]
    %v4205 = vld [vmem:[%s3 + $0x708] sm:$0xff]
    %v4206 = vld [vmem:[%s3 + $0x710] sm:$0xff]
    %v4207 = vld [vmem:[%s3 + $0x718] sm:$0xff]
    %v4208 = vld [vmem:[%s3 + $0x720] sm:$0xff]
    %v4209 = vld [vmem:[%s3 + $0x728] sm:$0xff]
    %v4210 = vld [vmem:[%s3 + $0x730] sm:$0xff]
    %v4211 = vld [vmem:[%s3 + $0x738] sm:$0xff]
    %v4212 = vld [vmem:[%s3 + $0x740] sm:$0xff]
    %v4213 = vld [vmem:[%s3 + $0x748] sm:$0xff]
    %v4214 = vld [vmem:[%s3 + $0x750] sm:$0xff]
    %v4215 = vld [vmem:[%s3 + $0x758] sm:$0xff]
    %v4216 = vld [vmem:[%s3 + $0x760] sm:$0xff]
    %v4217 = vld [vmem:[%s3 + $0x768] sm:$0xff]
    %v4218 = vld [vmem:[%s3 + $0x770] sm:$0xff]
    %v4219 = vld [vmem:[%s3 + $0x778] sm:$0xff]
    %v4220 = vld [vmem:[%s3 + $0x780] sm:$0xff]
    %v4221 = vld [vmem:[%s3 + $0x788] sm:$0xff]
    %v4222 = vld [vmem:[%s3 + $0x790] sm:$0xff]
    %v4223 = vld [vmem:[%s3 + $0x798] sm:$0xff]
    %v4224 = vld [vmem:[%s3 + $0x7a0] sm:$0xff]
    %v4225 = vld [vmem:[%s3 + $0x7a8] sm:$0xff]
    %v4226 = vld [vmem:[%s3 + $0x7b0] sm:$0xff]
    %v4227 = vld [vmem:[%s3 + $0x7b8] sm:$0xff]
    %v4228 = vld [vmem:[%s3 + $0x7c0] sm:$0xff]
    %v4229 = vld [vmem:[%s3 + $0x7c8] sm:$0xff]
    %v4230 = vld [vmem:[%s3 + $0x7d0] sm:$0xff]
    %v4231 = vld [vmem:[%s3 + $0x7d8] sm:$0xff]
    %v4232 = vld [vmem:[%s3 + $0x7e0] sm:$0xff]
    %v4233 = vld [vmem:[%s3 + $0x7e8] sm:$0xff]
    %v4234 = vld [vmem:[%s3 + $0x7f0] sm:$0xff]
    %v4235 = vld [vmem:[%s3 + $0x7f8] sm:$0xff]
    %v4236 = vld [vmem:[%s3 + $0x800] sm:$0xff]
    %v4237 = vld [vmem:[%s3 + $0x808] sm:$0xff]
    %v4238 = vld [vmem:[%s3 + $0x810] sm:$0xff]
    %v4239 = vld [vmem:[%s3 + $0x818] sm:$0xff]
    %v4240 = vld [vmem:[%s3 + $0x820] sm:$0xff]
    %v4241 = vld [vmem:[%s3 + $0x828] sm:$0xff]
    %v4242 = vld [vmem:[%s3 + $0x830] sm:$0xff]
    %v4243 = vld [vmem:[%s3 + $0x838] sm:$0xff]
    %v4244 = vld [vmem:[%s3 + $0x840] sm:$0xff]
    %v4245 = vld [vmem:[%s3 + $0x848] sm:$0xff]
    %v4246 = vld [vmem:[%s3 + $0x850] sm:$0xff]
    %v4247 = vld [vmem:[%s3 + $0x858] sm:$0xff]
    %v4248 = vld [vmem:[%s3 + $0x860] sm:$0xff]
    %v4249 = vld [vmem:[%s3 + $0x868] sm:$0xff]
    %v4250 = vld [vmem:[%s3 + $0x870] sm:$0xff]
    %v4251 = vld [vmem:[%s3 + $0x878] sm:$0xff]
    %v4252 = vld [vmem:[%s3 + $0x880] sm:$0xff]
    %v4253 = vld [vmem:[%s3 + $0x888] sm:$0xff]
    %v4254 = vld [vmem:[%s3 + $0x890] sm:$0xff]
    %v4255 = vld [vmem:[%s3 + $0x898] sm:$0xff]
    %v4256 = vld [vmem:[%s3 + $0x8a0] sm:$0xff]
    %v4257 = vld [vmem:[%s3 + $0x8a8] sm:$0xff]
    %v4258 = vld [vmem:[%s3 + $0x8b0] sm:$0xff]
    %v4259 = vld [vmem:[%s3 + $0x8b8] sm:$0xff]
    %v4260 = vld [vmem:[%s3 + $0x8c0] sm:$0xff]
    %v4261 = vld [vmem:[%s3 + $0x8c8] sm:$0xff]
    %v4262 = vld [vmem:[%s3 + $0x8d0] sm:$0xff]
    %v4263 = vld [vmem:[%s3 + $0x8d8] sm:$0xff]
    %v4264 = vld [vmem:[%s3 + $0x8e0] sm:$0xff]
    %v4265 = vld [vmem:[%s3 + $0x8e8] sm:$0xff]
    %v4266 = vld [vmem:[%s3 + $0x8f0] sm:$0xff]
    %v4267 = vld [vmem:[%s3 + $0x8f8] sm:$0xff]
    %v4268 = vld [vmem:[%s3 + $0x900] sm:$0xff]
    %v4269 = vld [vmem:[%s3 + $0x908] sm:$0xff]
    %v4270 = vld [vmem:[%s3 + $0x910] sm:$0xff]
    %v4271 = vld [vmem:[%s3 + $0x918] sm:$0xff]
    %v4272 = vld [vmem:[%s3 + $0x920] sm:$0xff]
    %v4273 = vld [vmem:[%s3 + $0x928] sm:$0xff]
    %v4274 = vld [vmem:[%s3 + $0x930] sm:$0xff]
    %v4275 = vld [vmem:[%s3 + $0x938] sm:$0xff]
    %v4276 = vld [vmem:[%s3 + $0x940] sm:$0xff]
    %v4277 = vld [vmem:[%s3 + $0x948] sm:$0xff]
    %v4278 = vld [vmem:[%s3 + $0x950] sm:$0xff]
    %v4279 = vld [vmem:[%s3 + $0x958] sm:$0xff]
    %v4280 = vld [vmem:[%s3 + $0x960] sm:$0xff]
    %v4281 = vld [vmem:[%s3 + $0x968] sm:$0xff]
    %v4282 = vld [vmem:[%s3 + $0x970] sm:$0xff]
    %v4283 = vld [vmem:[%s3 + $0x978] sm:$0xff]
    %v4284 = vld [vmem:[%s3 + $0x980] sm:$0xff]
    %v4285 = vld [vmem:[%s3 + $0x988] sm:$0xff]
    %v4286 = vld [vmem:[%s3 + $0x990] sm:$0xff]
    %v4287 = vld [vmem:[%s3 + $0x998] sm:$0xff]
    %v4288 = vld [vmem:[%s3 + $0x9a0] sm:$0xff]
    %v4289 = vld [vmem:[%s3 + $0x9a8] sm:$0xff]
    %v4290 = vld [vmem:[%s3 + $0x9b0] sm:$0xff]
    %v4291 = vld [vmem:[%s3 + $0x9b8] sm:$0xff]
    %v4292 = vld [vmem:[%s3 + $0x9c0] sm:$0xff]
    %v4293 = vld [vmem:[%s3 + $0x9c8] sm:$0xff]
    %v4294 = vld [vmem:[%s3 + $0x9d0] sm:$0xff]
    %v4295 = vld [vmem:[%s3 + $0x9d8] sm:$0xff]
    %v4296 = vld [vmem:[%s3 + $0x9e0] sm:$0xff]
    %v4297 = vld [vmem:[%s3 + $0x9e8] sm:$0xff]
    %v4298 = vld [vmem:[%s3 + $0x9f0] sm:$0xff]
    %v4299 = vld [vmem:[%s3 + $0x9f8] sm:$0xff]
    %v4300 = vld [vmem:[%s3 + $0xa00] sm:$0xff]
    %v4301 = vld [vmem:[%s3 + $0xa08] sm:$0xff]
    %v4302 = vld [vmem:[%s3 + $0xa10] sm:$0xff]
    %v4303 = vld [vmem:[%s3 + $0xa18] sm:$0xff]
    %v4304 = vld [vmem:[%s3 + $0xa20] sm:$0xff]
    %v4305 = vld [vmem:[%s3 + $0xa28] sm:$0xff]
    %v4306 = vld [vmem:[%s3 + $0xa30] sm:$0xff]
    %v4307 = vld [vmem:[%s3 + $0xa38] sm:$0xff]
    %v4308 = vld [vmem:[%s3 + $0xa40] sm:$0xff]
    %v4309 = vld [vmem:[%s3 + $0xa48] sm:$0xff]
    %v4310 = vld [vmem:[%s3 + $0xa50] sm:$0xff]
    %v4311 = vld [vmem:[%s3 + $0xa58] sm:$0xff]
    %v4312 = vld [vmem:[%s3 + $0xa60] sm:$0xff]
    %v4313 = vld [vmem:[%s3 + $0xa68] sm:$0xff]
    %v4314 = vld [vmem:[%s3 + $0xa70] sm:$0xff]
    %v4315 = vld [vmem:[%s3 + $0xa78] sm:$0xff]
    %v4316 = vld [vmem:[%s3 + $0xa80] sm:$0xff]
    %v4317 = vld [vmem:[%s3 + $0xa88] sm:$0xff]
    %v4318 = vld [vmem:[%s3 + $0xa90] sm:$0xff]
    %v4319 = vld [vmem:[%s3 + $0xa98] sm:$0xff]
    %v4320 = vld [vmem:[%s3 + $0xaa0] sm:$0xff]
    %v4321 = vld [vmem:[%s3 + $0xaa8] sm:$0xff]
    %v4322 = vld [vmem:[%s3 + $0xab0] sm:$0xff]
    %v4323 = vld [vmem:[%s3 + $0xab8] sm:$0xff]
    %v4324 = vld [vmem:[%s3 + $0xac0] sm:$0xff]
    %v4325 = vld [vmem:[%s3 + $0xac8] sm:$0xff]
    %v4326 = vld [vmem:[%s3 + $0xad0] sm:$0xff]
    %v4327 = vld [vmem:[%s3 + $0xad8] sm:$0xff]
    %v4328 = vld [vmem:[%s3 + $0xae0] sm:$0xff]
    %v4329 = vld [vmem:[%s3 + $0xae8] sm:$0xff]
    %v4330 = vld [vmem:[%s3 + $0xaf0] sm:$0xff]
    %v4331 = vld [vmem:[%s3 + $0xaf8] sm:$0xff]
    %v4332 = vld [vmem:[%s3 + $0xb00] sm:$0xff]
    %v4333 = vld [vmem:[%s3 + $0xb08] sm:$0xff]
    %v4334 = vld [vmem:[%s3 + $0xb10] sm:$0xff]
    %v4335 = vld [vmem:[%s3 + $0xb18] sm:$0xff]
    %v4336 = vld [vmem:[%s3 + $0xb20] sm:$0xff]
    %v4337 = vld [vmem:[%s3 + $0xb28] sm:$0xff]
    %v4338 = vld [vmem:[%s3 + $0xb30] sm:$0xff]
    %v4339 = vld [vmem:[%s3 + $0xb38] sm:$0xff]
    %v4340 = vld [vmem:[%s3 + $0xb40] sm:$0xff]
    %v4341 = vld [vmem:[%s3 + $0xb48] sm:$0xff]
    %v4342 = vld [vmem:[%s3 + $0xb50] sm:$0xff]
    %v4343 = vld [vmem:[%s3 + $0xb58] sm:$0xff]
    %v4344 = vld [vmem:[%s3 + $0xb60] sm:$0xff]
    %v4345 = vld [vmem:[%s3 + $0xb68] sm:$0xff]
    %v4346 = vld [vmem:[%s3 + $0xb70] sm:$0xff]
    %v4347 = vld [vmem:[%s3 + $0xb78] sm:$0xff]
    %v4348 = vld [vmem:[%s3 + $0xb80] sm:$0xff]
    %v4349 = vld [vmem:[%s3 + $0xb88] sm:$0xff]
    %v4350 = vld [vmem:[%s3 + $0xb90] sm:$0xff]
    %v4351 = vld [vmem:[%s3 + $0xb98] sm:$0xff]
    %v4352 = vld [vmem:[%s3 + $0xba0] sm:$0xff]
    %v4353 = vld [vmem:[%s3 + $0xba8] sm:$0xff]
    %v4354 = vld [vmem:[%s3 + $0xbb0] sm:$0xff]
    %v4355 = vld [vmem:[%s3 + $0xbb8] sm:$0xff]
    %v4356 = vld [vmem:[%s3 + $0xbc0] sm:$0xff]
    %v4357 = vld [vmem:[%s3 + $0xbc8] sm:$0xff]
    %v4358 = vld [vmem:[%s3 + $0xbd0] sm:$0xff]
    %v4359 = vld [vmem:[%s3 + $0xbd8] sm:$0xff]
    %v4360 = vld [vmem:[%s3 + $0xbe0] sm:$0xff]
    %v4361 = vld [vmem:[%s3 + $0xbe8] sm:$0xff]
    %v4362 = vld [vmem:[%s3 + $0xbf0] sm:$0xff]
    %v4363 = vld [vmem:[%s3 + $0xbf8] sm:$0xff]
    %v4364 = vld [vmem:[%s3 + $0xc00] sm:$0xff]
    %v4365 = vld [vmem:[%s3 + $0xc08] sm:$0xff]
    %v4366 = vld [vmem:[%s3 + $0xc10] sm:$0xff]
    %v4367 = vld [vmem:[%s3 + $0xc18] sm:$0xff]
    %v4368 = vld [vmem:[%s3 + $0xc20] sm:$0xff]
    %v4369 = vld [vmem:[%s3 + $0xc28] sm:$0xff]
    %v4370 = vld [vmem:[%s3 + $0xc30] sm:$0xff]
    %v4371 = vld [vmem:[%s3 + $0xc38] sm:$0xff]
    %v4372 = vld [vmem:[%s3 + $0xc40] sm:$0xff]
    %v4373 = vld [vmem:[%s3 + $0xc48] sm:$0xff]
    %v4374 = vld [vmem:[%s3 + $0xc50] sm:$0xff]
    %v4375 = vld [vmem:[%s3 + $0xc58] sm:$0xff]
    %v4376 = vld [vmem:[%s3 + $0xc60] sm:$0xff]
    %v4377 = vld [vmem:[%s3 + $0xc68] sm:$0xff]
    %v4378 = vld [vmem:[%s3 + $0xc70] sm:$0xff]
    %v4379 = vld [vmem:[%s3 + $0xc78] sm:$0xff]
    %v4380 = vld [vmem:[%s3 + $0xc80] sm:$0xff]
    %v4381 = vld [vmem:[%s3 + $0xc88] sm:$0xff]
    %v4382 = vld [vmem:[%s3 + $0xc90] sm:$0xff]
    %v4383 = vld [vmem:[%s3 + $0xc98] sm:$0xff]
    %v4384 = vld [vmem:[%s3 + $0xca0] sm:$0xff]
    %v4385 = vld [vmem:[%s3 + $0xca8] sm:$0xff]
    %v4386 = vld [vmem:[%s3 + $0xcb0] sm:$0xff]
    %v4387 = vld [vmem:[%s3 + $0xcb8] sm:$0xff]
    %v4388 = vld [vmem:[%s3 + $0xcc0] sm:$0xff]
    %v4389 = vld [vmem:[%s3 + $0xcc8] sm:$0xff]
    %v4390 = vld [vmem:[%s3 + $0xcd0] sm:$0xff]
    %v4391 = vld [vmem:[%s3 + $0xcd8] sm:$0xff]
    %v4392 = vld [vmem:[%s3 + $0xce0] sm:$0xff]
    %v4393 = vld [vmem:[%s3 + $0xce8] sm:$0xff]
    %v4394 = vld [vmem:[%s3 + $0xcf0] sm:$0xff]
    %v4395 = vld [vmem:[%s3 + $0xcf8] sm:$0xff]
    %v4396 = vld [vmem:[%s3 + $0xd00] sm:$0xff]
    %v4397 = vld [vmem:[%s3 + $0xd08] sm:$0xff]
    %v4398 = vld [vmem:[%s3 + $0xd10] sm:$0xff]
    %v4399 = vld [vmem:[%s3 + $0xd18] sm:$0xff]
    %v4400 = vld [vmem:[%s3 + $0xd20] sm:$0xff]
    %v4401 = vld [vmem:[%s3 + $0xd28] sm:$0xff]
    %v4402 = vld [vmem:[%s3 + $0xd30] sm:$0xff]
    %v4403 = vld [vmem:[%s3 + $0xd38] sm:$0xff]
    %v4404 = vld [vmem:[%s3 + $0xd40] sm:$0xff]
    %v4405 = vld [vmem:[%s3 + $0xd48] sm:$0xff]
    %v4406 = vld [vmem:[%s3 + $0xd50] sm:$0xff]
    %v4407 = vld [vmem:[%s3 + $0xd58] sm:$0xff]
    %v4408 = vld [vmem:[%s3 + $0xd60] sm:$0xff]
    %v4409 = vld [vmem:[%s3 + $0xd68] sm:$0xff]
    %v4410 = vld [vmem:[%s3 + $0xd70] sm:$0xff]
    %v4411 = vld [vmem:[%s3 + $0xd78] sm:$0xff]
    %v4412 = vld [vmem:[%s3 + $0xd80] sm:$0xff]
    %v4413 = vld [vmem:[%s3 + $0xd88] sm:$0xff]
    %v4414 = vld [vmem:[%s3 + $0xd90] sm:$0xff]
    %v4415 = vld [vmem:[%s3 + $0xd98] sm:$0xff]
    %v4416 = vld [vmem:[%s3 + $0xda0] sm:$0xff]
    %v4417 = vld [vmem:[%s3 + $0xda8] sm:$0xff]
    %v4418 = vld [vmem:[%s3 + $0xdb0] sm:$0xff]
    %v4419 = vld [vmem:[%s3 + $0xdb8] sm:$0xff]
    %v4420 = vld [vmem:[%s3 + $0xdc0] sm:$0xff]
    %v4421 = vld [vmem:[%s3 + $0xdc8] sm:$0xff]
    %v4422 = vld [vmem:[%s3 + $0xdd0] sm:$0xff]
    %v4423 = vld [vmem:[%s3 + $0xdd8] sm:$0xff]
    %v4424 = vld [vmem:[%s3 + $0xde0] sm:$0xff]
    %v4425 = vld [vmem:[%s3 + $0xde8] sm:$0xff]
    %v4426 = vld [vmem:[%s3 + $0xdf0] sm:$0xff]
    %v4427 = vld [vmem:[%s3 + $0xdf8] sm:$0xff]
    %v4428 = vld [vmem:[%s3 + $0xe00] sm:$0xff]
    %v4429 = vld [vmem:[%s3 + $0xe08] sm:$0xff]
    %v4430 = vld [vmem:[%s3 + $0xe10] sm:$0xff]
    %v4431 = vld [vmem:[%s3 + $0xe18] sm:$0xff]
    %v4432 = vld [vmem:[%s3 + $0xe20] sm:$0xff]
    %v4433 = vld [vmem:[%s3 + $0xe28] sm:$0xff]
    %v4434 = vld [vmem:[%s3 + $0xe30] sm:$0xff]
    %v4435 = vld [vmem:[%s3 + $0xe38] sm:$0xff]
    %v4436 = vld [vmem:[%s3 + $0xe40] sm:$0xff]
    %v4437 = vld [vmem:[%s3 + $0xe48] sm:$0xff]
    %v4438 = vld [vmem:[%s3 + $0xe50] sm:$0xff]
    %v4439 = vld [vmem:[%s3 + $0xe58] sm:$0xff]
    %v4440 = vld [vmem:[%s3 + $0xe60] sm:$0xff]
    %v4441 = vld [vmem:[%s3 + $0xe68] sm:$0xff]
    %v4442 = vld [vmem:[%s3 + $0xe70] sm:$0xff]
    %v4443 = vld [vmem:[%s3 + $0xe78] sm:$0xff]
    %v4444 = vld [vmem:[%s3 + $0xe80] sm:$0xff]
    %v4445 = vld [vmem:[%s3 + $0xe88] sm:$0xff]
    %v4446 = vld [vmem:[%s3 + $0xe90] sm:$0xff]
    %v4447 = vld [vmem:[%s3 + $0xe98] sm:$0xff]
    %v4448 = vld [vmem:[%s3 + $0xea0] sm:$0xff]
    %v4449 = vld [vmem:[%s3 + $0xea8] sm:$0xff]
    %v4450 = vld [vmem:[%s3 + $0xeb0] sm:$0xff]
    %v4451 = vld [vmem:[%s3 + $0xeb8] sm:$0xff]
    %v4452 = vld [vmem:[%s3 + $0xec0] sm:$0xff]
    %v4453 = vld [vmem:[%s3 + $0xec8] sm:$0xff]
    %v4454 = vld [vmem:[%s3 + $0xed0] sm:$0xff]
    %v4455 = vld [vmem:[%s3 + $0xed8] sm:$0xff]
    %v4456 = vld [vmem:[%s3 + $0xee0] sm:$0xff]
    %v4457 = vld [vmem:[%s3 + $0xee8] sm:$0xff]
    %v4458 = vld [vmem:[%s3 + $0xef0] sm:$0xff]
    %v4459 = vld [vmem:[%s3 + $0xef8] sm:$0xff]
    %v4460 = vld [vmem:[%s3 + $0xf00] sm:$0xff]
    %v4461 = vld [vmem:[%s3 + $0xf08] sm:$0xff]
    %v4462 = vld [vmem:[%s3 + $0xf10] sm:$0xff]
    %v4463 = vld [vmem:[%s3 + $0xf18] sm:$0xff]
    %v4464 = vld [vmem:[%s3 + $0xf20] sm:$0xff]
    %v4465 = vld [vmem:[%s3 + $0xf28] sm:$0xff]
    %v4466 = vld [vmem:[%s3 + $0xf30] sm:$0xff]
    %v4467 = vld [vmem:[%s3 + $0xf38] sm:$0xff]
    %v4468 = vld [vmem:[%s3 + $0xf40] sm:$0xff]
    %v4469 = vld [vmem:[%s3 + $0xf48] sm:$0xff]
    %v4470 = vld [vmem:[%s3 + $0xf50] sm:$0xff]
    %v4471 = vld [vmem:[%s3 + $0xf58] sm:$0xff]
    %v4472 = vld [vmem:[%s3 + $0xf60] sm:$0xff]
    %v4473 = vld [vmem:[%s3 + $0xf68] sm:$0xff]
    %v4474 = vld [vmem:[%s3 + $0xf70] sm:$0xff]
    %v4475 = vld [vmem:[%s3 + $0xf78] sm:$0xff]
    %v4476 = vld [vmem:[%s3 + $0xf80] sm:$0xff]
    %v4477 = vld [vmem:[%s3 + $0xf88] sm:$0xff]
    %v4478 = vld [vmem:[%s3 + $0xf90] sm:$0xff]
    %v4479 = vld [vmem:[%s3 + $0xf98] sm:$0xff]
    %v4480 = vld [vmem:[%s3 + $0xfa0] sm:$0xff]
    %v4481 = vld [vmem:[%s3 + $0xfa8] sm:$0xff]
    %v4482 = vld [vmem:[%s3 + $0xfb0] sm:$0xff]
    %v4483 = vld [vmem:[%s3 + $0xfb8] sm:$0xff]
    %v4484 = vld [vmem:[%s3 + $0xfc0] sm:$0xff]
    %v4485 = vld [vmem:[%s3 + $0xfc8] sm:$0xff]
    %v4486 = vld [vmem:[%s3 + $0xfd0] sm:$0xff]
    %v4487 = vld [vmem:[%s3 + $0xfd8] sm:$0xff]
    %v4488 = vld [vmem:[%s3 + $0xfe0] sm:$0xff]
    %v4489 = vld [vmem:[%s3 + $0xfe8] sm:$0xff]
    %v4490 = vld [vmem:[%s3 + $0xff0] sm:$0xff]
    %v4491 = vld [vmem:[%s3 + $0xff8] sm:$0xff]
    %v4492 = vld [vmem:[%s3 + $0x1000] sm:$0xff]
    %v4493 = vld [vmem:[%s3 + $0x1008] sm:$0xff]
    %v4494 = vld [vmem:[%s3 + $0x1010] sm:$0xff]
    %v4495 = vld [vmem:[%s3 + $0x1018] sm:$0xff]
    %v4496 = vld [vmem:[%s3 + $0x1020] sm:$0xff]
    %v4497 = vld [vmem:[%s3 + $0x1028] sm:$0xff]
    %v4498 = vld [vmem:[%s3 + $0x1030] sm:$0xff]
    %v4499 = vld [vmem:[%s3 + $0x1038] sm:$0xff]
    %v4500 = vld [vmem:[%s3 + $0x1040] sm:$0xff]
    %v4501 = vld [vmem:[%s3 + $0x1048] sm:$0xff]
    %v4502 = vld [vmem:[%s3 + $0x1050] sm:$0xff]
    %v4503 = vld [vmem:[%s3 + $0x1058] sm:$0xff]
    %v4504 = vld [vmem:[%s3 + $0x1060] sm:$0xff]
    %v4505 = vld [vmem:[%s3 + $0x1068] sm:$0xff]
    %v4506 = vld [vmem:[%s3 + $0x1070] sm:$0xff]
    %v4507 = vld [vmem:[%s3 + $0x1078] sm:$0xff]
    %v4508 = vld [vmem:[%s3 + $0x1080] sm:$0xff]
    %v4509 = vld [vmem:[%s3 + $0x1088] sm:$0xff]
    %v4510 = vld [vmem:[%s3 + $0x1090] sm:$0xff]
    %v4511 = vld [vmem:[%s3 + $0x1098] sm:$0xff]
    %v4512 = vld [vmem:[%s3 + $0x10a0] sm:$0xff]
    %v4513 = vld [vmem:[%s3 + $0x10a8] sm:$0xff]
    %v4514 = vld [vmem:[%s3 + $0x10b0] sm:$0xff]
    %v4515 = vld [vmem:[%s3 + $0x10b8] sm:$0xff]
    %v4516 = vld [vmem:[%s3 + $0x10c0] sm:$0xff]
    %v4517 = vld [vmem:[%s3 + $0x10c8] sm:$0xff]
    %v4518 = vld [vmem:[%s3 + $0x10d0] sm:$0xff]
    %v4519 = vld [vmem:[%s3 + $0x10d8] sm:$0xff]
    %v4520 = vld [vmem:[%s3 + $0x10e0] sm:$0xff]
    %v4521 = vld [vmem:[%s3 + $0x10e8] sm:$0xff]
    %v4522 = vld [vmem:[%s3 + $0x10f0] sm:$0xff]
    %v4523 = vld [vmem:[%s3 + $0x10f8] sm:$0xff]
    %v4524 = vld [vmem:[%s3 + $0x1100] sm:$0xff]
    %v4525 = vld [vmem:[%s3 + $0x1108] sm:$0xff]
    %v4526 = vld [vmem:[%s3 + $0x1110] sm:$0xff]
    %v4527 = vld [vmem:[%s3 + $0x1118] sm:$0xff]
    %v4528 = vld [vmem:[%s3 + $0x1120] sm:$0xff]
    %v4529 = vld [vmem:[%s3 + $0x1128] sm:$0xff]
    %v4530 = vld [vmem:[%s3 + $0x1130] sm:$0xff]
    %v4531 = vld [vmem:[%s3 + $0x1138] sm:$0xff]
    %v4532 = vld [vmem:[%s3 + $0x1140] sm:$0xff]
    %v4533 = vld [vmem:[%s3 + $0x1148] sm:$0xff]
    %v4534 = vld [vmem:[%s3 + $0x1150] sm:$0xff]
    %v4535 = vld [vmem:[%s3 + $0x1158] sm:$0xff]
    %v4536 = vld [vmem:[%s3 + $0x1160] sm:$0xff]
    %v4537 = vld [vmem:[%s3 + $0x1168] sm:$0xff]
    %v4538 = vld [vmem:[%s3 + $0x1170] sm:$0xff]
    %v4539 = vld [vmem:[%s3 + $0x1178] sm:$0xff]
    %v4540 = vld [vmem:[%s4] sm:$0x3]
    %v4542 = vlaneseq
    %v4543 = vshrl.u32 %v4542, 7
    %v4544 = vsub.s32 0, %v4543
    %v4545 = vrot.slane %v4540, %v4544
    %v4546 = vlaneseq
    %v4547 = vshrl.u32 %v4546, 7
    %v4548 = vsub.s32 1, %v4547
    %v4549 = vrot.slane %v4540, %v4548
    %v5112 = vunpack.c.l.b16 %v3980
    %v5113 = vunpack.c.h.b16 %v3980
    %v5114 = vunpack.c.l.b16 %v3981
    %v5115 = vunpack.c.h.b16 %v3981
    %v5116 = vunpack.c.l.b16 %v3982
    %v5117 = vunpack.c.h.b16 %v3982
    %v5118 = vunpack.c.l.b16 %v3983
    %v5119 = vunpack.c.h.b16 %v3983
    %v5120 = vunpack.c.l.b16 %v3984
    %v5121 = vunpack.c.h.b16 %v3984
    %v5122 = vunpack.c.l.b16 %v3985
    %v5123 = vunpack.c.h.b16 %v3985
    %v5124 = vunpack.c.l.b16 %v3986
    %v5125 = vunpack.c.h.b16 %v3986
    %v5126 = vunpack.c.l.b16 %v3987
    %v5127 = vunpack.c.h.b16 %v3987
    %v5128 = vunpack.c.l.b16 %v3988
    %v5129 = vunpack.c.h.b16 %v3988
    %v5130 = vunpack.c.l.b16 %v3989
    %v5131 = vunpack.c.h.b16 %v3989
    %v5132 = vunpack.c.l.b16 %v3990
    %v5133 = vunpack.c.h.b16 %v3990
    %v5134 = vunpack.c.l.b16 %v3991
    %v5135 = vunpack.c.h.b16 %v3991
    %v5136 = vunpack.c.l.b16 %v3992
    %v5137 = vunpack.c.h.b16 %v3992
    %v5138 = vunpack.c.l.b16 %v3993
    %v5139 = vunpack.c.h.b16 %v3993
    %v5140 = vunpack.c.l.b16 %v3994
    %v5141 = vunpack.c.h.b16 %v3994
    %v5142 = vunpack.c.l.b16 %v3995
    %v5143 = vunpack.c.h.b16 %v3995
    %v5144 = vunpack.c.l.b16 %v3996
    %v5145 = vunpack.c.h.b16 %v3996
    %v5146 = vunpack.c.l.b16 %v3997
    %v5147 = vunpack.c.h.b16 %v3997
    %v5148 = vunpack.c.l.b16 %v3998
    %v5149 = vunpack.c.h.b16 %v3998
    %v5150 = vunpack.c.l.b16 %v3999
    %v5151 = vunpack.c.h.b16 %v3999
    %v5152 = vunpack.c.l.b16 %v4000
    %v5153 = vunpack.c.h.b16 %v4000
    %v5154 = vunpack.c.l.b16 %v4001
    %v5155 = vunpack.c.h.b16 %v4001
    %v5156 = vunpack.c.l.b16 %v4002
    %v5157 = vunpack.c.h.b16 %v4002
    %v5158 = vunpack.c.l.b16 %v4003
    %v5159 = vunpack.c.h.b16 %v4003
    %v5160 = vunpack.c.l.b16 %v4004
    %v5161 = vunpack.c.h.b16 %v4004
    %v5162 = vunpack.c.l.b16 %v4005
    %v5163 = vunpack.c.h.b16 %v4005
    %v5164 = vunpack.c.l.b16 %v4006
    %v5165 = vunpack.c.h.b16 %v4006
    %v5166 = vunpack.c.l.b16 %v4007
    %v5167 = vunpack.c.h.b16 %v4007
    %v5168 = vunpack.c.l.b16 %v4008
    %v5169 = vunpack.c.h.b16 %v4008
    %v5170 = vunpack.c.l.b16 %v4009
    %v5171 = vunpack.c.h.b16 %v4009
    %v5172 = vunpack.c.l.b16 %v4010
    %v5173 = vunpack.c.h.b16 %v4010
    %v5174 = vunpack.c.l.b16 %v4011
    %v5175 = vunpack.c.h.b16 %v4011
    %v5176 = vunpack.c.l.b16 %v4012
    %v5177 = vunpack.c.h.b16 %v4012
    %v5178 = vunpack.c.l.b16 %v4013
    %v5179 = vunpack.c.h.b16 %v4013
    %v5180 = vunpack.c.l.b16 %v4014
    %v5181 = vunpack.c.h.b16 %v4014
    %v5182 = vunpack.c.l.b16 %v4015
    %v5183 = vunpack.c.h.b16 %v4015
    %v5184 = vunpack.c.l.b16 %v4016
    %v5185 = vunpack.c.h.b16 %v4016
    %v5186 = vunpack.c.l.b16 %v4017
    %v5187 = vunpack.c.h.b16 %v4017
    %v5188 = vunpack.c.l.b16 %v4018
    %v5189 = vunpack.c.h.b16 %v4018
    %v5190 = vunpack.c.l.b16 %v4019
    %v5191 = vunpack.c.h.b16 %v4019
    %v5192 = vunpack.c.l.b16 %v4020
    %v5193 = vunpack.c.h.b16 %v4020
    %v5194 = vunpack.c.l.b16 %v4021
    %v5195 = vunpack.c.h.b16 %v4021
    %v5196 = vunpack.c.l.b16 %v4022
    %v5197 = vunpack.c.h.b16 %v4022
    %v5198 = vunpack.c.l.b16 %v4023
    %v5199 = vunpack.c.h.b16 %v4023
    %v5200 = vunpack.c.l.b16 %v4024
    %v5201 = vunpack.c.h.b16 %v4024
    %v5202 = vunpack.c.l.b16 %v4025
    %v5203 = vunpack.c.h.b16 %v4025
    %v5204 = vunpack.c.l.b16 %v4026
    %v5205 = vunpack.c.h.b16 %v4026
    %v5206 = vunpack.c.l.b16 %v4027
    %v5207 = vunpack.c.h.b16 %v4027
    %v5208 = vunpack.c.l.b16 %v4028
    %v5209 = vunpack.c.h.b16 %v4028
    %v5210 = vunpack.c.l.b16 %v4029
    %v5211 = vunpack.c.h.b16 %v4029
    %v5212 = vunpack.c.l.b16 %v4030
    %v5213 = vunpack.c.h.b16 %v4030
    %v5214 = vunpack.c.l.b16 %v4031
    %v5215 = vunpack.c.h.b16 %v4031
    %v5216 = vunpack.c.l.b16 %v4032
    %v5217 = vunpack.c.h.b16 %v4032
    %v5218 = vunpack.c.l.b16 %v4033
    %v5219 = vunpack.c.h.b16 %v4033
    %v5220 = vunpack.c.l.b16 %v4034
    %v5221 = vunpack.c.h.b16 %v4034
    %v5222 = vunpack.c.l.b16 %v4035
    %v5223 = vunpack.c.h.b16 %v4035
    %v5224 = vunpack.c.l.b16 %v4036
    %v5225 = vunpack.c.h.b16 %v4036
    %v5226 = vunpack.c.l.b16 %v4037
    %v5227 = vunpack.c.h.b16 %v4037
    %v5228 = vunpack.c.l.b16 %v4038
    %v5229 = vunpack.c.h.b16 %v4038
    %v5230 = vunpack.c.l.b16 %v4039
    %v5231 = vunpack.c.h.b16 %v4039
    %v5232 = vunpack.c.l.b16 %v4040
    %v5233 = vunpack.c.h.b16 %v4040
    %v5234 = vunpack.c.l.b16 %v4041
    %v5235 = vunpack.c.h.b16 %v4041
    %v5236 = vunpack.c.l.b16 %v4042
    %v5237 = vunpack.c.h.b16 %v4042
    %v5238 = vunpack.c.l.b16 %v4043
    %v5239 = vunpack.c.h.b16 %v4043
    %v5240 = vunpack.c.l.b16 %v4044
    %v5241 = vunpack.c.h.b16 %v4044
    %v5242 = vunpack.c.l.b16 %v4045
    %v5243 = vunpack.c.h.b16 %v4045
    %v5244 = vunpack.c.l.b16 %v4046
    %v5245 = vunpack.c.h.b16 %v4046
    %v5246 = vunpack.c.l.b16 %v4047
    %v5247 = vunpack.c.h.b16 %v4047
    %v5248 = vunpack.c.l.b16 %v4048
    %v5249 = vunpack.c.h.b16 %v4048
    %v5250 = vunpack.c.l.b16 %v4049
    %v5251 = vunpack.c.h.b16 %v4049
    %v5252 = vunpack.c.l.b16 %v4050
    %v5253 = vunpack.c.h.b16 %v4050
    %v5254 = vunpack.c.l.b16 %v4051
    %v5255 = vunpack.c.h.b16 %v4051
    %v5256 = vunpack.c.l.b16 %v4052
    %v5257 = vunpack.c.h.b16 %v4052
    %v5258 = vunpack.c.l.b16 %v4053
    %v5259 = vunpack.c.h.b16 %v4053
    %v5260 = vunpack.c.l.b16 %v4054
    %v5261 = vunpack.c.h.b16 %v4054
    %v5262 = vunpack.c.l.b16 %v4055
    %v5263 = vunpack.c.h.b16 %v4055
    %v5264 = vunpack.c.l.b16 %v4056
    %v5265 = vunpack.c.h.b16 %v4056
    %v5266 = vunpack.c.l.b16 %v4057
    %v5267 = vunpack.c.h.b16 %v4057
    %v5268 = vunpack.c.l.b16 %v4058
    %v5269 = vunpack.c.h.b16 %v4058
    %v5270 = vunpack.c.l.b16 %v4059
    %v5271 = vunpack.c.h.b16 %v4059
    %v5272 = vunpack.c.l.b16 %v4060
    %v5273 = vunpack.c.h.b16 %v4060
    %v5274 = vunpack.c.l.b16 %v4061
    %v5275 = vunpack.c.h.b16 %v4061
    %v5276 = vunpack.c.l.b16 %v4062
    %v5277 = vunpack.c.h.b16 %v4062
    %v5278 = vunpack.c.l.b16 %v4063
    %v5279 = vunpack.c.h.b16 %v4063
    %v5280 = vunpack.c.l.b16 %v4064
    %v5281 = vunpack.c.h.b16 %v4064
    %v5282 = vunpack.c.l.b16 %v4065
    %v5283 = vunpack.c.h.b16 %v4065
    %v5284 = vunpack.c.l.b16 %v4066
    %v5285 = vunpack.c.h.b16 %v4066
    %v5286 = vunpack.c.l.b16 %v4067
    %v5287 = vunpack.c.h.b16 %v4067
    %v5288 = vunpack.c.l.b16 %v4068
    %v5289 = vunpack.c.h.b16 %v4068
    %v5290 = vunpack.c.l.b16 %v4069
    %v5291 = vunpack.c.h.b16 %v4069
    %v5292 = vunpack.c.l.b16 %v4070
    %v5293 = vunpack.c.h.b16 %v4070
    %v5294 = vunpack.c.l.b16 %v4071
    %v5295 = vunpack.c.h.b16 %v4071
    %v5296 = vunpack.c.l.b16 %v4072
    %v5297 = vunpack.c.h.b16 %v4072
    %v5298 = vunpack.c.l.b16 %v4073
    %v5299 = vunpack.c.h.b16 %v4073
    %v5300 = vunpack.c.l.b16 %v4074
    %v5301 = vunpack.c.h.b16 %v4074
    %v5302 = vunpack.c.l.b16 %v4075
    %v5303 = vunpack.c.h.b16 %v4075
    %v5304 = vunpack.c.l.b16 %v4076
    %v5305 = vunpack.c.h.b16 %v4076
    %v5306 = vunpack.c.l.b16 %v4077
    %v5307 = vunpack.c.h.b16 %v4077
    %v5308 = vunpack.c.l.b16 %v4078
    %v5309 = vunpack.c.h.b16 %v4078
    %v5310 = vunpack.c.l.b16 %v4079
    %v5311 = vunpack.c.h.b16 %v4079
    %v5312 = vunpack.c.l.b16 %v4080
    %v5313 = vunpack.c.h.b16 %v4080
    %v5314 = vunpack.c.l.b16 %v4081
    %v5315 = vunpack.c.h.b16 %v4081
    %v5316 = vunpack.c.l.b16 %v4082
    %v5317 = vunpack.c.h.b16 %v4082
    %v5318 = vunpack.c.l.b16 %v4083
    %v5319 = vunpack.c.h.b16 %v4083
    %v5320 = vunpack.c.l.b16 %v4084
    %v5321 = vunpack.c.h.b16 %v4084
    %v5322 = vunpack.c.l.b16 %v4085
    %v5323 = vunpack.c.h.b16 %v4085
    %v5324 = vunpack.c.l.b16 %v4086
    %v5325 = vunpack.c.h.b16 %v4086
    %v5326 = vunpack.c.l.b16 %v4087
    %v5327 = vunpack.c.h.b16 %v4087
    %v5328 = vunpack.c.l.b16 %v4088
    %v5329 = vunpack.c.h.b16 %v4088
    %v5330 = vunpack.c.l.b16 %v4089
    %v5331 = vunpack.c.h.b16 %v4089
    %v5332 = vunpack.c.l.b16 %v4090
    %v5333 = vunpack.c.h.b16 %v4090
    %v5334 = vunpack.c.l.b16 %v4091
    %v5335 = vunpack.c.h.b16 %v4091
    %v5336 = vunpack.c.l.b16 %v4092
    %v5337 = vunpack.c.h.b16 %v4092
    %v5338 = vunpack.c.l.b16 %v4093
    %v5339 = vunpack.c.h.b16 %v4093
    %v5340 = vunpack.c.l.b16 %v4094
    %v5341 = vunpack.c.h.b16 %v4094
    %v5342 = vunpack.c.l.b16 %v4095
    %v5343 = vunpack.c.h.b16 %v4095
    %v5344 = vunpack.c.l.b16 %v4096
    %v5345 = vunpack.c.h.b16 %v4096
    %v5346 = vunpack.c.l.b16 %v4097
    %v5347 = vunpack.c.h.b16 %v4097
    %v5348 = vunpack.c.l.b16 %v4098
    %v5349 = vunpack.c.h.b16 %v4098
    %v5350 = vunpack.c.l.b16 %v4099
    %v5351 = vunpack.c.h.b16 %v4099
    %v5352 = vunpack.c.l.b16 %v4100
    %v5353 = vunpack.c.h.b16 %v4100
    %v5354 = vunpack.c.l.b16 %v4101
    %v5355 = vunpack.c.h.b16 %v4101
    %v5356 = vunpack.c.l.b16 %v4102
    %v5357 = vunpack.c.h.b16 %v4102
    %v5358 = vunpack.c.l.b16 %v4103
    %v5359 = vunpack.c.h.b16 %v4103
    %v5360 = vunpack.c.l.b16 %v4104
    %v5361 = vunpack.c.h.b16 %v4104
    %v5362 = vunpack.c.l.b16 %v4105
    %v5363 = vunpack.c.h.b16 %v4105
    %v5364 = vunpack.c.l.b16 %v4106
    %v5365 = vunpack.c.h.b16 %v4106
    %v5366 = vunpack.c.l.b16 %v4107
    %v5367 = vunpack.c.h.b16 %v4107
    %v5368 = vunpack.c.l.b16 %v4108
    %v5369 = vunpack.c.h.b16 %v4108
    %v5370 = vunpack.c.l.b16 %v4109
    %v5371 = vunpack.c.h.b16 %v4109
    %v5372 = vunpack.c.l.b16 %v4110
    %v5373 = vunpack.c.h.b16 %v4110
    %v5374 = vunpack.c.l.b16 %v4111
    %v5375 = vunpack.c.h.b16 %v4111
    %v5376 = vunpack.c.l.b16 %v4112
    %v5377 = vunpack.c.h.b16 %v4112
    %v5378 = vunpack.c.l.b16 %v4113
    %v5379 = vunpack.c.h.b16 %v4113
    %v5380 = vunpack.c.l.b16 %v4114
    %v5381 = vunpack.c.h.b16 %v4114
    %v5382 = vunpack.c.l.b16 %v4115
    %v5383 = vunpack.c.h.b16 %v4115
    %v5384 = vunpack.c.l.b16 %v4116
    %v5385 = vunpack.c.h.b16 %v4116
    %v5386 = vunpack.c.l.b16 %v4117
    %v5387 = vunpack.c.h.b16 %v4117
    %v5388 = vunpack.c.l.b16 %v4118
    %v5389 = vunpack.c.h.b16 %v4118
    %v5390 = vunpack.c.l.b16 %v4119
    %v5391 = vunpack.c.h.b16 %v4119
    %v5392 = vunpack.c.l.b16 %v4120
    %v5393 = vunpack.c.h.b16 %v4120
    %v5394 = vunpack.c.l.b16 %v4121
    %v5395 = vunpack.c.h.b16 %v4121
    %v5396 = vunpack.c.l.b16 %v4122
    %v5397 = vunpack.c.h.b16 %v4122
    %v5398 = vunpack.c.l.b16 %v4123
    %v5399 = vunpack.c.h.b16 %v4123
    %v5400 = vunpack.c.l.b16 %v4124
    %v5401 = vunpack.c.h.b16 %v4124
    %v5402 = vunpack.c.l.b16 %v4125
    %v5403 = vunpack.c.h.b16 %v4125
    %v5404 = vunpack.c.l.b16 %v4126
    %v5405 = vunpack.c.h.b16 %v4126
    %v5406 = vunpack.c.l.b16 %v4127
    %v5407 = vunpack.c.h.b16 %v4127
    %v5408 = vunpack.c.l.b16 %v4128
    %v5409 = vunpack.c.h.b16 %v4128
    %v5410 = vunpack.c.l.b16 %v4129
    %v5411 = vunpack.c.h.b16 %v4129
    %v5412 = vunpack.c.l.b16 %v4130
    %v5413 = vunpack.c.h.b16 %v4130
    %v5414 = vunpack.c.l.b16 %v4131
    %v5415 = vunpack.c.h.b16 %v4131
    %v5416 = vunpack.c.l.b16 %v4132
    %v5417 = vunpack.c.h.b16 %v4132
    %v5418 = vunpack.c.l.b16 %v4133
    %v5419 = vunpack.c.h.b16 %v4133
    %v5420 = vunpack.c.l.b16 %v4134
    %v5421 = vunpack.c.h.b16 %v4134
    %v5422 = vunpack.c.l.b16 %v4135
    %v5423 = vunpack.c.h.b16 %v4135
    %v5424 = vunpack.c.l.b16 %v4136
    %v5425 = vunpack.c.h.b16 %v4136
    %v5426 = vunpack.c.l.b16 %v4137
    %v5427 = vunpack.c.h.b16 %v4137
    %v5428 = vunpack.c.l.b16 %v4138
    %v5429 = vunpack.c.h.b16 %v4138
    %v5430 = vunpack.c.l.b16 %v4139
    %v5431 = vunpack.c.h.b16 %v4139
    %v5432 = vunpack.c.l.b16 %v4140
    %v5433 = vunpack.c.h.b16 %v4140
    %v5434 = vunpack.c.l.b16 %v4141
    %v5435 = vunpack.c.h.b16 %v4141
    %v5436 = vunpack.c.l.b16 %v4142
    %v5437 = vunpack.c.h.b16 %v4142
    %v5438 = vunpack.c.l.b16 %v4143
    %v5439 = vunpack.c.h.b16 %v4143
    %v5440 = vunpack.c.l.b16 %v4144
    %v5441 = vunpack.c.h.b16 %v4144
    %v5442 = vunpack.c.l.b16 %v4145
    %v5443 = vunpack.c.h.b16 %v4145
    %v5444 = vunpack.c.l.b16 %v4146
    %v5445 = vunpack.c.h.b16 %v4146
    %v5446 = vunpack.c.l.b16 %v4147
    %v5447 = vunpack.c.h.b16 %v4147
    %v5448 = vunpack.c.l.b16 %v4148
    %v5449 = vunpack.c.h.b16 %v4148
    %v5450 = vunpack.c.l.b16 %v4149
    %v5451 = vunpack.c.h.b16 %v4149
    %v5452 = vunpack.c.l.b16 %v4150
    %v5453 = vunpack.c.h.b16 %v4150
    %v5454 = vunpack.c.l.b16 %v4151
    %v5455 = vunpack.c.h.b16 %v4151
    %v5456 = vunpack.c.l.b16 %v4152
    %v5457 = vunpack.c.h.b16 %v4152
    %v5458 = vunpack.c.l.b16 %v4153
    %v5459 = vunpack.c.h.b16 %v4153
    %v5460 = vunpack.c.l.b16 %v4154
    %v5461 = vunpack.c.h.b16 %v4154
    %v5462 = vunpack.c.l.b16 %v4155
    %v5463 = vunpack.c.h.b16 %v4155
    %v5464 = vunpack.c.l.b16 %v4156
    %v5465 = vunpack.c.h.b16 %v4156
    %v5466 = vunpack.c.l.b16 %v4157
    %v5467 = vunpack.c.h.b16 %v4157
    %v5468 = vunpack.c.l.b16 %v4158
    %v5469 = vunpack.c.h.b16 %v4158
    %v5470 = vunpack.c.l.b16 %v4159
    %v5471 = vunpack.c.h.b16 %v4159
    %v5472 = vunpack.c.l.b16 %v4160
    %v5473 = vunpack.c.h.b16 %v4160
    %v5474 = vunpack.c.l.b16 %v4161
    %v5475 = vunpack.c.h.b16 %v4161
    %v5476 = vunpack.c.l.b16 %v4162
    %v5477 = vunpack.c.h.b16 %v4162
    %v5478 = vunpack.c.l.b16 %v4163
    %v5479 = vunpack.c.h.b16 %v4163
    %v5480 = vunpack.c.l.b16 %v4164
    %v5481 = vunpack.c.h.b16 %v4164
    %v5482 = vunpack.c.l.b16 %v4165
    %v5483 = vunpack.c.h.b16 %v4165
    %v5484 = vunpack.c.l.b16 %v4166
    %v5485 = vunpack.c.h.b16 %v4166
    %v5486 = vunpack.c.l.b16 %v4167
    %v5487 = vunpack.c.h.b16 %v4167
    %v5488 = vunpack.c.l.b16 %v4168
    %v5489 = vunpack.c.h.b16 %v4168
    %v5490 = vunpack.c.l.b16 %v4169
    %v5491 = vunpack.c.h.b16 %v4169
    %v5492 = vunpack.c.l.b16 %v4170
    %v5493 = vunpack.c.h.b16 %v4170
    %v5494 = vunpack.c.l.b16 %v4171
    %v5495 = vunpack.c.h.b16 %v4171
    %v5496 = vunpack.c.l.b16 %v4172
    %v5497 = vunpack.c.h.b16 %v4172
    %v5498 = vunpack.c.l.b16 %v4173
    %v5499 = vunpack.c.h.b16 %v4173
    %v5500 = vunpack.c.l.b16 %v4174
    %v5501 = vunpack.c.h.b16 %v4174
    %v5502 = vunpack.c.l.b16 %v4175
    %v5503 = vunpack.c.h.b16 %v4175
    %v5504 = vunpack.c.l.b16 %v4176
    %v5505 = vunpack.c.h.b16 %v4176
    %v5506 = vunpack.c.l.b16 %v4177
    %v5507 = vunpack.c.h.b16 %v4177
    %v5508 = vunpack.c.l.b16 %v4178
    %v5509 = vunpack.c.h.b16 %v4178
    %v5510 = vunpack.c.l.b16 %v4179
    %v5511 = vunpack.c.h.b16 %v4179
    %v5512 = vunpack.c.l.b16 %v4180
    %v5513 = vunpack.c.h.b16 %v4180
    %v5514 = vunpack.c.l.b16 %v4181
    %v5515 = vunpack.c.h.b16 %v4181
    %v5516 = vunpack.c.l.b16 %v4182
    %v5517 = vunpack.c.h.b16 %v4182
    %v5518 = vunpack.c.l.b16 %v4183
    %v5519 = vunpack.c.h.b16 %v4183
    %v5520 = vunpack.c.l.b16 %v4184
    %v5521 = vunpack.c.h.b16 %v4184
    %v5522 = vunpack.c.l.b16 %v4185
    %v5523 = vunpack.c.h.b16 %v4185
    %v5524 = vunpack.c.l.b16 %v4186
    %v5525 = vunpack.c.h.b16 %v4186
    %v5526 = vunpack.c.l.b16 %v4187
    %v5527 = vunpack.c.h.b16 %v4187
    %v5528 = vunpack.c.l.b16 %v4188
    %v5529 = vunpack.c.h.b16 %v4188
    %v5530 = vunpack.c.l.b16 %v4189
    %v5531 = vunpack.c.h.b16 %v4189
    %v5532 = vunpack.c.l.b16 %v4190
    %v5533 = vunpack.c.h.b16 %v4190
    %v5534 = vunpack.c.l.b16 %v4191
    %v5535 = vunpack.c.h.b16 %v4191
    %v5536 = vunpack.c.l.b16 %v4192
    %v5537 = vunpack.c.h.b16 %v4192
    %v5538 = vunpack.c.l.b16 %v4193
    %v5539 = vunpack.c.h.b16 %v4193
    %v5540 = vunpack.c.l.b16 %v4194
    %v5541 = vunpack.c.h.b16 %v4194
    %v5542 = vunpack.c.l.b16 %v4195
    %v5543 = vunpack.c.h.b16 %v4195
    %v5544 = vunpack.c.l.b16 %v4196
    %v5545 = vunpack.c.h.b16 %v4196
    %v5546 = vunpack.c.l.b16 %v4197
    %v5547 = vunpack.c.h.b16 %v4197
    %v5548 = vunpack.c.l.b16 %v4198
    %v5549 = vunpack.c.h.b16 %v4198
    %v5550 = vunpack.c.l.b16 %v4199
    %v5551 = vunpack.c.h.b16 %v4199
    %v5552 = vunpack.c.l.b16 %v4200
    %v5553 = vunpack.c.h.b16 %v4200
    %v5554 = vunpack.c.l.b16 %v4201
    %v5555 = vunpack.c.h.b16 %v4201
    %v5556 = vunpack.c.l.b16 %v4202
    %v5557 = vunpack.c.h.b16 %v4202
    %v5558 = vunpack.c.l.b16 %v4203
    %v5559 = vunpack.c.h.b16 %v4203
    %v5560 = vunpack.c.l.b16 %v4204
    %v5561 = vunpack.c.h.b16 %v4204
    %v5562 = vunpack.c.l.b16 %v4205
    %v5563 = vunpack.c.h.b16 %v4205
    %v5564 = vunpack.c.l.b16 %v4206
    %v5565 = vunpack.c.h.b16 %v4206
    %v5566 = vunpack.c.l.b16 %v4207
    %v5567 = vunpack.c.h.b16 %v4207
    %v5568 = vunpack.c.l.b16 %v4208
    %v5569 = vunpack.c.h.b16 %v4208
    %v5570 = vunpack.c.l.b16 %v4209
    %v5571 = vunpack.c.h.b16 %v4209
    %v5572 = vunpack.c.l.b16 %v4210
    %v5573 = vunpack.c.h.b16 %v4210
    %v5574 = vunpack.c.l.b16 %v4211
    %v5575 = vunpack.c.h.b16 %v4211
    %v5576 = vunpack.c.l.b16 %v4212
    %v5577 = vunpack.c.h.b16 %v4212
    %v5578 = vunpack.c.l.b16 %v4213
    %v5579 = vunpack.c.h.b16 %v4213
    %v5580 = vunpack.c.l.b16 %v4214
    %v5581 = vunpack.c.h.b16 %v4214
    %v5582 = vunpack.c.l.b16 %v4215
    %v5583 = vunpack.c.h.b16 %v4215
    %v5584 = vunpack.c.l.b16 %v4216
    %v5585 = vunpack.c.h.b16 %v4216
    %v5586 = vunpack.c.l.b16 %v4217
    %v5587 = vunpack.c.h.b16 %v4217
    %v5588 = vunpack.c.l.b16 %v4218
    %v5589 = vunpack.c.h.b16 %v4218
    %v5590 = vunpack.c.l.b16 %v4219
    %v5591 = vunpack.c.h.b16 %v4219
    %v5592 = vunpack.c.l.b16 %v4220
    %v5593 = vunpack.c.h.b16 %v4220
    %v5594 = vunpack.c.l.b16 %v4221
    %v5595 = vunpack.c.h.b16 %v4221
    %v5596 = vunpack.c.l.b16 %v4222
    %v5597 = vunpack.c.h.b16 %v4222
    %v5598 = vunpack.c.l.b16 %v4223
    %v5599 = vunpack.c.h.b16 %v4223
    %v5600 = vunpack.c.l.b16 %v4224
    %v5601 = vunpack.c.h.b16 %v4224
    %v5602 = vunpack.c.l.b16 %v4225
    %v5603 = vunpack.c.h.b16 %v4225
    %v5604 = vunpack.c.l.b16 %v4226
    %v5605 = vunpack.c.h.b16 %v4226
    %v5606 = vunpack.c.l.b16 %v4227
    %v5607 = vunpack.c.h.b16 %v4227
    %v5608 = vunpack.c.l.b16 %v4228
    %v5609 = vunpack.c.h.b16 %v4228
    %v5610 = vunpack.c.l.b16 %v4229
    %v5611 = vunpack.c.h.b16 %v4229
    %v5612 = vunpack.c.l.b16 %v4230
    %v5613 = vunpack.c.h.b16 %v4230
    %v5614 = vunpack.c.l.b16 %v4231
    %v5615 = vunpack.c.h.b16 %v4231
    %v5616 = vunpack.c.l.b16 %v4232
    %v5617 = vunpack.c.h.b16 %v4232
    %v5618 = vunpack.c.l.b16 %v4233
    %v5619 = vunpack.c.h.b16 %v4233
    %v5620 = vunpack.c.l.b16 %v4234
    %v5621 = vunpack.c.h.b16 %v4234
    %v5622 = vunpack.c.l.b16 %v4235
    %v5623 = vunpack.c.h.b16 %v4235
    %v5624 = vunpack.c.l.b16 %v4236
    %v5625 = vunpack.c.h.b16 %v4236
    %v5626 = vunpack.c.l.b16 %v4237
    %v5627 = vunpack.c.h.b16 %v4237
    %v5628 = vunpack.c.l.b16 %v4238
    %v5629 = vunpack.c.h.b16 %v4238
    %v5630 = vunpack.c.l.b16 %v4239
    %v5631 = vunpack.c.h.b16 %v4239
    %v5632 = vunpack.c.l.b16 %v4240
    %v5633 = vunpack.c.h.b16 %v4240
    %v5634 = vunpack.c.l.b16 %v4241
    %v5635 = vunpack.c.h.b16 %v4241
    %v5636 = vunpack.c.l.b16 %v4242
    %v5637 = vunpack.c.h.b16 %v4242
    %v5638 = vunpack.c.l.b16 %v4243
    %v5639 = vunpack.c.h.b16 %v4243
    %v5640 = vunpack.c.l.b16 %v4244
    %v5641 = vunpack.c.h.b16 %v4244
    %v5642 = vunpack.c.l.b16 %v4245
    %v5643 = vunpack.c.h.b16 %v4245
    %v5644 = vunpack.c.l.b16 %v4246
    %v5645 = vunpack.c.h.b16 %v4246
    %v5646 = vunpack.c.l.b16 %v4247
    %v5647 = vunpack.c.h.b16 %v4247
    %v5648 = vunpack.c.l.b16 %v4248
    %v5649 = vunpack.c.h.b16 %v4248
    %v5650 = vunpack.c.l.b16 %v4249
    %v5651 = vunpack.c.h.b16 %v4249
    %v5652 = vunpack.c.l.b16 %v4250
    %v5653 = vunpack.c.h.b16 %v4250
    %v5654 = vunpack.c.l.b16 %v4251
    %v5655 = vunpack.c.h.b16 %v4251
    %v5656 = vunpack.c.l.b16 %v4252
    %v5657 = vunpack.c.h.b16 %v4252
    %v5658 = vunpack.c.l.b16 %v4253
    %v5659 = vunpack.c.h.b16 %v4253
    %v5660 = vunpack.c.l.b16 %v4254
    %v5661 = vunpack.c.h.b16 %v4254
    %v5662 = vunpack.c.l.b16 %v4255
    %v5663 = vunpack.c.h.b16 %v4255
    %v5664 = vunpack.c.l.b16 %v4256
    %v5665 = vunpack.c.h.b16 %v4256
    %v5666 = vunpack.c.l.b16 %v4257
    %v5667 = vunpack.c.h.b16 %v4257
    %v5668 = vunpack.c.l.b16 %v4258
    %v5669 = vunpack.c.h.b16 %v4258
    %v5670 = vunpack.c.l.b16 %v4259
    %v5671 = vunpack.c.h.b16 %v4259
    %v5672 = vunpack.c.l.b16 %v4260
    %v5673 = vunpack.c.h.b16 %v4260
    %v5674 = vunpack.c.l.b16 %v4261
    %v5675 = vunpack.c.h.b16 %v4261
    %v5676 = vunpack.c.l.b16 %v4262
    %v5677 = vunpack.c.h.b16 %v4262
    %v5678 = vunpack.c.l.b16 %v4263
    %v5679 = vunpack.c.h.b16 %v4263
    %v5680 = vunpack.c.l.b16 %v4264
    %v5681 = vunpack.c.h.b16 %v4264
    %v5682 = vunpack.c.l.b16 %v4265
    %v5683 = vunpack.c.h.b16 %v4265
    %v5684 = vunpack.c.l.b16 %v4266
    %v5685 = vunpack.c.h.b16 %v4266
    %v5686 = vunpack.c.l.b16 %v4267
    %v5687 = vunpack.c.h.b16 %v4267
    %v5688 = vunpack.c.l.b16 %v4268
    %v5689 = vunpack.c.h.b16 %v4268
    %v5690 = vunpack.c.l.b16 %v4269
    %v5691 = vunpack.c.h.b16 %v4269
    %v5692 = vunpack.c.l.b16 %v4270
    %v5693 = vunpack.c.h.b16 %v4270
    %v5694 = vunpack.c.l.b16 %v4271
    %v5695 = vunpack.c.h.b16 %v4271
    %v5696 = vunpack.c.l.b16 %v4272
    %v5697 = vunpack.c.h.b16 %v4272
    %v5698 = vunpack.c.l.b16 %v4273
    %v5699 = vunpack.c.h.b16 %v4273
    %v5700 = vunpack.c.l.b16 %v4274
    %v5701 = vunpack.c.h.b16 %v4274
    %v5702 = vunpack.c.l.b16 %v4275
    %v5703 = vunpack.c.h.b16 %v4275
    %v5704 = vunpack.c.l.b16 %v4276
    %v5705 = vunpack.c.h.b16 %v4276
    %v5706 = vunpack.c.l.b16 %v4277
    %v5707 = vunpack.c.h.b16 %v4277
    %v5708 = vunpack.c.l.b16 %v4278
    %v5709 = vunpack.c.h.b16 %v4278
    %v5710 = vunpack.c.l.b16 %v4279
    %v5711 = vunpack.c.h.b16 %v4279
    %v5712 = vunpack.c.l.b16 %v4280
    %v5713 = vunpack.c.h.b16 %v4280
    %v5714 = vunpack.c.l.b16 %v4281
    %v5715 = vunpack.c.h.b16 %v4281
    %v5716 = vunpack.c.l.b16 %v4282
    %v5717 = vunpack.c.h.b16 %v4282
    %v5718 = vunpack.c.l.b16 %v4283
    %v5719 = vunpack.c.h.b16 %v4283
    %v5720 = vunpack.c.l.b16 %v4284
    %v5721 = vunpack.c.h.b16 %v4284
    %v5722 = vunpack.c.l.b16 %v4285
    %v5723 = vunpack.c.h.b16 %v4285
    %v5724 = vunpack.c.l.b16 %v4286
    %v5725 = vunpack.c.h.b16 %v4286
    %v5726 = vunpack.c.l.b16 %v4287
    %v5727 = vunpack.c.h.b16 %v4287
    %v5728 = vunpack.c.l.b16 %v4288
    %v5729 = vunpack.c.h.b16 %v4288
    %v5730 = vunpack.c.l.b16 %v4289
    %v5731 = vunpack.c.h.b16 %v4289
    %v5732 = vunpack.c.l.b16 %v4290
    %v5733 = vunpack.c.h.b16 %v4290
    %v5734 = vunpack.c.l.b16 %v4291
    %v5735 = vunpack.c.h.b16 %v4291
    %v5736 = vunpack.c.l.b16 %v4292
    %v5737 = vunpack.c.h.b16 %v4292
    %v5738 = vunpack.c.l.b16 %v4293
    %v5739 = vunpack.c.h.b16 %v4293
    %v5740 = vunpack.c.l.b16 %v4294
    %v5741 = vunpack.c.h.b16 %v4294
    %v5742 = vunpack.c.l.b16 %v4295
    %v5743 = vunpack.c.h.b16 %v4295
    %v5744 = vunpack.c.l.b16 %v4296
    %v5745 = vunpack.c.h.b16 %v4296
    %v5746 = vunpack.c.l.b16 %v4297
    %v5747 = vunpack.c.h.b16 %v4297
    %v5748 = vunpack.c.l.b16 %v4298
    %v5749 = vunpack.c.h.b16 %v4298
    %v5750 = vunpack.c.l.b16 %v4299
    %v5751 = vunpack.c.h.b16 %v4299
    %v5752 = vunpack.c.l.b16 %v4300
    %v5753 = vunpack.c.h.b16 %v4300
    %v5754 = vunpack.c.l.b16 %v4301
    %v5755 = vunpack.c.h.b16 %v4301
    %v5756 = vunpack.c.l.b16 %v4302
    %v5757 = vunpack.c.h.b16 %v4302
    %v5758 = vunpack.c.l.b16 %v4303
    %v5759 = vunpack.c.h.b16 %v4303
    %v5760 = vunpack.c.l.b16 %v4304
    %v5761 = vunpack.c.h.b16 %v4304
    %v5762 = vunpack.c.l.b16 %v4305
    %v5763 = vunpack.c.h.b16 %v4305
    %v5764 = vunpack.c.l.b16 %v4306
    %v5765 = vunpack.c.h.b16 %v4306
    %v5766 = vunpack.c.l.b16 %v4307
    %v5767 = vunpack.c.h.b16 %v4307
    %v5768 = vunpack.c.l.b16 %v4308
    %v5769 = vunpack.c.h.b16 %v4308
    %v5770 = vunpack.c.l.b16 %v4309
    %v5771 = vunpack.c.h.b16 %v4309
    %v5772 = vunpack.c.l.b16 %v4310
    %v5773 = vunpack.c.h.b16 %v4310
    %v5774 = vunpack.c.l.b16 %v4311
    %v5775 = vunpack.c.h.b16 %v4311
    %v5776 = vunpack.c.l.b16 %v4312
    %v5777 = vunpack.c.h.b16 %v4312
    %v5778 = vunpack.c.l.b16 %v4313
    %v5779 = vunpack.c.h.b16 %v4313
    %v5780 = vunpack.c.l.b16 %v4314
    %v5781 = vunpack.c.h.b16 %v4314
    %v5782 = vunpack.c.l.b16 %v4315
    %v5783 = vunpack.c.h.b16 %v4315
    %v5784 = vunpack.c.l.b16 %v4316
    %v5785 = vunpack.c.h.b16 %v4316
    %v5786 = vunpack.c.l.b16 %v4317
    %v5787 = vunpack.c.h.b16 %v4317
    %v5788 = vunpack.c.l.b16 %v4318
    %v5789 = vunpack.c.h.b16 %v4318
    %v5790 = vunpack.c.l.b16 %v4319
    %v5791 = vunpack.c.h.b16 %v4319
    %v5792 = vunpack.c.l.b16 %v4320
    %v5793 = vunpack.c.h.b16 %v4320
    %v5794 = vunpack.c.l.b16 %v4321
    %v5795 = vunpack.c.h.b16 %v4321
    %v5796 = vunpack.c.l.b16 %v4322
    %v5797 = vunpack.c.h.b16 %v4322
    %v5798 = vunpack.c.l.b16 %v4323
    %v5799 = vunpack.c.h.b16 %v4323
    %v5800 = vunpack.c.l.b16 %v4324
    %v5801 = vunpack.c.h.b16 %v4324
    %v5802 = vunpack.c.l.b16 %v4325
    %v5803 = vunpack.c.h.b16 %v4325
    %v5804 = vunpack.c.l.b16 %v4326
    %v5805 = vunpack.c.h.b16 %v4326
    %v5806 = vunpack.c.l.b16 %v4327
    %v5807 = vunpack.c.h.b16 %v4327
    %v5808 = vunpack.c.l.b16 %v4328
    %v5809 = vunpack.c.h.b16 %v4328
    %v5810 = vunpack.c.l.b16 %v4329
    %v5811 = vunpack.c.h.b16 %v4329
    %v5812 = vunpack.c.l.b16 %v4330
    %v5813 = vunpack.c.h.b16 %v4330
    %v5814 = vunpack.c.l.b16 %v4331
    %v5815 = vunpack.c.h.b16 %v4331
    %v5816 = vunpack.c.l.b16 %v4332
    %v5817 = vunpack.c.h.b16 %v4332
    %v5818 = vunpack.c.l.b16 %v4333
    %v5819 = vunpack.c.h.b16 %v4333
    %v5820 = vunpack.c.l.b16 %v4334
    %v5821 = vunpack.c.h.b16 %v4334
    %v5822 = vunpack.c.l.b16 %v4335
    %v5823 = vunpack.c.h.b16 %v4335
    %v5824 = vunpack.c.l.b16 %v4336
    %v5825 = vunpack.c.h.b16 %v4336
    %v5826 = vunpack.c.l.b16 %v4337
    %v5827 = vunpack.c.h.b16 %v4337
    %v5828 = vunpack.c.l.b16 %v4338
    %v5829 = vunpack.c.h.b16 %v4338
    %v5830 = vunpack.c.l.b16 %v4339
    %v5831 = vunpack.c.h.b16 %v4339
    %v5832 = vunpack.c.l.b16 %v4340
    %v5833 = vunpack.c.h.b16 %v4340
    %v5834 = vunpack.c.l.b16 %v4341
    %v5835 = vunpack.c.h.b16 %v4341
    %v5836 = vunpack.c.l.b16 %v4342
    %v5837 = vunpack.c.h.b16 %v4342
    %v5838 = vunpack.c.l.b16 %v4343
    %v5839 = vunpack.c.h.b16 %v4343
    %v5840 = vunpack.c.l.b16 %v4344
    %v5841 = vunpack.c.h.b16 %v4344
    %v5842 = vunpack.c.l.b16 %v4345
    %v5843 = vunpack.c.h.b16 %v4345
    %v5844 = vunpack.c.l.b16 %v4346
    %v5845 = vunpack.c.h.b16 %v4346
    %v5846 = vunpack.c.l.b16 %v4347
    %v5847 = vunpack.c.h.b16 %v4347
    %v5848 = vunpack.c.l.b16 %v4348
    %v5849 = vunpack.c.h.b16 %v4348
    %v5850 = vunpack.c.l.b16 %v4349
    %v5851 = vunpack.c.h.b16 %v4349
    %v5852 = vunpack.c.l.b16 %v4350
    %v5853 = vunpack.c.h.b16 %v4350
    %v5854 = vunpack.c.l.b16 %v4351
    %v5855 = vunpack.c.h.b16 %v4351
    %v5856 = vunpack.c.l.b16 %v4352
    %v5857 = vunpack.c.h.b16 %v4352
    %v5858 = vunpack.c.l.b16 %v4353
    %v5859 = vunpack.c.h.b16 %v4353
    %v5860 = vunpack.c.l.b16 %v4354
    %v5861 = vunpack.c.h.b16 %v4354
    %v5862 = vunpack.c.l.b16 %v4355
    %v5863 = vunpack.c.h.b16 %v4355
    %v5864 = vunpack.c.l.b16 %v4356
    %v5865 = vunpack.c.h.b16 %v4356
    %v5866 = vunpack.c.l.b16 %v4357
    %v5867 = vunpack.c.h.b16 %v4357
    %v5868 = vunpack.c.l.b16 %v4358
    %v5869 = vunpack.c.h.b16 %v4358
    %v5870 = vunpack.c.l.b16 %v4359
    %v5871 = vunpack.c.h.b16 %v4359
    %v5872 = vunpack.c.l.b16 %v4360
    %v5873 = vunpack.c.h.b16 %v4360
    %v5874 = vunpack.c.l.b16 %v4361
    %v5875 = vunpack.c.h.b16 %v4361
    %v5876 = vunpack.c.l.b16 %v4362
    %v5877 = vunpack.c.h.b16 %v4362
    %v5878 = vunpack.c.l.b16 %v4363
    %v5879 = vunpack.c.h.b16 %v4363
    %v5880 = vunpack.c.l.b16 %v4364
    %v5881 = vunpack.c.h.b16 %v4364
    %v5882 = vunpack.c.l.b16 %v4365
    %v5883 = vunpack.c.h.b16 %v4365
    %v5884 = vunpack.c.l.b16 %v4366
    %v5885 = vunpack.c.h.b16 %v4366
    %v5886 = vunpack.c.l.b16 %v4367
    %v5887 = vunpack.c.h.b16 %v4367
    %v5888 = vunpack.c.l.b16 %v4368
    %v5889 = vunpack.c.h.b16 %v4368
    %v5890 = vunpack.c.l.b16 %v4369
    %v5891 = vunpack.c.h.b16 %v4369
    %v5892 = vunpack.c.l.b16 %v4370
    %v5893 = vunpack.c.h.b16 %v4370
    %v5894 = vunpack.c.l.b16 %v4371
    %v5895 = vunpack.c.h.b16 %v4371
    %v5896 = vunpack.c.l.b16 %v4372
    %v5897 = vunpack.c.h.b16 %v4372
    %v5898 = vunpack.c.l.b16 %v4373
    %v5899 = vunpack.c.h.b16 %v4373
    %v5900 = vunpack.c.l.b16 %v4374
    %v5901 = vunpack.c.h.b16 %v4374
    %v5902 = vunpack.c.l.b16 %v4375
    %v5903 = vunpack.c.h.b16 %v4375
    %v5904 = vunpack.c.l.b16 %v4376
    %v5905 = vunpack.c.h.b16 %v4376
    %v5906 = vunpack.c.l.b16 %v4377
    %v5907 = vunpack.c.h.b16 %v4377
    %v5908 = vunpack.c.l.b16 %v4378
    %v5909 = vunpack.c.h.b16 %v4378
    %v5910 = vunpack.c.l.b16 %v4379
    %v5911 = vunpack.c.h.b16 %v4379
    %v5912 = vunpack.c.l.b16 %v4380
    %v5913 = vunpack.c.h.b16 %v4380
    %v5914 = vunpack.c.l.b16 %v4381
    %v5915 = vunpack.c.h.b16 %v4381
    %v5916 = vunpack.c.l.b16 %v4382
    %v5917 = vunpack.c.h.b16 %v4382
    %v5918 = vunpack.c.l.b16 %v4383
    %v5919 = vunpack.c.h.b16 %v4383
    %v5920 = vunpack.c.l.b16 %v4384
    %v5921 = vunpack.c.h.b16 %v4384
    %v5922 = vunpack.c.l.b16 %v4385
    %v5923 = vunpack.c.h.b16 %v4385
    %v5924 = vunpack.c.l.b16 %v4386
    %v5925 = vunpack.c.h.b16 %v4386
    %v5926 = vunpack.c.l.b16 %v4387
    %v5927 = vunpack.c.h.b16 %v4387
    %v5928 = vunpack.c.l.b16 %v4388
    %v5929 = vunpack.c.h.b16 %v4388
    %v5930 = vunpack.c.l.b16 %v4389
    %v5931 = vunpack.c.h.b16 %v4389
    %v5932 = vunpack.c.l.b16 %v4390
    %v5933 = vunpack.c.h.b16 %v4390
    %v5934 = vunpack.c.l.b16 %v4391
    %v5935 = vunpack.c.h.b16 %v4391
    %v5936 = vunpack.c.l.b16 %v4392
    %v5937 = vunpack.c.h.b16 %v4392
    %v5938 = vunpack.c.l.b16 %v4393
    %v5939 = vunpack.c.h.b16 %v4393
    %v5940 = vunpack.c.l.b16 %v4394
    %v5941 = vunpack.c.h.b16 %v4394
    %v5942 = vunpack.c.l.b16 %v4395
    %v5943 = vunpack.c.h.b16 %v4395
    %v5944 = vunpack.c.l.b16 %v4396
    %v5945 = vunpack.c.h.b16 %v4396
    %v5946 = vunpack.c.l.b16 %v4397
    %v5947 = vunpack.c.h.b16 %v4397
    %v5948 = vunpack.c.l.b16 %v4398
    %v5949 = vunpack.c.h.b16 %v4398
    %v5950 = vunpack.c.l.b16 %v4399
    %v5951 = vunpack.c.h.b16 %v4399
    %v5952 = vunpack.c.l.b16 %v4400
    %v5953 = vunpack.c.h.b16 %v4400
    %v5954 = vunpack.c.l.b16 %v4401
    %v5955 = vunpack.c.h.b16 %v4401
    %v5956 = vunpack.c.l.b16 %v4402
    %v5957 = vunpack.c.h.b16 %v4402
    %v5958 = vunpack.c.l.b16 %v4403
    %v5959 = vunpack.c.h.b16 %v4403
    %v5960 = vunpack.c.l.b16 %v4404
    %v5961 = vunpack.c.h.b16 %v4404
    %v5962 = vunpack.c.l.b16 %v4405
    %v5963 = vunpack.c.h.b16 %v4405
    %v5964 = vunpack.c.l.b16 %v4406
    %v5965 = vunpack.c.h.b16 %v4406
    %v5966 = vunpack.c.l.b16 %v4407
    %v5967 = vunpack.c.h.b16 %v4407
    %v5968 = vunpack.c.l.b16 %v4408
    %v5969 = vunpack.c.h.b16 %v4408
    %v5970 = vunpack.c.l.b16 %v4409
    %v5971 = vunpack.c.h.b16 %v4409
    %v5972 = vunpack.c.l.b16 %v4410
    %v5973 = vunpack.c.h.b16 %v4410
    %v5974 = vunpack.c.l.b16 %v4411
    %v5975 = vunpack.c.h.b16 %v4411
    %v5976 = vunpack.c.l.b16 %v4412
    %v5977 = vunpack.c.h.b16 %v4412
    %v5978 = vunpack.c.l.b16 %v4413
    %v5979 = vunpack.c.h.b16 %v4413
    %v5980 = vunpack.c.l.b16 %v4414
    %v5981 = vunpack.c.h.b16 %v4414
    %v5982 = vunpack.c.l.b16 %v4415
    %v5983 = vunpack.c.h.b16 %v4415
    %v5984 = vunpack.c.l.b16 %v4416
    %v5985 = vunpack.c.h.b16 %v4416
    %v5986 = vunpack.c.l.b16 %v4417
    %v5987 = vunpack.c.h.b16 %v4417
    %v5988 = vunpack.c.l.b16 %v4418
    %v5989 = vunpack.c.h.b16 %v4418
    %v5990 = vunpack.c.l.b16 %v4419
    %v5991 = vunpack.c.h.b16 %v4419
    %v5992 = vunpack.c.l.b16 %v4420
    %v5993 = vunpack.c.h.b16 %v4420
    %v5994 = vunpack.c.l.b16 %v4421
    %v5995 = vunpack.c.h.b16 %v4421
    %v5996 = vunpack.c.l.b16 %v4422
    %v5997 = vunpack.c.h.b16 %v4422
    %v5998 = vunpack.c.l.b16 %v4423
    %v5999 = vunpack.c.h.b16 %v4423
    %v6000 = vunpack.c.l.b16 %v4424
    %v6001 = vunpack.c.h.b16 %v4424
    %v6002 = vunpack.c.l.b16 %v4425
    %v6003 = vunpack.c.h.b16 %v4425
    %v6004 = vunpack.c.l.b16 %v4426
    %v6005 = vunpack.c.h.b16 %v4426
    %v6006 = vunpack.c.l.b16 %v4427
    %v6007 = vunpack.c.h.b16 %v4427
    %v6008 = vunpack.c.l.b16 %v4428
    %v6009 = vunpack.c.h.b16 %v4428
    %v6010 = vunpack.c.l.b16 %v4429
    %v6011 = vunpack.c.h.b16 %v4429
    %v6012 = vunpack.c.l.b16 %v4430
    %v6013 = vunpack.c.h.b16 %v4430
    %v6014 = vunpack.c.l.b16 %v4431
    %v6015 = vunpack.c.h.b16 %v4431
    %v6016 = vunpack.c.l.b16 %v4432
    %v6017 = vunpack.c.h.b16 %v4432
    %v6018 = vunpack.c.l.b16 %v4433
    %v6019 = vunpack.c.h.b16 %v4433
    %v6020 = vunpack.c.l.b16 %v4434
    %v6021 = vunpack.c.h.b16 %v4434
    %v6022 = vunpack.c.l.b16 %v4435
    %v6023 = vunpack.c.h.b16 %v4435
    %v6024 = vunpack.c.l.b16 %v4436
    %v6025 = vunpack.c.h.b16 %v4436
    %v6026 = vunpack.c.l.b16 %v4437
    %v6027 = vunpack.c.h.b16 %v4437
    %v6028 = vunpack.c.l.b16 %v4438
    %v6029 = vunpack.c.h.b16 %v4438
    %v6030 = vunpack.c.l.b16 %v4439
    %v6031 = vunpack.c.h.b16 %v4439
    %v6032 = vunpack.c.l.b16 %v4440
    %v6033 = vunpack.c.h.b16 %v4440
    %v6034 = vunpack.c.l.b16 %v4441
    %v6035 = vunpack.c.h.b16 %v4441
    %v6036 = vunpack.c.l.b16 %v4442
    %v6037 = vunpack.c.h.b16 %v4442
    %v6038 = vunpack.c.l.b16 %v4443
    %v6039 = vunpack.c.h.b16 %v4443
    %v6040 = vunpack.c.l.b16 %v4444
    %v6041 = vunpack.c.h.b16 %v4444
    %v6042 = vunpack.c.l.b16 %v4445
    %v6043 = vunpack.c.h.b16 %v4445
    %v6044 = vunpack.c.l.b16 %v4446
    %v6045 = vunpack.c.h.b16 %v4446
    %v6046 = vunpack.c.l.b16 %v4447
    %v6047 = vunpack.c.h.b16 %v4447
    %v6048 = vunpack.c.l.b16 %v4448
    %v6049 = vunpack.c.h.b16 %v4448
    %v6050 = vunpack.c.l.b16 %v4449
    %v6051 = vunpack.c.h.b16 %v4449
    %v6052 = vunpack.c.l.b16 %v4450
    %v6053 = vunpack.c.h.b16 %v4450
    %v6054 = vunpack.c.l.b16 %v4451
    %v6055 = vunpack.c.h.b16 %v4451
    %v6056 = vunpack.c.l.b16 %v4452
    %v6057 = vunpack.c.h.b16 %v4452
    %v6058 = vunpack.c.l.b16 %v4453
    %v6059 = vunpack.c.h.b16 %v4453
    %v6060 = vunpack.c.l.b16 %v4454
    %v6061 = vunpack.c.h.b16 %v4454
    %v6062 = vunpack.c.l.b16 %v4455
    %v6063 = vunpack.c.h.b16 %v4455
    %v6064 = vunpack.c.l.b16 %v4456
    %v6065 = vunpack.c.h.b16 %v4456
    %v6066 = vunpack.c.l.b16 %v4457
    %v6067 = vunpack.c.h.b16 %v4457
    %v6068 = vunpack.c.l.b16 %v4458
    %v6069 = vunpack.c.h.b16 %v4458
    %v6070 = vunpack.c.l.b16 %v4459
    %v6071 = vunpack.c.h.b16 %v4459
    %v6072 = vunpack.c.l.b16 %v4460
    %v6073 = vunpack.c.h.b16 %v4460
    %v6074 = vunpack.c.l.b16 %v4461
    %v6075 = vunpack.c.h.b16 %v4461
    %v6076 = vunpack.c.l.b16 %v4462
    %v6077 = vunpack.c.h.b16 %v4462
    %v6078 = vunpack.c.l.b16 %v4463
    %v6079 = vunpack.c.h.b16 %v4463
    %v6080 = vunpack.c.l.b16 %v4464
    %v6081 = vunpack.c.h.b16 %v4464
    %v6082 = vunpack.c.l.b16 %v4465
    %v6083 = vunpack.c.h.b16 %v4465
    %v6084 = vunpack.c.l.b16 %v4466
    %v6085 = vunpack.c.h.b16 %v4466
    %v6086 = vunpack.c.l.b16 %v4467
    %v6087 = vunpack.c.h.b16 %v4467
    %v6088 = vunpack.c.l.b16 %v4468
    %v6089 = vunpack.c.h.b16 %v4468
    %v6090 = vunpack.c.l.b16 %v4469
    %v6091 = vunpack.c.h.b16 %v4469
    %v6092 = vunpack.c.l.b16 %v4470
    %v6093 = vunpack.c.h.b16 %v4470
    %v6094 = vunpack.c.l.b16 %v4471
    %v6095 = vunpack.c.h.b16 %v4471
    %v6096 = vunpack.c.l.b16 %v4472
    %v6097 = vunpack.c.h.b16 %v4472
    %v6098 = vunpack.c.l.b16 %v4473
    %v6099 = vunpack.c.h.b16 %v4473
    %v6100 = vunpack.c.l.b16 %v4474
    %v6101 = vunpack.c.h.b16 %v4474
    %v6102 = vunpack.c.l.b16 %v4475
    %v6103 = vunpack.c.h.b16 %v4475
    %v6104 = vunpack.c.l.b16 %v4476
    %v6105 = vunpack.c.h.b16 %v4476
    %v6106 = vunpack.c.l.b16 %v4477
    %v6107 = vunpack.c.h.b16 %v4477
    %v6108 = vunpack.c.l.b16 %v4478
    %v6109 = vunpack.c.h.b16 %v4478
    %v6110 = vunpack.c.l.b16 %v4479
    %v6111 = vunpack.c.h.b16 %v4479
    %v6112 = vunpack.c.l.b16 %v4480
    %v6113 = vunpack.c.h.b16 %v4480
    %v6114 = vunpack.c.l.b16 %v4481
    %v6115 = vunpack.c.h.b16 %v4481
    %v6116 = vunpack.c.l.b16 %v4482
    %v6117 = vunpack.c.h.b16 %v4482
    %v6118 = vunpack.c.l.b16 %v4483
    %v6119 = vunpack.c.h.b16 %v4483
    %v6120 = vunpack.c.l.b16 %v4484
    %v6121 = vunpack.c.h.b16 %v4484
    %v6122 = vunpack.c.l.b16 %v4485
    %v6123 = vunpack.c.h.b16 %v4485
    %v6124 = vunpack.c.l.b16 %v4486
    %v6125 = vunpack.c.h.b16 %v4486
    %v6126 = vunpack.c.l.b16 %v4487
    %v6127 = vunpack.c.h.b16 %v4487
    %v6128 = vunpack.c.l.b16 %v4488
    %v6129 = vunpack.c.h.b16 %v4488
    %v6130 = vunpack.c.l.b16 %v4489
    %v6131 = vunpack.c.h.b16 %v4489
    %v6132 = vunpack.c.l.b16 %v4490
    %v6133 = vunpack.c.h.b16 %v4490
    %v6134 = vunpack.c.l.b16 %v4491
    %v6135 = vunpack.c.h.b16 %v4491
    %v6136 = vunpack.c.l.b16 %v4492
    %v6137 = vunpack.c.h.b16 %v4492
    %v6138 = vunpack.c.l.b16 %v4493
    %v6139 = vunpack.c.h.b16 %v4493
    %v6140 = vunpack.c.l.b16 %v4494
    %v6141 = vunpack.c.h.b16 %v4494
    %v6142 = vunpack.c.l.b16 %v4495
    %v6143 = vunpack.c.h.b16 %v4495
    %v6144 = vunpack.c.l.b16 %v4496
    %v6145 = vunpack.c.h.b16 %v4496
    %v6146 = vunpack.c.l.b16 %v4497
    %v6147 = vunpack.c.h.b16 %v4497
    %v6148 = vunpack.c.l.b16 %v4498
    %v6149 = vunpack.c.h.b16 %v4498
    %v6150 = vunpack.c.l.b16 %v4499
    %v6151 = vunpack.c.h.b16 %v4499
    %v6152 = vunpack.c.l.b16 %v4500
    %v6153 = vunpack.c.h.b16 %v4500
    %v6154 = vunpack.c.l.b16 %v4501
    %v6155 = vunpack.c.h.b16 %v4501
    %v6156 = vunpack.c.l.b16 %v4502
    %v6157 = vunpack.c.h.b16 %v4502
    %v6158 = vunpack.c.l.b16 %v4503
    %v6159 = vunpack.c.h.b16 %v4503
    %v6160 = vunpack.c.l.b16 %v4504
    %v6161 = vunpack.c.h.b16 %v4504
    %v6162 = vunpack.c.l.b16 %v4505
    %v6163 = vunpack.c.h.b16 %v4505
    %v6164 = vunpack.c.l.b16 %v4506
    %v6165 = vunpack.c.h.b16 %v4506
    %v6166 = vunpack.c.l.b16 %v4507
    %v6167 = vunpack.c.h.b16 %v4507
    %v6168 = vunpack.c.l.b16 %v4508
    %v6169 = vunpack.c.h.b16 %v4508
    %v6170 = vunpack.c.l.b16 %v4509
    %v6171 = vunpack.c.h.b16 %v4509
    %v6172 = vunpack.c.l.b16 %v4510
    %v6173 = vunpack.c.h.b16 %v4510
    %v6174 = vunpack.c.l.b16 %v4511
    %v6175 = vunpack.c.h.b16 %v4511
    %v6176 = vunpack.c.l.b16 %v4512
    %v6177 = vunpack.c.h.b16 %v4512
    %v6178 = vunpack.c.l.b16 %v4513
    %v6179 = vunpack.c.h.b16 %v4513
    %v6180 = vunpack.c.l.b16 %v4514
    %v6181 = vunpack.c.h.b16 %v4514
    %v6182 = vunpack.c.l.b16 %v4515
    %v6183 = vunpack.c.h.b16 %v4515
    %v6184 = vunpack.c.l.b16 %v4516
    %v6185 = vunpack.c.h.b16 %v4516
    %v6186 = vunpack.c.l.b16 %v4517
    %v6187 = vunpack.c.h.b16 %v4517
    %v6188 = vunpack.c.l.b16 %v4518
    %v6189 = vunpack.c.h.b16 %v4518
    %v6190 = vunpack.c.l.b16 %v4519
    %v6191 = vunpack.c.h.b16 %v4519
    %v6192 = vunpack.c.l.b16 %v4520
    %v6193 = vunpack.c.h.b16 %v4520
    %v6194 = vunpack.c.l.b16 %v4521
    %v6195 = vunpack.c.h.b16 %v4521
    %v6196 = vunpack.c.l.b16 %v4522
    %v6197 = vunpack.c.h.b16 %v4522
    %v6198 = vunpack.c.l.b16 %v4523
    %v6199 = vunpack.c.h.b16 %v4523
    %v6200 = vunpack.c.l.b16 %v4524
    %v6201 = vunpack.c.h.b16 %v4524
    %v6202 = vunpack.c.l.b16 %v4525
    %v6203 = vunpack.c.h.b16 %v4525
    %v6204 = vunpack.c.l.b16 %v4526
    %v6205 = vunpack.c.h.b16 %v4526
    %v6206 = vunpack.c.l.b16 %v4527
    %v6207 = vunpack.c.h.b16 %v4527
    %v6208 = vunpack.c.l.b16 %v4528
    %v6209 = vunpack.c.h.b16 %v4528
    %v6210 = vunpack.c.l.b16 %v4529
    %v6211 = vunpack.c.h.b16 %v4529
    %v6212 = vunpack.c.l.b16 %v4530
    %v6213 = vunpack.c.h.b16 %v4530
    %v6214 = vunpack.c.l.b16 %v4531
    %v6215 = vunpack.c.h.b16 %v4531
    %v6216 = vunpack.c.l.b16 %v4532
    %v6217 = vunpack.c.h.b16 %v4532
    %v6218 = vunpack.c.l.b16 %v4533
    %v6219 = vunpack.c.h.b16 %v4533
    %v6220 = vunpack.c.l.b16 %v4534
    %v6221 = vunpack.c.h.b16 %v4534
    %v6222 = vunpack.c.l.b16 %v4535
    %v6223 = vunpack.c.h.b16 %v4535
    %v6224 = vunpack.c.l.b16 %v4536
    %v6225 = vunpack.c.h.b16 %v4536
    %v6226 = vunpack.c.l.b16 %v4537
    %v6227 = vunpack.c.h.b16 %v4537
    %v6228 = vunpack.c.l.b16 %v4538
    %v6229 = vunpack.c.h.b16 %v4538
    %v6230 = vunpack.c.l.b16 %v4539
    %v6231 = vunpack.c.h.b16 %v4539
    %v6232 = vpack.c.b16 %v5114, %v5112
    %v6233 = vpack.c.b16 %v5115, %v5113
    %v6234 = vpack.c.b16 %v5118, %v5116
    %v6235 = vpack.c.b16 %v5119, %v5117
    %v6236 = vpack.c.b16 %v5122, %v5120
    %v6237 = vpack.c.b16 %v5123, %v5121
    %v6238 = vpack.c.b16 %v5126, %v5124
    %v6239 = vpack.c.b16 %v5127, %v5125
    %v6240 = vpack.c.b16 %v5130, %v5128
    %v6241 = vpack.c.b16 %v5131, %v5129
    %v6242 = vpack.c.b16 %v5134, %v5132
    %v6243 = vpack.c.b16 %v5135, %v5133
    %v6244 = vpack.c.b16 %v5138, %v5136
    %v6245 = vpack.c.b16 %v5139, %v5137
    %v6246 = vpack.c.b16 %v5142, %v5140
    %v6247 = vpack.c.b16 %v5143, %v5141
    %v6248 = vpack.c.b16 %v5146, %v5144
    %v6249 = vpack.c.b16 %v5147, %v5145
    %v6250 = vpack.c.b16 %v5150, %v5148
    %v6251 = vpack.c.b16 %v5151, %v5149
    %v6252 = vpack.c.b16 %v5154, %v5152
    %v6253 = vpack.c.b16 %v5155, %v5153
    %v6254 = vpack.c.b16 %v5158, %v5156
    %v6255 = vpack.c.b16 %v5159, %v5157
    %v6256 = vpack.c.b16 %v5162, %v5160
    %v6257 = vpack.c.b16 %v5163, %v5161
    %v6258 = vpack.c.b16 %v5166, %v5164
    %v6259 = vpack.c.b16 %v5167, %v5165
    %v6260 = vpack.c.b16 %v5170, %v5168
    %v6261 = vpack.c.b16 %v5171, %v5169
    %v6262 = vpack.c.b16 %v5174, %v5172
    %v6263 = vpack.c.b16 %v5175, %v5173
    %v6264 = vpack.c.b16 %v5178, %v5176
    %v6265 = vpack.c.b16 %v5179, %v5177
    %v6266 = vpack.c.b16 %v5182, %v5180
    %v6267 = vpack.c.b16 %v5183, %v5181
    %v6268 = vpack.c.b16 %v5186, %v5184
    %v6269 = vpack.c.b16 %v5187, %v5185
    %v6270 = vpack.c.b16 %v5190, %v5188
    %v6271 = vpack.c.b16 %v5191, %v5189
    %v6272 = vpack.c.b16 %v5194, %v5192
    %v6273 = vpack.c.b16 %v5195, %v5193
    %v6274 = vpack.c.b16 %v5198, %v5196
    %v6275 = vpack.c.b16 %v5199, %v5197
    %v6276 = vpack.c.b16 %v5202, %v5200
    %v6277 = vpack.c.b16 %v5203, %v5201
    %v6278 = vpack.c.b16 %v5206, %v5204
    %v6279 = vpack.c.b16 %v5207, %v5205
    %v6280 = vpack.c.b16 %v5210, %v5208
    %v6281 = vpack.c.b16 %v5211, %v5209
    %v6282 = vpack.c.b16 %v5214, %v5212
    %v6283 = vpack.c.b16 %v5215, %v5213
    %v6284 = vpack.c.b16 %v5218, %v5216
    %v6285 = vpack.c.b16 %v5219, %v5217
    %v6286 = vpack.c.b16 %v5222, %v5220
    %v6287 = vpack.c.b16 %v5223, %v5221
    %v6288 = vpack.c.b16 %v5226, %v5224
    %v6289 = vpack.c.b16 %v5227, %v5225
    %v6290 = vpack.c.b16 %v5230, %v5228
    %v6291 = vpack.c.b16 %v5231, %v5229
    %v6292 = vpack.c.b16 %v5234, %v5232
    %v6293 = vpack.c.b16 %v5235, %v5233
    %v6294 = vpack.c.b16 %v5238, %v5236
    %v6295 = vpack.c.b16 %v5239, %v5237
    %v6296 = vpack.c.b16 %v5242, %v5240
    %v6297 = vpack.c.b16 %v5243, %v5241
    %v6298 = vpack.c.b16 %v5246, %v5244
    %v6299 = vpack.c.b16 %v5247, %v5245
    %v6300 = vpack.c.b16 %v5250, %v5248
    %v6301 = vpack.c.b16 %v5251, %v5249
    %v6302 = vpack.c.b16 %v5254, %v5252
    %v6303 = vpack.c.b16 %v5255, %v5253
    %v6304 = vpack.c.b16 %v5258, %v5256
    %v6305 = vpack.c.b16 %v5259, %v5257
    %v6306 = vpack.c.b16 %v5262, %v5260
    %v6307 = vpack.c.b16 %v5263, %v5261
    %v6308 = vpack.c.b16 %v5266, %v5264
    %v6309 = vpack.c.b16 %v5267, %v5265
    %v6310 = vpack.c.b16 %v5270, %v5268
    %v6311 = vpack.c.b16 %v5271, %v5269
    %v6312 = vpack.c.b16 %v5274, %v5272
    %v6313 = vpack.c.b16 %v5275, %v5273
    %v6314 = vpack.c.b16 %v5278, %v5276
    %v6315 = vpack.c.b16 %v5279, %v5277
    %v6316 = vpack.c.b16 %v5282, %v5280
    %v6317 = vpack.c.b16 %v5283, %v5281
    %v6318 = vpack.c.b16 %v5286, %v5284
    %v6319 = vpack.c.b16 %v5287, %v5285
    %v6320 = vpack.c.b16 %v5290, %v5288
    %v6321 = vpack.c.b16 %v5291, %v5289
    %v6322 = vpack.c.b16 %v5294, %v5292
    %v6323 = vpack.c.b16 %v5295, %v5293
    %v6324 = vpack.c.b16 %v5298, %v5296
    %v6325 = vpack.c.b16 %v5299, %v5297
    %v6326 = vpack.c.b16 %v5302, %v5300
    %v6327 = vpack.c.b16 %v5303, %v5301
    %v6328 = vpack.c.b16 %v5306, %v5304
    %v6329 = vpack.c.b16 %v5307, %v5305
    %v6330 = vpack.c.b16 %v5310, %v5308
    %v6331 = vpack.c.b16 %v5311, %v5309
    %v6332 = vpack.c.b16 %v5314, %v5312
    %v6333 = vpack.c.b16 %v5315, %v5313
    %v6334 = vpack.c.b16 %v5318, %v5316
    %v6335 = vpack.c.b16 %v5319, %v5317
    %v6336 = vpack.c.b16 %v5322, %v5320
    %v6337 = vpack.c.b16 %v5323, %v5321
    %v6338 = vpack.c.b16 %v5326, %v5324
    %v6339 = vpack.c.b16 %v5327, %v5325
    %v6340 = vpack.c.b16 %v5330, %v5328
    %v6341 = vpack.c.b16 %v5331, %v5329
    %v6342 = vpack.c.b16 %v5334, %v5332
    %v6343 = vpack.c.b16 %v5335, %v5333
    %v6344 = vpack.c.b16 %v5338, %v5336
    %v6345 = vpack.c.b16 %v5339, %v5337
    %v6346 = vpack.c.b16 %v5342, %v5340
    %v6347 = vpack.c.b16 %v5343, %v5341
    %v6348 = vpack.c.b16 %v5346, %v5344
    %v6349 = vpack.c.b16 %v5347, %v5345
    %v6350 = vpack.c.b16 %v5350, %v5348
    %v6351 = vpack.c.b16 %v5351, %v5349
    %v6352 = vpack.c.b16 %v5354, %v5352
    %v6353 = vpack.c.b16 %v5355, %v5353
    %v6354 = vpack.c.b16 %v5358, %v5356
    %v6355 = vpack.c.b16 %v5359, %v5357
    %v6356 = vpack.c.b16 %v5362, %v5360
    %v6357 = vpack.c.b16 %v5363, %v5361
    %v6358 = vpack.c.b16 %v5366, %v5364
    %v6359 = vpack.c.b16 %v5367, %v5365
    %v6360 = vpack.c.b16 %v5370, %v5368
    %v6361 = vpack.c.b16 %v5371, %v5369
    %v6362 = vpack.c.b16 %v5374, %v5372
    %v6363 = vpack.c.b16 %v5375, %v5373
    %v6364 = vpack.c.b16 %v5378, %v5376
    %v6365 = vpack.c.b16 %v5379, %v5377
    %v6366 = vpack.c.b16 %v5382, %v5380
    %v6367 = vpack.c.b16 %v5383, %v5381
    %v6368 = vpack.c.b16 %v5386, %v5384
    %v6369 = vpack.c.b16 %v5387, %v5385
    %v6370 = vpack.c.b16 %v5390, %v5388
    %v6371 = vpack.c.b16 %v5391, %v5389
    %v6372 = vpack.c.b16 %v5394, %v5392
    %v6373 = vpack.c.b16 %v5395, %v5393
    %v6374 = vpack.c.b16 %v5398, %v5396
    %v6375 = vpack.c.b16 %v5399, %v5397
    %v6376 = vpack.c.b16 %v5402, %v5400
    %v6377 = vpack.c.b16 %v5403, %v5401
    %v6378 = vpack.c.b16 %v5406, %v5404
    %v6379 = vpack.c.b16 %v5407, %v5405
    %v6380 = vpack.c.b16 %v5410, %v5408
    %v6381 = vpack.c.b16 %v5411, %v5409
    %v6382 = vpack.c.b16 %v5414, %v5412
    %v6383 = vpack.c.b16 %v5415, %v5413
    %v6384 = vpack.c.b16 %v5418, %v5416
    %v6385 = vpack.c.b16 %v5419, %v5417
    %v6386 = vpack.c.b16 %v5422, %v5420
    %v6387 = vpack.c.b16 %v5423, %v5421
    %v6388 = vpack.c.b16 %v5426, %v5424
    %v6389 = vpack.c.b16 %v5427, %v5425
    %v6390 = vpack.c.b16 %v5430, %v5428
    %v6391 = vpack.c.b16 %v5431, %v5429
    %v6392 = vpack.c.b16 %v5434, %v5432
    %v6393 = vpack.c.b16 %v5435, %v5433
    %v6394 = vpack.c.b16 %v5438, %v5436
    %v6395 = vpack.c.b16 %v5439, %v5437
    %v6396 = vpack.c.b16 %v5442, %v5440
    %v6397 = vpack.c.b16 %v5443, %v5441
    %v6398 = vpack.c.b16 %v5446, %v5444
    %v6399 = vpack.c.b16 %v5447, %v5445
    %v6400 = vpack.c.b16 %v5450, %v5448
    %v6401 = vpack.c.b16 %v5451, %v5449
    %v6402 = vpack.c.b16 %v5454, %v5452
    %v6403 = vpack.c.b16 %v5455, %v5453
    %v6404 = vpack.c.b16 %v5458, %v5456
    %v6405 = vpack.c.b16 %v5459, %v5457
    %v6406 = vpack.c.b16 %v5462, %v5460
    %v6407 = vpack.c.b16 %v5463, %v5461
    %v6408 = vpack.c.b16 %v5466, %v5464
    %v6409 = vpack.c.b16 %v5467, %v5465
    %v6410 = vpack.c.b16 %v5470, %v5468
    %v6411 = vpack.c.b16 %v5471, %v5469
    %v6412 = vpack.c.b16 %v5474, %v5472
    %v6413 = vpack.c.b16 %v5475, %v5473
    %v6414 = vpack.c.b16 %v5478, %v5476
    %v6415 = vpack.c.b16 %v5479, %v5477
    %v6416 = vpack.c.b16 %v5482, %v5480
    %v6417 = vpack.c.b16 %v5483, %v5481
    %v6418 = vpack.c.b16 %v5486, %v5484
    %v6419 = vpack.c.b16 %v5487, %v5485
    %v6420 = vpack.c.b16 %v5490, %v5488
    %v6421 = vpack.c.b16 %v5491, %v5489
    %v6422 = vpack.c.b16 %v5494, %v5492
    %v6423 = vpack.c.b16 %v5495, %v5493
    %v6424 = vpack.c.b16 %v5498, %v5496
    %v6425 = vpack.c.b16 %v5499, %v5497
    %v6426 = vpack.c.b16 %v5502, %v5500
    %v6427 = vpack.c.b16 %v5503, %v5501
    %v6428 = vpack.c.b16 %v5506, %v5504
    %v6429 = vpack.c.b16 %v5507, %v5505
    %v6430 = vpack.c.b16 %v5510, %v5508
    %v6431 = vpack.c.b16 %v5511, %v5509
    %v6432 = vpack.c.b16 %v5514, %v5512
    %v6433 = vpack.c.b16 %v5515, %v5513
    %v6434 = vpack.c.b16 %v5518, %v5516
    %v6435 = vpack.c.b16 %v5519, %v5517
    %v6436 = vpack.c.b16 %v5522, %v5520
    %v6437 = vpack.c.b16 %v5523, %v5521
    %v6438 = vpack.c.b16 %v5526, %v5524
    %v6439 = vpack.c.b16 %v5527, %v5525
    %v6440 = vpack.c.b16 %v5530, %v5528
    %v6441 = vpack.c.b16 %v5531, %v5529
    %v6442 = vpack.c.b16 %v5534, %v5532
    %v6443 = vpack.c.b16 %v5535, %v5533
    %v6444 = vpack.c.b16 %v5538, %v5536
    %v6445 = vpack.c.b16 %v5539, %v5537
    %v6446 = vpack.c.b16 %v5542, %v5540
    %v6447 = vpack.c.b16 %v5543, %v5541
    %v6448 = vpack.c.b16 %v5546, %v5544
    %v6449 = vpack.c.b16 %v5547, %v5545
    %v6450 = vpack.c.b16 %v5550, %v5548
    %v6451 = vpack.c.b16 %v5551, %v5549
    %v6452 = vpack.c.b16 %v5554, %v5552
    %v6453 = vpack.c.b16 %v5555, %v5553
    %v6454 = vpack.c.b16 %v5558, %v5556
    %v6455 = vpack.c.b16 %v5559, %v5557
    %v6456 = vpack.c.b16 %v5562, %v5560
    %v6457 = vpack.c.b16 %v5563, %v5561
    %v6458 = vpack.c.b16 %v5566, %v5564
    %v6459 = vpack.c.b16 %v5567, %v5565
    %v6460 = vpack.c.b16 %v5570, %v5568
    %v6461 = vpack.c.b16 %v5571, %v5569
    %v6462 = vpack.c.b16 %v5574, %v5572
    %v6463 = vpack.c.b16 %v5575, %v5573
    %v6464 = vpack.c.b16 %v5578, %v5576
    %v6465 = vpack.c.b16 %v5579, %v5577
    %v6466 = vpack.c.b16 %v5582, %v5580
    %v6467 = vpack.c.b16 %v5583, %v5581
    %v6468 = vpack.c.b16 %v5586, %v5584
    %v6469 = vpack.c.b16 %v5587, %v5585
    %v6470 = vpack.c.b16 %v5590, %v5588
    %v6471 = vpack.c.b16 %v5591, %v5589
    %v6472 = vpack.c.b16 %v5594, %v5592
    %v6473 = vpack.c.b16 %v5595, %v5593
    %v6474 = vpack.c.b16 %v5598, %v5596
    %v6475 = vpack.c.b16 %v5599, %v5597
    %v6476 = vpack.c.b16 %v5602, %v5600
    %v6477 = vpack.c.b16 %v5603, %v5601
    %v6478 = vpack.c.b16 %v5606, %v5604
    %v6479 = vpack.c.b16 %v5607, %v5605
    %v6480 = vpack.c.b16 %v5610, %v5608
    %v6481 = vpack.c.b16 %v5611, %v5609
    %v6482 = vpack.c.b16 %v5614, %v5612
    %v6483 = vpack.c.b16 %v5615, %v5613
    %v6484 = vpack.c.b16 %v5618, %v5616
    %v6485 = vpack.c.b16 %v5619, %v5617
    %v6486 = vpack.c.b16 %v5622, %v5620
    %v6487 = vpack.c.b16 %v5623, %v5621
    %v6488 = vpack.c.b16 %v5626, %v5624
    %v6489 = vpack.c.b16 %v5627, %v5625
    %v6490 = vpack.c.b16 %v5630, %v5628
    %v6491 = vpack.c.b16 %v5631, %v5629
    %v6492 = vpack.c.b16 %v5634, %v5632
    %v6493 = vpack.c.b16 %v5635, %v5633
    %v6494 = vpack.c.b16 %v5638, %v5636
    %v6495 = vpack.c.b16 %v5639, %v5637
    %v6496 = vpack.c.b16 %v5642, %v5640
    %v6497 = vpack.c.b16 %v5643, %v5641
    %v6498 = vpack.c.b16 %v5646, %v5644
    %v6499 = vpack.c.b16 %v5647, %v5645
    %v6500 = vpack.c.b16 %v5650, %v5648
    %v6501 = vpack.c.b16 %v5651, %v5649
    %v6502 = vpack.c.b16 %v5654, %v5652
    %v6503 = vpack.c.b16 %v5655, %v5653
    %v6504 = vpack.c.b16 %v5658, %v5656
    %v6505 = vpack.c.b16 %v5659, %v5657
    %v6506 = vpack.c.b16 %v5662, %v5660
    %v6507 = vpack.c.b16 %v5663, %v5661
    %v6508 = vpack.c.b16 %v5666, %v5664
    %v6509 = vpack.c.b16 %v5667, %v5665
    %v6510 = vpack.c.b16 %v5670, %v5668
    %v6511 = vpack.c.b16 %v5671, %v5669
    %v6512 = vpack.c.b16 %v5674, %v5672
    %v6513 = vpack.c.b16 %v5675, %v5673
    %v6514 = vpack.c.b16 %v5678, %v5676
    %v6515 = vpack.c.b16 %v5679, %v5677
    %v6516 = vpack.c.b16 %v5682, %v5680
    %v6517 = vpack.c.b16 %v5683, %v5681
    %v6518 = vpack.c.b16 %v5686, %v5684
    %v6519 = vpack.c.b16 %v5687, %v5685
    %v6520 = vpack.c.b16 %v5690, %v5688
    %v6521 = vpack.c.b16 %v5691, %v5689
    %v6522 = vpack.c.b16 %v5694, %v5692
    %v6523 = vpack.c.b16 %v5695, %v5693
    %v6524 = vpack.c.b16 %v5698, %v5696
    %v6525 = vpack.c.b16 %v5699, %v5697
    %v6526 = vpack.c.b16 %v5702, %v5700
    %v6527 = vpack.c.b16 %v5703, %v5701
    %v6528 = vpack.c.b16 %v5706, %v5704
    %v6529 = vpack.c.b16 %v5707, %v5705
    %v6530 = vpack.c.b16 %v5710, %v5708
    %v6531 = vpack.c.b16 %v5711, %v5709
    %v6532 = vpack.c.b16 %v5714, %v5712
    %v6533 = vpack.c.b16 %v5715, %v5713
    %v6534 = vpack.c.b16 %v5718, %v5716
    %v6535 = vpack.c.b16 %v5719, %v5717
    %v6536 = vpack.c.b16 %v5722, %v5720
    %v6537 = vpack.c.b16 %v5723, %v5721
    %v6538 = vpack.c.b16 %v5726, %v5724
    %v6539 = vpack.c.b16 %v5727, %v5725
    %v6540 = vpack.c.b16 %v5730, %v5728
    %v6541 = vpack.c.b16 %v5731, %v5729
    %v6542 = vpack.c.b16 %v5734, %v5732
    %v6543 = vpack.c.b16 %v5735, %v5733
    %v6544 = vpack.c.b16 %v5738, %v5736
    %v6545 = vpack.c.b16 %v5739, %v5737
    %v6546 = vpack.c.b16 %v5742, %v5740
    %v6547 = vpack.c.b16 %v5743, %v5741
    %v6548 = vpack.c.b16 %v5746, %v5744
    %v6549 = vpack.c.b16 %v5747, %v5745
    %v6550 = vpack.c.b16 %v5750, %v5748
    %v6551 = vpack.c.b16 %v5751, %v5749
    %v6552 = vpack.c.b16 %v5754, %v5752
    %v6553 = vpack.c.b16 %v5755, %v5753
    %v6554 = vpack.c.b16 %v5758, %v5756
    %v6555 = vpack.c.b16 %v5759, %v5757
    %v6556 = vpack.c.b16 %v5762, %v5760
    %v6557 = vpack.c.b16 %v5763, %v5761
    %v6558 = vpack.c.b16 %v5766, %v5764
    %v6559 = vpack.c.b16 %v5767, %v5765
    %v6560 = vpack.c.b16 %v5770, %v5768
    %v6561 = vpack.c.b16 %v5771, %v5769
    %v6562 = vpack.c.b16 %v5774, %v5772
    %v6563 = vpack.c.b16 %v5775, %v5773
    %v6564 = vpack.c.b16 %v5778, %v5776
    %v6565 = vpack.c.b16 %v5779, %v5777
    %v6566 = vpack.c.b16 %v5782, %v5780
    %v6567 = vpack.c.b16 %v5783, %v5781
    %v6568 = vpack.c.b16 %v5786, %v5784
    %v6569 = vpack.c.b16 %v5787, %v5785
    %v6570 = vpack.c.b16 %v5790, %v5788
    %v6571 = vpack.c.b16 %v5791, %v5789
    %v6572 = vpack.c.b16 %v5794, %v5792
    %v6573 = vpack.c.b16 %v5795, %v5793
    %v6574 = vpack.c.b16 %v5798, %v5796
    %v6575 = vpack.c.b16 %v5799, %v5797
    %v6576 = vpack.c.b16 %v5802, %v5800
    %v6577 = vpack.c.b16 %v5803, %v5801
    %v6578 = vpack.c.b16 %v5806, %v5804
    %v6579 = vpack.c.b16 %v5807, %v5805
    %v6580 = vpack.c.b16 %v5810, %v5808
    %v6581 = vpack.c.b16 %v5811, %v5809
    %v6582 = vpack.c.b16 %v5814, %v5812
    %v6583 = vpack.c.b16 %v5815, %v5813
    %v6584 = vpack.c.b16 %v5818, %v5816
    %v6585 = vpack.c.b16 %v5819, %v5817
    %v6586 = vpack.c.b16 %v5822, %v5820
    %v6587 = vpack.c.b16 %v5823, %v5821
    %v6588 = vpack.c.b16 %v5826, %v5824
    %v6589 = vpack.c.b16 %v5827, %v5825
    %v6590 = vpack.c.b16 %v5830, %v5828
    %v6591 = vpack.c.b16 %v5831, %v5829
    %v6592 = vpack.c.b16 %v5834, %v5832
    %v6593 = vpack.c.b16 %v5835, %v5833
    %v6594 = vpack.c.b16 %v5838, %v5836
    %v6595 = vpack.c.b16 %v5839, %v5837
    %v6596 = vpack.c.b16 %v5842, %v5840
    %v6597 = vpack.c.b16 %v5843, %v5841
    %v6598 = vpack.c.b16 %v5846, %v5844
    %v6599 = vpack.c.b16 %v5847, %v5845
    %v6600 = vpack.c.b16 %v5850, %v5848
    %v6601 = vpack.c.b16 %v5851, %v5849
    %v6602 = vpack.c.b16 %v5854, %v5852
    %v6603 = vpack.c.b16 %v5855, %v5853
    %v6604 = vpack.c.b16 %v5858, %v5856
    %v6605 = vpack.c.b16 %v5859, %v5857
    %v6606 = vpack.c.b16 %v5862, %v5860
    %v6607 = vpack.c.b16 %v5863, %v5861
    %v6608 = vpack.c.b16 %v5866, %v5864
    %v6609 = vpack.c.b16 %v5867, %v5865
    %v6610 = vpack.c.b16 %v5870, %v5868
    %v6611 = vpack.c.b16 %v5871, %v5869
    %v6612 = vpack.c.b16 %v5874, %v5872
    %v6613 = vpack.c.b16 %v5875, %v5873
    %v6614 = vpack.c.b16 %v5878, %v5876
    %v6615 = vpack.c.b16 %v5879, %v5877
    %v6616 = vpack.c.b16 %v5882, %v5880
    %v6617 = vpack.c.b16 %v5883, %v5881
    %v6618 = vpack.c.b16 %v5886, %v5884
    %v6619 = vpack.c.b16 %v5887, %v5885
    %v6620 = vpack.c.b16 %v5890, %v5888
    %v6621 = vpack.c.b16 %v5891, %v5889
    %v6622 = vpack.c.b16 %v5894, %v5892
    %v6623 = vpack.c.b16 %v5895, %v5893
    %v6624 = vpack.c.b16 %v5898, %v5896
    %v6625 = vpack.c.b16 %v5899, %v5897
    %v6626 = vpack.c.b16 %v5902, %v5900
    %v6627 = vpack.c.b16 %v5903, %v5901
    %v6628 = vpack.c.b16 %v5906, %v5904
    %v6629 = vpack.c.b16 %v5907, %v5905
    %v6630 = vpack.c.b16 %v5910, %v5908
    %v6631 = vpack.c.b16 %v5911, %v5909
    %v6632 = vpack.c.b16 %v5914, %v5912
    %v6633 = vpack.c.b16 %v5915, %v5913
    %v6634 = vpack.c.b16 %v5918, %v5916
    %v6635 = vpack.c.b16 %v5919, %v5917
    %v6636 = vpack.c.b16 %v5922, %v5920
    %v6637 = vpack.c.b16 %v5923, %v5921
    %v6638 = vpack.c.b16 %v5926, %v5924
    %v6639 = vpack.c.b16 %v5927, %v5925
    %v6640 = vpack.c.b16 %v5930, %v5928
    %v6641 = vpack.c.b16 %v5931, %v5929
    %v6642 = vpack.c.b16 %v5934, %v5932
    %v6643 = vpack.c.b16 %v5935, %v5933
    %v6644 = vpack.c.b16 %v5938, %v5936
    %v6645 = vpack.c.b16 %v5939, %v5937
    %v6646 = vpack.c.b16 %v5942, %v5940
    %v6647 = vpack.c.b16 %v5943, %v5941
    %v6648 = vpack.c.b16 %v5946, %v5944
    %v6649 = vpack.c.b16 %v5947, %v5945
    %v6650 = vpack.c.b16 %v5950, %v5948
    %v6651 = vpack.c.b16 %v5951, %v5949
    %v6652 = vpack.c.b16 %v5954, %v5952
    %v6653 = vpack.c.b16 %v5955, %v5953
    %v6654 = vpack.c.b16 %v5958, %v5956
    %v6655 = vpack.c.b16 %v5959, %v5957
    %v6656 = vpack.c.b16 %v5962, %v5960
    %v6657 = vpack.c.b16 %v5963, %v5961
    %v6658 = vpack.c.b16 %v5966, %v5964
    %v6659 = vpack.c.b16 %v5967, %v5965
    %v6660 = vpack.c.b16 %v5970, %v5968
    %v6661 = vpack.c.b16 %v5971, %v5969
    %v6662 = vpack.c.b16 %v5974, %v5972
    %v6663 = vpack.c.b16 %v5975, %v5973
    %v6664 = vpack.c.b16 %v5978, %v5976
    %v6665 = vpack.c.b16 %v5979, %v5977
    %v6666 = vpack.c.b16 %v5982, %v5980
    %v6667 = vpack.c.b16 %v5983, %v5981
    %v6668 = vpack.c.b16 %v5986, %v5984
    %v6669 = vpack.c.b16 %v5987, %v5985
    %v6670 = vpack.c.b16 %v5990, %v5988
    %v6671 = vpack.c.b16 %v5991, %v5989
    %v6672 = vpack.c.b16 %v5994, %v5992
    %v6673 = vpack.c.b16 %v5995, %v5993
    %v6674 = vpack.c.b16 %v5998, %v5996
    %v6675 = vpack.c.b16 %v5999, %v5997
    %v6676 = vpack.c.b16 %v6002, %v6000
    %v6677 = vpack.c.b16 %v6003, %v6001
    %v6678 = vpack.c.b16 %v6006, %v6004
    %v6679 = vpack.c.b16 %v6007, %v6005
    %v6680 = vpack.c.b16 %v6010, %v6008
    %v6681 = vpack.c.b16 %v6011, %v6009
    %v6682 = vpack.c.b16 %v6014, %v6012
    %v6683 = vpack.c.b16 %v6015, %v6013
    %v6684 = vpack.c.b16 %v6018, %v6016
    %v6685 = vpack.c.b16 %v6019, %v6017
    %v6686 = vpack.c.b16 %v6022, %v6020
    %v6687 = vpack.c.b16 %v6023, %v6021
    %v6688 = vpack.c.b16 %v6026, %v6024
    %v6689 = vpack.c.b16 %v6027, %v6025
    %v6690 = vpack.c.b16 %v6030, %v6028
    %v6691 = vpack.c.b16 %v6031, %v6029
    %v6692 = vpack.c.b16 %v6034, %v6032
    %v6693 = vpack.c.b16 %v6035, %v6033
    %v6694 = vpack.c.b16 %v6038, %v6036
    %v6695 = vpack.c.b16 %v6039, %v6037
    %v6696 = vpack.c.b16 %v6042, %v6040
    %v6697 = vpack.c.b16 %v6043, %v6041
    %v6698 = vpack.c.b16 %v6046, %v6044
    %v6699 = vpack.c.b16 %v6047, %v6045
    %v6700 = vpack.c.b16 %v6050, %v6048
    %v6701 = vpack.c.b16 %v6051, %v6049
    %v6702 = vpack.c.b16 %v6054, %v6052
    %v6703 = vpack.c.b16 %v6055, %v6053
    %v6704 = vpack.c.b16 %v6058, %v6056
    %v6705 = vpack.c.b16 %v6059, %v6057
    %v6706 = vpack.c.b16 %v6062, %v6060
    %v6707 = vpack.c.b16 %v6063, %v6061
    %v6708 = vpack.c.b16 %v6066, %v6064
    %v6709 = vpack.c.b16 %v6067, %v6065
    %v6710 = vpack.c.b16 %v6070, %v6068
    %v6711 = vpack.c.b16 %v6071, %v6069
    %v6712 = vpack.c.b16 %v6074, %v6072
    %v6713 = vpack.c.b16 %v6075, %v6073
    %v6714 = vpack.c.b16 %v6078, %v6076
    %v6715 = vpack.c.b16 %v6079, %v6077
    %v6716 = vpack.c.b16 %v6082, %v6080
    %v6717 = vpack.c.b16 %v6083, %v6081
    %v6718 = vpack.c.b16 %v6086, %v6084
    %v6719 = vpack.c.b16 %v6087, %v6085
    %v6720 = vpack.c.b16 %v6090, %v6088
    %v6721 = vpack.c.b16 %v6091, %v6089
    %v6722 = vpack.c.b16 %v6094, %v6092
    %v6723 = vpack.c.b16 %v6095, %v6093
    %v6724 = vpack.c.b16 %v6098, %v6096
    %v6725 = vpack.c.b16 %v6099, %v6097
    %v6726 = vpack.c.b16 %v6102, %v6100
    %v6727 = vpack.c.b16 %v6103, %v6101
    %v6728 = vpack.c.b16 %v6106, %v6104
    %v6729 = vpack.c.b16 %v6107, %v6105
    %v6730 = vpack.c.b16 %v6110, %v6108
    %v6731 = vpack.c.b16 %v6111, %v6109
    %v6732 = vpack.c.b16 %v6114, %v6112
    %v6733 = vpack.c.b16 %v6115, %v6113
    %v6734 = vpack.c.b16 %v6118, %v6116
    %v6735 = vpack.c.b16 %v6119, %v6117
    %v6736 = vpack.c.b16 %v6122, %v6120
    %v6737 = vpack.c.b16 %v6123, %v6121
    %v6738 = vpack.c.b16 %v6126, %v6124
    %v6739 = vpack.c.b16 %v6127, %v6125
    %v6740 = vpack.c.b16 %v6130, %v6128
    %v6741 = vpack.c.b16 %v6131, %v6129
    %v6742 = vpack.c.b16 %v6134, %v6132
    %v6743 = vpack.c.b16 %v6135, %v6133
    %v6744 = vpack.c.b16 %v6138, %v6136
    %v6745 = vpack.c.b16 %v6139, %v6137
    %v6746 = vpack.c.b16 %v6142, %v6140
    %v6747 = vpack.c.b16 %v6143, %v6141
    %v6748 = vpack.c.b16 %v6146, %v6144
    %v6749 = vpack.c.b16 %v6147, %v6145
    %v6750 = vpack.c.b16 %v6150, %v6148
    %v6751 = vpack.c.b16 %v6151, %v6149
    %v6752 = vpack.c.b16 %v6154, %v6152
    %v6753 = vpack.c.b16 %v6155, %v6153
    %v6754 = vpack.c.b16 %v6158, %v6156
    %v6755 = vpack.c.b16 %v6159, %v6157
    %v6756 = vpack.c.b16 %v6162, %v6160
    %v6757 = vpack.c.b16 %v6163, %v6161
    %v6758 = vpack.c.b16 %v6166, %v6164
    %v6759 = vpack.c.b16 %v6167, %v6165
    %v6760 = vpack.c.b16 %v6170, %v6168
    %v6761 = vpack.c.b16 %v6171, %v6169
    %v6762 = vpack.c.b16 %v6174, %v6172
    %v6763 = vpack.c.b16 %v6175, %v6173
    %v6764 = vpack.c.b16 %v6178, %v6176
    %v6765 = vpack.c.b16 %v6179, %v6177
    %v6766 = vpack.c.b16 %v6182, %v6180
    %v6767 = vpack.c.b16 %v6183, %v6181
    %v6768 = vpack.c.b16 %v6186, %v6184
    %v6769 = vpack.c.b16 %v6187, %v6185
    %v6770 = vpack.c.b16 %v6190, %v6188
    %v6771 = vpack.c.b16 %v6191, %v6189
    %v6772 = vpack.c.b16 %v6194, %v6192
    %v6773 = vpack.c.b16 %v6195, %v6193
    %v6774 = vpack.c.b16 %v6198, %v6196
    %v6775 = vpack.c.b16 %v6199, %v6197
    %v6776 = vpack.c.b16 %v6202, %v6200
    %v6777 = vpack.c.b16 %v6203, %v6201
    %v6778 = vpack.c.b16 %v6206, %v6204
    %v6779 = vpack.c.b16 %v6207, %v6205
    %v6780 = vpack.c.b16 %v6210, %v6208
    %v6781 = vpack.c.b16 %v6211, %v6209
    %v6782 = vpack.c.b16 %v6214, %v6212
    %v6783 = vpack.c.b16 %v6215, %v6213
    %v6784 = vpack.c.b16 %v6218, %v6216
    %v6785 = vpack.c.b16 %v6219, %v6217
    %v6786 = vpack.c.b16 %v6222, %v6220
    %v6787 = vpack.c.b16 %v6223, %v6221
    %v6788 = vpack.c.b16 %v6226, %v6224
    %v6789 = vpack.c.b16 %v6227, %v6225
    %v6790 = vpack.c.b16 %v6230, %v6228
    %v6791 = vpack.c.b16 %v6231, %v6229
    %7352 = vmatprep.subr.bf16.mxu0 %v6233
    %7353 = vmatpush1.bf16.msra.mxu0 %v6232
    %7354 = vmatprep.subr.bf16.mxu0 %v6235
    %7355 = vmatpush1.bf16.msra.mxu0 %v6234
    %7356 = vmatprep.subr.bf16.mxu0 %v6237
    %7357 = vmatpush1.bf16.msra.mxu0 %v6236
    %7358 = vmatprep.subr.bf16.mxu0 %v6239
    %7359 = vmatpush1.bf16.msra.mxu0 %v6238
    %7360 = vmatprep.subr.bf16.mxu0 %v6241
    %7361 = vmatpush1.bf16.msra.mxu0 %v6240
    %7362 = vmatprep.subr.bf16.mxu0 %v6243
    %7363 = vmatpush1.bf16.msra.mxu0 %v6242
    %7364 = vmatprep.subr.bf16.mxu0 %v6245
    %7365 = vmatpush1.bf16.msra.mxu0 %v6244
    %7366 = vmatprep.subr.bf16.mxu0 %v6247
    %7367 = vmatpush1.bf16.msra.mxu0 %v6246
    %7368 = vmatprep.subr.bf16.mxu0 %v6249
    %7369 = vmatpush1.bf16.msra.mxu0 %v6248
    %7370 = vmatprep.subr.bf16.mxu0 %v6251
    %7371 = vmatpush1.bf16.msra.mxu0 %v6250
    %7372 = vmatprep.subr.bf16.mxu0 %v6253
    %7373 = vmatpush1.bf16.msra.mxu0 %v6252
    %7374 = vmatprep.subr.bf16.mxu0 %v6255
    %7375 = vmatpush1.bf16.msra.mxu0 %v6254
    %7376 = vmatprep.subr.bf16.mxu0 %v6257
    %7377 = vmatpush1.bf16.msra.mxu0 %v6256
    %7378 = vmatprep.subr.bf16.mxu0 %v6259
    %7379 = vmatpush1.bf16.msra.mxu0 %v6258
    %7380 = vmatprep.subr.bf16.mxu0 %v6261
    %7381 = vmatpush1.bf16.msra.mxu0 %v6260
    %7382 = vmatprep.subr.bf16.mxu0 %v6263
    %7383 = vmatpush1.bf16.msra.mxu0 %v6262
    %7384 = vmatprep.mubr.bf16.mxu0 %v3946
    %7385 = vmatmul.mubr.bf16.gmra.mrb[0].mxu0 %v3945
    %v7386 = vpop.f32.mrb[0].mxu0
    %v7387 = vadd.f32 %v4545, %v7386
    %v7388 = vpop.f32.mrb[0].mxu0
    %v7389 = vadd.f32 %v4549, %v7388
    %v7390 = vpop.f32.mrb[0].mxu0
    %v7391 = vadd.f32 %v4545, %v7390
    %v7392 = vpop.f32.mrb[0].mxu0
    %v7393 = vadd.f32 %v4549, %v7392
    %7394 = vdwg.mxu0
    %7395 = vmatprep.subr.bf16.mxu0 %v6265
    %7396 = vmatpush1.bf16.msra.mxu0 %v6264
    %7397 = vmatprep.subr.bf16.mxu0 %v6267
    %7398 = vmatpush1.bf16.msra.mxu0 %v6266
    %7399 = vmatprep.subr.bf16.mxu0 %v6269
    %7400 = vmatpush1.bf16.msra.mxu0 %v6268
    %7401 = vmatprep.subr.bf16.mxu0 %v6271
    %7402 = vmatpush1.bf16.msra.mxu0 %v6270
    %7403 = vmatprep.subr.bf16.mxu0 %v6273
    %7404 = vmatpush1.bf16.msra.mxu0 %v6272
    %7405 = vmatprep.subr.bf16.mxu0 %v6275
    %7406 = vmatpush1.bf16.msra.mxu0 %v6274
    %7407 = vmatprep.subr.bf16.mxu0 %v6277
    %7408 = vmatpush1.bf16.msra.mxu0 %v6276
    %7409 = vmatprep.subr.bf16.mxu0 %v6279
    %7410 = vmatpush1.bf16.msra.mxu0 %v6278
    %7411 = vmatprep.subr.bf16.mxu0 %v6281
    %7412 = vmatpush1.bf16.msra.mxu0 %v6280
    %7413 = vmatprep.subr.bf16.mxu0 %v6283
    %7414 = vmatpush1.bf16.msra.mxu0 %v6282
    %7415 = vmatprep.subr.bf16.mxu0 %v6285
    %7416 = vmatpush1.bf16.msra.mxu0 %v6284
    %7417 = vmatprep.subr.bf16.mxu0 %v6287
    %7418 = vmatpush1.bf16.msra.mxu0 %v6286
    %7419 = vmatprep.subr.bf16.mxu0 %v6289
    %7420 = vmatpush1.bf16.msra.mxu0 %v6288
    %7421 = vmatprep.subr.bf16.mxu0 %v6291
    %7422 = vmatpush1.bf16.msra.mxu0 %v6290
    %7423 = vmatprep.subr.bf16.mxu0 %v6293
    %7424 = vmatpush1.bf16.msra.mxu0 %v6292
    %7425 = vmatprep.subr.bf16.mxu0 %v6295
    %7426 = vmatpush1.bf16.msra.mxu0 %v6294
    %7427 = vmatprep.mubr.bf16.mxu0 %v3948
    %7428 = vmatmul.mubr.bf16.gmra.mrb[0].mxu0 %v3947
    %v7429 = vpop.f32.mrb[0].mxu0
    %v7430 = vadd.f32 %v7387, %v7429
    %v7431 = vpop.f32.mrb[0].mxu0
    %v7432 = vadd.f32 %v7389, %v7431
    %v7433 = vpop.f32.mrb[0].mxu0
    %v7434 = vadd.f32 %v7391, %v7433
    %v7435 = vpop.f32.mrb[0].mxu0
    %v7436 = vadd.f32 %v7393, %v7435
    %7437 = vdwg.mxu0
    %7438 = vmatprep.subr.bf16.mxu0 %v6297
    %7439 = vmatpush1.bf16.msra.mxu0 %v6296
    %7440 = vmatprep.subr.bf16.mxu0 %v6299
    %7441 = vmatpush1.bf16.msra.mxu0 %v6298
    %7442 = vmatprep.subr.bf16.mxu0 %v6301
    %7443 = vmatpush1.bf16.msra.mxu0 %v6300
    %7444 = vmatprep.subr.bf16.mxu0 %v6303
    %7445 = vmatpush1.bf16.msra.mxu0 %v6302
    %7446 = vmatprep.subr.bf16.mxu0 %v6305
    %7447 = vmatpush1.bf16.msra.mxu0 %v6304
    %7448 = vmatprep.subr.bf16.mxu0 %v6307
    %7449 = vmatpush1.bf16.msra.mxu0 %v6306
    %7450 = vmatprep.subr.bf16.mxu0 %v6309
    %7451 = vmatpush1.bf16.msra.mxu0 %v6308
    %7452 = vmatprep.subr.bf16.mxu0 %v6311
    %7453 = vmatpush1.bf16.msra.mxu0 %v6310
    %7454 = vmatprep.subr.bf16.mxu0 %v6313
    %7455 = vmatpush1.bf16.msra.mxu0 %v6312
    %7456 = vmatprep.subr.bf16.mxu0 %v6315
    %7457 = vmatpush1.bf16.msra.mxu0 %v6314
    %7458 = vmatprep.subr.bf16.mxu0 %v6317
    %7459 = vmatpush1.bf16.msra.mxu0 %v6316
    %7460 = vmatprep.subr.bf16.mxu0 %v6319
    %7461 = vmatpush1.bf16.msra.mxu0 %v6318
    %7462 = vmatprep.subr.bf16.mxu0 %v6321
    %7463 = vmatpush1.bf16.msra.mxu0 %v6320
    %7464 = vmatprep.subr.bf16.mxu0 %v6323
    %7465 = vmatpush1.bf16.msra.mxu0 %v6322
    %7466 = vmatprep.subr.bf16.mxu0 %v6325
    %7467 = vmatpush1.bf16.msra.mxu0 %v6324
    %7468 = vmatprep.subr.bf16.mxu0 %v6327
    %7469 = vmatpush1.bf16.msra.mxu0 %v6326
    %7470 = vmatprep.mubr.bf16.mxu0 %v3950
    %7471 = vmatmul.mubr.bf16.gmra.mrb[0].mxu0 %v3949
    %v7472 = vpop.f32.mrb[0].mxu0
    %v7473 = vadd.f32 %v7430, %v7472
    %v7474 = vpop.f32.mrb[0].mxu0
    %v7475 = vadd.f32 %v7432, %v7474
    %v7476 = vpop.f32.mrb[0].mxu0
    %v7477 = vadd.f32 %v7434, %v7476
    %v7478 = vpop.f32.mrb[0].mxu0
    %v7479 = vadd.f32 %v7436, %v7478
    %7480 = vdwg.mxu0
    %7481 = vmatprep.subr.bf16.mxu0 %v6329
    %7482 = vmatpush1.bf16.msra.mxu0 %v6328
    %7483 = vmatprep.subr.bf16.mxu0 %v6331
    %7484 = vmatpush1.bf16.msra.mxu0 %v6330
    %7485 = vmatprep.subr.bf16.mxu0 %v6333
    %7486 = vmatpush1.bf16.msra.mxu0 %v6332
    %7487 = vmatprep.subr.bf16.mxu0 %v6335
    %7488 = vmatpush1.bf16.msra.mxu0 %v6334
    %7489 = vmatprep.subr.bf16.mxu0 %v6337
    %7490 = vmatpush1.bf16.msra.mxu0 %v6336
    %7491 = vmatprep.subr.bf16.mxu0 %v6339
    %7492 = vmatpush1.bf16.msra.mxu0 %v6338
    %7493 = vmatprep.subr.bf16.mxu0 %v6341
    %7494 = vmatpush1.bf16.msra.mxu0 %v6340
    %7495 = vmatprep.subr.bf16.mxu0 %v6343
    %7496 = vmatpush1.bf16.msra.mxu0 %v6342
    %7497 = vmatprep.subr.bf16.mxu0 %v6345
    %7498 = vmatpush1.bf16.msra.mxu0 %v6344
    %7499 = vmatprep.subr.bf16.mxu0 %v6347
    %7500 = vmatpush1.bf16.msra.mxu0 %v6346
    %7501 = vmatprep.subr.bf16.mxu0 %v6349
    %7502 = vmatpush1.bf16.msra.mxu0 %v6348
    %7503 = vmatprep.subr.bf16.mxu0 %v6351
    %7504 = vmatpush1.bf16.msra.mxu0 %v6350
    %7505 = vmatprep.subr.bf16.mxu0 %v6353
    %7506 = vmatpush1.bf16.msra.mxu0 %v6352
    %7507 = vmatprep.subr.bf16.mxu0 %v6355
    %7508 = vmatpush1.bf16.msra.mxu0 %v6354
    %7509 = vmatprep.subr.bf16.mxu0 %v6357
    %7510 = vmatpush1.bf16.msra.mxu0 %v6356
    %7511 = vmatprep.subr.bf16.mxu0 %v6359
    %7512 = vmatpush1.bf16.msra.mxu0 %v6358
    %7513 = vmatprep.mubr.bf16.mxu0 %v3952
    %7514 = vmatmul.mubr.bf16.gmra.mrb[0].mxu0 %v3951
    %v7515 = vpop.f32.mrb[0].mxu0
    %v7516 = vadd.f32 %v7473, %v7515
    %v7517 = vpop.f32.mrb[0].mxu0
    %v7518 = vadd.f32 %v7475, %v7517
    %v7519 = vpop.f32.mrb[0].mxu0
    %v7520 = vadd.f32 %v7477, %v7519
    %v7521 = vpop.f32.mrb[0].mxu0
    %v7522 = vadd.f32 %v7479, %v7521
    %7523 = vdwg.mxu0
    %7524 = vmatprep.subr.bf16.mxu0 %v6361
    %7525 = vmatpush1.bf16.msra.mxu0 %v6360
    %7526 = vmatprep.subr.bf16.mxu0 %v6363
    %7527 = vmatpush1.bf16.msra.mxu0 %v6362
    %7528 = vmatprep.subr.bf16.mxu0 %v6365
    %7529 = vmatpush1.bf16.msra.mxu0 %v6364
    %7530 = vmatprep.subr.bf16.mxu0 %v6367
    %7531 = vmatpush1.bf16.msra.mxu0 %v6366
    %7532 = vmatprep.subr.bf16.mxu0 %v6369
    %7533 = vmatpush1.bf16.msra.mxu0 %v6368
    %7534 = vmatprep.subr.bf16.mxu0 %v6371
    %7535 = vmatpush1.bf16.msra.mxu0 %v6370
    %7536 = vmatprep.subr.bf16.mxu0 %v6373
    %7537 = vmatpush1.bf16.msra.mxu0 %v6372
    %7538 = vmatprep.subr.bf16.mxu0 %v6375
    %7539 = vmatpush1.bf16.msra.mxu0 %v6374
    %7540 = vmatprep.subr.bf16.mxu0 %v6377
    %7541 = vmatpush1.bf16.msra.mxu0 %v6376
    %7542 = vmatprep.subr.bf16.mxu0 %v6379
    %7543 = vmatpush1.bf16.msra.mxu0 %v6378
    %7544 = vmatprep.subr.bf16.mxu0 %v6381
    %7545 = vmatpush1.bf16.msra.mxu0 %v6380
    %7546 = vmatprep.subr.bf16.mxu0 %v6383
    %7547 = vmatpush1.bf16.msra.mxu0 %v6382
    %7548 = vmatprep.subr.bf16.mxu0 %v6385
    %7549 = vmatpush1.bf16.msra.mxu0 %v6384
    %7550 = vmatprep.subr.bf16.mxu0 %v6387
    %7551 = vmatpush1.bf16.msra.mxu0 %v6386
    %7552 = vmatprep.subr.bf16.mxu0 %v6389
    %7553 = vmatpush1.bf16.msra.mxu0 %v6388
    %7554 = vmatprep.subr.bf16.mxu0 %v6391
    %7555 = vmatpush1.bf16.msra.mxu0 %v6390
    %7556 = vmatprep.mubr.bf16.mxu0 %v3954
    %7557 = vmatmul.mubr.bf16.gmra.mrb[0].mxu0 %v3953
    %v7558 = vpop.f32.mrb[0].mxu0
    %v7559 = vadd.f32 %v7516, %v7558
    %v7560 = vpop.f32.mrb[0].mxu0
    %v7561 = vadd.f32 %v7518, %v7560
    %v7562 = vpop.f32.mrb[0].mxu0
    %v7563 = vadd.f32 %v7520, %v7562
    %v7564 = vpop.f32.mrb[0].mxu0
    %v7565 = vadd.f32 %v7522, %v7564
    %7566 = vdwg.mxu0
    %7567 = vmatprep.subr.bf16.mxu0 %v6393
    %7568 = vmatpush1.bf16.msra.mxu0 %v6392
    %7569 = vmatprep.subr.bf16.mxu0 %v6395
    %7570 = vmatpush1.bf16.msra.mxu0 %v6394
    %7571 = vmatprep.subr.bf16.mxu0 %v6397
    %7572 = vmatpush1.bf16.msra.mxu0 %v6396
    %7573 = vmatprep.subr.bf16.mxu0 %v6399
    %7574 = vmatpush1.bf16.msra.mxu0 %v6398
    %7575 = vmatprep.subr.bf16.mxu0 %v6401
    %7576 = vmatpush1.bf16.msra.mxu0 %v6400
    %7577 = vmatprep.subr.bf16.mxu0 %v6403
    %7578 = vmatpush1.bf16.msra.mxu0 %v6402
    %7579 = vmatprep.subr.bf16.mxu0 %v6405
    %7580 = vmatpush1.bf16.msra.mxu0 %v6404
    %7581 = vmatprep.subr.bf16.mxu0 %v6407
    %7582 = vmatpush1.bf16.msra.mxu0 %v6406
    %7583 = vmatprep.subr.bf16.mxu0 %v6409
    %7584 = vmatpush1.bf16.msra.mxu0 %v6408
    %7585 = vmatprep.subr.bf16.mxu0 %v6411
    %7586 = vmatpush1.bf16.msra.mxu0 %v6410
    %7587 = vmatprep.subr.bf16.mxu0 %v6413
    %7588 = vmatpush1.bf16.msra.mxu0 %v6412
    %7589 = vmatprep.subr.bf16.mxu0 %v6415
    %7590 = vmatpush1.bf16.msra.mxu0 %v6414
    %7591 = vmatprep.subr.bf16.mxu0 %v6417
    %7592 = vmatpush1.bf16.msra.mxu0 %v6416
    %7593 = vmatprep.subr.bf16.mxu0 %v6419
    %7594 = vmatpush1.bf16.msra.mxu0 %v6418
    %7595 = vmatprep.subr.bf16.mxu0 %v6421
    %7596 = vmatpush1.bf16.msra.mxu0 %v6420
    %7597 = vmatprep.subr.bf16.mxu0 %v6423
    %7598 = vmatpush1.bf16.msra.mxu0 %v6422
    %7599 = vmatprep.mubr.bf16.mxu0 %v3956
    %7600 = vmatmul.mubr.bf16.gmra.mrb[0].mxu0 %v3955
    %v7601 = vpop.f32.mrb[0].mxu0
    %v7602 = vadd.f32 %v7559, %v7601
    %v7603 = vpop.f32.mrb[0].mxu0
    %v7604 = vadd.f32 %v7561, %v7603
    %v7605 = vpop.f32.mrb[0].mxu0
    %v7606 = vadd.f32 %v7563, %v7605
    %v7607 = vpop.f32.mrb[0].mxu0
    %v7608 = vadd.f32 %v7565, %v7607
    %7609 = vdwg.mxu0
    %7610 = vmatprep.subr.bf16.mxu0 %v6425
    %7611 = vmatpush1.bf16.msra.mxu0 %v6424
    %7612 = vmatprep.subr.bf16.mxu0 %v6427
    %7613 = vmatpush1.bf16.msra.mxu0 %v6426
    %7614 = vmatprep.subr.bf16.mxu0 %v6429
    %7615 = vmatpush1.bf16.msra.mxu0 %v6428
    %7616 = vmatprep.subr.bf16.mxu0 %v6431
    %7617 = vmatpush1.bf16.msra.mxu0 %v6430
    %7618 = vmatprep.subr.bf16.mxu0 %v6433
    %7619 = vmatpush1.bf16.msra.mxu0 %v6432
    %7620 = vmatprep.subr.bf16.mxu0 %v6435
    %7621 = vmatpush1.bf16.msra.mxu0 %v6434
    %7622 = vmatprep.subr.bf16.mxu0 %v6437
    %7623 = vmatpush1.bf16.msra.mxu0 %v6436
    %7624 = vmatprep.subr.bf16.mxu0 %v6439
    %7625 = vmatpush1.bf16.msra.mxu0 %v6438
    %7626 = vmatprep.subr.bf16.mxu0 %v6441
    %7627 = vmatpush1.bf16.msra.mxu0 %v6440
    %7628 = vmatprep.subr.bf16.mxu0 %v6443
    %7629 = vmatpush1.bf16.msra.mxu0 %v6442
    %7630 = vmatprep.subr.bf16.mxu0 %v6445
    %7631 = vmatpush1.bf16.msra.mxu0 %v6444
    %7632 = vmatprep.subr.bf16.mxu0 %v6447
    %7633 = vmatpush1.bf16.msra.mxu0 %v6446
    %7634 = vmatprep.subr.bf16.mxu0 %v6449
    %7635 = vmatpush1.bf16.msra.mxu0 %v6448
    %7636 = vmatprep.subr.bf16.mxu0 %v6451
    %7637 = vmatpush1.bf16.msra.mxu0 %v6450
    %7638 = vmatprep.subr.bf16.mxu0 %v6453
    %7639 = vmatpush1.bf16.msra.mxu0 %v6452
    %7640 = vmatprep.subr.bf16.mxu0 %v6455
    %7641 = vmatpush1.bf16.msra.mxu0 %v6454
    %7642 = vmatprep.mubr.bf16.mxu0 %v3958
    %7643 = vmatmul.mubr.bf16.gmra.mrb[0].mxu0 %v3957
    %v7644 = vpop.f32.mrb[0].mxu0
    %v7645 = vadd.f32 %v7602, %v7644
    %v7646 = vpop.f32.mrb[0].mxu0
    %v7647 = vadd.f32 %v7604, %v7646
    %v7648 = vpop.f32.mrb[0].mxu0
    %v7649 = vadd.f32 %v7606, %v7648
    %v7650 = vpop.f32.mrb[0].mxu0
    %v7651 = vadd.f32 %v7608, %v7650
    %7652 = vdwg.mxu0
    %7653 = vmatprep.subr.bf16.mxu0 %v6457
    %7654 = vmatpush1.bf16.msra.mxu0 %v6456
    %7655 = vmatprep.subr.bf16.mxu0 %v6459
    %7656 = vmatpush1.bf16.msra.mxu0 %v6458
    %7657 = vmatprep.subr.bf16.mxu0 %v6461
    %7658 = vmatpush1.bf16.msra.mxu0 %v6460
    %7659 = vmatprep.subr.bf16.mxu0 %v6463
    %7660 = vmatpush1.bf16.msra.mxu0 %v6462
    %7661 = vmatprep.subr.bf16.mxu0 %v6465
    %7662 = vmatpush1.bf16.msra.mxu0 %v6464
    %7663 = vmatprep.subr.bf16.mxu0 %v6467
    %7664 = vmatpush1.bf16.msra.mxu0 %v6466
    %7665 = vmatprep.subr.bf16.mxu0 %v6469
    %7666 = vmatpush1.bf16.msra.mxu0 %v6468
    %7667 = vmatprep.subr.bf16.mxu0 %v6471
    %7668 = vmatpush1.bf16.msra.mxu0 %v6470
    %7669 = vmatprep.subr.bf16.mxu0 %v6473
    %7670 = vmatpush1.bf16.msra.mxu0 %v6472
    %7671 = vmatprep.subr.bf16.mxu0 %v6475
    %7672 = vmatpush1.bf16.msra.mxu0 %v6474
    %7673 = vmatprep.subr.bf16.mxu0 %v6477
    %7674 = vmatpush1.bf16.msra.mxu0 %v6476
    %7675 = vmatprep.subr.bf16.mxu0 %v6479
    %7676 = vmatpush1.bf16.msra.mxu0 %v6478
    %7677 = vmatprep.subr.bf16.mxu0 %v6481
    %7678 = vmatpush1.bf16.msra.mxu0 %v6480
    %7679 = vmatprep.subr.bf16.mxu0 %v6483
    %7680 = vmatpush1.bf16.msra.mxu0 %v6482
    %7681 = vmatprep.subr.bf16.mxu0 %v6485
    %7682 = vmatpush1.bf16.msra.mxu0 %v6484
    %7683 = vmatprep.subr.bf16.mxu0 %v6487
    %7684 = vmatpush1.bf16.msra.mxu0 %v6486
    %7685 = vmatprep.mubr.bf16.mxu0 %v3960
    %7686 = vmatmul.mubr.bf16.gmra.mrb[0].mxu0 %v3959
    %v7687 = vpop.f32.mrb[0].mxu0
    %v7688 = vadd.f32 %v7645, %v7687
    %v7689 = vpop.f32.mrb[0].mxu0
    %v7690 = vadd.f32 %v7647, %v7689
    %v7691 = vpop.f32.mrb[0].mxu0
    %v7692 = vadd.f32 %v7649, %v7691
    %v7693 = vpop.f32.mrb[0].mxu0
    %v7694 = vadd.f32 %v7651, %v7693
    %7695 = vdwg.mxu0
    %7696 = vmatprep.subr.bf16.mxu0 %v6489
    %7697 = vmatpush1.bf16.msra.mxu0 %v6488
    %7698 = vmatprep.subr.bf16.mxu0 %v6491
    %7699 = vmatpush1.bf16.msra.mxu0 %v6490
    %7700 = vmatprep.subr.bf16.mxu0 %v6493
    %7701 = vmatpush1.bf16.msra.mxu0 %v6492
    %7702 = vmatprep.subr.bf16.mxu0 %v6495
    %7703 = vmatpush1.bf16.msra.mxu0 %v6494
    %7704 = vmatprep.subr.bf16.mxu0 %v6497
    %7705 = vmatpush1.bf16.msra.mxu0 %v6496
    %7706 = vmatprep.subr.bf16.mxu0 %v6499
    %7707 = vmatpush1.bf16.msra.mxu0 %v6498
    %7708 = vmatprep.subr.bf16.mxu0 %v6501
    %7709 = vmatpush1.bf16.msra.mxu0 %v6500
    %7710 = vmatprep.subr.bf16.mxu0 %v6503
    %7711 = vmatpush1.bf16.msra.mxu0 %v6502
    %7712 = vmatprep.subr.bf16.mxu0 %v6505
    %7713 = vmatpush1.bf16.msra.mxu0 %v6504
    %7714 = vmatprep.subr.bf16.mxu0 %v6507
    %7715 = vmatpush1.bf16.msra.mxu0 %v6506
    %7716 = vmatprep.subr.bf16.mxu0 %v6509
    %7717 = vmatpush1.bf16.msra.mxu0 %v6508
    %7718 = vmatprep.subr.bf16.mxu0 %v6511
    %7719 = vmatpush1.bf16.msra.mxu0 %v6510
    %7720 = vmatprep.subr.bf16.mxu0 %v6513
    %7721 = vmatpush1.bf16.msra.mxu0 %v6512
    %7722 = vmatprep.subr.bf16.mxu0 %v6515
    %7723 = vmatpush1.bf16.msra.mxu0 %v6514
    %7724 = vmatprep.subr.bf16.mxu0 %v6517
    %7725 = vmatpush1.bf16.msra.mxu0 %v6516
    %7726 = vmatprep.subr.bf16.mxu0 %v6519
    %7727 = vmatpush1.bf16.msra.mxu0 %v6518
    %7728 = vmatprep.mubr.bf16.mxu0 %v3962
    %7729 = vmatmul.mubr.bf16.gmra.mrb[0].mxu0 %v3961
    %v7730 = vpop.f32.mrb[0].mxu0
    %v7731 = vadd.f32 %v7688, %v7730
    %v7732 = vpop.f32.mrb[0].mxu0
    %v7733 = vadd.f32 %v7690, %v7732
    %v7734 = vpop.f32.mrb[0].mxu0
    %v7735 = vadd.f32 %v7692, %v7734
    %v7736 = vpop.f32.mrb[0].mxu0
    %v7737 = vadd.f32 %v7694, %v7736
    %7738 = vdwg.mxu0
    %7739 = vmatprep.subr.bf16.mxu0 %v6521
    %7740 = vmatpush1.bf16.msra.mxu0 %v6520
    %7741 = vmatprep.subr.bf16.mxu0 %v6523
    %7742 = vmatpush1.bf16.msra.mxu0 %v6522
    %7743 = vmatprep.subr.bf16.mxu0 %v6525
    %7744 = vmatpush1.bf16.msra.mxu0 %v6524
    %7745 = vmatprep.subr.bf16.mxu0 %v6527
    %7746 = vmatpush1.bf16.msra.mxu0 %v6526
    %7747 = vmatprep.subr.bf16.mxu0 %v6529
    %7748 = vmatpush1.bf16.msra.mxu0 %v6528
    %7749 = vmatprep.subr.bf16.mxu0 %v6531
    %7750 = vmatpush1.bf16.msra.mxu0 %v6530
    %7751 = vmatprep.subr.bf16.mxu0 %v6533
    %7752 = vmatpush1.bf16.msra.mxu0 %v6532
    %7753 = vmatprep.subr.bf16.mxu0 %v6535
    %7754 = vmatpush1.bf16.msra.mxu0 %v6534
    %7755 = vmatprep.subr.bf16.mxu0 %v6537
    %7756 = vmatpush1.bf16.msra.mxu0 %v6536
    %7757 = vmatprep.subr.bf16.mxu0 %v6539
    %7758 = vmatpush1.bf16.msra.mxu0 %v6538
    %7759 = vmatprep.subr.bf16.mxu0 %v6541
    %7760 = vmatpush1.bf16.msra.mxu0 %v6540
    %7761 = vmatprep.subr.bf16.mxu0 %v6543
    %7762 = vmatpush1.bf16.msra.mxu0 %v6542
    %7763 = vmatprep.subr.bf16.mxu0 %v6545
    %7764 = vmatpush1.bf16.msra.mxu0 %v6544
    %7765 = vmatprep.subr.bf16.mxu0 %v6547
    %7766 = vmatpush1.bf16.msra.mxu0 %v6546
    %7767 = vmatprep.subr.bf16.mxu0 %v6549
    %7768 = vmatpush1.bf16.msra.mxu0 %v6548
    %7769 = vmatprep.subr.bf16.mxu0 %v6551
    %7770 = vmatpush1.bf16.msra.mxu0 %v6550
    %7771 = vmatprep.mubr.bf16.mxu0 %v3964
    %7772 = vmatmul.mubr.bf16.gmra.mrb[0].mxu0 %v3963
    %v7773 = vpop.f32.mrb[0].mxu0
    %v7774 = vadd.f32 %v7731, %v7773
    %v7775 = vpop.f32.mrb[0].mxu0
    %v7776 = vadd.f32 %v7733, %v7775
    %v7777 = vpop.f32.mrb[0].mxu0
    %v7778 = vadd.f32 %v7735, %v7777
    %v7779 = vpop.f32.mrb[0].mxu0
    %v7780 = vadd.f32 %v7737, %v7779
    %7781 = vdwg.mxu0
    %7782 = vmatprep.subr.bf16.mxu0 %v6553
    %7783 = vmatpush1.bf16.msra.mxu0 %v6552
    %7784 = vmatprep.subr.bf16.mxu0 %v6555
    %7785 = vmatpush1.bf16.msra.mxu0 %v6554
    %7786 = vmatprep.subr.bf16.mxu0 %v6557
    %7787 = vmatpush1.bf16.msra.mxu0 %v6556
    %7788 = vmatprep.subr.bf16.mxu0 %v6559
    %7789 = vmatpush1.bf16.msra.mxu0 %v6558
    %7790 = vmatprep.subr.bf16.mxu0 %v6561
    %7791 = vmatpush1.bf16.msra.mxu0 %v6560
    %7792 = vmatprep.subr.bf16.mxu0 %v6563
    %7793 = vmatpush1.bf16.msra.mxu0 %v6562
    %7794 = vmatprep.subr.bf16.mxu0 %v6565
    %7795 = vmatpush1.bf16.msra.mxu0 %v6564
    %7796 = vmatprep.subr.bf16.mxu0 %v6567
    %7797 = vmatpush1.bf16.msra.mxu0 %v6566
    %7798 = vmatprep.subr.bf16.mxu0 %v6569
    %7799 = vmatpush1.bf16.msra.mxu0 %v6568
    %7800 = vmatprep.subr.bf16.mxu0 %v6571
    %7801 = vmatpush1.bf16.msra.mxu0 %v6570
    %7802 = vmatprep.subr.bf16.mxu0 %v6573
    %7803 = vmatpush1.bf16.msra.mxu0 %v6572
    %7804 = vmatprep.subr.bf16.mxu0 %v6575
    %7805 = vmatpush1.bf16.msra.mxu0 %v6574
    %7806 = vmatprep.subr.bf16.mxu0 %v6577
    %7807 = vmatpush1.bf16.msra.mxu0 %v6576
    %7808 = vmatprep.subr.bf16.mxu0 %v6579
    %7809 = vmatpush1.bf16.msra.mxu0 %v6578
    %7810 = vmatprep.subr.bf16.mxu0 %v6581
    %7811 = vmatpush1.bf16.msra.mxu0 %v6580
    %7812 = vmatprep.subr.bf16.mxu0 %v6583
    %7813 = vmatpush1.bf16.msra.mxu0 %v6582
    %7814 = vmatprep.mubr.bf16.mxu0 %v3966
    %7815 = vmatmul.mubr.bf16.gmra.mrb[0].mxu0 %v3965
    %v7816 = vpop.f32.mrb[0].mxu0
    %v7817 = vadd.f32 %v7774, %v7816
    %v7818 = vpop.f32.mrb[0].mxu0
    %v7819 = vadd.f32 %v7776, %v7818
    %v7820 = vpop.f32.mrb[0].mxu0
    %v7821 = vadd.f32 %v7778, %v7820
    %v7822 = vpop.f32.mrb[0].mxu0
    %v7823 = vadd.f32 %v7780, %v7822
    %7824 = vdwg.mxu0
    %7825 = vmatprep.subr.bf16.mxu0 %v6585
    %7826 = vmatpush1.bf16.msra.mxu0 %v6584
    %7827 = vmatprep.subr.bf16.mxu0 %v6587
    %7828 = vmatpush1.bf16.msra.mxu0 %v6586
    %7829 = vmatprep.subr.bf16.mxu0 %v6589
    %7830 = vmatpush1.bf16.msra.mxu0 %v6588
    %7831 = vmatprep.subr.bf16.mxu0 %v6591
    %7832 = vmatpush1.bf16.msra.mxu0 %v6590
    %7833 = vmatprep.subr.bf16.mxu0 %v6593
    %7834 = vmatpush1.bf16.msra.mxu0 %v6592
    %7835 = vmatprep.subr.bf16.mxu0 %v6595
    %7836 = vmatpush1.bf16.msra.mxu0 %v6594
    %7837 = vmatprep.subr.bf16.mxu0 %v6597
    %7838 = vmatpush1.bf16.msra.mxu0 %v6596
    %7839 = vmatprep.subr.bf16.mxu0 %v6599
    %7840 = vmatpush1.bf16.msra.mxu0 %v6598
    %7841 = vmatprep.subr.bf16.mxu0 %v6601
    %7842 = vmatpush1.bf16.msra.mxu0 %v6600
    %7843 = vmatprep.subr.bf16.mxu0 %v6603
    %7844 = vmatpush1.bf16.msra.mxu0 %v6602
    %7845 = vmatprep.subr.bf16.mxu0 %v6605
    %7846 = vmatpush1.bf16.msra.mxu0 %v6604
    %7847 = vmatprep.subr.bf16.mxu0 %v6607
    %7848 = vmatpush1.bf16.msra.mxu0 %v6606
    %7849 = vmatprep.subr.bf16.mxu0 %v6609
    %7850 = vmatpush1.bf16.msra.mxu0 %v6608
    %7851 = vmatprep.subr.bf16.mxu0 %v6611
    %7852 = vmatpush1.bf16.msra.mxu0 %v6610
    %7853 = vmatprep.subr.bf16.mxu0 %v6613
    %7854 = vmatpush1.bf16.msra.mxu0 %v6612
    %7855 = vmatprep.subr.bf16.mxu0 %v6615
    %7856 = vmatpush1.bf16.msra.mxu0 %v6614
    %7857 = vmatprep.mubr.bf16.mxu0 %v3968
    %7858 = vmatmul.mubr.bf16.gmra.mrb[0].mxu0 %v3967
    %v7859 = vpop.f32.mrb[0].mxu0
    %v7860 = vadd.f32 %v7817, %v7859
    %v7861 = vpop.f32.mrb[0].mxu0
    %v7862 = vadd.f32 %v7819, %v7861
    %v7863 = vpop.f32.mrb[0].mxu0
    %v7864 = vadd.f32 %v7821, %v7863
    %v7865 = vpop.f32.mrb[0].mxu0
    %v7866 = vadd.f32 %v7823, %v7865
    %7867 = vdwg.mxu0
    %7868 = vmatprep.subr.bf16.mxu0 %v6617
    %7869 = vmatpush1.bf16.msra.mxu0 %v6616
    %7870 = vmatprep.subr.bf16.mxu0 %v6619
    %7871 = vmatpush1.bf16.msra.mxu0 %v6618
    %7872 = vmatprep.subr.bf16.mxu0 %v6621
    %7873 = vmatpush1.bf16.msra.mxu0 %v6620
    %7874 = vmatprep.subr.bf16.mxu0 %v6623
    %7875 = vmatpush1.bf16.msra.mxu0 %v6622
    %7876 = vmatprep.subr.bf16.mxu0 %v6625
    %7877 = vmatpush1.bf16.msra.mxu0 %v6624
    %7878 = vmatprep.subr.bf16.mxu0 %v6627
    %7879 = vmatpush1.bf16.msra.mxu0 %v6626
    %7880 = vmatprep.subr.bf16.mxu0 %v6629
    %7881 = vmatpush1.bf16.msra.mxu0 %v6628
    %7882 = vmatprep.subr.bf16.mxu0 %v6631
    %7883 = vmatpush1.bf16.msra.mxu0 %v6630
    %7884 = vmatprep.subr.bf16.mxu0 %v6633
    %7885 = vmatpush1.bf16.msra.mxu0 %v6632
    %7886 = vmatprep.subr.bf16.mxu0 %v6635
    %7887 = vmatpush1.bf16.msra.mxu0 %v6634
    %7888 = vmatprep.subr.bf16.mxu0 %v6637
    %7889 = vmatpush1.bf16.msra.mxu0 %v6636
    %7890 = vmatprep.subr.bf16.mxu0 %v6639
    %7891 = vmatpush1.bf16.msra.mxu0 %v6638
    %7892 = vmatprep.subr.bf16.mxu0 %v6641
    %7893 = vmatpush1.bf16.msra.mxu0 %v6640
    %7894 = vmatprep.subr.bf16.mxu0 %v6643
    %7895 = vmatpush1.bf16.msra.mxu0 %v6642
    %7896 = vmatprep.subr.bf16.mxu0 %v6645
    %7897 = vmatpush1.bf16.msra.mxu0 %v6644
    %7898 = vmatprep.subr.bf16.mxu0 %v6647
    %7899 = vmatpush1.bf16.msra.mxu0 %v6646
    %7900 = vmatprep.mubr.bf16.mxu0 %v3970
    %7901 = vmatmul.mubr.bf16.gmra.mrb[0].mxu0 %v3969
    %v7902 = vpop.f32.mrb[0].mxu0
    %v7903 = vadd.f32 %v7860, %v7902
    %v7904 = vpop.f32.mrb[0].mxu0
    %v7905 = vadd.f32 %v7862, %v7904
    %v7906 = vpop.f32.mrb[0].mxu0
    %v7907 = vadd.f32 %v7864, %v7906
    %v7908 = vpop.f32.mrb[0].mxu0
    %v7909 = vadd.f32 %v7866, %v7908
    %7910 = vdwg.mxu0
    %7911 = vmatprep.subr.bf16.mxu0 %v6649
    %7912 = vmatpush1.bf16.msra.mxu0 %v6648
    %7913 = vmatprep.subr.bf16.mxu0 %v6651
    %7914 = vmatpush1.bf16.msra.mxu0 %v6650
    %7915 = vmatprep.subr.bf16.mxu0 %v6653
    %7916 = vmatpush1.bf16.msra.mxu0 %v6652
    %7917 = vmatprep.subr.bf16.mxu0 %v6655
    %7918 = vmatpush1.bf16.msra.mxu0 %v6654
    %7919 = vmatprep.subr.bf16.mxu0 %v6657
    %7920 = vmatpush1.bf16.msra.mxu0 %v6656
    %7921 = vmatprep.subr.bf16.mxu0 %v6659
    %7922 = vmatpush1.bf16.msra.mxu0 %v6658
    %7923 = vmatprep.subr.bf16.mxu0 %v6661
    %7924 = vmatpush1.bf16.msra.mxu0 %v6660
    %7925 = vmatprep.subr.bf16.mxu0 %v6663
    %7926 = vmatpush1.bf16.msra.mxu0 %v6662
    %7927 = vmatprep.subr.bf16.mxu0 %v6665
    %7928 = vmatpush1.bf16.msra.mxu0 %v6664
    %7929 = vmatprep.subr.bf16.mxu0 %v6667
    %7930 = vmatpush1.bf16.msra.mxu0 %v6666
    %7931 = vmatprep.subr.bf16.mxu0 %v6669
    %7932 = vmatpush1.bf16.msra.mxu0 %v6668
    %7933 = vmatprep.subr.bf16.mxu0 %v6671
    %7934 = vmatpush1.bf16.msra.mxu0 %v6670
    %7935 = vmatprep.subr.bf16.mxu0 %v6673
    %7936 = vmatpush1.bf16.msra.mxu0 %v6672
    %7937 = vmatprep.subr.bf16.mxu0 %v6675
    %7938 = vmatpush1.bf16.msra.mxu0 %v6674
    %7939 = vmatprep.subr.bf16.mxu0 %v6677
    %7940 = vmatpush1.bf16.msra.mxu0 %v6676
    %7941 = vmatprep.subr.bf16.mxu0 %v6679
    %7942 = vmatpush1.bf16.msra.mxu0 %v6678
    %7943 = vmatprep.mubr.bf16.mxu0 %v3972
    %7944 = vmatmul.mubr.bf16.gmra.mrb[0].mxu0 %v3971
    %v7945 = vpop.f32.mrb[0].mxu0
    %v7946 = vadd.f32 %v7903, %v7945
    %v7947 = vpop.f32.mrb[0].mxu0
    %v7948 = vadd.f32 %v7905, %v7947
    %v7949 = vpop.f32.mrb[0].mxu0
    %v7950 = vadd.f32 %v7907, %v7949
    %v7951 = vpop.f32.mrb[0].mxu0
    %v7952 = vadd.f32 %v7909, %v7951
    %7953 = vdwg.mxu0
    %7954 = vmatprep.subr.bf16.mxu0 %v6681
    %7955 = vmatpush1.bf16.msra.mxu0 %v6680
    %7956 = vmatprep.subr.bf16.mxu0 %v6683
    %7957 = vmatpush1.bf16.msra.mxu0 %v6682
    %7958 = vmatprep.subr.bf16.mxu0 %v6685
    %7959 = vmatpush1.bf16.msra.mxu0 %v6684
    %7960 = vmatprep.subr.bf16.mxu0 %v6687
    %7961 = vmatpush1.bf16.msra.mxu0 %v6686
    %7962 = vmatprep.subr.bf16.mxu0 %v6689
    %7963 = vmatpush1.bf16.msra.mxu0 %v6688
    %7964 = vmatprep.subr.bf16.mxu0 %v6691
    %7965 = vmatpush1.bf16.msra.mxu0 %v6690
    %7966 = vmatprep.subr.bf16.mxu0 %v6693
    %7967 = vmatpush1.bf16.msra.mxu0 %v6692
    %7968 = vmatprep.subr.bf16.mxu0 %v6695
    %7969 = vmatpush1.bf16.msra.mxu0 %v6694
    %7970 = vmatprep.subr.bf16.mxu0 %v6697
    %7971 = vmatpush1.bf16.msra.mxu0 %v6696
    %7972 = vmatprep.subr.bf16.mxu0 %v6699
    %7973 = vmatpush1.bf16.msra.mxu0 %v6698
    %7974 = vmatprep.subr.bf16.mxu0 %v6701
    %7975 = vmatpush1.bf16.msra.mxu0 %v6700
    %7976 = vmatprep.subr.bf16.mxu0 %v6703
    %7977 = vmatpush1.bf16.msra.mxu0 %v6702
    %7978 = vmatprep.subr.bf16.mxu0 %v6705
    %7979 = vmatpush1.bf16.msra.mxu0 %v6704
    %7980 = vmatprep.subr.bf16.mxu0 %v6707
    %7981 = vmatpush1.bf16.msra.mxu0 %v6706
    %7982 = vmatprep.subr.bf16.mxu0 %v6709
    %7983 = vmatpush1.bf16.msra.mxu0 %v6708
    %7984 = vmatprep.subr.bf16.mxu0 %v6711
    %7985 = vmatpush1.bf16.msra.mxu0 %v6710
    %7986 = vmatprep.mubr.bf16.mxu0 %v3974
    %7987 = vmatmul.mubr.bf16.gmra.mrb[0].mxu0 %v3973
    %v7988 = vpop.f32.mrb[0].mxu0
    %v7989 = vadd.f32 %v7946, %v7988
    %v7990 = vpop.f32.mrb[0].mxu0
    %v7991 = vadd.f32 %v7948, %v7990
    %v7992 = vpop.f32.mrb[0].mxu0
    %v7993 = vadd.f32 %v7950, %v7992
    %v7994 = vpop.f32.mrb[0].mxu0
    %v7995 = vadd.f32 %v7952, %v7994
    %7996 = vdwg.mxu0
    %7997 = vmatprep.subr.bf16.mxu0 %v6713
    %7998 = vmatpush1.bf16.msra.mxu0 %v6712
    %7999 = vmatprep.subr.bf16.mxu0 %v6715
    %8000 = vmatpush1.bf16.msra.mxu0 %v6714
    %8001 = vmatprep.subr.bf16.mxu0 %v6717
    %8002 = vmatpush1.bf16.msra.mxu0 %v6716
    %8003 = vmatprep.subr.bf16.mxu0 %v6719
    %8004 = vmatpush1.bf16.msra.mxu0 %v6718
    %8005 = vmatprep.subr.bf16.mxu0 %v6721
    %8006 = vmatpush1.bf16.msra.mxu0 %v6720
    %8007 = vmatprep.subr.bf16.mxu0 %v6723
    %8008 = vmatpush1.bf16.msra.mxu0 %v6722
    %8009 = vmatprep.subr.bf16.mxu0 %v6725
    %8010 = vmatpush1.bf16.msra.mxu0 %v6724
    %8011 = vmatprep.subr.bf16.mxu0 %v6727
    %8012 = vmatpush1.bf16.msra.mxu0 %v6726
    %8013 = vmatprep.subr.bf16.mxu0 %v6729
    %8014 = vmatpush1.bf16.msra.mxu0 %v6728
    %8015 = vmatprep.subr.bf16.mxu0 %v6731
    %8016 = vmatpush1.bf16.msra.mxu0 %v6730
    %8017 = vmatprep.subr.bf16.mxu0 %v6733
    %8018 = vmatpush1.bf16.msra.mxu0 %v6732
    %8019 = vmatprep.subr.bf16.mxu0 %v6735
    %8020 = vmatpush1.bf16.msra.mxu0 %v6734
    %8021 = vmatprep.subr.bf16.mxu0 %v6737
    %8022 = vmatpush1.bf16.msra.mxu0 %v6736
    %8023 = vmatprep.subr.bf16.mxu0 %v6739
    %8024 = vmatpush1.bf16.msra.mxu0 %v6738
    %8025 = vmatprep.subr.bf16.mxu0 %v6741
    %8026 = vmatpush1.bf16.msra.mxu0 %v6740
    %8027 = vmatprep.subr.bf16.mxu0 %v6743
    %8028 = vmatpush1.bf16.msra.mxu0 %v6742
    %8029 = vmatprep.mubr.bf16.mxu0 %v3976
    %8030 = vmatmul.mubr.bf16.gmra.mrb[0].mxu0 %v3975
    %v8031 = vpop.f32.mrb[0].mxu0
    %v8032 = vadd.f32 %v7989, %v8031
    %v8033 = vpop.f32.mrb[0].mxu0
    %v8034 = vadd.f32 %v7991, %v8033
    %v8035 = vpop.f32.mrb[0].mxu0
    %v8036 = vadd.f32 %v7993, %v8035
    %v8037 = vpop.f32.mrb[0].mxu0
    %v8038 = vadd.f32 %v7995, %v8037
    %8039 = vdwg.mxu0
    %8040 = vmatprep.subr.bf16.mxu0 %v6745
    %8041 = vmatpush1.bf16.msra.mxu0 %v6744
    %8042 = vmatprep.subr.bf16.mxu0 %v6747
    %8043 = vmatpush1.bf16.msra.mxu0 %v6746
    %8044 = vmatprep.subr.bf16.mxu0 %v6749
    %8045 = vmatpush1.bf16.msra.mxu0 %v6748
    %8046 = vmatprep.subr.bf16.mxu0 %v6751
    %8047 = vmatpush1.bf16.msra.mxu0 %v6750
    %8048 = vmatprep.subr.bf16.mxu0 %v6753
    %8049 = vmatpush1.bf16.msra.mxu0 %v6752
    %8050 = vmatprep.subr.bf16.mxu0 %v6755
    %8051 = vmatpush1.bf16.msra.mxu0 %v6754
    %8052 = vmatprep.subr.bf16.mxu0 %v6757
    %8053 = vmatpush1.bf16.msra.mxu0 %v6756
    %8054 = vmatprep.subr.bf16.mxu0 %v6759
    %8055 = vmatpush1.bf16.msra.mxu0 %v6758
    %8056 = vmatprep.subr.bf16.mxu0 %v6761
    %8057 = vmatpush1.bf16.msra.mxu0 %v6760
    %8058 = vmatprep.subr.bf16.mxu0 %v6763
    %8059 = vmatpush1.bf16.msra.mxu0 %v6762
    %8060 = vmatprep.subr.bf16.mxu0 %v6765
    %8061 = vmatpush1.bf16.msra.mxu0 %v6764
    %8062 = vmatprep.subr.bf16.mxu0 %v6767
    %8063 = vmatpush1.bf16.msra.mxu0 %v6766
    %8064 = vmatprep.subr.bf16.mxu0 %v6769
    %8065 = vmatpush1.bf16.msra.mxu0 %v6768
    %8066 = vmatprep.subr.bf16.mxu0 %v6771
    %8067 = vmatpush1.bf16.msra.mxu0 %v6770
    %8068 = vmatprep.subr.bf16.mxu0 %v6773
    %8069 = vmatpush1.bf16.msra.mxu0 %v6772
    %8070 = vmatprep.subr.bf16.mxu0 %v6775
    %8071 = vmatpush1.bf16.msra.mxu0 %v6774
    %8072 = vmatprep.mubr.bf16.mxu0 %v3978
    %8073 = vmatmul.mubr.bf16.gmra.mrb[0].mxu0 %v3977
    %v8074 = vpop.f32.mrb[0].mxu0
    %v8075 = vadd.f32 %v8032, %v8074
    %v8076 = vpop.f32.mrb[0].mxu0
    %v8077 = vadd.f32 %v8034, %v8076
    %v8078 = vpop.f32.mrb[0].mxu0
    %v8079 = vadd.f32 %v8036, %v8078
    %v8080 = vpop.f32.mrb[0].mxu0
    %v8081 = vadd.f32 %v8038, %v8080
    %8082 = vdwg.mxu0
    %8083 = vmatprep.subr.bf16.mxu0 %v6777
    %8084 = vmatpush1.bf16.msra.mxu0 %v6776
    %8085 = vmatprep.subr.bf16.mxu0 %v6779
    %8086 = vmatpush1.bf16.msra.mxu0 %v6778
    %8087 = vmatprep.subr.bf16.mxu0 %v6781
    %8088 = vmatpush1.bf16.msra.mxu0 %v6780
    %8089 = vmatprep.subr.bf16.mxu0 %v6783
    %8090 = vmatpush1.bf16.msra.mxu0 %v6782
    %8091 = vmatprep.subr.bf16.mxu0 %v6785
    %8092 = vmatpush1.bf16.msra.mxu0 %v6784
    %8093 = vmatprep.subr.bf16.mxu0 %v6787
    %8094 = vmatpush1.bf16.msra.mxu0 %v6786
    %8095 = vmatprep.subr.bf16.mxu0 %v6789
    %8096 = vmatpush1.bf16.msra.mxu0 %v6788
    %8097 = vmatprep.subr.bf16.mxu0 %v6791
    %8098 = vmatpush1.bf16.msra.mxu0 %v6790
    %8099 = vmatprep.subr.bf16.mxu0 0
    %8100 = vmatpush1.bf16.msra.mxu0 0
    %8101 = vmatprep.subr.bf16.mxu0 0
    %8102 = vmatpush1.bf16.msra.mxu0 0
    %8103 = vmatprep.subr.bf16.mxu0 0
    %8104 = vmatpush1.bf16.msra.mxu0 0
    %8105 = vmatprep.subr.bf16.mxu0 0
    %8106 = vmatpush1.bf16.msra.mxu0 0
    %8107 = vmatprep.subr.bf16.mxu0 0
    %8108 = vmatpush1.bf16.msra.mxu0 0
    %8109 = vmatprep.subr.bf16.mxu0 0
    %8110 = vmatpush1.bf16.msra.mxu0 0
    %8111 = vmatprep.subr.bf16.mxu0 0
    %8112 = vmatpush1.bf16.msra.mxu0 0
    %8113 = vmatprep.subr.bf16.mxu0 0
    %8114 = vmatpush1.bf16.msra.mxu0 0
    %8115 = vmatprep.mubr.bf16.mxu0 0
    %8116 = vmatmul.mubr.bf16.gmra.mrb[0].mxu0 %v3979
    %v8117 = vpop.f32.mrb[0].mxu0
    %v8118 = vadd.f32 %v8075, %v8117
    %v8119 = vpop.f32.mrb[0].mxu0
    %v8120 = vadd.f32 %v8077, %v8119
    %v8121 = vpop.f32.mrb[0].mxu0
    %v8122 = vadd.f32 %v8079, %v8121
    %v8123 = vpop.f32.mrb[0].mxu0
    %v8124 = vadd.f32 %v8081, %v8123
    %8125 = vdwg.mxu0
    %vm8126 = vcmp.ge.f32.partialorder %v8118, 0.0
    %vm8127 = vcmp.ge.f32.partialorder %v8120, 0.0
    %vm8128 = vcmp.ge.f32.partialorder %v8122, 0.0
    %vm8129 = vcmp.ge.f32.partialorder %v8124, 0.0
    %v8130 = vmul.f32 %v8118, 0.01
    %v8131 = vmul.f32 %v8120, 0.01
    %v8132 = vmul.f32 %v8122, 0.01
    %v8133 = vmul.f32 %v8124, 0.01
    %v8134 = vsel %vm8126, %v8118, %v8130
    %v8135 = vsel %vm8127, %v8120, %v8131
    %v8136 = vsel %vm8128, %v8122, %v8132
    %v8137 = vsel %vm8129, %v8124, %v8133
    %v8138 = vsel %vm3195, %v8134, -inf
    %v8139 = vrot.slane %v8138, 4
    %v8140 = vmax.f32 %v8138, %v8139
    %v8141 = vrot.slane %v8140, 2
    %v8142 = vmax.f32 %v8140, %v8141
    %v8143 = vrot.slane %v8142, 1
    %v8144 = vmax.f32 %v8142, %v8143
    %vm8145 = vcmask 783360
    %v8146 = vsel %vm8145, %v8135, -inf
    %v8147 = vrot.slane %v8146, 4
    %v8148 = vmax.f32 %v8146, %v8147
    %v8149 = vrot.slane %v8148, 2
    %v8150 = vmax.f32 %v8148, %v8149
    %v8151 = vrot.slane %v8150, 1
    %v8152 = vmax.f32 %v8150, %v8151
    %vm8153 = vcmask 1047558
    %v8154 = vsel %vm8153, %v8134, -inf
    %v8155 = vsel %vm3193, %v8136, -inf
    %v8156 = vmax.f32 %v8154, %v8155
    %v8157 = vrot.slane %v8156, 4
    %v8158 = vmax.f32 %v8156, %v8157
    %v8159 = vrot.slane %v8158, 2
    %v8160 = vmax.f32 %v8158, %v8159
    %v8161 = vrot.slane %v8160, 1
    %v8162 = vmax.f32 %v8160, %v8161
    %vm8163 = vcmask 785414
    %v8164 = vsel %vm8163, %v8135, -inf
    %vm8165 = vcmask 781312
    %v8166 = vsel %vm8165, %v8137, -inf
    %v8167 = vmax.f32 %v8164, %v8166
    %v8168 = vrot.slane %v8167, 4
    %v8169 = vmax.f32 %v8167, %v8168
    %v8170 = vrot.slane %v8169, 2
    %v8171 = vmax.f32 %v8169, %v8170
    %v8172 = vrot.slane %v8171, 1
    %v8173 = vmax.f32 %v8171, %v8172
    %v8174 = vsel %vm3171, %v8144, %v8162
    %v8175 = vsel %vm3171, %v8152, %v8173
    %v8176 = vld [vmem:[%s5] sm:$0xff]
    %v8177 = vld [vmem:[%s5 + $0x8] sm:$0xff]
    %v8178 = vld [vmem:[%s5 + $0x10] sm:$0xff]
    %v8179 = vld [vmem:[%s5 + $0x18] sm:$0xff]
    %v8180 = vld [vmem:[%s5 + $0x20] sm:$0xff]
    %v8181 = vld [vmem:[%s5 + $0x28] sm:$0xff]
    %v8182 = vld [vmem:[%s5 + $0x30] sm:$0xff]
    %v8183 = vld [vmem:[%s5 + $0x38] sm:$0xff]
    %v8184 = vld [vmem:[%s5 + $0x40] sm:$0xff]
    %v8185 = vld [vmem:[%s5 + $0x48] sm:$0xff]
    %v8186 = vld [vmem:[%s5 + $0x50] sm:$0xff]
    %v8187 = vld [vmem:[%s5 + $0x58] sm:$0xff]
    %v8188 = vld [vmem:[%s5 + $0x60] sm:$0xff]
    %v8189 = vld [vmem:[%s5 + $0x68] sm:$0xff]
    %v8190 = vld [vmem:[%s5 + $0x70] sm:$0xff]
    %v8191 = vld [vmem:[%s5 + $0x78] sm:$0xff]
    %v8192 = vld [vmem:[%s5 + $0x80] sm:$0xff]
    %v8193 = vld [vmem:[%s5 + $0x88] sm:$0xff]
    %v8194 = vld [vmem:[%s5 + $0x90] sm:$0xff]
    %v8195 = vld [vmem:[%s5 + $0x98] sm:$0xff]
    %v8196 = vld [vmem:[%s5 + $0xa0] sm:$0xff]
    %v8197 = vld [vmem:[%s5 + $0xa8] sm:$0xff]
    %v8198 = vld [vmem:[%s5 + $0xb0] sm:$0xff]
    %v8199 = vld [vmem:[%s5 + $0xb8] sm:$0xff]
    %v8200 = vld [vmem:[%s5 + $0xc0] sm:$0xff]
    %v8201 = vld [vmem:[%s5 + $0xc8] sm:$0xff]
    %v8202 = vld [vmem:[%s5 + $0xd0] sm:$0xff]
    %v8203 = vld [vmem:[%s5 + $0xd8] sm:$0xff]
    %v8204 = vld [vmem:[%s6] sm:$0x1]
    %v8206 = vlaneseq
    %v8207 = vshrl.u32 %v8206, 7
    %v8208 = vsub.s32 0, %v8207
    %v8209 = vrot.slane %v8204, %v8208
    %v8212 = vsel %vm3705, %v8175, 0
    %8214 = vmatprep.subr.mxu0 0.0
    %8215 = vmatpush1.msra.mxu0 %v8176
    %8216 = vmatprep.subr.mxu0 0.0
    %8217 = vmatpush1.msra.mxu0 %v8177
    %8218 = vmatprep.subr.mxu0 0.0
    %8219 = vmatpush1.msra.mxu0 %v8178
    %8220 = vmatprep.subr.mxu0 0.0
    %8221 = vmatpush1.msra.mxu0 %v8179
    %8222 = vmatprep.subr.mxu0 0.0
    %8223 = vmatpush1.msra.mxu0 %v8180
    %8224 = vmatprep.subr.mxu0 0.0
    %8225 = vmatpush1.msra.mxu0 %v8181
    %8226 = vmatprep.subr.mxu0 0.0
    %8227 = vmatpush1.msra.mxu0 %v8182
    %8228 = vmatprep.subr.mxu0 0.0
    %8229 = vmatpush1.msra.mxu0 %v8183
    %8230 = vmatprep.subr.mxu0 0.0
    %8231 = vmatpush1.msra.mxu0 %v8184
    %8232 = vmatprep.subr.mxu0 0.0
    %8233 = vmatpush1.msra.mxu0 %v8185
    %8234 = vmatprep.subr.mxu0 0.0
    %8235 = vmatpush1.msra.mxu0 %v8186
    %8236 = vmatprep.subr.mxu0 0.0
    %8237 = vmatpush1.msra.mxu0 %v8187
    %8238 = vmatprep.subr.mxu0 0.0
    %8239 = vmatpush1.msra.mxu0 %v8188
    %8240 = vmatprep.subr.mxu0 0.0
    %8241 = vmatpush1.msra.mxu0 %v8189
    %8242 = vmatprep.subr.mxu0 0.0
    %8243 = vmatpush1.msra.mxu0 %v8190
    %8244 = vmatprep.subr.mxu0 0.0
    %8245 = vmatpush1.msra.mxu0 %v8191
    %8246 = vmatprep.subr.mxu0 0.0
    %8247 = vmatpush1.msra.mxu0 %v8192
    %8248 = vmatprep.subr.mxu0 0.0
    %8249 = vmatpush1.msra.mxu0 %v8193
    %8250 = vmatprep.subr.mxu0 0.0
    %8251 = vmatpush1.msra.mxu0 %v8194
    %8252 = vmatprep.subr.mxu0 0.0
    %8253 = vmatpush1.msra.mxu0 %v8195
    %8254 = vmatprep.subr.mxu0 0.0
    %8255 = vmatpush1.msra.mxu0 %v8196
    %8256 = vmatprep.subr.mxu0 0.0
    %8257 = vmatpush1.msra.mxu0 %v8197
    %8258 = vmatprep.subr.mxu0 0.0
    %8259 = vmatpush1.msra.mxu0 %v8198
    %8260 = vmatprep.subr.mxu0 0.0
    %8261 = vmatpush1.msra.mxu0 %v8199
    %8262 = vmatprep.subr.mxu0 0.0
    %8263 = vmatpush1.msra.mxu0 %v8200
    %8264 = vmatprep.subr.mxu0 0.0
    %8265 = vmatpush1.msra.mxu0 %v8201
    %8266 = vmatprep.subr.mxu0 0.0
    %8267 = vmatpush1.msra.mxu0 %v8202
    %8268 = vmatprep.subr.mxu0 0.0
    %8269 = vmatpush1.msra.mxu0 %v8203
    %8270 = vmatprep.subr.mxu0 0.0
    %8271 = vmatpush1.msra.mxu0 0.0
    %8272 = vmatprep.subr.mxu0 0.0
    %8273 = vmatpush1.msra.mxu0 0.0
    %8274 = vmatprep.subr.mxu0 0.0
    %8275 = vmatpush1.msra.mxu0 0.0
    %8276 = vmatprep.subr.mxu0 0.0
    %8277 = vmatpush1.msra.mxu0 0.0
    %8278 = vmatprep.mubr.f32.mxu0 %v8212
    %8279 = vmatmul.mubr.f32.gmra.mrb[0].mxu0 %v8174
    %v8280 = vpop.f32.mrb[0].mxu0
    %v8281 = vadd.f32 %v8209, %v8280
    %v8282 = vpop.f32.mrb[0].mxu0
    %8283 = vdwg.mxu0
    %vm8284 = vcmask 33792
    %8285 = vst.msk [vmem:[#allocation2] sm:$0x3] %vm8284, %v8281
    // Predicated region
    $region30: #{smallnet_forward.1} parent=1 // pred_check
      _
    $region31: #{smallnet_forward.1} parent=1 // pred_check_branch
      %8287 = sbr.rel (0) target = $region33
    $region32: #{smallnet_forward.1} parent=1 // pred_region
      %s8289 = ssub.s32 32, 32
      %8290 = vsyncadd [#allocation3], %s8289
      %s8292 = sshll.u32 [#allocation2], 4
      %s8293 = int_to_ptr.vmem [resolvable:$true] %s8292
      %8295 = dma.vmem_to_hbm [thread:$0]  %s8293, 32, %s7, [#allocation3]
    $region33: #{smallnet_forward.1} parent=1 // pred_fallthru
      _
    // Predicated region
    $region34: #{smallnet_forward.1} parent=1 // pred_check
      _
    $region35: #{smallnet_forward.1} parent=1 // pred_check_branch
      %8297 = sbr.rel (0) target = $region37
    $region36: #{smallnet_forward.1} parent=1 // pred_region
      %8298 = dma.done [#allocation3], 32
    $region37: #{smallnet_forward.1} parent=1 // pred_fallthru
      _
    %8299 = vsyncpa [#allocation3], 1

</llo_original>
